<compile_context>
chip_gen: v6e
topology: v6e:2x2x1
jax: 0.10.0
libtpu: 0.0.40
codegen_flags: <defaults>
</compile_context>

<pallas_src>
import jax
import jax.numpy as jnp
import numpy as np
from jax.experimental import pallas as pl
from jax.experimental.pallas import tpu as pltpu


# ----------------------------- architecture constants ----------------------
IN_H = IN_W = 8                       # input must be 8x8 so that 32*3*3 == 288
C1_IN, C1_OUT, K1, PAD1 = 1, 25, 2, 2
C2_IN, C2_OUT, K2, PAD2 = 25, 32, 3, 2
C1_PAD = 32                           # conv1 cout zero-padded 25 -> 32
H1 = IN_H + 2 * PAD1 - K1 + 1         # 11 (conv1 output)
P1S = H1 // 2                         # 5  (after max_pool2d(2), floor)
H2 = P1S + 2 * PAD2 - K2 + 1          # 7  (conv2 output)
P2S = H2 // 2                         # 3  (after pool)
FC1_IN, FC1_OUT, FC2_OUT = 288, 50, 10
assert P2S * P2S * C2_OUT == FC1_IN

# lane-padded kernel-side widths (all multiples of 128)
INP = 128                             # input pixels 64 -> 128
F1 = P1S * P1S * C1_PAD               # 800  (conv1+pool features, c-minor)
F1P = 896                             # 800 -> 7*128
F2 = P2S * P2S * C2_OUT               # 288
F2P = 384                             # 288 -> 3*128
FC1P = 128                            # fc1 out 50 -> 128
OUTP = 128                            # logits 10 -> 128
NEG = -1e30                           # bias of padded logit lanes


# ------------------------------- fused kernel ------------------------------
def _fused_net_kernel(x_ref, m1_ref, b1_ref, m2_ref, b2_ref,
                      wf1_ref, bf1_ref, wf2_ref, bf2_ref, o_ref):
    cdt = m1_ref.dtype                                        # bf16 or f32
    x = x_ref[...].astype(cdt)                                # (TB, 128)

    # conv1(k=2,pad=2) + max_pool2d(2) + relu:
    # ONE wide MXU matmul over the 4 packed pool-offset blocks, then an
    # elementwise max of four 896-wide lane-aligned slabs (bias after max).
    c1 = jnp.dot(x, m1_ref[...], preferred_element_type=jnp.float32)   # (TB, 4*896)
    c1 = jnp.maximum(jnp.maximum(c1[:, 0 * F1P:1 * F1P], c1[:, 1 * F1P:2 * F1P]),
                     jnp.maximum(c1[:, 2 * F1P:3 * F1P], c1[:, 3 * F1P:4 * F1P]))
    a1 = jnp.maximum(c1 + b1_ref[...], 0.0).astype(cdt)       # (TB, 896)

    # conv2(k=3,pad=2) [+Dropout2d = eval identity] + max_pool2d(2) + relu
    c2 = jnp.dot(a1, m2_ref[...], preferred_element_type=jnp.float32)  # (TB, 4*384)
    c2 = jnp.maximum(jnp.maximum(c2[:, 0 * F2P:1 * F2P], c2[:, 1 * F2P:2 * F2P]),
                     jnp.maximum(c2[:, 2 * F2P:3 * F2P], c2[:, 3 * F2P:4 * F2P]))
    a2 = jnp.maximum(c2 + b2_ref[...], 0.0).astype(cdt)       # (TB, 384)

    # fc1 + relu + [dropout = eval identity] + fc2 + log_softmax(dim=1)
    h = jnp.maximum(
        jnp.dot(a2, wf1_ref[...], preferred_element_type=jnp.float32)
        + bf1_ref[...], 0.0).astype(cdt)                      # (TB, 128)
    logits = (jnp.dot(h, wf2_ref[...], preferred_element_type=jnp.float32)
              + bf2_ref[...])                                 # (TB, 128), pads at -1e30
    z = logits - jnp.max(logits, axis=-1, keepdims=True)
    o_ref[...] = z - jnp.log(jnp.sum(jnp.exp(z), axis=-1, keepdims=True))


# ------------------------------- wrapper ------------------------------------
def _round_up(n, m):
    return (n + m - 1) // m * m


def net_forward(x_nchw, params, *, tile_b=512):
    """x_nchw: (B, 1, 8, 8) -> (B, 10) log-probs, single fused Pallas kernel."""
    B = x_nchw.shape[0]
    x2d = x_nchw.astype(jnp.float32).reshape(B, IN_H * IN_W)
    # TB = 512 default (review: amortize ~0.35us/step overhead); on huge
    # batches the grid has many steps so v7x can split them across its 2 TCs.
    TB = tile_b if B >= tile_b else _round_up(max(B, 1), 8)
    Bp = _round_up(B, TB)
    x2d = jnp.pad(x2d, ((0, Bp - B), (0, INP - IN_H * IN_W)))  # lane-dense input

    m1, b1b = params["m1"], params["b1big"]
    m2, b2b = params["m2"], params["b2big"]
    wf1, bf1 = params["wf1p"], params["bf1"]
    wf2, bf2 = params["wf2p"], params["bf2"]

    out = pl.pallas_call(
        _fused_net_kernel,
        out_shape=jax.ShapeDtypeStruct((Bp, OUTP), jnp.float32),
        grid=(Bp // TB,),
        in_specs=[
            pl.BlockSpec((TB, INP), lambda i: (i, 0)),        # batch tile
            pl.BlockSpec(m1.shape, lambda i: (0, 0)),         # resident weights
            pl.BlockSpec(b1b.shape, lambda i: (0, 0)),
            pl.BlockSpec(m2.shape, lambda i: (0, 0)),
            pl.BlockSpec(b2b.shape, lambda i: (0, 0)),
            pl.BlockSpec(wf1.shape, lambda i: (0, 0)),
            pl.BlockSpec(bf1.shape, lambda i: (0, 0)),
            pl.BlockSpec(wf2.shape, lambda i: (0, 0)),
            pl.BlockSpec(bf2.shape, lambda i: (0, 0)),
        ],
        out_specs=pl.BlockSpec((TB, OUTP), lambda i: (i, 0)),
        compiler_params=pltpu.CompilerParams(
            dimension_semantics=("parallel",),      # v7x: shard batch on 2 TCs
            vmem_limit_bytes=48 * 1024 * 1024),     # fits v7x's 64 MiB VMEM
    )(x2d, m1, b1b, m2, b2b, wf1, bf1, wf2, bf2)
    return out[:B, :FC2_OUT]


# --------------------- parameter construction (one-time) --------------------
def init_torch_params(key):
    """Random parameters in PyTorch's native layouts (as nn.Module holds them)."""
    ks = jax.random.split(key, 8)
    s = 0.1
    return dict(
        w1=s * jax.random.normal(ks[0], (C1_OUT, C1_IN, K1, K1), jnp.float32),
        b1=s * jax.random.normal(ks[1], (C1_OUT,), jnp.float32),
        w2=s * jax.random.normal(ks[2], (C2_OUT, C2_IN, K2, K2), jnp.float32),
        b2=s * jax.random.normal(ks[3], (C2_OUT,), jnp.float32),
        wf1=s * jax.random.normal(ks[4], (FC1_OUT, FC1_IN), jnp.float32),
        bf1=s * jax.random.normal(ks[5], (FC1_OUT,), jnp.float32),
        wf2=s * jax.random.normal(ks[6], (FC2_OUT, FC1_OUT), jnp.float32),
        bf2=s * jax.random.normal(ks[7], (FC2_OUT,), jnp.float32),
    )


def build_kernel_params(tp, compute_dtype=jnp.bfloat16):
    """Fold conv+pool pairs into packed per-pool-offset Toeplitz matrices
    (lane-padded), and fold the NCHW flatten into fc1's weight rows.
    Host-side, one-time cost.  Biases stay f32 (VPU side)."""
    w1 = np.asarray(tp["w1"], np.float32); b1 = np.asarray(tp["b1"], np.float32)
    w2 = np.asarray(tp["w2"], np.float32); b2 = np.asarray(tp["b2"], np.float32)
    wf1 = np.asarray(tp["wf1"], np.float32); bf1 = np.asarray(tp["bf1"], np.float32)
    wf2 = np.asarray(tp["wf2"], np.float32); bf2 = np.asarray(tp["bf2"], np.float32)

    # conv1 (8x8 -> 11x11) fused with 2x2/2 pool (-> 5x5): four Toeplitz
    # blocks packed along N -> (128, 4*896).  Per-block feature order is
    # (i, j, c) with c minor, c padded 25->32, block padded 800->896.
    m1 = np.zeros((INP, 4 * F1P), np.float32)
    for di in range(2):
        for dj in range(2):
            base = (di * 2 + dj) * F1P
            for i in range(P1S):
                for j in range(P1S):
                    y, x = 2 * i + di, 2 * j + dj            # conv1 output pixel
                    q0 = base + (i * P1S + j) * C1_PAD
                    for ki in range(K1):
                        for kj in range(K1):
                            iy, ix = y + ki - PAD1, x + kj - PAD1
                            if 0 <= iy < IN_H and 0 <= ix < IN_W:
                                m1[iy * IN_W + ix, q0:q0 + C1_OUT] = w1[:, 0, ki, kj]
    tmp = np.zeros((P1S * P1S, C1_PAD), np.float32)
    tmp[:, :C1_OUT] = b1
    b1big = np.zeros((1, F1P), np.float32)
    b1big[0, :F1] = tmp.reshape(-1)

    # conv2 (5x5 -> 7x7) fused with 2x2/2 pool (-> 3x3): packed (896, 4*384).
    m2 = np.zeros((F1P, 4 * F2P), np.float32)
    for di in range(2):
        for dj in range(2):
            base = (di * 2 + dj) * F2P
            for i in range(P2S):
                for j in range(P2S):
                    y, x = 2 * i + di, 2 * j + dj            # conv2 output pixel
                    q0 = base + (i * P2S + j) * C2_OUT
                    for ki in range(K2):
                        for kj in range(K2):
                            iy, ix = y + ki - PAD2, x + kj - PAD2
                            if 0 <= iy < P1S and 0 <= ix < P1S:
                                for ci in range(C2_IN):
                                    p = (iy * P1S + ix) * C1_PAD + ci
                                    m2[p, q0:q0 + C2_OUT] = w2[:, ci, ki, kj]
    b2big = np.zeros((1, F2P), np.float32)
    b2big[0, :F2] = np.tile(b2, (P2S * P2S,))

    # Fold PyTorch's channel-major x.view(-1, 288) into fc1's weight rows:
    # our a2 order is (i, j, c); PyTorch's is (c, i, j).  K padded 288->384
    # (zero rows), N padded 50->128 (zero cols -> h pads are relu(0)=0).
    wf1p = np.zeros((F2P, FC1P), np.float32)
    for i in range(P2S):
        for j in range(P2S):
            for c in range(C2_OUT):
                wf1p[(i * P2S + j) * C2_OUT + c, :FC1_OUT] = \
                    wf1[:, c * (P2S * P2S) + i * P2S + j]
    bf1big = np.zeros((1, FC1P), np.float32)
    bf1big[0, :FC1_OUT] = bf1

    # fc2: K padded 50->128 (zero rows), N padded 10->128; padded logit lanes
    # get a -1e30 bias so max/logsumexp over the real 10 columns is unchanged.
    wf2p = np.zeros((FC1P, OUTP), np.float32)
    wf2p[:FC1_OUT, :FC2_OUT] = wf2.T
    bf2big = np.full((1, OUTP), NEG, np.float32)
    bf2big[0, :FC2_OUT] = bf2

    cd = compute_dtype
    return dict(
        m1=jnp.asarray(m1, cd), b1big=jnp.asarray(b1big, jnp.float32),
        m2=jnp.asarray(m2, cd), b2big=jnp.asarray(b2big, jnp.float32),
        wf1p=jnp.asarray(wf1p, cd), bf1=jnp.asarray(bf1big, jnp.float32),
        wf2p=jnp.asarray(wf2p, cd), bf2=jnp.asarray(bf2big, jnp.float32),
    )


# -------------------- pure-JAX reference (validation only) ------------------
def reference_forward(x_nchw, tp):
    def conv(x, w, b, pad):
        y = jax.lax.conv_general_dilated(
            x, w, window_strides=(1, 1), padding=((pad, pad), (pad, pad)),
            dimension_numbers=("NCHW", "OIHW", "NCHW"))
        return y + b[None, :, None, None]

    def pool2(x):                                   # max_pool2d(2), floor mode
        b, c, h, w = x.shape
        x = x[:, :, :h // 2 * 2, :w // 2 * 2]
        return x.reshape(b, c, h // 2, 2, w // 2, 2).max(axis=(3, 5))

    x = x_nchw.astype(jnp.float32)
    a1 = jax.nn.relu(pool2(conv(x, tp["w1"], tp["b1"], PAD1)))
    a2 = jax.nn.relu(pool2(conv(a1, tp["w2"], tp["b2"], PAD2)))
    flat = a2.reshape(a2.shape[0], -1)              # == x.view(-1, 288) (NCHW)
    h = jax.nn.relu(flat @ tp["wf1"].T + tp["bf1"])
    logits = h @ tp["wf2"].T + tp["bf2"]
    return jax.nn.log_softmax(logits, axis=1)


if __name__ == "__main__":
    key = jax.random.PRNGKey(0)
    k_x, k_p = jax.random.split(key)
    # 8x8 single-channel input: conv1->11, pool->5, conv2->7, pool->3; 32*3*3=288
    x = jax.random.normal(k_x, (2, 1, IN_H, IN_W), dtype=jnp.float32)

    torch_params = init_torch_params(k_p)
    # bf16 MXU operands with f32 accumulation (default); use jnp.float32 for
    # stricter parity with PyTorch f32.
    params = build_kernel_params(torch_params, compute_dtype=jnp.bfloat16)

    out = jax.block_until_ready(jax.jit(net_forward)(x, params))
    assert out.shape == (2, FC2_OUT), out.shape
    # log_softmax rows must exponentiate-sum to 1
    assert bool(jnp.allclose(jnp.exp(out).sum(axis=-1), 1.0, atol=1e-4))
    # fused Pallas kernel must match the pure-JAX replica of the PyTorch net
    ref = reference_forward(x, torch_params)
    assert bool(jnp.allclose(out, ref, atol=3e-2, rtol=3e-2)), \
        float(jnp.max(jnp.abs(out - ref)))
    print("KERNEL_OK")
</pallas_src>

<mosaic_0001>
module attributes {stable_mosaic.version = 11 : i64} {
  func.func @_fused_net_kernel(%arg0: i32, %arg1: memref<8x128xf32, #tpu.memory_space<vmem>>, %arg2: memref<128x3584xbf16, #tpu.memory_space<vmem>>, %arg3: memref<1x896xf32, #tpu.memory_space<vmem>>, %arg4: memref<896x1536xbf16, #tpu.memory_space<vmem>>, %arg5: memref<1x384xf32, #tpu.memory_space<vmem>>, %arg6: memref<384x128xbf16, #tpu.memory_space<vmem>>, %arg7: memref<1x128xf32, #tpu.memory_space<vmem>>, %arg8: memref<128x128xbf16, #tpu.memory_space<vmem>>, %arg9: memref<1x128xf32, #tpu.memory_space<vmem>>, %arg10: memref<8x128xf32, #tpu.memory_space<vmem>>) attributes {dimension_semantics = [#tpu.dimension_semantics<parallel>], iteration_bounds = array<i64: 1>, scalar_prefetch = 0 : i64, scratch_operands = 0 : i64, tpu.core_type = #tpu.core_type<tc>, window_params = [{transform_indices = @transform_0, window_bounds = array<i64: 8, 128>}, {pipeline_mode = #tpu.pipeline_mode<synchronous>, transform_indices = @transform_1, window_bounds = array<i64: 128, 3584>}, {pipeline_mode = #tpu.pipeline_mode<synchronous>, transform_indices = @transform_2, window_bounds = array<i64: 1, 896>}, {pipeline_mode = #tpu.pipeline_mode<synchronous>, transform_indices = @transform_3, window_bounds = array<i64: 896, 1536>}, {pipeline_mode = #tpu.pipeline_mode<synchronous>, transform_indices = @transform_4, window_bounds = array<i64: 1, 384>}, {pipeline_mode = #tpu.pipeline_mode<synchronous>, transform_indices = @transform_5, window_bounds = array<i64: 384, 128>}, {pipeline_mode = #tpu.pipeline_mode<synchronous>, transform_indices = @transform_6, window_bounds = array<i64: 1, 128>}, {pipeline_mode = #tpu.pipeline_mode<synchronous>, transform_indices = @transform_7, window_bounds = array<i64: 128, 128>}, {pipeline_mode = #tpu.pipeline_mode<synchronous>, transform_indices = @transform_8, window_bounds = array<i64: 1, 128>}, {transform_indices = @transform_9, window_bounds = array<i64: 8, 128>}]} {
    %c0 = arith.constant 0 : index
    %c0_0 = arith.constant 0 : index
    %0 = vector.load %arg1[%c0, %c0_0] : memref<8x128xf32, #tpu.memory_space<vmem>>, vector<8x128xf32>
    %1 = arith.truncf %0 : vector<8x128xf32> to vector<8x128xbf16>
    %c0_1 = arith.constant 0 : index
    %c0_2 = arith.constant 0 : index
    %2 = vector.load %arg2[%c0_1, %c0_2] : memref<128x3584xbf16, #tpu.memory_space<vmem>>, vector<128x3584xbf16>
    %cst = arith.constant dense<0.000000e+00> : vector<8x3584xf32>
    %3 = tpu.matmul %1, %2, %cst {dimension_numbers = #tpu.dot_dimension_numbers<[1], [0], [0], [1], [0, 0, 1, 1], [], []>} : vector<8x128xbf16>, vector<128x3584xbf16>, vector<8x3584xf32> -> vector<8x3584xf32>
    %4 = vector.extract_strided_slice %3 {offsets = [0, 0], sizes = [8, 896], strides = [1, 1]} : vector<8x3584xf32> to vector<8x896xf32>
    %5 = vector.extract_strided_slice %3 {offsets = [0, 896], sizes = [8, 896], strides = [1, 1]} : vector<8x3584xf32> to vector<8x896xf32>
    %6 = arith.maximumf %4, %5 : vector<8x896xf32>
    %7 = vector.extract_strided_slice %3 {offsets = [0, 1792], sizes = [8, 896], strides = [1, 1]} : vector<8x3584xf32> to vector<8x896xf32>
    %8 = vector.extract_strided_slice %3 {offsets = [0, 2688], sizes = [8, 896], strides = [1, 1]} : vector<8x3584xf32> to vector<8x896xf32>
    %9 = arith.maximumf %7, %8 : vector<8x896xf32>
    %10 = arith.maximumf %6, %9 : vector<8x896xf32>
    %c0_3 = arith.constant 0 : index
    %c0_4 = arith.constant 0 : index
    %11 = vector.load %arg3[%c0_3, %c0_4] : memref<1x896xf32, #tpu.memory_space<vmem>>, vector<1x896xf32>
    %12 = vector.broadcast %11 : vector<1x896xf32> to vector<8x896xf32>
    %13 = arith.addf %10, %12 : vector<8x896xf32>
    %cst_5 = arith.constant 0.000000e+00 : f32
    %14 = vector.broadcast %cst_5 : f32 to vector<8x896xf32>
    %15 = arith.maximumf %13, %14 : vector<8x896xf32>
    %16 = arith.truncf %15 : vector<8x896xf32> to vector<8x896xbf16>
    %c0_6 = arith.constant 0 : index
    %c0_7 = arith.constant 0 : index
    %17 = vector.load %arg4[%c0_6, %c0_7] : memref<896x1536xbf16, #tpu.memory_space<vmem>>, vector<896x1536xbf16>
    %cst_8 = arith.constant dense<0.000000e+00> : vector<8x1536xf32>
    %18 = tpu.matmul %16, %17, %cst_8 {dimension_numbers = #tpu.dot_dimension_numbers<[1], [0], [0], [1], [0, 0, 1, 1], [], []>} : vector<8x896xbf16>, vector<896x1536xbf16>, vector<8x1536xf32> -> vector<8x1536xf32>
    %19 = vector.extract_strided_slice %18 {offsets = [0, 0], sizes = [8, 384], strides = [1, 1]} : vector<8x1536xf32> to vector<8x384xf32>
    %20 = vector.extract_strided_slice %18 {offsets = [0, 384], sizes = [8, 384], strides = [1, 1]} : vector<8x1536xf32> to vector<8x384xf32>
    %21 = arith.maximumf %19, %20 : vector<8x384xf32>
    %22 = vector.extract_strided_slice %18 {offsets = [0, 768], sizes = [8, 384], strides = [1, 1]} : vector<8x1536xf32> to vector<8x384xf32>
    %23 = vector.extract_strided_slice %18 {offsets = [0, 1152], sizes = [8, 384], strides = [1, 1]} : vector<8x1536xf32> to vector<8x384xf32>
    %24 = arith.maximumf %22, %23 : vector<8x384xf32>
    %25 = arith.maximumf %21, %24 : vector<8x384xf32>
    %c0_9 = arith.constant 0 : index
    %c0_10 = arith.constant 0 : index
    %26 = vector.load %arg5[%c0_9, %c0_10] : memref<1x384xf32, #tpu.memory_space<vmem>>, vector<1x384xf32>
    %27 = vector.broadcast %26 : vector<1x384xf32> to vector<8x384xf32>
    %28 = arith.addf %25, %27 : vector<8x384xf32>
    %cst_11 = arith.constant 0.000000e+00 : f32
    %29 = vector.broadcast %cst_11 : f32 to vector<8x384xf32>
    %30 = arith.maximumf %28, %29 : vector<8x384xf32>
    %31 = arith.truncf %30 : vector<8x384xf32> to vector<8x384xbf16>
    %c0_12 = arith.constant 0 : index
    %c0_13 = arith.constant 0 : index
    %32 = vector.load %arg6[%c0_12, %c0_13] : memref<384x128xbf16, #tpu.memory_space<vmem>>, vector<384x128xbf16>
    %cst_14 = arith.constant dense<0.000000e+00> : vector<8x128xf32>
    %33 = tpu.matmul %31, %32, %cst_14 {dimension_numbers = #tpu.dot_dimension_numbers<[1], [0], [0], [1], [0, 0, 1, 1], [], []>} : vector<8x384xbf16>, vector<384x128xbf16>, vector<8x128xf32> -> vector<8x128xf32>
    %c0_15 = arith.constant 0 : index
    %c0_16 = arith.constant 0 : index
    %34 = vector.load %arg7[%c0_15, %c0_16] : memref<1x128xf32, #tpu.memory_space<vmem>>, vector<1x128xf32>
    %35 = vector.broadcast %34 : vector<1x128xf32> to vector<8x128xf32>
    %36 = arith.addf %33, %35 : vector<8x128xf32>
    %cst_17 = arith.constant 0.000000e+00 : f32
    %37 = vector.broadcast %cst_17 : f32 to vector<8x128xf32>
    %38 = arith.maximumf %36, %37 : vector<8x128xf32>
    %39 = arith.truncf %38 : vector<8x128xf32> to vector<8x128xbf16>
    %c0_18 = arith.constant 0 : index
    %c0_19 = arith.constant 0 : index
    %40 = vector.load %arg8[%c0_18, %c0_19] : memref<128x128xbf16, #tpu.memory_space<vmem>>, vector<128x128xbf16>
    %cst_20 = arith.constant dense<0.000000e+00> : vector<8x128xf32>
    %41 = tpu.matmul %39, %40, %cst_20 {dimension_numbers = #tpu.dot_dimension_numbers<[1], [0], [0], [1], [0, 0, 1, 1], [], []>} : vector<8x128xbf16>, vector<128x128xbf16>, vector<8x128xf32> -> vector<8x128xf32>
    %c0_21 = arith.constant 0 : index
    %c0_22 = arith.constant 0 : index
    %42 = vector.load %arg9[%c0_21, %c0_22] : memref<1x128xf32, #tpu.memory_space<vmem>>, vector<1x128xf32>
    %43 = vector.broadcast %42 : vector<1x128xf32> to vector<8x128xf32>
    %44 = arith.addf %41, %43 : vector<8x128xf32>
    %cst_23 = arith.constant dense<0xFF800000> : vector<8xf32>
    %45 = vector.multi_reduction <maximumf>, %44, %cst_23 [1] : vector<8x128xf32> to vector<8xf32>
    %46 = vector.shape_cast %45 : vector<8xf32> to vector<8x1xf32>
    %47 = vector.broadcast %46 : vector<8x1xf32> to vector<8x128xf32>
    %48 = arith.subf %44, %47 : vector<8x128xf32>
    %49 = math.exp %48 : vector<8x128xf32>
    %cst_24 = arith.constant dense<0.000000e+00> : vector<8xf32>
    %50 = vector.multi_reduction <add>, %49, %cst_24 [1] : vector<8x128xf32> to vector<8xf32>
    %51 = vector.shape_cast %50 : vector<8xf32> to vector<8x1xf32>
    %52 = math.log %51 : vector<8x1xf32>
    %53 = vector.broadcast %52 : vector<8x1xf32> to vector<8x128xf32>
    %54 = arith.subf %48, %53 : vector<8x128xf32>
    %c0_25 = arith.constant 0 : index
    %c0_26 = arith.constant 0 : index
    %55 = vector.load %arg10[%c0_25, %c0_26] : memref<8x128xf32, #tpu.memory_space<vmem>>, vector<8x128xf32>
    tpu.vector_store %arg10[%c0_25, %c0_26], %54 {strides = array<i32>} : memref<8x128xf32, #tpu.memory_space<vmem>>, vector<8x128xf32>,
    return
  }
  func.func @transform_0(%arg0: i32) -> (i32, i32) {
    %c0_i32 = arith.constant 0 : i32
    %c0_i32_0 = arith.constant 0 : i32
    return %arg0, %c0_i32 : i32, i32
  }
  func.func @transform_1(%arg0: i32) -> (i32, i32) {
    %c0_i32 = arith.constant 0 : i32
    %c0_i32_0 = arith.constant 0 : i32
    %c0_i32_1 = arith.constant 0 : i32
    return %c0_i32, %c0_i32_0 : i32, i32
  }
  func.func @transform_2(%arg0: i32) -> (i32, i32) {
    %c0_i32 = arith.constant 0 : i32
    %c0_i32_0 = arith.constant 0 : i32
    %c0_i32_1 = arith.constant 0 : i32
    return %c0_i32, %c0_i32_0 : i32, i32
  }
  func.func @transform_3(%arg0: i32) -> (i32, i32) {
    %c0_i32 = arith.constant 0 : i32
    %c0_i32_0 = arith.constant 0 : i32
    %c0_i32_1 = arith.constant 0 : i32
    return %c0_i32, %c0_i32_0 : i32, i32
  }
  func.func @transform_4(%arg0: i32) -> (i32, i32) {
    %c0_i32 = arith.constant 0 : i32
    %c0_i32_0 = arith.constant 0 : i32
    %c0_i32_1 = arith.constant 0 : i32
    return %c0_i32, %c0_i32_0 : i32, i32
  }
  func.func @transform_5(%arg0: i32) -> (i32, i32) {
    %c0_i32 = arith.constant 0 : i32
    %c0_i32_0 = arith.constant 0 : i32
    %c0_i32_1 = arith.constant 0 : i32
    return %c0_i32, %c0_i32_0 : i32, i32
  }
  func.func @transform_6(%arg0: i32) -> (i32, i32) {
    %c0_i32 = arith.constant 0 : i32
    %c0_i32_0 = arith.constant 0 : i32
    %c0_i32_1 = arith.constant 0 : i32
    return %c0_i32, %c0_i32_0 : i32, i32
  }
  func.func @transform_7(%arg0: i32) -> (i32, i32) {
    %c0_i32 = arith.constant 0 : i32
    %c0_i32_0 = arith.constant 0 : i32
    %c0_i32_1 = arith.constant 0 : i32
    return %c0_i32, %c0_i32_0 : i32, i32
  }
  func.func @transform_8(%arg0: i32) -> (i32, i32) {
    %c0_i32 = arith.constant 0 : i32
    %c0_i32_0 = arith.constant 0 : i32
    %c0_i32_1 = arith.constant 0 : i32
    return %c0_i32, %c0_i32_0 : i32, i32
  }
  func.func @transform_9(%arg0: i32) -> (i32, i32) {
    %c0_i32 = arith.constant 0 : i32
    %c0_i32_0 = arith.constant 0 : i32
    return %arg0, %c0_i32 : i32, i32
  }
}

</mosaic_0001>

<llo_original>
// kernel: net_forward.1
$region0: #{net_forward.1}
  #allocation0 [shape = 'u32[]', space=smem, size = 0x4, offset = 0x4, fixed_abs, tag = 'smem constant byte address 0x4 - core index']
  #allocation1 [shape = 'u32[144,128]{1,0:T(1,128)}', space=vmem, size = 0x12000, scoped, tag = 'internal scratch']
  %s0 = inlined_call_operand.vmem [shape: f32[8,128], index: 0, kind: input, shape index: {}]
  %s1 = inlined_call_operand.hbm [shape: bf16[128,3584], index: 1, kind: input, shape index: {}]
  %s2 = inlined_call_operand.hbm [shape: f32[1,896], index: 2, kind: input, shape index: {}]
  %s3 = inlined_call_operand.hbm [shape: bf16[896,1536], index: 3, kind: input, shape index: {}]
  %s4 = inlined_call_operand.hbm [shape: f32[1,384], index: 4, kind: input, shape index: {}]
  %s5 = inlined_call_operand.hbm [shape: bf16[384,128], index: 5, kind: input, shape index: {}]
  %s6 = inlined_call_operand.hbm [shape: f32[1,128], index: 6, kind: input, shape index: {}]
  %s7 = inlined_call_operand.hbm [shape: bf16[128,128], index: 7, kind: input, shape index: {}]
  %s8 = inlined_call_operand.hbm [shape: f32[1,128], index: 8, kind: input, shape index: {}]
  %s9 = inlined_call_operand.vmem [shape: f32[8,128], index: 9, kind: output, shape index: {}]
  %s10 = sld [smem:[#allocation0]]
  $region78: #{net_forward.1} parent=0
    _
  %s12 = ssub.s32 1, %s10
  %s13 = scalar_select 0, %s12, %s10
  $region1: #{net_forward.1} parent=0
    #allocation2 [shape = 'u8[917504]{0}', space=vmem, size = 0xe0000, scoped, tag = 'input window, operand 1, single buffered']
    #allocation3 [shape = 's32[1]{0}', space=sflag, size = 0x4, scoped, tag = 'scoped memory for net_forward.1']
    #allocation4 [shape = 'u8[3584]{0}', space=vmem, size = 0x1000, scoped, tag = 'input window, operand 2, single buffered']
    #allocation5 [shape = 's32[1]{0}', space=sflag, size = 0x4, scoped, tag = 'scoped memory for net_forward.1']
    #allocation6 [shape = 'u8[2752512]{0}', space=vmem, size = 0x2a0000, scoped, tag = 'input window, operand 3, single buffered']
    #allocation7 [shape = 'u8[1536]{0}', space=vmem, size = 0x800, scoped, tag = 'input window, operand 4, single buffered']
    #allocation8 [shape = 's32[1]{0}', space=sflag, size = 0x4, scoped, tag = 'scoped memory for net_forward.1']
    #allocation9 [shape = 'u8[98304]{0}', space=vmem, size = 0x18000, scoped, tag = 'input window, operand 5, single buffered']
    #allocation10 [shape = 'u8[512]{0}', space=vmem, size = 0x400, scoped, tag = 'input window, operand 6, single buffered']
    #allocation11 [shape = 's32[1]{0}', space=sflag, size = 0x4, scoped, tag = 'scoped memory for net_forward.1']
    #allocation12 [shape = 'u8[32768]{0}', space=vmem, size = 0x8000, scoped, tag = 'input window, operand 7, single buffered']
    #allocation13 [shape = 'u8[512]{0}', space=vmem, size = 0x400, scoped, tag = 'input window, operand 8, single buffered']
    #allocation14 [shape = 's32[1]{0}', space=sflag, size = 0x4, scoped, tag = 'scoped memory for net_forward.1']
    %14 = vsyncpa [#allocation3], 0
    %15 = vsyncpa [#allocation5], 0
    %16 = vsyncpa [#allocation8], 0
    %17 = vsyncpa [#allocation11], 0
    %18 = vsyncpa [#allocation14], 0
    // Predicated region
    $region2: #{net_forward.1} parent=1 // pred_check
      _
    $region3: #{net_forward.1} parent=1 // pred_check_branch
      %20 = sbr.rel (0) target = $region5
    $region4: #{net_forward.1} parent=1 // pred_region
      _
    $region5: #{net_forward.1} parent=1 // pred_fallthru
      _
    // Predicated region
    $region6: #{net_forward.1} parent=1 // pred_check
      _
    $region7: #{net_forward.1} parent=1 // pred_check_branch
      %22 = sbr.rel (0) target = $region9
    $region8: #{net_forward.1} parent=1 // pred_region
      %s24 = ssub.s32 28672, 28672
      %25 = vsyncadd [#allocation3], %s24
      %s26 = sshll.u32 [#allocation2], 4
      %s27 = int_to_ptr.vmem [resolvable:$true] %s26
      %32 = dma.hbm_to_vmem [thread:$0]  %s1, 28672, %s27, [#allocation3], 1792, 1792, 112
    $region9: #{net_forward.1} parent=1 // pred_fallthru
      _
    // Predicated region
    $region10: #{net_forward.1} parent=1 // pred_check
      _
    $region11: #{net_forward.1} parent=1 // pred_check_branch
      %34 = sbr.rel (0) target = $region13
    $region12: #{net_forward.1} parent=1 // pred_region
      %s36 = ssub.s32 112, 112
      %37 = vsyncadd [#allocation5], %s36
      %s39 = sshll.u32 [#allocation4], 4
      %s40 = int_to_ptr.vmem [resolvable:$true] %s39
      %42 = dma.hbm_to_vmem [thread:$0]  %s2, 112, %s40, [#allocation5]
    $region13: #{net_forward.1} parent=1 // pred_fallthru
      _
    // Predicated region
    $region14: #{net_forward.1} parent=1 // pred_check
      _
    $region15: #{net_forward.1} parent=1 // pred_check_branch
      %44 = sbr.rel (0) target = $region17
    $region16: #{net_forward.1} parent=1 // pred_region
      %s46 = ssub.s32 86016, 86016
      %47 = vsyncadd [#allocation5], %s46
      %s48 = sshll.u32 [#allocation6], 4
      %s49 = int_to_ptr.vmem [resolvable:$true] %s48
      %54 = dma.hbm_to_vmem [thread:$0]  %s3, 86016, %s49, [#allocation5], 768, 768, 48
    $region17: #{net_forward.1} parent=1 // pred_fallthru
      _
    // Predicated region
    $region18: #{net_forward.1} parent=1 // pred_check
      _
    $region19: #{net_forward.1} parent=1 // pred_check_branch
      %56 = sbr.rel (0) target = $region21
    $region20: #{net_forward.1} parent=1 // pred_region
      %s58 = ssub.s32 48, 48
      %59 = vsyncadd [#allocation8], %s58
      %s61 = sshll.u32 [#allocation7], 4
      %s62 = int_to_ptr.vmem [resolvable:$true] %s61
      %64 = dma.hbm_to_vmem [thread:$0]  %s4, 48, %s62, [#allocation8]
    $region21: #{net_forward.1} parent=1 // pred_fallthru
      _
    // Predicated region
    $region22: #{net_forward.1} parent=1 // pred_check
      _
    $region23: #{net_forward.1} parent=1 // pred_check_branch
      %66 = sbr.rel (0) target = $region25
    $region24: #{net_forward.1} parent=1 // pred_region
      %s68 = ssub.s32 3072, 3072
      %69 = vsyncadd [#allocation8], %s68
      %s70 = sshll.u32 [#allocation9], 4
      %s71 = int_to_ptr.vmem [resolvable:$true] %s70
      %76 = dma.hbm_to_vmem [thread:$0]  %s5, 3072, %s71, [#allocation8], 64, 64, 4
    $region25: #{net_forward.1} parent=1 // pred_fallthru
      _
    // Predicated region
    $region26: #{net_forward.1} parent=1 // pred_check
      _
    $region27: #{net_forward.1} parent=1 // pred_check_branch
      %78 = sbr.rel (0) target = $region29
    $region28: #{net_forward.1} parent=1 // pred_region
      %s80 = ssub.s32 16, 16
      %81 = vsyncadd [#allocation11], %s80
      %s83 = sshll.u32 [#allocation10], 4
      %s84 = int_to_ptr.vmem [resolvable:$true] %s83
      %86 = dma.hbm_to_vmem [thread:$0]  %s6, 16, %s84, [#allocation11]
    $region29: #{net_forward.1} parent=1 // pred_fallthru
      _
    // Predicated region
    $region30: #{net_forward.1} parent=1 // pred_check
      _
    $region31: #{net_forward.1} parent=1 // pred_check_branch
      %88 = sbr.rel (0) target = $region33
    $region32: #{net_forward.1} parent=1 // pred_region
      %s90 = ssub.s32 1024, 1024
      %91 = vsyncadd [#allocation11], %s90
      %s92 = sshll.u32 [#allocation12], 4
      %s93 = int_to_ptr.vmem [resolvable:$true] %s92
      %98 = dma.hbm_to_vmem [thread:$0]  %s7, 1024, %s93, [#allocation11], 64, 64, 4
    $region33: #{net_forward.1} parent=1 // pred_fallthru
      _
    // Predicated region
    $region34: #{net_forward.1} parent=1 // pred_check
      _
    $region35: #{net_forward.1} parent=1 // pred_check_branch
      %100 = sbr.rel (0) target = $region37
    $region36: #{net_forward.1} parent=1 // pred_region
      %s102 = ssub.s32 16, 16
      %103 = vsyncadd [#allocation14], %s102
      %s105 = sshll.u32 [#allocation13], 4
      %s106 = int_to_ptr.vmem [resolvable:$true] %s105
      %108 = dma.hbm_to_vmem [thread:$0]  %s8, 16, %s106, [#allocation14]
    $region37: #{net_forward.1} parent=1 // pred_fallthru
      _
    // Predicated region
    $region38: #{net_forward.1} parent=1 // pred_check
      _
    $region39: #{net_forward.1} parent=1 // pred_check_branch
      %110 = sbr.rel (0) target = $region41
    $region40: #{net_forward.1} parent=1 // pred_region
      %111 = dma.done [#allocation3], 28672
    $region41: #{net_forward.1} parent=1 // pred_fallthru
      _
    // Predicated region
    $region42: #{net_forward.1} parent=1 // pred_check
      _
    $region43: #{net_forward.1} parent=1 // pred_check_branch
      %113 = sbr.rel (0) target = $region45
    $region44: #{net_forward.1} parent=1 // pred_region
      %114 = dma.done [#allocation5], 112
    $region45: #{net_forward.1} parent=1 // pred_fallthru
      _
    // Predicated region
    $region46: #{net_forward.1} parent=1 // pred_check
      _
    $region47: #{net_forward.1} parent=1 // pred_check_branch
      %116 = sbr.rel (0) target = $region49
    $region48: #{net_forward.1} parent=1 // pred_region
      %117 = dma.done [#allocation5], 86016
    $region49: #{net_forward.1} parent=1 // pred_fallthru
      _
    // Predicated region
    $region50: #{net_forward.1} parent=1 // pred_check
      _
    $region51: #{net_forward.1} parent=1 // pred_check_branch
      %119 = sbr.rel (0) target = $region53
    $region52: #{net_forward.1} parent=1 // pred_region
      %120 = dma.done [#allocation8], 48
    $region53: #{net_forward.1} parent=1 // pred_fallthru
      _
    // Predicated region
    $region54: #{net_forward.1} parent=1 // pred_check
      _
    $region55: #{net_forward.1} parent=1 // pred_check_branch
      %122 = sbr.rel (0) target = $region57
    $region56: #{net_forward.1} parent=1 // pred_region
      %123 = dma.done [#allocation8], 3072
    $region57: #{net_forward.1} parent=1 // pred_fallthru
      _
    // Predicated region
    $region58: #{net_forward.1} parent=1 // pred_check
      _
    $region59: #{net_forward.1} parent=1 // pred_check_branch
      %125 = sbr.rel (0) target = $region61
    $region60: #{net_forward.1} parent=1 // pred_region
      %126 = dma.done [#allocation11], 16
    $region61: #{net_forward.1} parent=1 // pred_fallthru
      _
    // Predicated region
    $region62: #{net_forward.1} parent=1 // pred_check
      _
    $region63: #{net_forward.1} parent=1 // pred_check_branch
      %128 = sbr.rel (0) target = $region65
    $region64: #{net_forward.1} parent=1 // pred_region
      %129 = dma.done [#allocation11], 1024
    $region65: #{net_forward.1} parent=1 // pred_fallthru
      _
    // Predicated region
    $region66: #{net_forward.1} parent=1 // pred_check
      _
    $region67: #{net_forward.1} parent=1 // pred_check_branch
      %131 = sbr.rel (0) target = $region69
    $region68: #{net_forward.1} parent=1 // pred_region
      %132 = dma.done [#allocation14], 16
    $region69: #{net_forward.1} parent=1 // pred_fallthru
      _
    %v134 = vld [vmem:[%s0] sm:$0xff]
    %v135 = vpack.c.bf16 %v134, %v134
    %v136 = vld [vmem:[#allocation2] sm:$0xff]
    %v137 = vld [vmem:[#allocation2 + $0x8] sm:$0xff]
    %v138 = vld [vmem:[#allocation2 + $0x10] sm:$0xff]
    %v139 = vld [vmem:[#allocation2 + $0x18] sm:$0xff]
    %v140 = vld [vmem:[#allocation2 + $0x20] sm:$0xff]
    %v141 = vld [vmem:[#allocation2 + $0x28] sm:$0xff]
    %v142 = vld [vmem:[#allocation2 + $0x30] sm:$0xff]
    %v143 = vld [vmem:[#allocation2 + $0x38] sm:$0xff]
    %v144 = vld [vmem:[#allocation2 + $0x40] sm:$0xff]
    %v145 = vld [vmem:[#allocation2 + $0x48] sm:$0xff]
    %v146 = vld [vmem:[#allocation2 + $0x50] sm:$0xff]
    %v147 = vld [vmem:[#allocation2 + $0x58] sm:$0xff]
    %v148 = vld [vmem:[#allocation2 + $0x60] sm:$0xff]
    %v149 = vld [vmem:[#allocation2 + $0x68] sm:$0xff]
    %v150 = vld [vmem:[#allocation2 + $0x70] sm:$0xff]
    %v151 = vld [vmem:[#allocation2 + $0x78] sm:$0xff]
    %v152 = vld [vmem:[#allocation2 + $0x80] sm:$0xff]
    %v153 = vld [vmem:[#allocation2 + $0x88] sm:$0xff]
    %v154 = vld [vmem:[#allocation2 + $0x90] sm:$0xff]
    %v155 = vld [vmem:[#allocation2 + $0x98] sm:$0xff]
    %v156 = vld [vmem:[#allocation2 + $0xa0] sm:$0xff]
    %v157 = vld [vmem:[#allocation2 + $0xa8] sm:$0xff]
    %v158 = vld [vmem:[#allocation2 + $0xb0] sm:$0xff]
    %v159 = vld [vmem:[#allocation2 + $0xb8] sm:$0xff]
    %v160 = vld [vmem:[#allocation2 + $0xc0] sm:$0xff]
    %v161 = vld [vmem:[#allocation2 + $0xc8] sm:$0xff]
    %v162 = vld [vmem:[#allocation2 + $0xd0] sm:$0xff]
    %v163 = vld [vmem:[#allocation2 + $0xd8] sm:$0xff]
    %v164 = vld [vmem:[#allocation2 + $0xe0] sm:$0xff]
    %v165 = vld [vmem:[#allocation2 + $0xe8] sm:$0xff]
    %v166 = vld [vmem:[#allocation2 + $0xf0] sm:$0xff]
    %v167 = vld [vmem:[#allocation2 + $0xf8] sm:$0xff]
    %v168 = vld [vmem:[#allocation2 + $0x100] sm:$0xff]
    %v169 = vld [vmem:[#allocation2 + $0x108] sm:$0xff]
    %v170 = vld [vmem:[#allocation2 + $0x110] sm:$0xff]
    %v171 = vld [vmem:[#allocation2 + $0x118] sm:$0xff]
    %v172 = vld [vmem:[#allocation2 + $0x120] sm:$0xff]
    %v173 = vld [vmem:[#allocation2 + $0x128] sm:$0xff]
    %v174 = vld [vmem:[#allocation2 + $0x130] sm:$0xff]
    %v175 = vld [vmem:[#allocation2 + $0x138] sm:$0xff]
    %v176 = vld [vmem:[#allocation2 + $0x140] sm:$0xff]
    %v177 = vld [vmem:[#allocation2 + $0x148] sm:$0xff]
    %v178 = vld [vmem:[#allocation2 + $0x150] sm:$0xff]
    %v179 = vld [vmem:[#allocation2 + $0x158] sm:$0xff]
    %v180 = vld [vmem:[#allocation2 + $0x160] sm:$0xff]
    %v181 = vld [vmem:[#allocation2 + $0x168] sm:$0xff]
    %v182 = vld [vmem:[#allocation2 + $0x170] sm:$0xff]
    %v183 = vld [vmem:[#allocation2 + $0x178] sm:$0xff]
    %v184 = vld [vmem:[#allocation2 + $0x180] sm:$0xff]
    %v185 = vld [vmem:[#allocation2 + $0x188] sm:$0xff]
    %v186 = vld [vmem:[#allocation2 + $0x190] sm:$0xff]
    %v187 = vld [vmem:[#allocation2 + $0x198] sm:$0xff]
    %v188 = vld [vmem:[#allocation2 + $0x1a0] sm:$0xff]
    %v189 = vld [vmem:[#allocation2 + $0x1a8] sm:$0xff]
    %v190 = vld [vmem:[#allocation2 + $0x1b0] sm:$0xff]
    %v191 = vld [vmem:[#allocation2 + $0x1b8] sm:$0xff]
    %v192 = vld [vmem:[#allocation2 + $0x1c0] sm:$0xff]
    %v193 = vld [vmem:[#allocation2 + $0x1c8] sm:$0xff]
    %v194 = vld [vmem:[#allocation2 + $0x1d0] sm:$0xff]
    %v195 = vld [vmem:[#allocation2 + $0x1d8] sm:$0xff]
    %v196 = vld [vmem:[#allocation2 + $0x1e0] sm:$0xff]
    %v197 = vld [vmem:[#allocation2 + $0x1e8] sm:$0xff]
    %v198 = vld [vmem:[#allocation2 + $0x1f0] sm:$0xff]
    %v199 = vld [vmem:[#allocation2 + $0x1f8] sm:$0xff]
    %v200 = vld [vmem:[#allocation2 + $0x200] sm:$0xff]
    %v201 = vld [vmem:[#allocation2 + $0x208] sm:$0xff]
    %v202 = vld [vmem:[#allocation2 + $0x210] sm:$0xff]
    %v203 = vld [vmem:[#allocation2 + $0x218] sm:$0xff]
    %v204 = vld [vmem:[#allocation2 + $0x220] sm:$0xff]
    %v205 = vld [vmem:[#allocation2 + $0x228] sm:$0xff]
    %v206 = vld [vmem:[#allocation2 + $0x230] sm:$0xff]
    %v207 = vld [vmem:[#allocation2 + $0x238] sm:$0xff]
    %v208 = vld [vmem:[#allocation2 + $0x240] sm:$0xff]
    %v209 = vld [vmem:[#allocation2 + $0x248] sm:$0xff]
    %v210 = vld [vmem:[#allocation2 + $0x250] sm:$0xff]
    %v211 = vld [vmem:[#allocation2 + $0x258] sm:$0xff]
    %v212 = vld [vmem:[#allocation2 + $0x260] sm:$0xff]
    %v213 = vld [vmem:[#allocation2 + $0x268] sm:$0xff]
    %v214 = vld [vmem:[#allocation2 + $0x270] sm:$0xff]
    %v215 = vld [vmem:[#allocation2 + $0x278] sm:$0xff]
    %v216 = vld [vmem:[#allocation2 + $0x280] sm:$0xff]
    %v217 = vld [vmem:[#allocation2 + $0x288] sm:$0xff]
    %v218 = vld [vmem:[#allocation2 + $0x290] sm:$0xff]
    %v219 = vld [vmem:[#allocation2 + $0x298] sm:$0xff]
    %v220 = vld [vmem:[#allocation2 + $0x2a0] sm:$0xff]
    %v221 = vld [vmem:[#allocation2 + $0x2a8] sm:$0xff]
    %v222 = vld [vmem:[#allocation2 + $0x2b0] sm:$0xff]
    %v223 = vld [vmem:[#allocation2 + $0x2b8] sm:$0xff]
    %v224 = vld [vmem:[#allocation2 + $0x2c0] sm:$0xff]
    %v225 = vld [vmem:[#allocation2 + $0x2c8] sm:$0xff]
    %v226 = vld [vmem:[#allocation2 + $0x2d0] sm:$0xff]
    %v227 = vld [vmem:[#allocation2 + $0x2d8] sm:$0xff]
    %v228 = vld [vmem:[#allocation2 + $0x2e0] sm:$0xff]
    %v229 = vld [vmem:[#allocation2 + $0x2e8] sm:$0xff]
    %v230 = vld [vmem:[#allocation2 + $0x2f0] sm:$0xff]
    %v231 = vld [vmem:[#allocation2 + $0x2f8] sm:$0xff]
    %v232 = vld [vmem:[#allocation2 + $0x300] sm:$0xff]
    %v233 = vld [vmem:[#allocation2 + $0x308] sm:$0xff]
    %v234 = vld [vmem:[#allocation2 + $0x310] sm:$0xff]
    %v235 = vld [vmem:[#allocation2 + $0x318] sm:$0xff]
    %v236 = vld [vmem:[#allocation2 + $0x320] sm:$0xff]
    %v237 = vld [vmem:[#allocation2 + $0x328] sm:$0xff]
    %v238 = vld [vmem:[#allocation2 + $0x330] sm:$0xff]
    %v239 = vld [vmem:[#allocation2 + $0x338] sm:$0xff]
    %v240 = vld [vmem:[#allocation2 + $0x340] sm:$0xff]
    %v241 = vld [vmem:[#allocation2 + $0x348] sm:$0xff]
    %v242 = vld [vmem:[#allocation2 + $0x350] sm:$0xff]
    %v243 = vld [vmem:[#allocation2 + $0x358] sm:$0xff]
    %v244 = vld [vmem:[#allocation2 + $0x360] sm:$0xff]
    %v245 = vld [vmem:[#allocation2 + $0x368] sm:$0xff]
    %v246 = vld [vmem:[#allocation2 + $0x370] sm:$0xff]
    %v247 = vld [vmem:[#allocation2 + $0x378] sm:$0xff]
    %v248 = vld [vmem:[#allocation2 + $0x380] sm:$0xff]
    %v249 = vld [vmem:[#allocation2 + $0x388] sm:$0xff]
    %v250 = vld [vmem:[#allocation2 + $0x390] sm:$0xff]
    %v251 = vld [vmem:[#allocation2 + $0x398] sm:$0xff]
    %v252 = vld [vmem:[#allocation2 + $0x3a0] sm:$0xff]
    %v253 = vld [vmem:[#allocation2 + $0x3a8] sm:$0xff]
    %v254 = vld [vmem:[#allocation2 + $0x3b0] sm:$0xff]
    %v255 = vld [vmem:[#allocation2 + $0x3b8] sm:$0xff]
    %v256 = vld [vmem:[#allocation2 + $0x3c0] sm:$0xff]
    %v257 = vld [vmem:[#allocation2 + $0x3c8] sm:$0xff]
    %v258 = vld [vmem:[#allocation2 + $0x3d0] sm:$0xff]
    %v259 = vld [vmem:[#allocation2 + $0x3d8] sm:$0xff]
    %v260 = vld [vmem:[#allocation2 + $0x3e0] sm:$0xff]
    %v261 = vld [vmem:[#allocation2 + $0x3e8] sm:$0xff]
    %v262 = vld [vmem:[#allocation2 + $0x3f0] sm:$0xff]
    %v263 = vld [vmem:[#allocation2 + $0x3f8] sm:$0xff]
    %v264 = vld [vmem:[#allocation2 + $0x400] sm:$0xff]
    %v265 = vld [vmem:[#allocation2 + $0x408] sm:$0xff]
    %v266 = vld [vmem:[#allocation2 + $0x410] sm:$0xff]
    %v267 = vld [vmem:[#allocation2 + $0x418] sm:$0xff]
    %v268 = vld [vmem:[#allocation2 + $0x420] sm:$0xff]
    %v269 = vld [vmem:[#allocation2 + $0x428] sm:$0xff]
    %v270 = vld [vmem:[#allocation2 + $0x430] sm:$0xff]
    %v271 = vld [vmem:[#allocation2 + $0x438] sm:$0xff]
    %v272 = vld [vmem:[#allocation2 + $0x440] sm:$0xff]
    %v273 = vld [vmem:[#allocation2 + $0x448] sm:$0xff]
    %v274 = vld [vmem:[#allocation2 + $0x450] sm:$0xff]
    %v275 = vld [vmem:[#allocation2 + $0x458] sm:$0xff]
    %v276 = vld [vmem:[#allocation2 + $0x460] sm:$0xff]
    %v277 = vld [vmem:[#allocation2 + $0x468] sm:$0xff]
    %v278 = vld [vmem:[#allocation2 + $0x470] sm:$0xff]
    %v279 = vld [vmem:[#allocation2 + $0x478] sm:$0xff]
    %v280 = vld [vmem:[#allocation2 + $0x480] sm:$0xff]
    %v281 = vld [vmem:[#allocation2 + $0x488] sm:$0xff]
    %v282 = vld [vmem:[#allocation2 + $0x490] sm:$0xff]
    %v283 = vld [vmem:[#allocation2 + $0x498] sm:$0xff]
    %v284 = vld [vmem:[#allocation2 + $0x4a0] sm:$0xff]
    %v285 = vld [vmem:[#allocation2 + $0x4a8] sm:$0xff]
    %v286 = vld [vmem:[#allocation2 + $0x4b0] sm:$0xff]
    %v287 = vld [vmem:[#allocation2 + $0x4b8] sm:$0xff]
    %v288 = vld [vmem:[#allocation2 + $0x4c0] sm:$0xff]
    %v289 = vld [vmem:[#allocation2 + $0x4c8] sm:$0xff]
    %v290 = vld [vmem:[#allocation2 + $0x4d0] sm:$0xff]
    %v291 = vld [vmem:[#allocation2 + $0x4d8] sm:$0xff]
    %v292 = vld [vmem:[#allocation2 + $0x4e0] sm:$0xff]
    %v293 = vld [vmem:[#allocation2 + $0x4e8] sm:$0xff]
    %v294 = vld [vmem:[#allocation2 + $0x4f0] sm:$0xff]
    %v295 = vld [vmem:[#allocation2 + $0x4f8] sm:$0xff]
    %v296 = vld [vmem:[#allocation2 + $0x500] sm:$0xff]
    %v297 = vld [vmem:[#allocation2 + $0x508] sm:$0xff]
    %v298 = vld [vmem:[#allocation2 + $0x510] sm:$0xff]
    %v299 = vld [vmem:[#allocation2 + $0x518] sm:$0xff]
    %v300 = vld [vmem:[#allocation2 + $0x520] sm:$0xff]
    %v301 = vld [vmem:[#allocation2 + $0x528] sm:$0xff]
    %v302 = vld [vmem:[#allocation2 + $0x530] sm:$0xff]
    %v303 = vld [vmem:[#allocation2 + $0x538] sm:$0xff]
    %v304 = vld [vmem:[#allocation2 + $0x540] sm:$0xff]
    %v305 = vld [vmem:[#allocation2 + $0x548] sm:$0xff]
    %v306 = vld [vmem:[#allocation2 + $0x550] sm:$0xff]
    %v307 = vld [vmem:[#allocation2 + $0x558] sm:$0xff]
    %v308 = vld [vmem:[#allocation2 + $0x560] sm:$0xff]
    %v309 = vld [vmem:[#allocation2 + $0x568] sm:$0xff]
    %v310 = vld [vmem:[#allocation2 + $0x570] sm:$0xff]
    %v311 = vld [vmem:[#allocation2 + $0x578] sm:$0xff]
    %v312 = vld [vmem:[#allocation2 + $0x580] sm:$0xff]
    %v313 = vld [vmem:[#allocation2 + $0x588] sm:$0xff]
    %v314 = vld [vmem:[#allocation2 + $0x590] sm:$0xff]
    %v315 = vld [vmem:[#allocation2 + $0x598] sm:$0xff]
    %v316 = vld [vmem:[#allocation2 + $0x5a0] sm:$0xff]
    %v317 = vld [vmem:[#allocation2 + $0x5a8] sm:$0xff]
    %v318 = vld [vmem:[#allocation2 + $0x5b0] sm:$0xff]
    %v319 = vld [vmem:[#allocation2 + $0x5b8] sm:$0xff]
    %v320 = vld [vmem:[#allocation2 + $0x5c0] sm:$0xff]
    %v321 = vld [vmem:[#allocation2 + $0x5c8] sm:$0xff]
    %v322 = vld [vmem:[#allocation2 + $0x5d0] sm:$0xff]
    %v323 = vld [vmem:[#allocation2 + $0x5d8] sm:$0xff]
    %v324 = vld [vmem:[#allocation2 + $0x5e0] sm:$0xff]
    %v325 = vld [vmem:[#allocation2 + $0x5e8] sm:$0xff]
    %v326 = vld [vmem:[#allocation2 + $0x5f0] sm:$0xff]
    %v327 = vld [vmem:[#allocation2 + $0x5f8] sm:$0xff]
    %v328 = vld [vmem:[#allocation2 + $0x600] sm:$0xff]
    %v329 = vld [vmem:[#allocation2 + $0x608] sm:$0xff]
    %v330 = vld [vmem:[#allocation2 + $0x610] sm:$0xff]
    %v331 = vld [vmem:[#allocation2 + $0x618] sm:$0xff]
    %v332 = vld [vmem:[#allocation2 + $0x620] sm:$0xff]
    %v333 = vld [vmem:[#allocation2 + $0x628] sm:$0xff]
    %v334 = vld [vmem:[#allocation2 + $0x630] sm:$0xff]
    %v335 = vld [vmem:[#allocation2 + $0x638] sm:$0xff]
    %v336 = vld [vmem:[#allocation2 + $0x640] sm:$0xff]
    %v337 = vld [vmem:[#allocation2 + $0x648] sm:$0xff]
    %v338 = vld [vmem:[#allocation2 + $0x650] sm:$0xff]
    %v339 = vld [vmem:[#allocation2 + $0x658] sm:$0xff]
    %v340 = vld [vmem:[#allocation2 + $0x660] sm:$0xff]
    %v341 = vld [vmem:[#allocation2 + $0x668] sm:$0xff]
    %v342 = vld [vmem:[#allocation2 + $0x670] sm:$0xff]
    %v343 = vld [vmem:[#allocation2 + $0x678] sm:$0xff]
    %v344 = vld [vmem:[#allocation2 + $0x680] sm:$0xff]
    %v345 = vld [vmem:[#allocation2 + $0x688] sm:$0xff]
    %v346 = vld [vmem:[#allocation2 + $0x690] sm:$0xff]
    %v347 = vld [vmem:[#allocation2 + $0x698] sm:$0xff]
    %v348 = vld [vmem:[#allocation2 + $0x6a0] sm:$0xff]
    %v349 = vld [vmem:[#allocation2 + $0x6a8] sm:$0xff]
    %v350 = vld [vmem:[#allocation2 + $0x6b0] sm:$0xff]
    %v351 = vld [vmem:[#allocation2 + $0x6b8] sm:$0xff]
    %v352 = vld [vmem:[#allocation2 + $0x6c0] sm:$0xff]
    %v353 = vld [vmem:[#allocation2 + $0x6c8] sm:$0xff]
    %v354 = vld [vmem:[#allocation2 + $0x6d0] sm:$0xff]
    %v355 = vld [vmem:[#allocation2 + $0x6d8] sm:$0xff]
    %v356 = vld [vmem:[#allocation2 + $0x6e0] sm:$0xff]
    %v357 = vld [vmem:[#allocation2 + $0x6e8] sm:$0xff]
    %v358 = vld [vmem:[#allocation2 + $0x6f0] sm:$0xff]
    %v359 = vld [vmem:[#allocation2 + $0x6f8] sm:$0xff]
    %v584 = vunpack.c.l.b16 %v136
    %v585 = vunpack.c.h.b16 %v136
    %v586 = vunpack.c.l.b16 %v137
    %v587 = vunpack.c.h.b16 %v137
    %v588 = vunpack.c.l.b16 %v138
    %v589 = vunpack.c.h.b16 %v138
    %v590 = vunpack.c.l.b16 %v139
    %v591 = vunpack.c.h.b16 %v139
    %v592 = vunpack.c.l.b16 %v140
    %v593 = vunpack.c.h.b16 %v140
    %v594 = vunpack.c.l.b16 %v141
    %v595 = vunpack.c.h.b16 %v141
    %v596 = vunpack.c.l.b16 %v142
    %v597 = vunpack.c.h.b16 %v142
    %v598 = vunpack.c.l.b16 %v143
    %v599 = vunpack.c.h.b16 %v143
    %v600 = vunpack.c.l.b16 %v144
    %v601 = vunpack.c.h.b16 %v144
    %v602 = vunpack.c.l.b16 %v145
    %v603 = vunpack.c.h.b16 %v145
    %v604 = vunpack.c.l.b16 %v146
    %v605 = vunpack.c.h.b16 %v146
    %v606 = vunpack.c.l.b16 %v147
    %v607 = vunpack.c.h.b16 %v147
    %v608 = vunpack.c.l.b16 %v148
    %v609 = vunpack.c.h.b16 %v148
    %v610 = vunpack.c.l.b16 %v149
    %v611 = vunpack.c.h.b16 %v149
    %v612 = vunpack.c.l.b16 %v150
    %v613 = vunpack.c.h.b16 %v150
    %v614 = vunpack.c.l.b16 %v151
    %v615 = vunpack.c.h.b16 %v151
    %v616 = vunpack.c.l.b16 %v152
    %v617 = vunpack.c.h.b16 %v152
    %v618 = vunpack.c.l.b16 %v153
    %v619 = vunpack.c.h.b16 %v153
    %v620 = vunpack.c.l.b16 %v154
    %v621 = vunpack.c.h.b16 %v154
    %v622 = vunpack.c.l.b16 %v155
    %v623 = vunpack.c.h.b16 %v155
    %v624 = vunpack.c.l.b16 %v156
    %v625 = vunpack.c.h.b16 %v156
    %v626 = vunpack.c.l.b16 %v157
    %v627 = vunpack.c.h.b16 %v157
    %v628 = vunpack.c.l.b16 %v158
    %v629 = vunpack.c.h.b16 %v158
    %v630 = vunpack.c.l.b16 %v159
    %v631 = vunpack.c.h.b16 %v159
    %v632 = vunpack.c.l.b16 %v160
    %v633 = vunpack.c.h.b16 %v160
    %v634 = vunpack.c.l.b16 %v161
    %v635 = vunpack.c.h.b16 %v161
    %v636 = vunpack.c.l.b16 %v162
    %v637 = vunpack.c.h.b16 %v162
    %v638 = vunpack.c.l.b16 %v163
    %v639 = vunpack.c.h.b16 %v163
    %v640 = vunpack.c.l.b16 %v164
    %v641 = vunpack.c.h.b16 %v164
    %v642 = vunpack.c.l.b16 %v165
    %v643 = vunpack.c.h.b16 %v165
    %v644 = vunpack.c.l.b16 %v166
    %v645 = vunpack.c.h.b16 %v166
    %v646 = vunpack.c.l.b16 %v167
    %v647 = vunpack.c.h.b16 %v167
    %v648 = vunpack.c.l.b16 %v168
    %v649 = vunpack.c.h.b16 %v168
    %v650 = vunpack.c.l.b16 %v169
    %v651 = vunpack.c.h.b16 %v169
    %v652 = vunpack.c.l.b16 %v170
    %v653 = vunpack.c.h.b16 %v170
    %v654 = vunpack.c.l.b16 %v171
    %v655 = vunpack.c.h.b16 %v171
    %v656 = vunpack.c.l.b16 %v172
    %v657 = vunpack.c.h.b16 %v172
    %v658 = vunpack.c.l.b16 %v173
    %v659 = vunpack.c.h.b16 %v173
    %v660 = vunpack.c.l.b16 %v174
    %v661 = vunpack.c.h.b16 %v174
    %v662 = vunpack.c.l.b16 %v175
    %v663 = vunpack.c.h.b16 %v175
    %v664 = vunpack.c.l.b16 %v176
    %v665 = vunpack.c.h.b16 %v176
    %v666 = vunpack.c.l.b16 %v177
    %v667 = vunpack.c.h.b16 %v177
    %v668 = vunpack.c.l.b16 %v178
    %v669 = vunpack.c.h.b16 %v178
    %v670 = vunpack.c.l.b16 %v179
    %v671 = vunpack.c.h.b16 %v179
    %v672 = vunpack.c.l.b16 %v180
    %v673 = vunpack.c.h.b16 %v180
    %v674 = vunpack.c.l.b16 %v181
    %v675 = vunpack.c.h.b16 %v181
    %v676 = vunpack.c.l.b16 %v182
    %v677 = vunpack.c.h.b16 %v182
    %v678 = vunpack.c.l.b16 %v183
    %v679 = vunpack.c.h.b16 %v183
    %v680 = vunpack.c.l.b16 %v184
    %v681 = vunpack.c.h.b16 %v184
    %v682 = vunpack.c.l.b16 %v185
    %v683 = vunpack.c.h.b16 %v185
    %v684 = vunpack.c.l.b16 %v186
    %v685 = vunpack.c.h.b16 %v186
    %v686 = vunpack.c.l.b16 %v187
    %v687 = vunpack.c.h.b16 %v187
    %v688 = vunpack.c.l.b16 %v188
    %v689 = vunpack.c.h.b16 %v188
    %v690 = vunpack.c.l.b16 %v189
    %v691 = vunpack.c.h.b16 %v189
    %v692 = vunpack.c.l.b16 %v190
    %v693 = vunpack.c.h.b16 %v190
    %v694 = vunpack.c.l.b16 %v191
    %v695 = vunpack.c.h.b16 %v191
    %v696 = vunpack.c.l.b16 %v192
    %v697 = vunpack.c.h.b16 %v192
    %v698 = vunpack.c.l.b16 %v193
    %v699 = vunpack.c.h.b16 %v193
    %v700 = vunpack.c.l.b16 %v194
    %v701 = vunpack.c.h.b16 %v194
    %v702 = vunpack.c.l.b16 %v195
    %v703 = vunpack.c.h.b16 %v195
    %v704 = vunpack.c.l.b16 %v196
    %v705 = vunpack.c.h.b16 %v196
    %v706 = vunpack.c.l.b16 %v197
    %v707 = vunpack.c.h.b16 %v197
    %v708 = vunpack.c.l.b16 %v198
    %v709 = vunpack.c.h.b16 %v198
    %v710 = vunpack.c.l.b16 %v199
    %v711 = vunpack.c.h.b16 %v199
    %v712 = vunpack.c.l.b16 %v200
    %v713 = vunpack.c.h.b16 %v200
    %v714 = vunpack.c.l.b16 %v201
    %v715 = vunpack.c.h.b16 %v201
    %v716 = vunpack.c.l.b16 %v202
    %v717 = vunpack.c.h.b16 %v202
    %v718 = vunpack.c.l.b16 %v203
    %v719 = vunpack.c.h.b16 %v203
    %v720 = vunpack.c.l.b16 %v204
    %v721 = vunpack.c.h.b16 %v204
    %v722 = vunpack.c.l.b16 %v205
    %v723 = vunpack.c.h.b16 %v205
    %v724 = vunpack.c.l.b16 %v206
    %v725 = vunpack.c.h.b16 %v206
    %v726 = vunpack.c.l.b16 %v207
    %v727 = vunpack.c.h.b16 %v207
    %v728 = vunpack.c.l.b16 %v208
    %v729 = vunpack.c.h.b16 %v208
    %v730 = vunpack.c.l.b16 %v209
    %v731 = vunpack.c.h.b16 %v209
    %v732 = vunpack.c.l.b16 %v210
    %v733 = vunpack.c.h.b16 %v210
    %v734 = vunpack.c.l.b16 %v211
    %v735 = vunpack.c.h.b16 %v211
    %v736 = vunpack.c.l.b16 %v212
    %v737 = vunpack.c.h.b16 %v212
    %v738 = vunpack.c.l.b16 %v213
    %v739 = vunpack.c.h.b16 %v213
    %v740 = vunpack.c.l.b16 %v214
    %v741 = vunpack.c.h.b16 %v214
    %v742 = vunpack.c.l.b16 %v215
    %v743 = vunpack.c.h.b16 %v215
    %v744 = vunpack.c.l.b16 %v216
    %v745 = vunpack.c.h.b16 %v216
    %v746 = vunpack.c.l.b16 %v217
    %v747 = vunpack.c.h.b16 %v217
    %v748 = vunpack.c.l.b16 %v218
    %v749 = vunpack.c.h.b16 %v218
    %v750 = vunpack.c.l.b16 %v219
    %v751 = vunpack.c.h.b16 %v219
    %v752 = vunpack.c.l.b16 %v220
    %v753 = vunpack.c.h.b16 %v220
    %v754 = vunpack.c.l.b16 %v221
    %v755 = vunpack.c.h.b16 %v221
    %v756 = vunpack.c.l.b16 %v222
    %v757 = vunpack.c.h.b16 %v222
    %v758 = vunpack.c.l.b16 %v223
    %v759 = vunpack.c.h.b16 %v223
    %v760 = vunpack.c.l.b16 %v224
    %v761 = vunpack.c.h.b16 %v224
    %v762 = vunpack.c.l.b16 %v225
    %v763 = vunpack.c.h.b16 %v225
    %v764 = vunpack.c.l.b16 %v226
    %v765 = vunpack.c.h.b16 %v226
    %v766 = vunpack.c.l.b16 %v227
    %v767 = vunpack.c.h.b16 %v227
    %v768 = vunpack.c.l.b16 %v228
    %v769 = vunpack.c.h.b16 %v228
    %v770 = vunpack.c.l.b16 %v229
    %v771 = vunpack.c.h.b16 %v229
    %v772 = vunpack.c.l.b16 %v230
    %v773 = vunpack.c.h.b16 %v230
    %v774 = vunpack.c.l.b16 %v231
    %v775 = vunpack.c.h.b16 %v231
    %v776 = vunpack.c.l.b16 %v232
    %v777 = vunpack.c.h.b16 %v232
    %v778 = vunpack.c.l.b16 %v233
    %v779 = vunpack.c.h.b16 %v233
    %v780 = vunpack.c.l.b16 %v234
    %v781 = vunpack.c.h.b16 %v234
    %v782 = vunpack.c.l.b16 %v235
    %v783 = vunpack.c.h.b16 %v235
    %v784 = vunpack.c.l.b16 %v236
    %v785 = vunpack.c.h.b16 %v236
    %v786 = vunpack.c.l.b16 %v237
    %v787 = vunpack.c.h.b16 %v237
    %v788 = vunpack.c.l.b16 %v238
    %v789 = vunpack.c.h.b16 %v238
    %v790 = vunpack.c.l.b16 %v239
    %v791 = vunpack.c.h.b16 %v239
    %v792 = vunpack.c.l.b16 %v240
    %v793 = vunpack.c.h.b16 %v240
    %v794 = vunpack.c.l.b16 %v241
    %v795 = vunpack.c.h.b16 %v241
    %v796 = vunpack.c.l.b16 %v242
    %v797 = vunpack.c.h.b16 %v242
    %v798 = vunpack.c.l.b16 %v243
    %v799 = vunpack.c.h.b16 %v243
    %v800 = vunpack.c.l.b16 %v244
    %v801 = vunpack.c.h.b16 %v244
    %v802 = vunpack.c.l.b16 %v245
    %v803 = vunpack.c.h.b16 %v245
    %v804 = vunpack.c.l.b16 %v246
    %v805 = vunpack.c.h.b16 %v246
    %v806 = vunpack.c.l.b16 %v247
    %v807 = vunpack.c.h.b16 %v247
    %v808 = vunpack.c.l.b16 %v248
    %v809 = vunpack.c.h.b16 %v248
    %v810 = vunpack.c.l.b16 %v249
    %v811 = vunpack.c.h.b16 %v249
    %v812 = vunpack.c.l.b16 %v250
    %v813 = vunpack.c.h.b16 %v250
    %v814 = vunpack.c.l.b16 %v251
    %v815 = vunpack.c.h.b16 %v251
    %v816 = vunpack.c.l.b16 %v252
    %v817 = vunpack.c.h.b16 %v252
    %v818 = vunpack.c.l.b16 %v253
    %v819 = vunpack.c.h.b16 %v253
    %v820 = vunpack.c.l.b16 %v254
    %v821 = vunpack.c.h.b16 %v254
    %v822 = vunpack.c.l.b16 %v255
    %v823 = vunpack.c.h.b16 %v255
    %v824 = vunpack.c.l.b16 %v256
    %v825 = vunpack.c.h.b16 %v256
    %v826 = vunpack.c.l.b16 %v257
    %v827 = vunpack.c.h.b16 %v257
    %v828 = vunpack.c.l.b16 %v258
    %v829 = vunpack.c.h.b16 %v258
    %v830 = vunpack.c.l.b16 %v259
    %v831 = vunpack.c.h.b16 %v259
    %v832 = vunpack.c.l.b16 %v260
    %v833 = vunpack.c.h.b16 %v260
    %v834 = vunpack.c.l.b16 %v261
    %v835 = vunpack.c.h.b16 %v261
    %v836 = vunpack.c.l.b16 %v262
    %v837 = vunpack.c.h.b16 %v262
    %v838 = vunpack.c.l.b16 %v263
    %v839 = vunpack.c.h.b16 %v263
    %v840 = vunpack.c.l.b16 %v264
    %v841 = vunpack.c.h.b16 %v264
    %v842 = vunpack.c.l.b16 %v265
    %v843 = vunpack.c.h.b16 %v265
    %v844 = vunpack.c.l.b16 %v266
    %v845 = vunpack.c.h.b16 %v266
    %v846 = vunpack.c.l.b16 %v267
    %v847 = vunpack.c.h.b16 %v267
    %v848 = vunpack.c.l.b16 %v268
    %v849 = vunpack.c.h.b16 %v268
    %v850 = vunpack.c.l.b16 %v269
    %v851 = vunpack.c.h.b16 %v269
    %v852 = vunpack.c.l.b16 %v270
    %v853 = vunpack.c.h.b16 %v270
    %v854 = vunpack.c.l.b16 %v271
    %v855 = vunpack.c.h.b16 %v271
    %v856 = vunpack.c.l.b16 %v272
    %v857 = vunpack.c.h.b16 %v272
    %v858 = vunpack.c.l.b16 %v273
    %v859 = vunpack.c.h.b16 %v273
    %v860 = vunpack.c.l.b16 %v274
    %v861 = vunpack.c.h.b16 %v274
    %v862 = vunpack.c.l.b16 %v275
    %v863 = vunpack.c.h.b16 %v275
    %v864 = vunpack.c.l.b16 %v276
    %v865 = vunpack.c.h.b16 %v276
    %v866 = vunpack.c.l.b16 %v277
    %v867 = vunpack.c.h.b16 %v277
    %v868 = vunpack.c.l.b16 %v278
    %v869 = vunpack.c.h.b16 %v278
    %v870 = vunpack.c.l.b16 %v279
    %v871 = vunpack.c.h.b16 %v279
    %v872 = vunpack.c.l.b16 %v280
    %v873 = vunpack.c.h.b16 %v280
    %v874 = vunpack.c.l.b16 %v281
    %v875 = vunpack.c.h.b16 %v281
    %v876 = vunpack.c.l.b16 %v282
    %v877 = vunpack.c.h.b16 %v282
    %v878 = vunpack.c.l.b16 %v283
    %v879 = vunpack.c.h.b16 %v283
    %v880 = vunpack.c.l.b16 %v284
    %v881 = vunpack.c.h.b16 %v284
    %v882 = vunpack.c.l.b16 %v285
    %v883 = vunpack.c.h.b16 %v285
    %v884 = vunpack.c.l.b16 %v286
    %v885 = vunpack.c.h.b16 %v286
    %v886 = vunpack.c.l.b16 %v287
    %v887 = vunpack.c.h.b16 %v287
    %v888 = vunpack.c.l.b16 %v288
    %v889 = vunpack.c.h.b16 %v288
    %v890 = vunpack.c.l.b16 %v289
    %v891 = vunpack.c.h.b16 %v289
    %v892 = vunpack.c.l.b16 %v290
    %v893 = vunpack.c.h.b16 %v290
    %v894 = vunpack.c.l.b16 %v291
    %v895 = vunpack.c.h.b16 %v291
    %v896 = vunpack.c.l.b16 %v292
    %v897 = vunpack.c.h.b16 %v292
    %v898 = vunpack.c.l.b16 %v293
    %v899 = vunpack.c.h.b16 %v293
    %v900 = vunpack.c.l.b16 %v294
    %v901 = vunpack.c.h.b16 %v294
    %v902 = vunpack.c.l.b16 %v295
    %v903 = vunpack.c.h.b16 %v295
    %v904 = vunpack.c.l.b16 %v296
    %v905 = vunpack.c.h.b16 %v296
    %v906 = vunpack.c.l.b16 %v297
    %v907 = vunpack.c.h.b16 %v297
    %v908 = vunpack.c.l.b16 %v298
    %v909 = vunpack.c.h.b16 %v298
    %v910 = vunpack.c.l.b16 %v299
    %v911 = vunpack.c.h.b16 %v299
    %v912 = vunpack.c.l.b16 %v300
    %v913 = vunpack.c.h.b16 %v300
    %v914 = vunpack.c.l.b16 %v301
    %v915 = vunpack.c.h.b16 %v301
    %v916 = vunpack.c.l.b16 %v302
    %v917 = vunpack.c.h.b16 %v302
    %v918 = vunpack.c.l.b16 %v303
    %v919 = vunpack.c.h.b16 %v303
    %v920 = vunpack.c.l.b16 %v304
    %v921 = vunpack.c.h.b16 %v304
    %v922 = vunpack.c.l.b16 %v305
    %v923 = vunpack.c.h.b16 %v305
    %v924 = vunpack.c.l.b16 %v306
    %v925 = vunpack.c.h.b16 %v306
    %v926 = vunpack.c.l.b16 %v307
    %v927 = vunpack.c.h.b16 %v307
    %v928 = vunpack.c.l.b16 %v308
    %v929 = vunpack.c.h.b16 %v308
    %v930 = vunpack.c.l.b16 %v309
    %v931 = vunpack.c.h.b16 %v309
    %v932 = vunpack.c.l.b16 %v310
    %v933 = vunpack.c.h.b16 %v310
    %v934 = vunpack.c.l.b16 %v311
    %v935 = vunpack.c.h.b16 %v311
    %v936 = vunpack.c.l.b16 %v312
    %v937 = vunpack.c.h.b16 %v312
    %v938 = vunpack.c.l.b16 %v313
    %v939 = vunpack.c.h.b16 %v313
    %v940 = vunpack.c.l.b16 %v314
    %v941 = vunpack.c.h.b16 %v314
    %v942 = vunpack.c.l.b16 %v315
    %v943 = vunpack.c.h.b16 %v315
    %v944 = vunpack.c.l.b16 %v316
    %v945 = vunpack.c.h.b16 %v316
    %v946 = vunpack.c.l.b16 %v317
    %v947 = vunpack.c.h.b16 %v317
    %v948 = vunpack.c.l.b16 %v318
    %v949 = vunpack.c.h.b16 %v318
    %v950 = vunpack.c.l.b16 %v319
    %v951 = vunpack.c.h.b16 %v319
    %v952 = vunpack.c.l.b16 %v320
    %v953 = vunpack.c.h.b16 %v320
    %v954 = vunpack.c.l.b16 %v321
    %v955 = vunpack.c.h.b16 %v321
    %v956 = vunpack.c.l.b16 %v322
    %v957 = vunpack.c.h.b16 %v322
    %v958 = vunpack.c.l.b16 %v323
    %v959 = vunpack.c.h.b16 %v323
    %v960 = vunpack.c.l.b16 %v324
    %v961 = vunpack.c.h.b16 %v324
    %v962 = vunpack.c.l.b16 %v325
    %v963 = vunpack.c.h.b16 %v325
    %v964 = vunpack.c.l.b16 %v326
    %v965 = vunpack.c.h.b16 %v326
    %v966 = vunpack.c.l.b16 %v327
    %v967 = vunpack.c.h.b16 %v327
    %v968 = vunpack.c.l.b16 %v328
    %v969 = vunpack.c.h.b16 %v328
    %v970 = vunpack.c.l.b16 %v329
    %v971 = vunpack.c.h.b16 %v329
    %v972 = vunpack.c.l.b16 %v330
    %v973 = vunpack.c.h.b16 %v330
    %v974 = vunpack.c.l.b16 %v331
    %v975 = vunpack.c.h.b16 %v331
    %v976 = vunpack.c.l.b16 %v332
    %v977 = vunpack.c.h.b16 %v332
    %v978 = vunpack.c.l.b16 %v333
    %v979 = vunpack.c.h.b16 %v333
    %v980 = vunpack.c.l.b16 %v334
    %v981 = vunpack.c.h.b16 %v334
    %v982 = vunpack.c.l.b16 %v335
    %v983 = vunpack.c.h.b16 %v335
    %v984 = vunpack.c.l.b16 %v336
    %v985 = vunpack.c.h.b16 %v336
    %v986 = vunpack.c.l.b16 %v337
    %v987 = vunpack.c.h.b16 %v337
    %v988 = vunpack.c.l.b16 %v338
    %v989 = vunpack.c.h.b16 %v338
    %v990 = vunpack.c.l.b16 %v339
    %v991 = vunpack.c.h.b16 %v339
    %v992 = vunpack.c.l.b16 %v340
    %v993 = vunpack.c.h.b16 %v340
    %v994 = vunpack.c.l.b16 %v341
    %v995 = vunpack.c.h.b16 %v341
    %v996 = vunpack.c.l.b16 %v342
    %v997 = vunpack.c.h.b16 %v342
    %v998 = vunpack.c.l.b16 %v343
    %v999 = vunpack.c.h.b16 %v343
    %v1000 = vunpack.c.l.b16 %v344
    %v1001 = vunpack.c.h.b16 %v344
    %v1002 = vunpack.c.l.b16 %v345
    %v1003 = vunpack.c.h.b16 %v345
    %v1004 = vunpack.c.l.b16 %v346
    %v1005 = vunpack.c.h.b16 %v346
    %v1006 = vunpack.c.l.b16 %v347
    %v1007 = vunpack.c.h.b16 %v347
    %v1008 = vunpack.c.l.b16 %v348
    %v1009 = vunpack.c.h.b16 %v348
    %v1010 = vunpack.c.l.b16 %v349
    %v1011 = vunpack.c.h.b16 %v349
    %v1012 = vunpack.c.l.b16 %v350
    %v1013 = vunpack.c.h.b16 %v350
    %v1014 = vunpack.c.l.b16 %v351
    %v1015 = vunpack.c.h.b16 %v351
    %v1016 = vunpack.c.l.b16 %v352
    %v1017 = vunpack.c.h.b16 %v352
    %v1018 = vunpack.c.l.b16 %v353
    %v1019 = vunpack.c.h.b16 %v353
    %v1020 = vunpack.c.l.b16 %v354
    %v1021 = vunpack.c.h.b16 %v354
    %v1022 = vunpack.c.l.b16 %v355
    %v1023 = vunpack.c.h.b16 %v355
    %v1024 = vunpack.c.l.b16 %v356
    %v1025 = vunpack.c.h.b16 %v356
    %v1026 = vunpack.c.l.b16 %v357
    %v1027 = vunpack.c.h.b16 %v357
    %v1028 = vunpack.c.l.b16 %v358
    %v1029 = vunpack.c.h.b16 %v358
    %v1030 = vunpack.c.l.b16 %v359
    %v1031 = vunpack.c.h.b16 %v359
    %v1032 = vpack.c.b16 %v612, %v584
    %v1033 = vpack.c.b16 %v613, %v585
    %v1034 = vpack.c.b16 %v614, %v586
    %v1035 = vpack.c.b16 %v615, %v587
    %v1036 = vpack.c.b16 %v616, %v588
    %v1037 = vpack.c.b16 %v617, %v589
    %v1038 = vpack.c.b16 %v618, %v590
    %v1039 = vpack.c.b16 %v619, %v591
    %v1040 = vpack.c.b16 %v620, %v592
    %v1041 = vpack.c.b16 %v621, %v593
    %v1042 = vpack.c.b16 %v622, %v594
    %v1043 = vpack.c.b16 %v623, %v595
    %v1044 = vpack.c.b16 %v624, %v596
    %v1045 = vpack.c.b16 %v625, %v597
    %v1046 = vpack.c.b16 %v626, %v598
    %v1047 = vpack.c.b16 %v627, %v599
    %v1048 = vpack.c.b16 %v628, %v600
    %v1049 = vpack.c.b16 %v629, %v601
    %v1050 = vpack.c.b16 %v630, %v602
    %v1051 = vpack.c.b16 %v631, %v603
    %v1052 = vpack.c.b16 %v632, %v604
    %v1053 = vpack.c.b16 %v633, %v605
    %v1054 = vpack.c.b16 %v634, %v606
    %v1055 = vpack.c.b16 %v635, %v607
    %v1056 = vpack.c.b16 %v636, %v608
    %v1057 = vpack.c.b16 %v637, %v609
    %v1058 = vpack.c.b16 %v638, %v610
    %v1059 = vpack.c.b16 %v639, %v611
    %v1060 = vpack.c.b16 %v668, %v640
    %v1061 = vpack.c.b16 %v669, %v641
    %v1062 = vpack.c.b16 %v670, %v642
    %v1063 = vpack.c.b16 %v671, %v643
    %v1064 = vpack.c.b16 %v672, %v644
    %v1065 = vpack.c.b16 %v673, %v645
    %v1066 = vpack.c.b16 %v674, %v646
    %v1067 = vpack.c.b16 %v675, %v647
    %v1068 = vpack.c.b16 %v676, %v648
    %v1069 = vpack.c.b16 %v677, %v649
    %v1070 = vpack.c.b16 %v678, %v650
    %v1071 = vpack.c.b16 %v679, %v651
    %v1072 = vpack.c.b16 %v680, %v652
    %v1073 = vpack.c.b16 %v681, %v653
    %v1074 = vpack.c.b16 %v682, %v654
    %v1075 = vpack.c.b16 %v683, %v655
    %v1076 = vpack.c.b16 %v684, %v656
    %v1077 = vpack.c.b16 %v685, %v657
    %v1078 = vpack.c.b16 %v686, %v658
    %v1079 = vpack.c.b16 %v687, %v659
    %v1080 = vpack.c.b16 %v688, %v660
    %v1081 = vpack.c.b16 %v689, %v661
    %v1082 = vpack.c.b16 %v690, %v662
    %v1083 = vpack.c.b16 %v691, %v663
    %v1084 = vpack.c.b16 %v692, %v664
    %v1085 = vpack.c.b16 %v693, %v665
    %v1086 = vpack.c.b16 %v694, %v666
    %v1087 = vpack.c.b16 %v695, %v667
    %v1088 = vpack.c.b16 %v724, %v696
    %v1089 = vpack.c.b16 %v725, %v697
    %v1090 = vpack.c.b16 %v726, %v698
    %v1091 = vpack.c.b16 %v727, %v699
    %v1092 = vpack.c.b16 %v728, %v700
    %v1093 = vpack.c.b16 %v729, %v701
    %v1094 = vpack.c.b16 %v730, %v702
    %v1095 = vpack.c.b16 %v731, %v703
    %v1096 = vpack.c.b16 %v732, %v704
    %v1097 = vpack.c.b16 %v733, %v705
    %v1098 = vpack.c.b16 %v734, %v706
    %v1099 = vpack.c.b16 %v735, %v707
    %v1100 = vpack.c.b16 %v736, %v708
    %v1101 = vpack.c.b16 %v737, %v709
    %v1102 = vpack.c.b16 %v738, %v710
    %v1103 = vpack.c.b16 %v739, %v711
    %v1104 = vpack.c.b16 %v740, %v712
    %v1105 = vpack.c.b16 %v741, %v713
    %v1106 = vpack.c.b16 %v742, %v714
    %v1107 = vpack.c.b16 %v743, %v715
    %v1108 = vpack.c.b16 %v744, %v716
    %v1109 = vpack.c.b16 %v745, %v717
    %v1110 = vpack.c.b16 %v746, %v718
    %v1111 = vpack.c.b16 %v747, %v719
    %v1112 = vpack.c.b16 %v748, %v720
    %v1113 = vpack.c.b16 %v749, %v721
    %v1114 = vpack.c.b16 %v750, %v722
    %v1115 = vpack.c.b16 %v751, %v723
    %v1116 = vpack.c.b16 %v780, %v752
    %v1117 = vpack.c.b16 %v781, %v753
    %v1118 = vpack.c.b16 %v782, %v754
    %v1119 = vpack.c.b16 %v783, %v755
    %v1120 = vpack.c.b16 %v784, %v756
    %v1121 = vpack.c.b16 %v785, %v757
    %v1122 = vpack.c.b16 %v786, %v758
    %v1123 = vpack.c.b16 %v787, %v759
    %v1124 = vpack.c.b16 %v788, %v760
    %v1125 = vpack.c.b16 %v789, %v761
    %v1126 = vpack.c.b16 %v790, %v762
    %v1127 = vpack.c.b16 %v791, %v763
    %v1128 = vpack.c.b16 %v792, %v764
    %v1129 = vpack.c.b16 %v793, %v765
    %v1130 = vpack.c.b16 %v794, %v766
    %v1131 = vpack.c.b16 %v795, %v767
    %v1132 = vpack.c.b16 %v796, %v768
    %v1133 = vpack.c.b16 %v797, %v769
    %v1134 = vpack.c.b16 %v798, %v770
    %v1135 = vpack.c.b16 %v799, %v771
    %v1136 = vpack.c.b16 %v800, %v772
    %v1137 = vpack.c.b16 %v801, %v773
    %v1138 = vpack.c.b16 %v802, %v774
    %v1139 = vpack.c.b16 %v803, %v775
    %v1140 = vpack.c.b16 %v804, %v776
    %v1141 = vpack.c.b16 %v805, %v777
    %v1142 = vpack.c.b16 %v806, %v778
    %v1143 = vpack.c.b16 %v807, %v779
    %v1144 = vpack.c.b16 %v836, %v808
    %v1145 = vpack.c.b16 %v837, %v809
    %v1146 = vpack.c.b16 %v838, %v810
    %v1147 = vpack.c.b16 %v839, %v811
    %v1148 = vpack.c.b16 %v840, %v812
    %v1149 = vpack.c.b16 %v841, %v813
    %v1150 = vpack.c.b16 %v842, %v814
    %v1151 = vpack.c.b16 %v843, %v815
    %v1152 = vpack.c.b16 %v844, %v816
    %v1153 = vpack.c.b16 %v845, %v817
    %v1154 = vpack.c.b16 %v846, %v818
    %v1155 = vpack.c.b16 %v847, %v819
    %v1156 = vpack.c.b16 %v848, %v820
    %v1157 = vpack.c.b16 %v849, %v821
    %v1158 = vpack.c.b16 %v850, %v822
    %v1159 = vpack.c.b16 %v851, %v823
    %v1160 = vpack.c.b16 %v852, %v824
    %v1161 = vpack.c.b16 %v853, %v825
    %v1162 = vpack.c.b16 %v854, %v826
    %v1163 = vpack.c.b16 %v855, %v827
    %v1164 = vpack.c.b16 %v856, %v828
    %v1165 = vpack.c.b16 %v857, %v829
    %v1166 = vpack.c.b16 %v858, %v830
    %v1167 = vpack.c.b16 %v859, %v831
    %v1168 = vpack.c.b16 %v860, %v832
    %v1169 = vpack.c.b16 %v861, %v833
    %v1170 = vpack.c.b16 %v862, %v834
    %v1171 = vpack.c.b16 %v863, %v835
    %v1172 = vpack.c.b16 %v892, %v864
    %v1173 = vpack.c.b16 %v893, %v865
    %v1174 = vpack.c.b16 %v894, %v866
    %v1175 = vpack.c.b16 %v895, %v867
    %v1176 = vpack.c.b16 %v896, %v868
    %v1177 = vpack.c.b16 %v897, %v869
    %v1178 = vpack.c.b16 %v898, %v870
    %v1179 = vpack.c.b16 %v899, %v871
    %v1180 = vpack.c.b16 %v900, %v872
    %v1181 = vpack.c.b16 %v901, %v873
    %v1182 = vpack.c.b16 %v902, %v874
    %v1183 = vpack.c.b16 %v903, %v875
    %v1184 = vpack.c.b16 %v904, %v876
    %v1185 = vpack.c.b16 %v905, %v877
    %v1186 = vpack.c.b16 %v906, %v878
    %v1187 = vpack.c.b16 %v907, %v879
    %v1188 = vpack.c.b16 %v908, %v880
    %v1189 = vpack.c.b16 %v909, %v881
    %v1190 = vpack.c.b16 %v910, %v882
    %v1191 = vpack.c.b16 %v911, %v883
    %v1192 = vpack.c.b16 %v912, %v884
    %v1193 = vpack.c.b16 %v913, %v885
    %v1194 = vpack.c.b16 %v914, %v886
    %v1195 = vpack.c.b16 %v915, %v887
    %v1196 = vpack.c.b16 %v916, %v888
    %v1197 = vpack.c.b16 %v917, %v889
    %v1198 = vpack.c.b16 %v918, %v890
    %v1199 = vpack.c.b16 %v919, %v891
    %v1200 = vpack.c.b16 %v948, %v920
    %v1201 = vpack.c.b16 %v949, %v921
    %v1202 = vpack.c.b16 %v950, %v922
    %v1203 = vpack.c.b16 %v951, %v923
    %v1204 = vpack.c.b16 %v952, %v924
    %v1205 = vpack.c.b16 %v953, %v925
    %v1206 = vpack.c.b16 %v954, %v926
    %v1207 = vpack.c.b16 %v955, %v927
    %v1208 = vpack.c.b16 %v956, %v928
    %v1209 = vpack.c.b16 %v957, %v929
    %v1210 = vpack.c.b16 %v958, %v930
    %v1211 = vpack.c.b16 %v959, %v931
    %v1212 = vpack.c.b16 %v960, %v932
    %v1213 = vpack.c.b16 %v961, %v933
    %v1214 = vpack.c.b16 %v962, %v934
    %v1215 = vpack.c.b16 %v963, %v935
    %v1216 = vpack.c.b16 %v964, %v936
    %v1217 = vpack.c.b16 %v965, %v937
    %v1218 = vpack.c.b16 %v966, %v938
    %v1219 = vpack.c.b16 %v967, %v939
    %v1220 = vpack.c.b16 %v968, %v940
    %v1221 = vpack.c.b16 %v969, %v941
    %v1222 = vpack.c.b16 %v970, %v942
    %v1223 = vpack.c.b16 %v971, %v943
    %v1224 = vpack.c.b16 %v972, %v944
    %v1225 = vpack.c.b16 %v973, %v945
    %v1226 = vpack.c.b16 %v974, %v946
    %v1227 = vpack.c.b16 %v975, %v947
    %v1228 = vpack.c.b16 %v1004, %v976
    %v1229 = vpack.c.b16 %v1005, %v977
    %v1230 = vpack.c.b16 %v1006, %v978
    %v1231 = vpack.c.b16 %v1007, %v979
    %v1232 = vpack.c.b16 %v1008, %v980
    %v1233 = vpack.c.b16 %v1009, %v981
    %v1234 = vpack.c.b16 %v1010, %v982
    %v1235 = vpack.c.b16 %v1011, %v983
    %v1236 = vpack.c.b16 %v1012, %v984
    %v1237 = vpack.c.b16 %v1013, %v985
    %v1238 = vpack.c.b16 %v1014, %v986
    %v1239 = vpack.c.b16 %v1015, %v987
    %v1240 = vpack.c.b16 %v1016, %v988
    %v1241 = vpack.c.b16 %v1017, %v989
    %v1242 = vpack.c.b16 %v1018, %v990
    %v1243 = vpack.c.b16 %v1019, %v991
    %v1244 = vpack.c.b16 %v1020, %v992
    %v1245 = vpack.c.b16 %v1021, %v993
    %v1246 = vpack.c.b16 %v1022, %v994
    %v1247 = vpack.c.b16 %v1023, %v995
    %v1248 = vpack.c.b16 %v1024, %v996
    %v1249 = vpack.c.b16 %v1025, %v997
    %v1250 = vpack.c.b16 %v1026, %v998
    %v1251 = vpack.c.b16 %v1027, %v999
    %v1252 = vpack.c.b16 %v1028, %v1000
    %v1253 = vpack.c.b16 %v1029, %v1001
    %v1254 = vpack.c.b16 %v1030, %v1002
    %v1255 = vpack.c.b16 %v1031, %v1003
    %1480 = vmatprep.subr.bf16.mxu0 %v1229
    %1481 = vmatpush1.bf16.msra.mxu0 %v1228
    %1482 = vmatprep.subr.bf16.mxu0 %v1201
    %1483 = vmatpush1.bf16.msra.mxu0 %v1200
    %1484 = vmatprep.subr.bf16.mxu0 %v1173
    %1485 = vmatpush1.bf16.msra.mxu0 %v1172
    %1486 = vmatprep.subr.bf16.mxu0 %v1145
    %1487 = vmatpush1.bf16.msra.mxu0 %v1144
    %1488 = vmatprep.subr.bf16.mxu0 %v1117
    %1489 = vmatpush1.bf16.msra.mxu0 %v1116
    %1490 = vmatprep.subr.bf16.mxu0 %v1089
    %1491 = vmatpush1.bf16.msra.mxu0 %v1088
    %1492 = vmatprep.subr.bf16.mxu0 %v1061
    %1493 = vmatpush1.bf16.msra.mxu0 %v1060
    %1494 = vmatprep.subr.bf16.mxu0 %v1033
    %1495 = vmatpush1.bf16.msra.mxu0 %v1032
    %1496 = vmatprep.subr.bf16.mxu0 0
    %1497 = vmatpush2.bf16.msra.mxu0 0
    %1498 = vmatprep.subr.bf16.mxu0 0
    %1499 = vmatpush2.bf16.msra.mxu0 0
    %1500 = vmatprep.subr.bf16.mxu0 0
    %1501 = vmatpush2.bf16.msra.mxu0 0
    %1502 = vmatprep.subr.bf16.mxu0 0
    %1503 = vmatpush2.bf16.msra.mxu0 0
    %1504 = vmatprep.subr.bf16.mxu0 0
    %1505 = vmatpush2.bf16.msra.mxu0 0
    %1506 = vmatprep.subr.bf16.mxu0 0
    %1507 = vmatpush2.bf16.msra.mxu0 0
    %1508 = vmatprep.subr.bf16.mxu0 0
    %1509 = vmatpush2.bf16.msra.mxu0 0
    %1510 = vmatprep.subr.bf16.mxu0 0
    %1511 = vmatpush2.bf16.msra.mxu0 0
    %1512 = vmatprep.mubr.bf16.mxu0 0
    %1513 = vmatmul.mubr.bf16.gmra.mxu0 %v135
    %v1514 = vpop.f32.mrf.mxu0
    %v1515 = vadd.f32 0.0, %v1514
    %v1516 = vpop.f32.mrf.mxu0
    %v1517 = vadd.f32 0.0, %v1516
    %v1518 = vpop.f32.mrf.mxu0
    %v1519 = vpop.f32.mrf.mxu0
    %1520 = vdwg.mxu0
    %1521 = vmatprep.subr.bf16.mxu0 %v1231
    %1522 = vmatpush1.bf16.msra.mxu0 %v1230
    %1523 = vmatprep.subr.bf16.mxu0 %v1203
    %1524 = vmatpush1.bf16.msra.mxu0 %v1202
    %1525 = vmatprep.subr.bf16.mxu0 %v1175
    %1526 = vmatpush1.bf16.msra.mxu0 %v1174
    %1527 = vmatprep.subr.bf16.mxu0 %v1147
    %1528 = vmatpush1.bf16.msra.mxu0 %v1146
    %1529 = vmatprep.subr.bf16.mxu0 %v1119
    %1530 = vmatpush1.bf16.msra.mxu0 %v1118
    %1531 = vmatprep.subr.bf16.mxu0 %v1091
    %1532 = vmatpush1.bf16.msra.mxu0 %v1090
    %1533 = vmatprep.subr.bf16.mxu0 %v1063
    %1534 = vmatpush1.bf16.msra.mxu0 %v1062
    %1535 = vmatprep.subr.bf16.mxu0 %v1035
    %1536 = vmatpush1.bf16.msra.mxu0 %v1034
    %1537 = vmatprep.subr.bf16.mxu0 0
    %1538 = vmatpush2.bf16.msra.mxu0 0
    %1539 = vmatprep.subr.bf16.mxu0 0
    %1540 = vmatpush2.bf16.msra.mxu0 0
    %1541 = vmatprep.subr.bf16.mxu0 0
    %1542 = vmatpush2.bf16.msra.mxu0 0
    %1543 = vmatprep.subr.bf16.mxu0 0
    %1544 = vmatpush2.bf16.msra.mxu0 0
    %1545 = vmatprep.subr.bf16.mxu0 0
    %1546 = vmatpush2.bf16.msra.mxu0 0
    %1547 = vmatprep.subr.bf16.mxu0 0
    %1548 = vmatpush2.bf16.msra.mxu0 0
    %1549 = vmatprep.subr.bf16.mxu0 0
    %1550 = vmatpush2.bf16.msra.mxu0 0
    %1551 = vmatprep.subr.bf16.mxu0 0
    %1552 = vmatpush2.bf16.msra.mxu0 0
    %1553 = vmatprep.mubr.bf16.mxu0 0
    %1554 = vmatmul.mubr.bf16.gmra.mxu0 %v135
    %v1555 = vpop.f32.mrf.mxu0
    %v1556 = vadd.f32 0.0, %v1555
    %v1557 = vpop.f32.mrf.mxu0
    %v1558 = vadd.f32 0.0, %v1557
    %v1559 = vpop.f32.mrf.mxu0
    %v1560 = vpop.f32.mrf.mxu0
    %1561 = vdwg.mxu0
    %1562 = vmatprep.subr.bf16.mxu0 %v1233
    %1563 = vmatpush1.bf16.msra.mxu0 %v1232
    %1564 = vmatprep.subr.bf16.mxu0 %v1205
    %1565 = vmatpush1.bf16.msra.mxu0 %v1204
    %1566 = vmatprep.subr.bf16.mxu0 %v1177
    %1567 = vmatpush1.bf16.msra.mxu0 %v1176
    %1568 = vmatprep.subr.bf16.mxu0 %v1149
    %1569 = vmatpush1.bf16.msra.mxu0 %v1148
    %1570 = vmatprep.subr.bf16.mxu0 %v1121
    %1571 = vmatpush1.bf16.msra.mxu0 %v1120
    %1572 = vmatprep.subr.bf16.mxu0 %v1093
    %1573 = vmatpush1.bf16.msra.mxu0 %v1092
    %1574 = vmatprep.subr.bf16.mxu0 %v1065
    %1575 = vmatpush1.bf16.msra.mxu0 %v1064
    %1576 = vmatprep.subr.bf16.mxu0 %v1037
    %1577 = vmatpush1.bf16.msra.mxu0 %v1036
    %1578 = vmatprep.subr.bf16.mxu0 0
    %1579 = vmatpush2.bf16.msra.mxu0 0
    %1580 = vmatprep.subr.bf16.mxu0 0
    %1581 = vmatpush2.bf16.msra.mxu0 0
    %1582 = vmatprep.subr.bf16.mxu0 0
    %1583 = vmatpush2.bf16.msra.mxu0 0
    %1584 = vmatprep.subr.bf16.mxu0 0
    %1585 = vmatpush2.bf16.msra.mxu0 0
    %1586 = vmatprep.subr.bf16.mxu0 0
    %1587 = vmatpush2.bf16.msra.mxu0 0
    %1588 = vmatprep.subr.bf16.mxu0 0
    %1589 = vmatpush2.bf16.msra.mxu0 0
    %1590 = vmatprep.subr.bf16.mxu0 0
    %1591 = vmatpush2.bf16.msra.mxu0 0
    %1592 = vmatprep.subr.bf16.mxu0 0
    %1593 = vmatpush2.bf16.msra.mxu0 0
    %1594 = vmatprep.mubr.bf16.mxu0 0
    %1595 = vmatmul.mubr.bf16.gmra.mxu0 %v135
    %v1596 = vpop.f32.mrf.mxu0
    %v1597 = vadd.f32 0.0, %v1596
    %v1598 = vpop.f32.mrf.mxu0
    %v1599 = vadd.f32 0.0, %v1598
    %v1600 = vpop.f32.mrf.mxu0
    %v1601 = vpop.f32.mrf.mxu0
    %1602 = vdwg.mxu0
    %1603 = vmatprep.subr.bf16.mxu0 %v1235
    %1604 = vmatpush1.bf16.msra.mxu0 %v1234
    %1605 = vmatprep.subr.bf16.mxu0 %v1207
    %1606 = vmatpush1.bf16.msra.mxu0 %v1206
    %1607 = vmatprep.subr.bf16.mxu0 %v1179
    %1608 = vmatpush1.bf16.msra.mxu0 %v1178
    %1609 = vmatprep.subr.bf16.mxu0 %v1151
    %1610 = vmatpush1.bf16.msra.mxu0 %v1150
    %1611 = vmatprep.subr.bf16.mxu0 %v1123
    %1612 = vmatpush1.bf16.msra.mxu0 %v1122
    %1613 = vmatprep.subr.bf16.mxu0 %v1095
    %1614 = vmatpush1.bf16.msra.mxu0 %v1094
    %1615 = vmatprep.subr.bf16.mxu0 %v1067
    %1616 = vmatpush1.bf16.msra.mxu0 %v1066
    %1617 = vmatprep.subr.bf16.mxu0 %v1039
    %1618 = vmatpush1.bf16.msra.mxu0 %v1038
    %1619 = vmatprep.subr.bf16.mxu0 0
    %1620 = vmatpush2.bf16.msra.mxu0 0
    %1621 = vmatprep.subr.bf16.mxu0 0
    %1622 = vmatpush2.bf16.msra.mxu0 0
    %1623 = vmatprep.subr.bf16.mxu0 0
    %1624 = vmatpush2.bf16.msra.mxu0 0
    %1625 = vmatprep.subr.bf16.mxu0 0
    %1626 = vmatpush2.bf16.msra.mxu0 0
    %1627 = vmatprep.subr.bf16.mxu0 0
    %1628 = vmatpush2.bf16.msra.mxu0 0
    %1629 = vmatprep.subr.bf16.mxu0 0
    %1630 = vmatpush2.bf16.msra.mxu0 0
    %1631 = vmatprep.subr.bf16.mxu0 0
    %1632 = vmatpush2.bf16.msra.mxu0 0
    %1633 = vmatprep.subr.bf16.mxu0 0
    %1634 = vmatpush2.bf16.msra.mxu0 0
    %1635 = vmatprep.mubr.bf16.mxu0 0
    %1636 = vmatmul.mubr.bf16.gmra.mxu0 %v135
    %v1637 = vpop.f32.mrf.mxu0
    %v1638 = vadd.f32 0.0, %v1637
    %v1639 = vpop.f32.mrf.mxu0
    %v1640 = vadd.f32 0.0, %v1639
    %v1641 = vpop.f32.mrf.mxu0
    %v1642 = vpop.f32.mrf.mxu0
    %1643 = vdwg.mxu0
    %1644 = vmatprep.subr.bf16.mxu0 %v1237
    %1645 = vmatpush1.bf16.msra.mxu0 %v1236
    %1646 = vmatprep.subr.bf16.mxu0 %v1209
    %1647 = vmatpush1.bf16.msra.mxu0 %v1208
    %1648 = vmatprep.subr.bf16.mxu0 %v1181
    %1649 = vmatpush1.bf16.msra.mxu0 %v1180
    %1650 = vmatprep.subr.bf16.mxu0 %v1153
    %1651 = vmatpush1.bf16.msra.mxu0 %v1152
    %1652 = vmatprep.subr.bf16.mxu0 %v1125
    %1653 = vmatpush1.bf16.msra.mxu0 %v1124
    %1654 = vmatprep.subr.bf16.mxu0 %v1097
    %1655 = vmatpush1.bf16.msra.mxu0 %v1096
    %1656 = vmatprep.subr.bf16.mxu0 %v1069
    %1657 = vmatpush1.bf16.msra.mxu0 %v1068
    %1658 = vmatprep.subr.bf16.mxu0 %v1041
    %1659 = vmatpush1.bf16.msra.mxu0 %v1040
    %1660 = vmatprep.subr.bf16.mxu0 0
    %1661 = vmatpush2.bf16.msra.mxu0 0
    %1662 = vmatprep.subr.bf16.mxu0 0
    %1663 = vmatpush2.bf16.msra.mxu0 0
    %1664 = vmatprep.subr.bf16.mxu0 0
    %1665 = vmatpush2.bf16.msra.mxu0 0
    %1666 = vmatprep.subr.bf16.mxu0 0
    %1667 = vmatpush2.bf16.msra.mxu0 0
    %1668 = vmatprep.subr.bf16.mxu0 0
    %1669 = vmatpush2.bf16.msra.mxu0 0
    %1670 = vmatprep.subr.bf16.mxu0 0
    %1671 = vmatpush2.bf16.msra.mxu0 0
    %1672 = vmatprep.subr.bf16.mxu0 0
    %1673 = vmatpush2.bf16.msra.mxu0 0
    %1674 = vmatprep.subr.bf16.mxu0 0
    %1675 = vmatpush2.bf16.msra.mxu0 0
    %1676 = vmatprep.mubr.bf16.mxu0 0
    %1677 = vmatmul.mubr.bf16.gmra.mxu0 %v135
    %v1678 = vpop.f32.mrf.mxu0
    %v1679 = vadd.f32 0.0, %v1678
    %v1680 = vpop.f32.mrf.mxu0
    %v1681 = vadd.f32 0.0, %v1680
    %v1682 = vpop.f32.mrf.mxu0
    %v1683 = vpop.f32.mrf.mxu0
    %1684 = vdwg.mxu0
    %1685 = vmatprep.subr.bf16.mxu0 %v1239
    %1686 = vmatpush1.bf16.msra.mxu0 %v1238
    %1687 = vmatprep.subr.bf16.mxu0 %v1211
    %1688 = vmatpush1.bf16.msra.mxu0 %v1210
    %1689 = vmatprep.subr.bf16.mxu0 %v1183
    %1690 = vmatpush1.bf16.msra.mxu0 %v1182
    %1691 = vmatprep.subr.bf16.mxu0 %v1155
    %1692 = vmatpush1.bf16.msra.mxu0 %v1154
    %1693 = vmatprep.subr.bf16.mxu0 %v1127
    %1694 = vmatpush1.bf16.msra.mxu0 %v1126
    %1695 = vmatprep.subr.bf16.mxu0 %v1099
    %1696 = vmatpush1.bf16.msra.mxu0 %v1098
    %1697 = vmatprep.subr.bf16.mxu0 %v1071
    %1698 = vmatpush1.bf16.msra.mxu0 %v1070
    %1699 = vmatprep.subr.bf16.mxu0 %v1043
    %1700 = vmatpush1.bf16.msra.mxu0 %v1042
    %1701 = vmatprep.subr.bf16.mxu0 0
    %1702 = vmatpush2.bf16.msra.mxu0 0
    %1703 = vmatprep.subr.bf16.mxu0 0
    %1704 = vmatpush2.bf16.msra.mxu0 0
    %1705 = vmatprep.subr.bf16.mxu0 0
    %1706 = vmatpush2.bf16.msra.mxu0 0
    %1707 = vmatprep.subr.bf16.mxu0 0
    %1708 = vmatpush2.bf16.msra.mxu0 0
    %1709 = vmatprep.subr.bf16.mxu0 0
    %1710 = vmatpush2.bf16.msra.mxu0 0
    %1711 = vmatprep.subr.bf16.mxu0 0
    %1712 = vmatpush2.bf16.msra.mxu0 0
    %1713 = vmatprep.subr.bf16.mxu0 0
    %1714 = vmatpush2.bf16.msra.mxu0 0
    %1715 = vmatprep.subr.bf16.mxu0 0
    %1716 = vmatpush2.bf16.msra.mxu0 0
    %1717 = vmatprep.mubr.bf16.mxu0 0
    %1718 = vmatmul.mubr.bf16.gmra.mxu0 %v135
    %v1719 = vpop.f32.mrf.mxu0
    %v1720 = vadd.f32 0.0, %v1719
    %v1721 = vpop.f32.mrf.mxu0
    %v1722 = vadd.f32 0.0, %v1721
    %v1723 = vpop.f32.mrf.mxu0
    %v1724 = vpop.f32.mrf.mxu0
    %1725 = vdwg.mxu0
    %1726 = vmatprep.subr.bf16.mxu0 %v1241
    %1727 = vmatpush1.bf16.msra.mxu0 %v1240
    %1728 = vmatprep.subr.bf16.mxu0 %v1213
    %1729 = vmatpush1.bf16.msra.mxu0 %v1212
    %1730 = vmatprep.subr.bf16.mxu0 %v1185
    %1731 = vmatpush1.bf16.msra.mxu0 %v1184
    %1732 = vmatprep.subr.bf16.mxu0 %v1157
    %1733 = vmatpush1.bf16.msra.mxu0 %v1156
    %1734 = vmatprep.subr.bf16.mxu0 %v1129
    %1735 = vmatpush1.bf16.msra.mxu0 %v1128
    %1736 = vmatprep.subr.bf16.mxu0 %v1101
    %1737 = vmatpush1.bf16.msra.mxu0 %v1100
    %1738 = vmatprep.subr.bf16.mxu0 %v1073
    %1739 = vmatpush1.bf16.msra.mxu0 %v1072
    %1740 = vmatprep.subr.bf16.mxu0 %v1045
    %1741 = vmatpush1.bf16.msra.mxu0 %v1044
    %1742 = vmatprep.subr.bf16.mxu0 0
    %1743 = vmatpush2.bf16.msra.mxu0 0
    %1744 = vmatprep.subr.bf16.mxu0 0
    %1745 = vmatpush2.bf16.msra.mxu0 0
    %1746 = vmatprep.subr.bf16.mxu0 0
    %1747 = vmatpush2.bf16.msra.mxu0 0
    %1748 = vmatprep.subr.bf16.mxu0 0
    %1749 = vmatpush2.bf16.msra.mxu0 0
    %1750 = vmatprep.subr.bf16.mxu0 0
    %1751 = vmatpush2.bf16.msra.mxu0 0
    %1752 = vmatprep.subr.bf16.mxu0 0
    %1753 = vmatpush2.bf16.msra.mxu0 0
    %1754 = vmatprep.subr.bf16.mxu0 0
    %1755 = vmatpush2.bf16.msra.mxu0 0
    %1756 = vmatprep.subr.bf16.mxu0 0
    %1757 = vmatpush2.bf16.msra.mxu0 0
    %1758 = vmatprep.mubr.bf16.mxu0 0
    %1759 = vmatmul.mubr.bf16.gmra.mxu0 %v135
    %v1760 = vpop.f32.mrf.mxu0
    %v1761 = vadd.f32 0.0, %v1760
    %v1762 = vpop.f32.mrf.mxu0
    %v1763 = vadd.f32 0.0, %v1762
    %v1764 = vpop.f32.mrf.mxu0
    %v1765 = vpop.f32.mrf.mxu0
    %1766 = vdwg.mxu0
    %1767 = vmatprep.subr.bf16.mxu0 %v1243
    %1768 = vmatpush1.bf16.msra.mxu0 %v1242
    %1769 = vmatprep.subr.bf16.mxu0 %v1215
    %1770 = vmatpush1.bf16.msra.mxu0 %v1214
    %1771 = vmatprep.subr.bf16.mxu0 %v1187
    %1772 = vmatpush1.bf16.msra.mxu0 %v1186
    %1773 = vmatprep.subr.bf16.mxu0 %v1159
    %1774 = vmatpush1.bf16.msra.mxu0 %v1158
    %1775 = vmatprep.subr.bf16.mxu0 %v1131
    %1776 = vmatpush1.bf16.msra.mxu0 %v1130
    %1777 = vmatprep.subr.bf16.mxu0 %v1103
    %1778 = vmatpush1.bf16.msra.mxu0 %v1102
    %1779 = vmatprep.subr.bf16.mxu0 %v1075
    %1780 = vmatpush1.bf16.msra.mxu0 %v1074
    %1781 = vmatprep.subr.bf16.mxu0 %v1047
    %1782 = vmatpush1.bf16.msra.mxu0 %v1046
    %1783 = vmatprep.subr.bf16.mxu0 0
    %1784 = vmatpush2.bf16.msra.mxu0 0
    %1785 = vmatprep.subr.bf16.mxu0 0
    %1786 = vmatpush2.bf16.msra.mxu0 0
    %1787 = vmatprep.subr.bf16.mxu0 0
    %1788 = vmatpush2.bf16.msra.mxu0 0
    %1789 = vmatprep.subr.bf16.mxu0 0
    %1790 = vmatpush2.bf16.msra.mxu0 0
    %1791 = vmatprep.subr.bf16.mxu0 0
    %1792 = vmatpush2.bf16.msra.mxu0 0
    %1793 = vmatprep.subr.bf16.mxu0 0
    %1794 = vmatpush2.bf16.msra.mxu0 0
    %1795 = vmatprep.subr.bf16.mxu0 0
    %1796 = vmatpush2.bf16.msra.mxu0 0
    %1797 = vmatprep.subr.bf16.mxu0 0
    %1798 = vmatpush2.bf16.msra.mxu0 0
    %1799 = vmatprep.mubr.bf16.mxu0 0
    %1800 = vmatmul.mubr.bf16.gmra.mxu0 %v135
    %v1801 = vpop.f32.mrf.mxu0
    %v1802 = vadd.f32 0.0, %v1801
    %v1803 = vpop.f32.mrf.mxu0
    %v1804 = vadd.f32 0.0, %v1803
    %v1805 = vpop.f32.mrf.mxu0
    %v1806 = vpop.f32.mrf.mxu0
    %1807 = vdwg.mxu0
    %1808 = vmatprep.subr.bf16.mxu0 %v1245
    %1809 = vmatpush1.bf16.msra.mxu0 %v1244
    %1810 = vmatprep.subr.bf16.mxu0 %v1217
    %1811 = vmatpush1.bf16.msra.mxu0 %v1216
    %1812 = vmatprep.subr.bf16.mxu0 %v1189
    %1813 = vmatpush1.bf16.msra.mxu0 %v1188
    %1814 = vmatprep.subr.bf16.mxu0 %v1161
    %1815 = vmatpush1.bf16.msra.mxu0 %v1160
    %1816 = vmatprep.subr.bf16.mxu0 %v1133
    %1817 = vmatpush1.bf16.msra.mxu0 %v1132
    %1818 = vmatprep.subr.bf16.mxu0 %v1105
    %1819 = vmatpush1.bf16.msra.mxu0 %v1104
    %1820 = vmatprep.subr.bf16.mxu0 %v1077
    %1821 = vmatpush1.bf16.msra.mxu0 %v1076
    %1822 = vmatprep.subr.bf16.mxu0 %v1049
    %1823 = vmatpush1.bf16.msra.mxu0 %v1048
    %1824 = vmatprep.subr.bf16.mxu0 0
    %1825 = vmatpush2.bf16.msra.mxu0 0
    %1826 = vmatprep.subr.bf16.mxu0 0
    %1827 = vmatpush2.bf16.msra.mxu0 0
    %1828 = vmatprep.subr.bf16.mxu0 0
    %1829 = vmatpush2.bf16.msra.mxu0 0
    %1830 = vmatprep.subr.bf16.mxu0 0
    %1831 = vmatpush2.bf16.msra.mxu0 0
    %1832 = vmatprep.subr.bf16.mxu0 0
    %1833 = vmatpush2.bf16.msra.mxu0 0
    %1834 = vmatprep.subr.bf16.mxu0 0
    %1835 = vmatpush2.bf16.msra.mxu0 0
    %1836 = vmatprep.subr.bf16.mxu0 0
    %1837 = vmatpush2.bf16.msra.mxu0 0
    %1838 = vmatprep.subr.bf16.mxu0 0
    %1839 = vmatpush2.bf16.msra.mxu0 0
    %1840 = vmatprep.mubr.bf16.mxu0 0
    %1841 = vmatmul.mubr.bf16.gmra.mxu0 %v135
    %v1842 = vpop.f32.mrf.mxu0
    %v1843 = vadd.f32 0.0, %v1842
    %v1844 = vpop.f32.mrf.mxu0
    %v1845 = vadd.f32 0.0, %v1844
    %v1846 = vpop.f32.mrf.mxu0
    %v1847 = vpop.f32.mrf.mxu0
    %1848 = vdwg.mxu0
    %1849 = vmatprep.subr.bf16.mxu0 %v1247
    %1850 = vmatpush1.bf16.msra.mxu0 %v1246
    %1851 = vmatprep.subr.bf16.mxu0 %v1219
    %1852 = vmatpush1.bf16.msra.mxu0 %v1218
    %1853 = vmatprep.subr.bf16.mxu0 %v1191
    %1854 = vmatpush1.bf16.msra.mxu0 %v1190
    %1855 = vmatprep.subr.bf16.mxu0 %v1163
    %1856 = vmatpush1.bf16.msra.mxu0 %v1162
    %1857 = vmatprep.subr.bf16.mxu0 %v1135
    %1858 = vmatpush1.bf16.msra.mxu0 %v1134
    %1859 = vmatprep.subr.bf16.mxu0 %v1107
    %1860 = vmatpush1.bf16.msra.mxu0 %v1106
    %1861 = vmatprep.subr.bf16.mxu0 %v1079
    %1862 = vmatpush1.bf16.msra.mxu0 %v1078
    %1863 = vmatprep.subr.bf16.mxu0 %v1051
    %1864 = vmatpush1.bf16.msra.mxu0 %v1050
    %1865 = vmatprep.subr.bf16.mxu0 0
    %1866 = vmatpush2.bf16.msra.mxu0 0
    %1867 = vmatprep.subr.bf16.mxu0 0
    %1868 = vmatpush2.bf16.msra.mxu0 0
    %1869 = vmatprep.subr.bf16.mxu0 0
    %1870 = vmatpush2.bf16.msra.mxu0 0
    %1871 = vmatprep.subr.bf16.mxu0 0
    %1872 = vmatpush2.bf16.msra.mxu0 0
    %1873 = vmatprep.subr.bf16.mxu0 0
    %1874 = vmatpush2.bf16.msra.mxu0 0
    %1875 = vmatprep.subr.bf16.mxu0 0
    %1876 = vmatpush2.bf16.msra.mxu0 0
    %1877 = vmatprep.subr.bf16.mxu0 0
    %1878 = vmatpush2.bf16.msra.mxu0 0
    %1879 = vmatprep.subr.bf16.mxu0 0
    %1880 = vmatpush2.bf16.msra.mxu0 0
    %1881 = vmatprep.mubr.bf16.mxu0 0
    %1882 = vmatmul.mubr.bf16.gmra.mxu0 %v135
    %v1883 = vpop.f32.mrf.mxu0
    %v1884 = vadd.f32 0.0, %v1883
    %v1885 = vpop.f32.mrf.mxu0
    %v1886 = vadd.f32 0.0, %v1885
    %v1887 = vpop.f32.mrf.mxu0
    %v1888 = vpop.f32.mrf.mxu0
    %1889 = vdwg.mxu0
    %1890 = vmatprep.subr.bf16.mxu0 %v1249
    %1891 = vmatpush1.bf16.msra.mxu0 %v1248
    %1892 = vmatprep.subr.bf16.mxu0 %v1221
    %1893 = vmatpush1.bf16.msra.mxu0 %v1220
    %1894 = vmatprep.subr.bf16.mxu0 %v1193
    %1895 = vmatpush1.bf16.msra.mxu0 %v1192
    %1896 = vmatprep.subr.bf16.mxu0 %v1165
    %1897 = vmatpush1.bf16.msra.mxu0 %v1164
    %1898 = vmatprep.subr.bf16.mxu0 %v1137
    %1899 = vmatpush1.bf16.msra.mxu0 %v1136
    %1900 = vmatprep.subr.bf16.mxu0 %v1109
    %1901 = vmatpush1.bf16.msra.mxu0 %v1108
    %1902 = vmatprep.subr.bf16.mxu0 %v1081
    %1903 = vmatpush1.bf16.msra.mxu0 %v1080
    %1904 = vmatprep.subr.bf16.mxu0 %v1053
    %1905 = vmatpush1.bf16.msra.mxu0 %v1052
    %1906 = vmatprep.subr.bf16.mxu0 0
    %1907 = vmatpush2.bf16.msra.mxu0 0
    %1908 = vmatprep.subr.bf16.mxu0 0
    %1909 = vmatpush2.bf16.msra.mxu0 0
    %1910 = vmatprep.subr.bf16.mxu0 0
    %1911 = vmatpush2.bf16.msra.mxu0 0
    %1912 = vmatprep.subr.bf16.mxu0 0
    %1913 = vmatpush2.bf16.msra.mxu0 0
    %1914 = vmatprep.subr.bf16.mxu0 0
    %1915 = vmatpush2.bf16.msra.mxu0 0
    %1916 = vmatprep.subr.bf16.mxu0 0
    %1917 = vmatpush2.bf16.msra.mxu0 0
    %1918 = vmatprep.subr.bf16.mxu0 0
    %1919 = vmatpush2.bf16.msra.mxu0 0
    %1920 = vmatprep.subr.bf16.mxu0 0
    %1921 = vmatpush2.bf16.msra.mxu0 0
    %1922 = vmatprep.mubr.bf16.mxu0 0
    %1923 = vmatmul.mubr.bf16.gmra.mxu0 %v135
    %v1924 = vpop.f32.mrf.mxu0
    %v1925 = vadd.f32 0.0, %v1924
    %v1926 = vpop.f32.mrf.mxu0
    %v1927 = vadd.f32 0.0, %v1926
    %v1928 = vpop.f32.mrf.mxu0
    %v1929 = vpop.f32.mrf.mxu0
    %1930 = vdwg.mxu0
    %1931 = vmatprep.subr.bf16.mxu0 %v1251
    %1932 = vmatpush1.bf16.msra.mxu0 %v1250
    %1933 = vmatprep.subr.bf16.mxu0 %v1223
    %1934 = vmatpush1.bf16.msra.mxu0 %v1222
    %1935 = vmatprep.subr.bf16.mxu0 %v1195
    %1936 = vmatpush1.bf16.msra.mxu0 %v1194
    %1937 = vmatprep.subr.bf16.mxu0 %v1167
    %1938 = vmatpush1.bf16.msra.mxu0 %v1166
    %1939 = vmatprep.subr.bf16.mxu0 %v1139
    %1940 = vmatpush1.bf16.msra.mxu0 %v1138
    %1941 = vmatprep.subr.bf16.mxu0 %v1111
    %1942 = vmatpush1.bf16.msra.mxu0 %v1110
    %1943 = vmatprep.subr.bf16.mxu0 %v1083
    %1944 = vmatpush1.bf16.msra.mxu0 %v1082
    %1945 = vmatprep.subr.bf16.mxu0 %v1055
    %1946 = vmatpush1.bf16.msra.mxu0 %v1054
    %1947 = vmatprep.subr.bf16.mxu0 0
    %1948 = vmatpush2.bf16.msra.mxu0 0
    %1949 = vmatprep.subr.bf16.mxu0 0
    %1950 = vmatpush2.bf16.msra.mxu0 0
    %1951 = vmatprep.subr.bf16.mxu0 0
    %1952 = vmatpush2.bf16.msra.mxu0 0
    %1953 = vmatprep.subr.bf16.mxu0 0
    %1954 = vmatpush2.bf16.msra.mxu0 0
    %1955 = vmatprep.subr.bf16.mxu0 0
    %1956 = vmatpush2.bf16.msra.mxu0 0
    %1957 = vmatprep.subr.bf16.mxu0 0
    %1958 = vmatpush2.bf16.msra.mxu0 0
    %1959 = vmatprep.subr.bf16.mxu0 0
    %1960 = vmatpush2.bf16.msra.mxu0 0
    %1961 = vmatprep.subr.bf16.mxu0 0
    %1962 = vmatpush2.bf16.msra.mxu0 0
    %1963 = vmatprep.mubr.bf16.mxu0 0
    %1964 = vmatmul.mubr.bf16.gmra.mxu0 %v135
    %v1965 = vpop.f32.mrf.mxu0
    %v1966 = vadd.f32 0.0, %v1965
    %v1967 = vpop.f32.mrf.mxu0
    %v1968 = vadd.f32 0.0, %v1967
    %v1969 = vpop.f32.mrf.mxu0
    %v1970 = vpop.f32.mrf.mxu0
    %1971 = vdwg.mxu0
    %1972 = vmatprep.subr.bf16.mxu0 %v1253
    %1973 = vmatpush1.bf16.msra.mxu0 %v1252
    %1974 = vmatprep.subr.bf16.mxu0 %v1225
    %1975 = vmatpush1.bf16.msra.mxu0 %v1224
    %1976 = vmatprep.subr.bf16.mxu0 %v1197
    %1977 = vmatpush1.bf16.msra.mxu0 %v1196
    %1978 = vmatprep.subr.bf16.mxu0 %v1169
    %1979 = vmatpush1.bf16.msra.mxu0 %v1168
    %1980 = vmatprep.subr.bf16.mxu0 %v1141
    %1981 = vmatpush1.bf16.msra.mxu0 %v1140
    %1982 = vmatprep.subr.bf16.mxu0 %v1113
    %1983 = vmatpush1.bf16.msra.mxu0 %v1112
    %1984 = vmatprep.subr.bf16.mxu0 %v1085
    %1985 = vmatpush1.bf16.msra.mxu0 %v1084
    %1986 = vmatprep.subr.bf16.mxu0 %v1057
    %1987 = vmatpush1.bf16.msra.mxu0 %v1056
    %1988 = vmatprep.subr.bf16.mxu0 0
    %1989 = vmatpush2.bf16.msra.mxu0 0
    %1990 = vmatprep.subr.bf16.mxu0 0
    %1991 = vmatpush2.bf16.msra.mxu0 0
    %1992 = vmatprep.subr.bf16.mxu0 0
    %1993 = vmatpush2.bf16.msra.mxu0 0
    %1994 = vmatprep.subr.bf16.mxu0 0
    %1995 = vmatpush2.bf16.msra.mxu0 0
    %1996 = vmatprep.subr.bf16.mxu0 0
    %1997 = vmatpush2.bf16.msra.mxu0 0
    %1998 = vmatprep.subr.bf16.mxu0 0
    %1999 = vmatpush2.bf16.msra.mxu0 0
    %2000 = vmatprep.subr.bf16.mxu0 0
    %2001 = vmatpush2.bf16.msra.mxu0 0
    %2002 = vmatprep.subr.bf16.mxu0 0
    %2003 = vmatpush2.bf16.msra.mxu0 0
    %2004 = vmatprep.mubr.bf16.mxu0 0
    %2005 = vmatmul.mubr.bf16.gmra.mxu0 %v135
    %v2006 = vpop.f32.mrf.mxu0
    %v2007 = vadd.f32 0.0, %v2006
    %v2008 = vpop.f32.mrf.mxu0
    %v2009 = vadd.f32 0.0, %v2008
    %v2010 = vpop.f32.mrf.mxu0
    %v2011 = vpop.f32.mrf.mxu0
    %2012 = vdwg.mxu0
    %2013 = vmatprep.subr.bf16.mxu0 %v1255
    %2014 = vmatpush1.bf16.msra.mxu0 %v1254
    %2015 = vmatprep.subr.bf16.mxu0 %v1227
    %2016 = vmatpush1.bf16.msra.mxu0 %v1226
    %2017 = vmatprep.subr.bf16.mxu0 %v1199
    %2018 = vmatpush1.bf16.msra.mxu0 %v1198
    %2019 = vmatprep.subr.bf16.mxu0 %v1171
    %2020 = vmatpush1.bf16.msra.mxu0 %v1170
    %2021 = vmatprep.subr.bf16.mxu0 %v1143
    %2022 = vmatpush1.bf16.msra.mxu0 %v1142
    %2023 = vmatprep.subr.bf16.mxu0 %v1115
    %2024 = vmatpush1.bf16.msra.mxu0 %v1114
    %2025 = vmatprep.subr.bf16.mxu0 %v1087
    %2026 = vmatpush1.bf16.msra.mxu0 %v1086
    %2027 = vmatprep.subr.bf16.mxu0 %v1059
    %2028 = vmatpush1.bf16.msra.mxu0 %v1058
    %2029 = vmatprep.subr.bf16.mxu0 0
    %2030 = vmatpush2.bf16.msra.mxu0 0
    %2031 = vmatprep.subr.bf16.mxu0 0
    %2032 = vmatpush2.bf16.msra.mxu0 0
    %2033 = vmatprep.subr.bf16.mxu0 0
    %2034 = vmatpush2.bf16.msra.mxu0 0
    %2035 = vmatprep.subr.bf16.mxu0 0
    %2036 = vmatpush2.bf16.msra.mxu0 0
    %2037 = vmatprep.subr.bf16.mxu0 0
    %2038 = vmatpush2.bf16.msra.mxu0 0
    %2039 = vmatprep.subr.bf16.mxu0 0
    %2040 = vmatpush2.bf16.msra.mxu0 0
    %2041 = vmatprep.subr.bf16.mxu0 0
    %2042 = vmatpush2.bf16.msra.mxu0 0
    %2043 = vmatprep.subr.bf16.mxu0 0
    %2044 = vmatpush2.bf16.msra.mxu0 0
    %2045 = vmatprep.mubr.bf16.mxu0 0
    %2046 = vmatmul.mubr.bf16.gmra.mxu0 %v135
    %v2047 = vpop.f32.mrf.mxu0
    %v2048 = vadd.f32 0.0, %v2047
    %v2049 = vpop.f32.mrf.mxu0
    %v2050 = vadd.f32 0.0, %v2049
    %v2051 = vpop.f32.mrf.mxu0
    %v2052 = vpop.f32.mrf.mxu0
    %2053 = vdwg.mxu0
    %v2054 = vmax.f32 %v1515, %v1640
    %v2055 = vmax.f32 %v1517, %v1679
    %v2056 = vmax.f32 %v1556, %v1681
    %v2057 = vmax.f32 %v1558, %v1720
    %v2058 = vmax.f32 %v1597, %v1722
    %v2059 = vmax.f32 %v1599, %v1761
    %v2060 = vmax.f32 %v1638, %v1763
    %v2061 = vmax.f32 %v1802, %v1927
    %v2062 = vmax.f32 %v1804, %v1966
    %v2063 = vmax.f32 %v1843, %v1968
    %v2064 = vmax.f32 %v1845, %v2007
    %v2065 = vmax.f32 %v1884, %v2009
    %v2066 = vmax.f32 %v1886, %v2048
    %v2067 = vmax.f32 %v1925, %v2050
    %v2068 = vmax.f32 %v2054, %v2061
    %v2069 = vmax.f32 %v2055, %v2062
    %v2070 = vmax.f32 %v2056, %v2063
    %v2071 = vmax.f32 %v2057, %v2064
    %v2072 = vmax.f32 %v2058, %v2065
    %v2073 = vmax.f32 %v2059, %v2066
    %v2074 = vmax.f32 %v2060, %v2067
    %v2075 = vld [vmem:[#allocation4] sm:$0xff]
    %v2077 = vlaneseq
    %v2078 = vshrl.u32 %v2077, 7
    %v2079 = vsub.s32 0, %v2078
    %v2080 = vrot.slane %v2075, %v2079
    %v2081 = vlaneseq
    %v2082 = vshrl.u32 %v2081, 7
    %v2083 = vsub.s32 1, %v2082
    %v2084 = vrot.slane %v2075, %v2083
    %v2085 = vlaneseq
    %v2086 = vshrl.u32 %v2085, 7
    %v2087 = vsub.s32 2, %v2086
    %v2088 = vrot.slane %v2075, %v2087
    %v2089 = vlaneseq
    %v2090 = vshrl.u32 %v2089, 7
    %v2091 = vsub.s32 3, %v2090
    %v2092 = vrot.slane %v2075, %v2091
    %v2093 = vlaneseq
    %v2094 = vshrl.u32 %v2093, 7
    %v2095 = vsub.s32 4, %v2094
    %v2096 = vrot.slane %v2075, %v2095
    %v2097 = vlaneseq
    %v2098 = vshrl.u32 %v2097, 7
    %v2099 = vsub.s32 5, %v2098
    %v2100 = vrot.slane %v2075, %v2099
    %v2101 = vlaneseq
    %v2102 = vshrl.u32 %v2101, 7
    %v2103 = vsub.s32 6, %v2102
    %v2104 = vrot.slane %v2075, %v2103
    %v2112 = vadd.f32 %v2068, %v2080
    %v2113 = vadd.f32 %v2069, %v2084
    %v2114 = vadd.f32 %v2070, %v2088
    %v2115 = vadd.f32 %v2071, %v2092
    %v2116 = vadd.f32 %v2072, %v2096
    %v2117 = vadd.f32 %v2073, %v2100
    %v2118 = vadd.f32 %v2074, %v2104
    %v2119 = vmax.f32 %v2112, 0.0
    %v2120 = vmax.f32 %v2113, 0.0
    %v2121 = vmax.f32 %v2114, 0.0
    %v2122 = vmax.f32 %v2115, 0.0
    %v2123 = vmax.f32 %v2116, 0.0
    %v2124 = vmax.f32 %v2117, 0.0
    %v2125 = vmax.f32 %v2118, 0.0
    %v2126 = vpack.c.bf16 %v2119, %v2119
    %v2127 = vpack.c.bf16 %v2120, %v2120
    %v2128 = vpack.c.bf16 %v2121, %v2121
    %v2129 = vpack.c.bf16 %v2122, %v2122
    %v2130 = vpack.c.bf16 %v2123, %v2123
    %v2131 = vpack.c.bf16 %v2124, %v2124
    %v2132 = vpack.c.bf16 %v2125, %v2125
    %v2133 = vld [vmem:[#allocation6] sm:$0xff]
    %v2134 = vld [vmem:[#allocation6 + $0x8] sm:$0xff]
    %v2135 = vld [vmem:[#allocation6 + $0x10] sm:$0xff]
    %v2136 = vld [vmem:[#allocation6 + $0x18] sm:$0xff]
    %v2137 = vld [vmem:[#allocation6 + $0x20] sm:$0xff]
    %v2138 = vld [vmem:[#allocation6 + $0x28] sm:$0xff]
    %v2139 = vld [vmem:[#allocation6 + $0x30] sm:$0xff]
    %v2140 = vld [vmem:[#allocation6 + $0x38] sm:$0xff]
    %v2141 = vld [vmem:[#allocation6 + $0x40] sm:$0xff]
    %v2142 = vld [vmem:[#allocation6 + $0x48] sm:$0xff]
    %v2143 = vld [vmem:[#allocation6 + $0x50] sm:$0xff]
    %v2144 = vld [vmem:[#allocation6 + $0x58] sm:$0xff]
    %v2145 = vld [vmem:[#allocation6 + $0x60] sm:$0xff]
    %v2146 = vld [vmem:[#allocation6 + $0x68] sm:$0xff]
    %v2147 = vld [vmem:[#allocation6 + $0x70] sm:$0xff]
    %v2148 = vld [vmem:[#allocation6 + $0x78] sm:$0xff]
    %v2149 = vld [vmem:[#allocation6 + $0x80] sm:$0xff]
    %v2150 = vld [vmem:[#allocation6 + $0x88] sm:$0xff]
    %v2151 = vld [vmem:[#allocation6 + $0x90] sm:$0xff]
    %v2152 = vld [vmem:[#allocation6 + $0x98] sm:$0xff]
    %v2153 = vld [vmem:[#allocation6 + $0xa0] sm:$0xff]
    %v2154 = vld [vmem:[#allocation6 + $0xa8] sm:$0xff]
    %v2155 = vld [vmem:[#allocation6 + $0xb0] sm:$0xff]
    %v2156 = vld [vmem:[#allocation6 + $0xb8] sm:$0xff]
    %v2157 = vld [vmem:[#allocation6 + $0xc0] sm:$0xff]
    %v2158 = vld [vmem:[#allocation6 + $0xc8] sm:$0xff]
    %v2159 = vld [vmem:[#allocation6 + $0xd0] sm:$0xff]
    %v2160 = vld [vmem:[#allocation6 + $0xd8] sm:$0xff]
    %v2161 = vld [vmem:[#allocation6 + $0xe0] sm:$0xff]
    %v2162 = vld [vmem:[#allocation6 + $0xe8] sm:$0xff]
    %v2163 = vld [vmem:[#allocation6 + $0xf0] sm:$0xff]
    %v2164 = vld [vmem:[#allocation6 + $0xf8] sm:$0xff]
    %v2165 = vld [vmem:[#allocation6 + $0x100] sm:$0xff]
    %v2166 = vld [vmem:[#allocation6 + $0x108] sm:$0xff]
    %v2167 = vld [vmem:[#allocation6 + $0x110] sm:$0xff]
    %v2168 = vld [vmem:[#allocation6 + $0x118] sm:$0xff]
    %v2169 = vld [vmem:[#allocation6 + $0x120] sm:$0xff]
    %v2170 = vld [vmem:[#allocation6 + $0x128] sm:$0xff]
    %v2171 = vld [vmem:[#allocation6 + $0x130] sm:$0xff]
    %v2172 = vld [vmem:[#allocation6 + $0x138] sm:$0xff]
    %v2173 = vld [vmem:[#allocation6 + $0x140] sm:$0xff]
    %v2174 = vld [vmem:[#allocation6 + $0x148] sm:$0xff]
    %v2175 = vld [vmem:[#allocation6 + $0x150] sm:$0xff]
    %v2176 = vld [vmem:[#allocation6 + $0x158] sm:$0xff]
    %v2177 = vld [vmem:[#allocation6 + $0x160] sm:$0xff]
    %v2178 = vld [vmem:[#allocation6 + $0x168] sm:$0xff]
    %v2179 = vld [vmem:[#allocation6 + $0x170] sm:$0xff]
    %v2180 = vld [vmem:[#allocation6 + $0x178] sm:$0xff]
    %v2181 = vld [vmem:[#allocation6 + $0x180] sm:$0xff]
    %v2182 = vld [vmem:[#allocation6 + $0x188] sm:$0xff]
    %v2183 = vld [vmem:[#allocation6 + $0x190] sm:$0xff]
    %v2184 = vld [vmem:[#allocation6 + $0x198] sm:$0xff]
    %v2185 = vld [vmem:[#allocation6 + $0x1a0] sm:$0xff]
    %v2186 = vld [vmem:[#allocation6 + $0x1a8] sm:$0xff]
    %v2187 = vld [vmem:[#allocation6 + $0x1b0] sm:$0xff]
    %v2188 = vld [vmem:[#allocation6 + $0x1b8] sm:$0xff]
    %v2189 = vld [vmem:[#allocation6 + $0x1c0] sm:$0xff]
    %v2190 = vld [vmem:[#allocation6 + $0x1c8] sm:$0xff]
    %v2191 = vld [vmem:[#allocation6 + $0x1d0] sm:$0xff]
    %v2192 = vld [vmem:[#allocation6 + $0x1d8] sm:$0xff]
    %v2193 = vld [vmem:[#allocation6 + $0x1e0] sm:$0xff]
    %v2194 = vld [vmem:[#allocation6 + $0x1e8] sm:$0xff]
    %v2195 = vld [vmem:[#allocation6 + $0x1f0] sm:$0xff]
    %v2196 = vld [vmem:[#allocation6 + $0x1f8] sm:$0xff]
    %v2197 = vld [vmem:[#allocation6 + $0x200] sm:$0xff]
    %v2198 = vld [vmem:[#allocation6 + $0x208] sm:$0xff]
    %v2199 = vld [vmem:[#allocation6 + $0x210] sm:$0xff]
    %v2200 = vld [vmem:[#allocation6 + $0x218] sm:$0xff]
    %v2201 = vld [vmem:[#allocation6 + $0x220] sm:$0xff]
    %v2202 = vld [vmem:[#allocation6 + $0x228] sm:$0xff]
    %v2203 = vld [vmem:[#allocation6 + $0x230] sm:$0xff]
    %v2204 = vld [vmem:[#allocation6 + $0x238] sm:$0xff]
    %v2205 = vld [vmem:[#allocation6 + $0x240] sm:$0xff]
    %v2206 = vld [vmem:[#allocation6 + $0x248] sm:$0xff]
    %v2207 = vld [vmem:[#allocation6 + $0x250] sm:$0xff]
    %v2208 = vld [vmem:[#allocation6 + $0x258] sm:$0xff]
    %v2209 = vld [vmem:[#allocation6 + $0x260] sm:$0xff]
    %v2210 = vld [vmem:[#allocation6 + $0x268] sm:$0xff]
    %v2211 = vld [vmem:[#allocation6 + $0x270] sm:$0xff]
    %v2212 = vld [vmem:[#allocation6 + $0x278] sm:$0xff]
    %v2213 = vld [vmem:[#allocation6 + $0x280] sm:$0xff]
    %v2214 = vld [vmem:[#allocation6 + $0x288] sm:$0xff]
    %v2215 = vld [vmem:[#allocation6 + $0x290] sm:$0xff]
    %v2216 = vld [vmem:[#allocation6 + $0x298] sm:$0xff]
    %v2217 = vld [vmem:[#allocation6 + $0x2a0] sm:$0xff]
    %v2218 = vld [vmem:[#allocation6 + $0x2a8] sm:$0xff]
    %v2219 = vld [vmem:[#allocation6 + $0x2b0] sm:$0xff]
    %v2220 = vld [vmem:[#allocation6 + $0x2b8] sm:$0xff]
    %v2221 = vld [vmem:[#allocation6 + $0x2c0] sm:$0xff]
    %v2222 = vld [vmem:[#allocation6 + $0x2c8] sm:$0xff]
    %v2223 = vld [vmem:[#allocation6 + $0x2d0] sm:$0xff]
    %v2224 = vld [vmem:[#allocation6 + $0x2d8] sm:$0xff]
    %v2225 = vld [vmem:[#allocation6 + $0x2e0] sm:$0xff]
    %v2226 = vld [vmem:[#allocation6 + $0x2e8] sm:$0xff]
    %v2227 = vld [vmem:[#allocation6 + $0x2f0] sm:$0xff]
    %v2228 = vld [vmem:[#allocation6 + $0x2f8] sm:$0xff]
    %v2229 = vld [vmem:[#allocation6 + $0x300] sm:$0xff]
    %v2230 = vld [vmem:[#allocation6 + $0x308] sm:$0xff]
    %v2231 = vld [vmem:[#allocation6 + $0x310] sm:$0xff]
    %v2232 = vld [vmem:[#allocation6 + $0x318] sm:$0xff]
    %v2233 = vld [vmem:[#allocation6 + $0x320] sm:$0xff]
    %v2234 = vld [vmem:[#allocation6 + $0x328] sm:$0xff]
    %v2235 = vld [vmem:[#allocation6 + $0x330] sm:$0xff]
    %v2236 = vld [vmem:[#allocation6 + $0x338] sm:$0xff]
    %v2237 = vld [vmem:[#allocation6 + $0x340] sm:$0xff]
    %v2238 = vld [vmem:[#allocation6 + $0x348] sm:$0xff]
    %v2239 = vld [vmem:[#allocation6 + $0x350] sm:$0xff]
    %v2240 = vld [vmem:[#allocation6 + $0x358] sm:$0xff]
    %v2241 = vld [vmem:[#allocation6 + $0x360] sm:$0xff]
    %v2242 = vld [vmem:[#allocation6 + $0x368] sm:$0xff]
    %v2243 = vld [vmem:[#allocation6 + $0x370] sm:$0xff]
    %v2244 = vld [vmem:[#allocation6 + $0x378] sm:$0xff]
    %v2245 = vld [vmem:[#allocation6 + $0x380] sm:$0xff]
    %v2246 = vld [vmem:[#allocation6 + $0x388] sm:$0xff]
    %v2247 = vld [vmem:[#allocation6 + $0x390] sm:$0xff]
    %v2248 = vld [vmem:[#allocation6 + $0x398] sm:$0xff]
    %v2249 = vld [vmem:[#allocation6 + $0x3a0] sm:$0xff]
    %v2250 = vld [vmem:[#allocation6 + $0x3a8] sm:$0xff]
    %v2251 = vld [vmem:[#allocation6 + $0x3b0] sm:$0xff]
    %v2252 = vld [vmem:[#allocation6 + $0x3b8] sm:$0xff]
    %v2253 = vld [vmem:[#allocation6 + $0x3c0] sm:$0xff]
    %v2254 = vld [vmem:[#allocation6 + $0x3c8] sm:$0xff]
    %v2255 = vld [vmem:[#allocation6 + $0x3d0] sm:$0xff]
    %v2256 = vld [vmem:[#allocation6 + $0x3d8] sm:$0xff]
    %v2257 = vld [vmem:[#allocation6 + $0x3e0] sm:$0xff]
    %v2258 = vld [vmem:[#allocation6 + $0x3e8] sm:$0xff]
    %v2259 = vld [vmem:[#allocation6 + $0x3f0] sm:$0xff]
    %v2260 = vld [vmem:[#allocation6 + $0x3f8] sm:$0xff]
    %v2261 = vld [vmem:[#allocation6 + $0x400] sm:$0xff]
    %v2262 = vld [vmem:[#allocation6 + $0x408] sm:$0xff]
    %v2263 = vld [vmem:[#allocation6 + $0x410] sm:$0xff]
    %v2264 = vld [vmem:[#allocation6 + $0x418] sm:$0xff]
    %v2265 = vld [vmem:[#allocation6 + $0x420] sm:$0xff]
    %v2266 = vld [vmem:[#allocation6 + $0x428] sm:$0xff]
    %v2267 = vld [vmem:[#allocation6 + $0x430] sm:$0xff]
    %v2268 = vld [vmem:[#allocation6 + $0x438] sm:$0xff]
    %v2269 = vld [vmem:[#allocation6 + $0x440] sm:$0xff]
    %v2270 = vld [vmem:[#allocation6 + $0x448] sm:$0xff]
    %v2271 = vld [vmem:[#allocation6 + $0x450] sm:$0xff]
    %v2272 = vld [vmem:[#allocation6 + $0x458] sm:$0xff]
    %v2273 = vld [vmem:[#allocation6 + $0x460] sm:$0xff]
    %v2274 = vld [vmem:[#allocation6 + $0x468] sm:$0xff]
    %v2275 = vld [vmem:[#allocation6 + $0x470] sm:$0xff]
    %v2276 = vld [vmem:[#allocation6 + $0x478] sm:$0xff]
    %v2277 = vld [vmem:[#allocation6 + $0x480] sm:$0xff]
    %v2278 = vld [vmem:[#allocation6 + $0x488] sm:$0xff]
    %v2279 = vld [vmem:[#allocation6 + $0x490] sm:$0xff]
    %v2280 = vld [vmem:[#allocation6 + $0x498] sm:$0xff]
    %v2281 = vld [vmem:[#allocation6 + $0x4a0] sm:$0xff]
    %v2282 = vld [vmem:[#allocation6 + $0x4a8] sm:$0xff]
    %v2283 = vld [vmem:[#allocation6 + $0x4b0] sm:$0xff]
    %v2284 = vld [vmem:[#allocation6 + $0x4b8] sm:$0xff]
    %v2285 = vld [vmem:[#allocation6 + $0x4c0] sm:$0xff]
    %v2286 = vld [vmem:[#allocation6 + $0x4c8] sm:$0xff]
    %v2287 = vld [vmem:[#allocation6 + $0x4d0] sm:$0xff]
    %v2288 = vld [vmem:[#allocation6 + $0x4d8] sm:$0xff]
    %v2289 = vld [vmem:[#allocation6 + $0x4e0] sm:$0xff]
    %v2290 = vld [vmem:[#allocation6 + $0x4e8] sm:$0xff]
    %v2291 = vld [vmem:[#allocation6 + $0x4f0] sm:$0xff]
    %v2292 = vld [vmem:[#allocation6 + $0x4f8] sm:$0xff]
    %v2293 = vld [vmem:[#allocation6 + $0x500] sm:$0xff]
    %v2294 = vld [vmem:[#allocation6 + $0x508] sm:$0xff]
    %v2295 = vld [vmem:[#allocation6 + $0x510] sm:$0xff]
    %v2296 = vld [vmem:[#allocation6 + $0x518] sm:$0xff]
    %v2297 = vld [vmem:[#allocation6 + $0x520] sm:$0xff]
    %v2298 = vld [vmem:[#allocation6 + $0x528] sm:$0xff]
    %v2299 = vld [vmem:[#allocation6 + $0x530] sm:$0xff]
    %v2300 = vld [vmem:[#allocation6 + $0x538] sm:$0xff]
    %v2301 = vld [vmem:[#allocation6 + $0x540] sm:$0xff]
    %v2302 = vld [vmem:[#allocation6 + $0x548] sm:$0xff]
    %v2303 = vld [vmem:[#allocation6 + $0x550] sm:$0xff]
    %v2304 = vld [vmem:[#allocation6 + $0x558] sm:$0xff]
    %v2305 = vld [vmem:[#allocation6 + $0x560] sm:$0xff]
    %v2306 = vld [vmem:[#allocation6 + $0x568] sm:$0xff]
    %v2307 = vld [vmem:[#allocation6 + $0x570] sm:$0xff]
    %v2308 = vld [vmem:[#allocation6 + $0x578] sm:$0xff]
    %v2309 = vld [vmem:[#allocation6 + $0x580] sm:$0xff]
    %v2310 = vld [vmem:[#allocation6 + $0x588] sm:$0xff]
    %v2311 = vld [vmem:[#allocation6 + $0x590] sm:$0xff]
    %v2312 = vld [vmem:[#allocation6 + $0x598] sm:$0xff]
    %v2313 = vld [vmem:[#allocation6 + $0x5a0] sm:$0xff]
    %v2314 = vld [vmem:[#allocation6 + $0x5a8] sm:$0xff]
    %v2315 = vld [vmem:[#allocation6 + $0x5b0] sm:$0xff]
    %v2316 = vld [vmem:[#allocation6 + $0x5b8] sm:$0xff]
    %v2317 = vld [vmem:[#allocation6 + $0x5c0] sm:$0xff]
    %v2318 = vld [vmem:[#allocation6 + $0x5c8] sm:$0xff]
    %v2319 = vld [vmem:[#allocation6 + $0x5d0] sm:$0xff]
    %v2320 = vld [vmem:[#allocation6 + $0x5d8] sm:$0xff]
    %v2321 = vld [vmem:[#allocation6 + $0x5e0] sm:$0xff]
    %v2322 = vld [vmem:[#allocation6 + $0x5e8] sm:$0xff]
    %v2323 = vld [vmem:[#allocation6 + $0x5f0] sm:$0xff]
    %v2324 = vld [vmem:[#allocation6 + $0x5f8] sm:$0xff]
    %v2325 = vld [vmem:[#allocation6 + $0x600] sm:$0xff]
    %v2326 = vld [vmem:[#allocation6 + $0x608] sm:$0xff]
    %v2327 = vld [vmem:[#allocation6 + $0x610] sm:$0xff]
    %v2328 = vld [vmem:[#allocation6 + $0x618] sm:$0xff]
    %v2329 = vld [vmem:[#allocation6 + $0x620] sm:$0xff]
    %v2330 = vld [vmem:[#allocation6 + $0x628] sm:$0xff]
    %v2331 = vld [vmem:[#allocation6 + $0x630] sm:$0xff]
    %v2332 = vld [vmem:[#allocation6 + $0x638] sm:$0xff]
    %v2333 = vld [vmem:[#allocation6 + $0x640] sm:$0xff]
    %v2334 = vld [vmem:[#allocation6 + $0x648] sm:$0xff]
    %v2335 = vld [vmem:[#allocation6 + $0x650] sm:$0xff]
    %v2336 = vld [vmem:[#allocation6 + $0x658] sm:$0xff]
    %v2337 = vld [vmem:[#allocation6 + $0x660] sm:$0xff]
    %v2338 = vld [vmem:[#allocation6 + $0x668] sm:$0xff]
    %v2339 = vld [vmem:[#allocation6 + $0x670] sm:$0xff]
    %v2340 = vld [vmem:[#allocation6 + $0x678] sm:$0xff]
    %v2341 = vld [vmem:[#allocation6 + $0x680] sm:$0xff]
    %v2342 = vld [vmem:[#allocation6 + $0x688] sm:$0xff]
    %v2343 = vld [vmem:[#allocation6 + $0x690] sm:$0xff]
    %v2344 = vld [vmem:[#allocation6 + $0x698] sm:$0xff]
    %v2345 = vld [vmem:[#allocation6 + $0x6a0] sm:$0xff]
    %v2346 = vld [vmem:[#allocation6 + $0x6a8] sm:$0xff]
    %v2347 = vld [vmem:[#allocation6 + $0x6b0] sm:$0xff]
    %v2348 = vld [vmem:[#allocation6 + $0x6b8] sm:$0xff]
    %v2349 = vld [vmem:[#allocation6 + $0x6c0] sm:$0xff]
    %v2350 = vld [vmem:[#allocation6 + $0x6c8] sm:$0xff]
    %v2351 = vld [vmem:[#allocation6 + $0x6d0] sm:$0xff]
    %v2352 = vld [vmem:[#allocation6 + $0x6d8] sm:$0xff]
    %v2353 = vld [vmem:[#allocation6 + $0x6e0] sm:$0xff]
    %v2354 = vld [vmem:[#allocation6 + $0x6e8] sm:$0xff]
    %v2355 = vld [vmem:[#allocation6 + $0x6f0] sm:$0xff]
    %v2356 = vld [vmem:[#allocation6 + $0x6f8] sm:$0xff]
    %v2357 = vld [vmem:[#allocation6 + $0x700] sm:$0xff]
    %v2358 = vld [vmem:[#allocation6 + $0x708] sm:$0xff]
    %v2359 = vld [vmem:[#allocation6 + $0x710] sm:$0xff]
    %v2360 = vld [vmem:[#allocation6 + $0x718] sm:$0xff]
    %v2361 = vld [vmem:[#allocation6 + $0x720] sm:$0xff]
    %v2362 = vld [vmem:[#allocation6 + $0x728] sm:$0xff]
    %v2363 = vld [vmem:[#allocation6 + $0x730] sm:$0xff]
    %v2364 = vld [vmem:[#allocation6 + $0x738] sm:$0xff]
    %v2365 = vld [vmem:[#allocation6 + $0x740] sm:$0xff]
    %v2366 = vld [vmem:[#allocation6 + $0x748] sm:$0xff]
    %v2367 = vld [vmem:[#allocation6 + $0x750] sm:$0xff]
    %v2368 = vld [vmem:[#allocation6 + $0x758] sm:$0xff]
    %v2369 = vld [vmem:[#allocation6 + $0x760] sm:$0xff]
    %v2370 = vld [vmem:[#allocation6 + $0x768] sm:$0xff]
    %v2371 = vld [vmem:[#allocation6 + $0x770] sm:$0xff]
    %v2372 = vld [vmem:[#allocation6 + $0x778] sm:$0xff]
    %v2373 = vld [vmem:[#allocation6 + $0x780] sm:$0xff]
    %v2374 = vld [vmem:[#allocation6 + $0x788] sm:$0xff]
    %v2375 = vld [vmem:[#allocation6 + $0x790] sm:$0xff]
    %v2376 = vld [vmem:[#allocation6 + $0x798] sm:$0xff]
    %v2377 = vld [vmem:[#allocation6 + $0x7a0] sm:$0xff]
    %v2378 = vld [vmem:[#allocation6 + $0x7a8] sm:$0xff]
    %v2379 = vld [vmem:[#allocation6 + $0x7b0] sm:$0xff]
    %v2380 = vld [vmem:[#allocation6 + $0x7b8] sm:$0xff]
    %v2381 = vld [vmem:[#allocation6 + $0x7c0] sm:$0xff]
    %v2382 = vld [vmem:[#allocation6 + $0x7c8] sm:$0xff]
    %v2383 = vld [vmem:[#allocation6 + $0x7d0] sm:$0xff]
    %v2384 = vld [vmem:[#allocation6 + $0x7d8] sm:$0xff]
    %v2385 = vld [vmem:[#allocation6 + $0x7e0] sm:$0xff]
    %v2386 = vld [vmem:[#allocation6 + $0x7e8] sm:$0xff]
    %v2387 = vld [vmem:[#allocation6 + $0x7f0] sm:$0xff]
    %v2388 = vld [vmem:[#allocation6 + $0x7f8] sm:$0xff]
    %v2389 = vld [vmem:[#allocation6 + $0x800] sm:$0xff]
    %v2390 = vld [vmem:[#allocation6 + $0x808] sm:$0xff]
    %v2391 = vld [vmem:[#allocation6 + $0x810] sm:$0xff]
    %v2392 = vld [vmem:[#allocation6 + $0x818] sm:$0xff]
    %v2393 = vld [vmem:[#allocation6 + $0x820] sm:$0xff]
    %v2394 = vld [vmem:[#allocation6 + $0x828] sm:$0xff]
    %v2395 = vld [vmem:[#allocation6 + $0x830] sm:$0xff]
    %v2396 = vld [vmem:[#allocation6 + $0x838] sm:$0xff]
    %v2397 = vld [vmem:[#allocation6 + $0x840] sm:$0xff]
    %v2398 = vld [vmem:[#allocation6 + $0x848] sm:$0xff]
    %v2399 = vld [vmem:[#allocation6 + $0x850] sm:$0xff]
    %v2400 = vld [vmem:[#allocation6 + $0x858] sm:$0xff]
    %v2401 = vld [vmem:[#allocation6 + $0x860] sm:$0xff]
    %v2402 = vld [vmem:[#allocation6 + $0x868] sm:$0xff]
    %v2403 = vld [vmem:[#allocation6 + $0x870] sm:$0xff]
    %v2404 = vld [vmem:[#allocation6 + $0x878] sm:$0xff]
    %v2405 = vld [vmem:[#allocation6 + $0x880] sm:$0xff]
    %v2406 = vld [vmem:[#allocation6 + $0x888] sm:$0xff]
    %v2407 = vld [vmem:[#allocation6 + $0x890] sm:$0xff]
    %v2408 = vld [vmem:[#allocation6 + $0x898] sm:$0xff]
    %v2409 = vld [vmem:[#allocation6 + $0x8a0] sm:$0xff]
    %v2410 = vld [vmem:[#allocation6 + $0x8a8] sm:$0xff]
    %v2411 = vld [vmem:[#allocation6 + $0x8b0] sm:$0xff]
    %v2412 = vld [vmem:[#allocation6 + $0x8b8] sm:$0xff]
    %v2413 = vld [vmem:[#allocation6 + $0x8c0] sm:$0xff]
    %v2414 = vld [vmem:[#allocation6 + $0x8c8] sm:$0xff]
    %v2415 = vld [vmem:[#allocation6 + $0x8d0] sm:$0xff]
    %v2416 = vld [vmem:[#allocation6 + $0x8d8] sm:$0xff]
    %v2417 = vld [vmem:[#allocation6 + $0x8e0] sm:$0xff]
    %v2418 = vld [vmem:[#allocation6 + $0x8e8] sm:$0xff]
    %v2419 = vld [vmem:[#allocation6 + $0x8f0] sm:$0xff]
    %v2420 = vld [vmem:[#allocation6 + $0x8f8] sm:$0xff]
    %v2421 = vld [vmem:[#allocation6 + $0x900] sm:$0xff]
    %v2422 = vld [vmem:[#allocation6 + $0x908] sm:$0xff]
    %v2423 = vld [vmem:[#allocation6 + $0x910] sm:$0xff]
    %v2424 = vld [vmem:[#allocation6 + $0x918] sm:$0xff]
    %v2425 = vld [vmem:[#allocation6 + $0x920] sm:$0xff]
    %v2426 = vld [vmem:[#allocation6 + $0x928] sm:$0xff]
    %v2427 = vld [vmem:[#allocation6 + $0x930] sm:$0xff]
    %v2428 = vld [vmem:[#allocation6 + $0x938] sm:$0xff]
    %v2429 = vld [vmem:[#allocation6 + $0x940] sm:$0xff]
    %v2430 = vld [vmem:[#allocation6 + $0x948] sm:$0xff]
    %v2431 = vld [vmem:[#allocation6 + $0x950] sm:$0xff]
    %v2432 = vld [vmem:[#allocation6 + $0x958] sm:$0xff]
    %v2433 = vld [vmem:[#allocation6 + $0x960] sm:$0xff]
    %v2434 = vld [vmem:[#allocation6 + $0x968] sm:$0xff]
    %v2435 = vld [vmem:[#allocation6 + $0x970] sm:$0xff]
    %v2436 = vld [vmem:[#allocation6 + $0x978] sm:$0xff]
    %v2437 = vld [vmem:[#allocation6 + $0x980] sm:$0xff]
    %v2438 = vld [vmem:[#allocation6 + $0x988] sm:$0xff]
    %v2439 = vld [vmem:[#allocation6 + $0x990] sm:$0xff]
    %v2440 = vld [vmem:[#allocation6 + $0x998] sm:$0xff]
    %v2441 = vld [vmem:[#allocation6 + $0x9a0] sm:$0xff]
    %v2442 = vld [vmem:[#allocation6 + $0x9a8] sm:$0xff]
    %v2443 = vld [vmem:[#allocation6 + $0x9b0] sm:$0xff]
    %v2444 = vld [vmem:[#allocation6 + $0x9b8] sm:$0xff]
    %v2445 = vld [vmem:[#allocation6 + $0x9c0] sm:$0xff]
    %v2446 = vld [vmem:[#allocation6 + $0x9c8] sm:$0xff]
    %v2447 = vld [vmem:[#allocation6 + $0x9d0] sm:$0xff]
    %v2448 = vld [vmem:[#allocation6 + $0x9d8] sm:$0xff]
    %v2449 = vld [vmem:[#allocation6 + $0x9e0] sm:$0xff]
    %v2450 = vld [vmem:[#allocation6 + $0x9e8] sm:$0xff]
    %v2451 = vld [vmem:[#allocation6 + $0x9f0] sm:$0xff]
    %v2452 = vld [vmem:[#allocation6 + $0x9f8] sm:$0xff]
    %v2453 = vld [vmem:[#allocation6 + $0xa00] sm:$0xff]
    %v2454 = vld [vmem:[#allocation6 + $0xa08] sm:$0xff]
    %v2455 = vld [vmem:[#allocation6 + $0xa10] sm:$0xff]
    %v2456 = vld [vmem:[#allocation6 + $0xa18] sm:$0xff]
    %v2457 = vld [vmem:[#allocation6 + $0xa20] sm:$0xff]
    %v2458 = vld [vmem:[#allocation6 + $0xa28] sm:$0xff]
    %v2459 = vld [vmem:[#allocation6 + $0xa30] sm:$0xff]
    %v2460 = vld [vmem:[#allocation6 + $0xa38] sm:$0xff]
    %v2461 = vld [vmem:[#allocation6 + $0xa40] sm:$0xff]
    %v2462 = vld [vmem:[#allocation6 + $0xa48] sm:$0xff]
    %v2463 = vld [vmem:[#allocation6 + $0xa50] sm:$0xff]
    %v2464 = vld [vmem:[#allocation6 + $0xa58] sm:$0xff]
    %v2465 = vld [vmem:[#allocation6 + $0xa60] sm:$0xff]
    %v2466 = vld [vmem:[#allocation6 + $0xa68] sm:$0xff]
    %v2467 = vld [vmem:[#allocation6 + $0xa70] sm:$0xff]
    %v2468 = vld [vmem:[#allocation6 + $0xa78] sm:$0xff]
    %v2469 = vld [vmem:[#allocation6 + $0xa80] sm:$0xff]
    %v2470 = vld [vmem:[#allocation6 + $0xa88] sm:$0xff]
    %v2471 = vld [vmem:[#allocation6 + $0xa90] sm:$0xff]
    %v2472 = vld [vmem:[#allocation6 + $0xa98] sm:$0xff]
    %v2473 = vld [vmem:[#allocation6 + $0xaa0] sm:$0xff]
    %v2474 = vld [vmem:[#allocation6 + $0xaa8] sm:$0xff]
    %v2475 = vld [vmem:[#allocation6 + $0xab0] sm:$0xff]
    %v2476 = vld [vmem:[#allocation6 + $0xab8] sm:$0xff]
    %v2477 = vld [vmem:[#allocation6 + $0xac0] sm:$0xff]
    %v2478 = vld [vmem:[#allocation6 + $0xac8] sm:$0xff]
    %v2479 = vld [vmem:[#allocation6 + $0xad0] sm:$0xff]
    %v2480 = vld [vmem:[#allocation6 + $0xad8] sm:$0xff]
    %v2481 = vld [vmem:[#allocation6 + $0xae0] sm:$0xff]
    %v2482 = vld [vmem:[#allocation6 + $0xae8] sm:$0xff]
    %v2483 = vld [vmem:[#allocation6 + $0xaf0] sm:$0xff]
    %v2484 = vld [vmem:[#allocation6 + $0xaf8] sm:$0xff]
    %v2485 = vld [vmem:[#allocation6 + $0xb00] sm:$0xff]
    %v2486 = vld [vmem:[#allocation6 + $0xb08] sm:$0xff]
    %v2487 = vld [vmem:[#allocation6 + $0xb10] sm:$0xff]
    %v2488 = vld [vmem:[#allocation6 + $0xb18] sm:$0xff]
    %v2489 = vld [vmem:[#allocation6 + $0xb20] sm:$0xff]
    %v2490 = vld [vmem:[#allocation6 + $0xb28] sm:$0xff]
    %v2491 = vld [vmem:[#allocation6 + $0xb30] sm:$0xff]
    %v2492 = vld [vmem:[#allocation6 + $0xb38] sm:$0xff]
    %v2493 = vld [vmem:[#allocation6 + $0xb40] sm:$0xff]
    %v2494 = vld [vmem:[#allocation6 + $0xb48] sm:$0xff]
    %v2495 = vld [vmem:[#allocation6 + $0xb50] sm:$0xff]
    %v2496 = vld [vmem:[#allocation6 + $0xb58] sm:$0xff]
    %v2497 = vld [vmem:[#allocation6 + $0xb60] sm:$0xff]
    %v2498 = vld [vmem:[#allocation6 + $0xb68] sm:$0xff]
    %v2499 = vld [vmem:[#allocation6 + $0xb70] sm:$0xff]
    %v2500 = vld [vmem:[#allocation6 + $0xb78] sm:$0xff]
    %v2501 = vld [vmem:[#allocation6 + $0xb80] sm:$0xff]
    %v2502 = vld [vmem:[#allocation6 + $0xb88] sm:$0xff]
    %v2503 = vld [vmem:[#allocation6 + $0xb90] sm:$0xff]
    %v2504 = vld [vmem:[#allocation6 + $0xb98] sm:$0xff]
    %v2505 = vld [vmem:[#allocation6 + $0xba0] sm:$0xff]
    %v2506 = vld [vmem:[#allocation6 + $0xba8] sm:$0xff]
    %v2507 = vld [vmem:[#allocation6 + $0xbb0] sm:$0xff]
    %v2508 = vld [vmem:[#allocation6 + $0xbb8] sm:$0xff]
    %v2509 = vld [vmem:[#allocation6 + $0xbc0] sm:$0xff]
    %v2510 = vld [vmem:[#allocation6 + $0xbc8] sm:$0xff]
    %v2511 = vld [vmem:[#allocation6 + $0xbd0] sm:$0xff]
    %v2512 = vld [vmem:[#allocation6 + $0xbd8] sm:$0xff]
    %v2513 = vld [vmem:[#allocation6 + $0xbe0] sm:$0xff]
    %v2514 = vld [vmem:[#allocation6 + $0xbe8] sm:$0xff]
    %v2515 = vld [vmem:[#allocation6 + $0xbf0] sm:$0xff]
    %v2516 = vld [vmem:[#allocation6 + $0xbf8] sm:$0xff]
    %v2517 = vld [vmem:[#allocation6 + $0xc00] sm:$0xff]
    %v2518 = vld [vmem:[#allocation6 + $0xc08] sm:$0xff]
    %v2519 = vld [vmem:[#allocation6 + $0xc10] sm:$0xff]
    %v2520 = vld [vmem:[#allocation6 + $0xc18] sm:$0xff]
    %v2521 = vld [vmem:[#allocation6 + $0xc20] sm:$0xff]
    %v2522 = vld [vmem:[#allocation6 + $0xc28] sm:$0xff]
    %v2523 = vld [vmem:[#allocation6 + $0xc30] sm:$0xff]
    %v2524 = vld [vmem:[#allocation6 + $0xc38] sm:$0xff]
    %v2525 = vld [vmem:[#allocation6 + $0xc40] sm:$0xff]
    %v2526 = vld [vmem:[#allocation6 + $0xc48] sm:$0xff]
    %v2527 = vld [vmem:[#allocation6 + $0xc50] sm:$0xff]
    %v2528 = vld [vmem:[#allocation6 + $0xc58] sm:$0xff]
    %v2529 = vld [vmem:[#allocation6 + $0xc60] sm:$0xff]
    %v2530 = vld [vmem:[#allocation6 + $0xc68] sm:$0xff]
    %v2531 = vld [vmem:[#allocation6 + $0xc70] sm:$0xff]
    %v2532 = vld [vmem:[#allocation6 + $0xc78] sm:$0xff]
    %v2533 = vld [vmem:[#allocation6 + $0xc80] sm:$0xff]
    %v2534 = vld [vmem:[#allocation6 + $0xc88] sm:$0xff]
    %v2535 = vld [vmem:[#allocation6 + $0xc90] sm:$0xff]
    %v2536 = vld [vmem:[#allocation6 + $0xc98] sm:$0xff]
    %v2537 = vld [vmem:[#allocation6 + $0xca0] sm:$0xff]
    %v2538 = vld [vmem:[#allocation6 + $0xca8] sm:$0xff]
    %v2539 = vld [vmem:[#allocation6 + $0xcb0] sm:$0xff]
    %v2540 = vld [vmem:[#allocation6 + $0xcb8] sm:$0xff]
    %v2541 = vld [vmem:[#allocation6 + $0xcc0] sm:$0xff]
    %v2542 = vld [vmem:[#allocation6 + $0xcc8] sm:$0xff]
    %v2543 = vld [vmem:[#allocation6 + $0xcd0] sm:$0xff]
    %v2544 = vld [vmem:[#allocation6 + $0xcd8] sm:$0xff]
    %v2545 = vld [vmem:[#allocation6 + $0xce0] sm:$0xff]
    %v2546 = vld [vmem:[#allocation6 + $0xce8] sm:$0xff]
    %v2547 = vld [vmem:[#allocation6 + $0xcf0] sm:$0xff]
    %v2548 = vld [vmem:[#allocation6 + $0xcf8] sm:$0xff]
    %v2549 = vld [vmem:[#allocation6 + $0xd00] sm:$0xff]
    %v2550 = vld [vmem:[#allocation6 + $0xd08] sm:$0xff]
    %v2551 = vld [vmem:[#allocation6 + $0xd10] sm:$0xff]
    %v2552 = vld [vmem:[#allocation6 + $0xd18] sm:$0xff]
    %v2553 = vld [vmem:[#allocation6 + $0xd20] sm:$0xff]
    %v2554 = vld [vmem:[#allocation6 + $0xd28] sm:$0xff]
    %v2555 = vld [vmem:[#allocation6 + $0xd30] sm:$0xff]
    %v2556 = vld [vmem:[#allocation6 + $0xd38] sm:$0xff]
    %v2557 = vld [vmem:[#allocation6 + $0xd40] sm:$0xff]
    %v2558 = vld [vmem:[#allocation6 + $0xd48] sm:$0xff]
    %v2559 = vld [vmem:[#allocation6 + $0xd50] sm:$0xff]
    %v2560 = vld [vmem:[#allocation6 + $0xd58] sm:$0xff]
    %v2561 = vld [vmem:[#allocation6 + $0xd60] sm:$0xff]
    %v2562 = vld [vmem:[#allocation6 + $0xd68] sm:$0xff]
    %v2563 = vld [vmem:[#allocation6 + $0xd70] sm:$0xff]
    %v2564 = vld [vmem:[#allocation6 + $0xd78] sm:$0xff]
    %v2565 = vld [vmem:[#allocation6 + $0xd80] sm:$0xff]
    %v2566 = vld [vmem:[#allocation6 + $0xd88] sm:$0xff]
    %v2567 = vld [vmem:[#allocation6 + $0xd90] sm:$0xff]
    %v2568 = vld [vmem:[#allocation6 + $0xd98] sm:$0xff]
    %v2569 = vld [vmem:[#allocation6 + $0xda0] sm:$0xff]
    %v2570 = vld [vmem:[#allocation6 + $0xda8] sm:$0xff]
    %v2571 = vld [vmem:[#allocation6 + $0xdb0] sm:$0xff]
    %v2572 = vld [vmem:[#allocation6 + $0xdb8] sm:$0xff]
    %v2573 = vld [vmem:[#allocation6 + $0xdc0] sm:$0xff]
    %v2574 = vld [vmem:[#allocation6 + $0xdc8] sm:$0xff]
    %v2575 = vld [vmem:[#allocation6 + $0xdd0] sm:$0xff]
    %v2576 = vld [vmem:[#allocation6 + $0xdd8] sm:$0xff]
    %v2577 = vld [vmem:[#allocation6 + $0xde0] sm:$0xff]
    %v2578 = vld [vmem:[#allocation6 + $0xde8] sm:$0xff]
    %v2579 = vld [vmem:[#allocation6 + $0xdf0] sm:$0xff]
    %v2580 = vld [vmem:[#allocation6 + $0xdf8] sm:$0xff]
    %v2581 = vld [vmem:[#allocation6 + $0xe00] sm:$0xff]
    %v2582 = vld [vmem:[#allocation6 + $0xe08] sm:$0xff]
    %v2583 = vld [vmem:[#allocation6 + $0xe10] sm:$0xff]
    %v2584 = vld [vmem:[#allocation6 + $0xe18] sm:$0xff]
    %v2585 = vld [vmem:[#allocation6 + $0xe20] sm:$0xff]
    %v2586 = vld [vmem:[#allocation6 + $0xe28] sm:$0xff]
    %v2587 = vld [vmem:[#allocation6 + $0xe30] sm:$0xff]
    %v2588 = vld [vmem:[#allocation6 + $0xe38] sm:$0xff]
    %v2589 = vld [vmem:[#allocation6 + $0xe40] sm:$0xff]
    %v2590 = vld [vmem:[#allocation6 + $0xe48] sm:$0xff]
    %v2591 = vld [vmem:[#allocation6 + $0xe50] sm:$0xff]
    %v2592 = vld [vmem:[#allocation6 + $0xe58] sm:$0xff]
    %v2593 = vld [vmem:[#allocation6 + $0xe60] sm:$0xff]
    %v2594 = vld [vmem:[#allocation6 + $0xe68] sm:$0xff]
    %v2595 = vld [vmem:[#allocation6 + $0xe70] sm:$0xff]
    %v2596 = vld [vmem:[#allocation6 + $0xe78] sm:$0xff]
    %v2597 = vld [vmem:[#allocation6 + $0xe80] sm:$0xff]
    %v2598 = vld [vmem:[#allocation6 + $0xe88] sm:$0xff]
    %v2599 = vld [vmem:[#allocation6 + $0xe90] sm:$0xff]
    %v2600 = vld [vmem:[#allocation6 + $0xe98] sm:$0xff]
    %v2601 = vld [vmem:[#allocation6 + $0xea0] sm:$0xff]
    %v2602 = vld [vmem:[#allocation6 + $0xea8] sm:$0xff]
    %v2603 = vld [vmem:[#allocation6 + $0xeb0] sm:$0xff]
    %v2604 = vld [vmem:[#allocation6 + $0xeb8] sm:$0xff]
    %v2605 = vld [vmem:[#allocation6 + $0xec0] sm:$0xff]
    %v2606 = vld [vmem:[#allocation6 + $0xec8] sm:$0xff]
    %v2607 = vld [vmem:[#allocation6 + $0xed0] sm:$0xff]
    %v2608 = vld [vmem:[#allocation6 + $0xed8] sm:$0xff]
    %v2609 = vld [vmem:[#allocation6 + $0xee0] sm:$0xff]
    %v2610 = vld [vmem:[#allocation6 + $0xee8] sm:$0xff]
    %v2611 = vld [vmem:[#allocation6 + $0xef0] sm:$0xff]
    %v2612 = vld [vmem:[#allocation6 + $0xef8] sm:$0xff]
    %v2613 = vld [vmem:[#allocation6 + $0xf00] sm:$0xff]
    %v2614 = vld [vmem:[#allocation6 + $0xf08] sm:$0xff]
    %v2615 = vld [vmem:[#allocation6 + $0xf10] sm:$0xff]
    %v2616 = vld [vmem:[#allocation6 + $0xf18] sm:$0xff]
    %v2617 = vld [vmem:[#allocation6 + $0xf20] sm:$0xff]
    %v2618 = vld [vmem:[#allocation6 + $0xf28] sm:$0xff]
    %v2619 = vld [vmem:[#allocation6 + $0xf30] sm:$0xff]
    %v2620 = vld [vmem:[#allocation6 + $0xf38] sm:$0xff]
    %v2621 = vld [vmem:[#allocation6 + $0xf40] sm:$0xff]
    %v2622 = vld [vmem:[#allocation6 + $0xf48] sm:$0xff]
    %v2623 = vld [vmem:[#allocation6 + $0xf50] sm:$0xff]
    %v2624 = vld [vmem:[#allocation6 + $0xf58] sm:$0xff]
    %v2625 = vld [vmem:[#allocation6 + $0xf60] sm:$0xff]
    %v2626 = vld [vmem:[#allocation6 + $0xf68] sm:$0xff]
    %v2627 = vld [vmem:[#allocation6 + $0xf70] sm:$0xff]
    %v2628 = vld [vmem:[#allocation6 + $0xf78] sm:$0xff]
    %v2629 = vld [vmem:[#allocation6 + $0xf80] sm:$0xff]
    %v2630 = vld [vmem:[#allocation6 + $0xf88] sm:$0xff]
    %v2631 = vld [vmem:[#allocation6 + $0xf90] sm:$0xff]
    %v2632 = vld [vmem:[#allocation6 + $0xf98] sm:$0xff]
    %v2633 = vld [vmem:[#allocation6 + $0xfa0] sm:$0xff]
    %v2634 = vld [vmem:[#allocation6 + $0xfa8] sm:$0xff]
    %v2635 = vld [vmem:[#allocation6 + $0xfb0] sm:$0xff]
    %v2636 = vld [vmem:[#allocation6 + $0xfb8] sm:$0xff]
    %v2637 = vld [vmem:[#allocation6 + $0xfc0] sm:$0xff]
    %v2638 = vld [vmem:[#allocation6 + $0xfc8] sm:$0xff]
    %v2639 = vld [vmem:[#allocation6 + $0xfd0] sm:$0xff]
    %v2640 = vld [vmem:[#allocation6 + $0xfd8] sm:$0xff]
    %v2641 = vld [vmem:[#allocation6 + $0xfe0] sm:$0xff]
    %v2642 = vld [vmem:[#allocation6 + $0xfe8] sm:$0xff]
    %v2643 = vld [vmem:[#allocation6 + $0xff0] sm:$0xff]
    %v2644 = vld [vmem:[#allocation6 + $0xff8] sm:$0xff]
    %v2645 = vld [vmem:[#allocation6 + $0x1000] sm:$0xff]
    %v2646 = vld [vmem:[#allocation6 + $0x1008] sm:$0xff]
    %v2647 = vld [vmem:[#allocation6 + $0x1010] sm:$0xff]
    %v2648 = vld [vmem:[#allocation6 + $0x1018] sm:$0xff]
    %v2649 = vld [vmem:[#allocation6 + $0x1020] sm:$0xff]
    %v2650 = vld [vmem:[#allocation6 + $0x1028] sm:$0xff]
    %v2651 = vld [vmem:[#allocation6 + $0x1030] sm:$0xff]
    %v2652 = vld [vmem:[#allocation6 + $0x1038] sm:$0xff]
    %v2653 = vld [vmem:[#allocation6 + $0x1040] sm:$0xff]
    %v2654 = vld [vmem:[#allocation6 + $0x1048] sm:$0xff]
    %v2655 = vld [vmem:[#allocation6 + $0x1050] sm:$0xff]
    %v2656 = vld [vmem:[#allocation6 + $0x1058] sm:$0xff]
    %v2657 = vld [vmem:[#allocation6 + $0x1060] sm:$0xff]
    %v2658 = vld [vmem:[#allocation6 + $0x1068] sm:$0xff]
    %v2659 = vld [vmem:[#allocation6 + $0x1070] sm:$0xff]
    %v2660 = vld [vmem:[#allocation6 + $0x1078] sm:$0xff]
    %v2661 = vld [vmem:[#allocation6 + $0x1080] sm:$0xff]
    %v2662 = vld [vmem:[#allocation6 + $0x1088] sm:$0xff]
    %v2663 = vld [vmem:[#allocation6 + $0x1090] sm:$0xff]
    %v2664 = vld [vmem:[#allocation6 + $0x1098] sm:$0xff]
    %v2665 = vld [vmem:[#allocation6 + $0x10a0] sm:$0xff]
    %v2666 = vld [vmem:[#allocation6 + $0x10a8] sm:$0xff]
    %v2667 = vld [vmem:[#allocation6 + $0x10b0] sm:$0xff]
    %v2668 = vld [vmem:[#allocation6 + $0x10b8] sm:$0xff]
    %v2669 = vld [vmem:[#allocation6 + $0x10c0] sm:$0xff]
    %v2670 = vld [vmem:[#allocation6 + $0x10c8] sm:$0xff]
    %v2671 = vld [vmem:[#allocation6 + $0x10d0] sm:$0xff]
    %v2672 = vld [vmem:[#allocation6 + $0x10d8] sm:$0xff]
    %v2673 = vld [vmem:[#allocation6 + $0x10e0] sm:$0xff]
    %v2674 = vld [vmem:[#allocation6 + $0x10e8] sm:$0xff]
    %v2675 = vld [vmem:[#allocation6 + $0x10f0] sm:$0xff]
    %v2676 = vld [vmem:[#allocation6 + $0x10f8] sm:$0xff]
    %v2677 = vld [vmem:[#allocation6 + $0x1100] sm:$0xff]
    %v2678 = vld [vmem:[#allocation6 + $0x1108] sm:$0xff]
    %v2679 = vld [vmem:[#allocation6 + $0x1110] sm:$0xff]
    %v2680 = vld [vmem:[#allocation6 + $0x1118] sm:$0xff]
    %v2681 = vld [vmem:[#allocation6 + $0x1120] sm:$0xff]
    %v2682 = vld [vmem:[#allocation6 + $0x1128] sm:$0xff]
    %v2683 = vld [vmem:[#allocation6 + $0x1130] sm:$0xff]
    %v2684 = vld [vmem:[#allocation6 + $0x1138] sm:$0xff]
    %v2685 = vld [vmem:[#allocation6 + $0x1140] sm:$0xff]
    %v2686 = vld [vmem:[#allocation6 + $0x1148] sm:$0xff]
    %v2687 = vld [vmem:[#allocation6 + $0x1150] sm:$0xff]
    %v2688 = vld [vmem:[#allocation6 + $0x1158] sm:$0xff]
    %v2689 = vld [vmem:[#allocation6 + $0x1160] sm:$0xff]
    %v2690 = vld [vmem:[#allocation6 + $0x1168] sm:$0xff]
    %v2691 = vld [vmem:[#allocation6 + $0x1170] sm:$0xff]
    %v2692 = vld [vmem:[#allocation6 + $0x1178] sm:$0xff]
    %v2693 = vld [vmem:[#allocation6 + $0x1180] sm:$0xff]
    %v2694 = vld [vmem:[#allocation6 + $0x1188] sm:$0xff]
    %v2695 = vld [vmem:[#allocation6 + $0x1190] sm:$0xff]
    %v2696 = vld [vmem:[#allocation6 + $0x1198] sm:$0xff]
    %v2697 = vld [vmem:[#allocation6 + $0x11a0] sm:$0xff]
    %v2698 = vld [vmem:[#allocation6 + $0x11a8] sm:$0xff]
    %v2699 = vld [vmem:[#allocation6 + $0x11b0] sm:$0xff]
    %v2700 = vld [vmem:[#allocation6 + $0x11b8] sm:$0xff]
    %v2701 = vld [vmem:[#allocation6 + $0x11c0] sm:$0xff]
    %v2702 = vld [vmem:[#allocation6 + $0x11c8] sm:$0xff]
    %v2703 = vld [vmem:[#allocation6 + $0x11d0] sm:$0xff]
    %v2704 = vld [vmem:[#allocation6 + $0x11d8] sm:$0xff]
    %v2705 = vld [vmem:[#allocation6 + $0x11e0] sm:$0xff]
    %v2706 = vld [vmem:[#allocation6 + $0x11e8] sm:$0xff]
    %v2707 = vld [vmem:[#allocation6 + $0x11f0] sm:$0xff]
    %v2708 = vld [vmem:[#allocation6 + $0x11f8] sm:$0xff]
    %v2709 = vld [vmem:[#allocation6 + $0x1200] sm:$0xff]
    %v2710 = vld [vmem:[#allocation6 + $0x1208] sm:$0xff]
    %v2711 = vld [vmem:[#allocation6 + $0x1210] sm:$0xff]
    %v2712 = vld [vmem:[#allocation6 + $0x1218] sm:$0xff]
    %v2713 = vld [vmem:[#allocation6 + $0x1220] sm:$0xff]
    %v2714 = vld [vmem:[#allocation6 + $0x1228] sm:$0xff]
    %v2715 = vld [vmem:[#allocation6 + $0x1230] sm:$0xff]
    %v2716 = vld [vmem:[#allocation6 + $0x1238] sm:$0xff]
    %v2717 = vld [vmem:[#allocation6 + $0x1240] sm:$0xff]
    %v2718 = vld [vmem:[#allocation6 + $0x1248] sm:$0xff]
    %v2719 = vld [vmem:[#allocation6 + $0x1250] sm:$0xff]
    %v2720 = vld [vmem:[#allocation6 + $0x1258] sm:$0xff]
    %v2721 = vld [vmem:[#allocation6 + $0x1260] sm:$0xff]
    %v2722 = vld [vmem:[#allocation6 + $0x1268] sm:$0xff]
    %v2723 = vld [vmem:[#allocation6 + $0x1270] sm:$0xff]
    %v2724 = vld [vmem:[#allocation6 + $0x1278] sm:$0xff]
    %v2725 = vld [vmem:[#allocation6 + $0x1280] sm:$0xff]
    %v2726 = vld [vmem:[#allocation6 + $0x1288] sm:$0xff]
    %v2727 = vld [vmem:[#allocation6 + $0x1290] sm:$0xff]
    %v2728 = vld [vmem:[#allocation6 + $0x1298] sm:$0xff]
    %v2729 = vld [vmem:[#allocation6 + $0x12a0] sm:$0xff]
    %v2730 = vld [vmem:[#allocation6 + $0x12a8] sm:$0xff]
    %v2731 = vld [vmem:[#allocation6 + $0x12b0] sm:$0xff]
    %v2732 = vld [vmem:[#allocation6 + $0x12b8] sm:$0xff]
    %v2733 = vld [vmem:[#allocation6 + $0x12c0] sm:$0xff]
    %v2734 = vld [vmem:[#allocation6 + $0x12c8] sm:$0xff]
    %v2735 = vld [vmem:[#allocation6 + $0x12d0] sm:$0xff]
    %v2736 = vld [vmem:[#allocation6 + $0x12d8] sm:$0xff]
    %v2737 = vld [vmem:[#allocation6 + $0x12e0] sm:$0xff]
    %v2738 = vld [vmem:[#allocation6 + $0x12e8] sm:$0xff]
    %v2739 = vld [vmem:[#allocation6 + $0x12f0] sm:$0xff]
    %v2740 = vld [vmem:[#allocation6 + $0x12f8] sm:$0xff]
    %v2741 = vld [vmem:[#allocation6 + $0x1300] sm:$0xff]
    %v2742 = vld [vmem:[#allocation6 + $0x1308] sm:$0xff]
    %v2743 = vld [vmem:[#allocation6 + $0x1310] sm:$0xff]
    %v2744 = vld [vmem:[#allocation6 + $0x1318] sm:$0xff]
    %v2745 = vld [vmem:[#allocation6 + $0x1320] sm:$0xff]
    %v2746 = vld [vmem:[#allocation6 + $0x1328] sm:$0xff]
    %v2747 = vld [vmem:[#allocation6 + $0x1330] sm:$0xff]
    %v2748 = vld [vmem:[#allocation6 + $0x1338] sm:$0xff]
    %v2749 = vld [vmem:[#allocation6 + $0x1340] sm:$0xff]
    %v2750 = vld [vmem:[#allocation6 + $0x1348] sm:$0xff]
    %v2751 = vld [vmem:[#allocation6 + $0x1350] sm:$0xff]
    %v2752 = vld [vmem:[#allocation6 + $0x1358] sm:$0xff]
    %v2753 = vld [vmem:[#allocation6 + $0x1360] sm:$0xff]
    %v2754 = vld [vmem:[#allocation6 + $0x1368] sm:$0xff]
    %v2755 = vld [vmem:[#allocation6 + $0x1370] sm:$0xff]
    %v2756 = vld [vmem:[#allocation6 + $0x1378] sm:$0xff]
    %v2757 = vld [vmem:[#allocation6 + $0x1380] sm:$0xff]
    %v2758 = vld [vmem:[#allocation6 + $0x1388] sm:$0xff]
    %v2759 = vld [vmem:[#allocation6 + $0x1390] sm:$0xff]
    %v2760 = vld [vmem:[#allocation6 + $0x1398] sm:$0xff]
    %v2761 = vld [vmem:[#allocation6 + $0x13a0] sm:$0xff]
    %v2762 = vld [vmem:[#allocation6 + $0x13a8] sm:$0xff]
    %v2763 = vld [vmem:[#allocation6 + $0x13b0] sm:$0xff]
    %v2764 = vld [vmem:[#allocation6 + $0x13b8] sm:$0xff]
    %v2765 = vld [vmem:[#allocation6 + $0x13c0] sm:$0xff]
    %v2766 = vld [vmem:[#allocation6 + $0x13c8] sm:$0xff]
    %v2767 = vld [vmem:[#allocation6 + $0x13d0] sm:$0xff]
    %v2768 = vld [vmem:[#allocation6 + $0x13d8] sm:$0xff]
    %v2769 = vld [vmem:[#allocation6 + $0x13e0] sm:$0xff]
    %v2770 = vld [vmem:[#allocation6 + $0x13e8] sm:$0xff]
    %v2771 = vld [vmem:[#allocation6 + $0x13f0] sm:$0xff]
    %v2772 = vld [vmem:[#allocation6 + $0x13f8] sm:$0xff]
    %v2773 = vld [vmem:[#allocation6 + $0x1400] sm:$0xff]
    %v2774 = vld [vmem:[#allocation6 + $0x1408] sm:$0xff]
    %v2775 = vld [vmem:[#allocation6 + $0x1410] sm:$0xff]
    %v2776 = vld [vmem:[#allocation6 + $0x1418] sm:$0xff]
    %v2777 = vld [vmem:[#allocation6 + $0x1420] sm:$0xff]
    %v2778 = vld [vmem:[#allocation6 + $0x1428] sm:$0xff]
    %v2779 = vld [vmem:[#allocation6 + $0x1430] sm:$0xff]
    %v2780 = vld [vmem:[#allocation6 + $0x1438] sm:$0xff]
    %v2781 = vld [vmem:[#allocation6 + $0x1440] sm:$0xff]
    %v2782 = vld [vmem:[#allocation6 + $0x1448] sm:$0xff]
    %v2783 = vld [vmem:[#allocation6 + $0x1450] sm:$0xff]
    %v2784 = vld [vmem:[#allocation6 + $0x1458] sm:$0xff]
    %v2785 = vld [vmem:[#allocation6 + $0x1460] sm:$0xff]
    %v2786 = vld [vmem:[#allocation6 + $0x1468] sm:$0xff]
    %v2787 = vld [vmem:[#allocation6 + $0x1470] sm:$0xff]
    %v2788 = vld [vmem:[#allocation6 + $0x1478] sm:$0xff]
    %v2789 = vld [vmem:[#allocation6 + $0x1480] sm:$0xff]
    %v2790 = vld [vmem:[#allocation6 + $0x1488] sm:$0xff]
    %v2791 = vld [vmem:[#allocation6 + $0x1490] sm:$0xff]
    %v2792 = vld [vmem:[#allocation6 + $0x1498] sm:$0xff]
    %v2793 = vld [vmem:[#allocation6 + $0x14a0] sm:$0xff]
    %v2794 = vld [vmem:[#allocation6 + $0x14a8] sm:$0xff]
    %v2795 = vld [vmem:[#allocation6 + $0x14b0] sm:$0xff]
    %v2796 = vld [vmem:[#allocation6 + $0x14b8] sm:$0xff]
    %v2797 = vld [vmem:[#allocation6 + $0x14c0] sm:$0xff]
    %v2798 = vld [vmem:[#allocation6 + $0x14c8] sm:$0xff]
    %v2799 = vld [vmem:[#allocation6 + $0x14d0] sm:$0xff]
    %v2800 = vld [vmem:[#allocation6 + $0x14d8] sm:$0xff]
    %v2801 = vld [vmem:[#allocation6 + $0x14e0] sm:$0xff]
    %v2802 = vld [vmem:[#allocation6 + $0x14e8] sm:$0xff]
    %v2803 = vld [vmem:[#allocation6 + $0x14f0] sm:$0xff]
    %v2804 = vld [vmem:[#allocation6 + $0x14f8] sm:$0xff]
    %v3477 = vunpack.c.l.b16 %v2133
    %v3478 = vunpack.c.h.b16 %v2133
    %v3479 = vunpack.c.l.b16 %v2134
    %v3480 = vunpack.c.h.b16 %v2134
    %v3481 = vunpack.c.l.b16 %v2135
    %v3482 = vunpack.c.h.b16 %v2135
    %v3483 = vunpack.c.l.b16 %v2136
    %v3484 = vunpack.c.h.b16 %v2136
    %v3485 = vunpack.c.l.b16 %v2137
    %v3486 = vunpack.c.h.b16 %v2137
    %v3487 = vunpack.c.l.b16 %v2138
    %v3488 = vunpack.c.h.b16 %v2138
    %v3489 = vunpack.c.l.b16 %v2139
    %v3490 = vunpack.c.h.b16 %v2139
    %v3491 = vunpack.c.l.b16 %v2140
    %v3492 = vunpack.c.h.b16 %v2140
    %v3493 = vunpack.c.l.b16 %v2141
    %v3494 = vunpack.c.h.b16 %v2141
    %v3495 = vunpack.c.l.b16 %v2142
    %v3496 = vunpack.c.h.b16 %v2142
    %v3497 = vunpack.c.l.b16 %v2143
    %v3498 = vunpack.c.h.b16 %v2143
    %v3499 = vunpack.c.l.b16 %v2144
    %v3500 = vunpack.c.h.b16 %v2144
    %v3501 = vunpack.c.l.b16 %v2145
    %v3502 = vunpack.c.h.b16 %v2145
    %v3503 = vunpack.c.l.b16 %v2146
    %v3504 = vunpack.c.h.b16 %v2146
    %v3505 = vunpack.c.l.b16 %v2147
    %v3506 = vunpack.c.h.b16 %v2147
    %v3507 = vunpack.c.l.b16 %v2148
    %v3508 = vunpack.c.h.b16 %v2148
    %v3509 = vunpack.c.l.b16 %v2149
    %v3510 = vunpack.c.h.b16 %v2149
    %v3511 = vunpack.c.l.b16 %v2150
    %v3512 = vunpack.c.h.b16 %v2150
    %v3513 = vunpack.c.l.b16 %v2151
    %v3514 = vunpack.c.h.b16 %v2151
    %v3515 = vunpack.c.l.b16 %v2152
    %v3516 = vunpack.c.h.b16 %v2152
    %v3517 = vunpack.c.l.b16 %v2153
    %v3518 = vunpack.c.h.b16 %v2153
    %v3519 = vunpack.c.l.b16 %v2154
    %v3520 = vunpack.c.h.b16 %v2154
    %v3521 = vunpack.c.l.b16 %v2155
    %v3522 = vunpack.c.h.b16 %v2155
    %v3523 = vunpack.c.l.b16 %v2156
    %v3524 = vunpack.c.h.b16 %v2156
    %v3525 = vunpack.c.l.b16 %v2157
    %v3526 = vunpack.c.h.b16 %v2157
    %v3527 = vunpack.c.l.b16 %v2158
    %v3528 = vunpack.c.h.b16 %v2158
    %v3529 = vunpack.c.l.b16 %v2159
    %v3530 = vunpack.c.h.b16 %v2159
    %v3531 = vunpack.c.l.b16 %v2160
    %v3532 = vunpack.c.h.b16 %v2160
    %v3533 = vunpack.c.l.b16 %v2161
    %v3534 = vunpack.c.h.b16 %v2161
    %v3535 = vunpack.c.l.b16 %v2162
    %v3536 = vunpack.c.h.b16 %v2162
    %v3537 = vunpack.c.l.b16 %v2163
    %v3538 = vunpack.c.h.b16 %v2163
    %v3539 = vunpack.c.l.b16 %v2164
    %v3540 = vunpack.c.h.b16 %v2164
    %v3541 = vunpack.c.l.b16 %v2165
    %v3542 = vunpack.c.h.b16 %v2165
    %v3543 = vunpack.c.l.b16 %v2166
    %v3544 = vunpack.c.h.b16 %v2166
    %v3545 = vunpack.c.l.b16 %v2167
    %v3546 = vunpack.c.h.b16 %v2167
    %v3547 = vunpack.c.l.b16 %v2168
    %v3548 = vunpack.c.h.b16 %v2168
    %v3549 = vunpack.c.l.b16 %v2169
    %v3550 = vunpack.c.h.b16 %v2169
    %v3551 = vunpack.c.l.b16 %v2170
    %v3552 = vunpack.c.h.b16 %v2170
    %v3553 = vunpack.c.l.b16 %v2171
    %v3554 = vunpack.c.h.b16 %v2171
    %v3555 = vunpack.c.l.b16 %v2172
    %v3556 = vunpack.c.h.b16 %v2172
    %v3557 = vunpack.c.l.b16 %v2173
    %v3558 = vunpack.c.h.b16 %v2173
    %v3559 = vunpack.c.l.b16 %v2174
    %v3560 = vunpack.c.h.b16 %v2174
    %v3561 = vunpack.c.l.b16 %v2175
    %v3562 = vunpack.c.h.b16 %v2175
    %v3563 = vunpack.c.l.b16 %v2176
    %v3564 = vunpack.c.h.b16 %v2176
    %v3565 = vunpack.c.l.b16 %v2177
    %v3566 = vunpack.c.h.b16 %v2177
    %v3567 = vunpack.c.l.b16 %v2178
    %v3568 = vunpack.c.h.b16 %v2178
    %v3569 = vunpack.c.l.b16 %v2179
    %v3570 = vunpack.c.h.b16 %v2179
    %v3571 = vunpack.c.l.b16 %v2180
    %v3572 = vunpack.c.h.b16 %v2180
    %v3573 = vunpack.c.l.b16 %v2181
    %v3574 = vunpack.c.h.b16 %v2181
    %v3575 = vunpack.c.l.b16 %v2182
    %v3576 = vunpack.c.h.b16 %v2182
    %v3577 = vunpack.c.l.b16 %v2183
    %v3578 = vunpack.c.h.b16 %v2183
    %v3579 = vunpack.c.l.b16 %v2184
    %v3580 = vunpack.c.h.b16 %v2184
    %v3581 = vunpack.c.l.b16 %v2185
    %v3582 = vunpack.c.h.b16 %v2185
    %v3583 = vunpack.c.l.b16 %v2186
    %v3584 = vunpack.c.h.b16 %v2186
    %v3585 = vunpack.c.l.b16 %v2187
    %v3586 = vunpack.c.h.b16 %v2187
    %v3587 = vunpack.c.l.b16 %v2188
    %v3588 = vunpack.c.h.b16 %v2188
    %v3589 = vunpack.c.l.b16 %v2189
    %v3590 = vunpack.c.h.b16 %v2189
    %v3591 = vunpack.c.l.b16 %v2190
    %v3592 = vunpack.c.h.b16 %v2190
    %v3593 = vunpack.c.l.b16 %v2191
    %v3594 = vunpack.c.h.b16 %v2191
    %v3595 = vunpack.c.l.b16 %v2192
    %v3596 = vunpack.c.h.b16 %v2192
    %v3597 = vunpack.c.l.b16 %v2193
    %v3598 = vunpack.c.h.b16 %v2193
    %v3599 = vunpack.c.l.b16 %v2194
    %v3600 = vunpack.c.h.b16 %v2194
    %v3601 = vunpack.c.l.b16 %v2195
    %v3602 = vunpack.c.h.b16 %v2195
    %v3603 = vunpack.c.l.b16 %v2196
    %v3604 = vunpack.c.h.b16 %v2196
    %v3605 = vunpack.c.l.b16 %v2197
    %v3606 = vunpack.c.h.b16 %v2197
    %v3607 = vunpack.c.l.b16 %v2198
    %v3608 = vunpack.c.h.b16 %v2198
    %v3609 = vunpack.c.l.b16 %v2199
    %v3610 = vunpack.c.h.b16 %v2199
    %v3611 = vunpack.c.l.b16 %v2200
    %v3612 = vunpack.c.h.b16 %v2200
    %v3613 = vunpack.c.l.b16 %v2201
    %v3614 = vunpack.c.h.b16 %v2201
    %v3615 = vunpack.c.l.b16 %v2202
    %v3616 = vunpack.c.h.b16 %v2202
    %v3617 = vunpack.c.l.b16 %v2203
    %v3618 = vunpack.c.h.b16 %v2203
    %v3619 = vunpack.c.l.b16 %v2204
    %v3620 = vunpack.c.h.b16 %v2204
    %v3621 = vunpack.c.l.b16 %v2205
    %v3622 = vunpack.c.h.b16 %v2205
    %v3623 = vunpack.c.l.b16 %v2206
    %v3624 = vunpack.c.h.b16 %v2206
    %v3625 = vunpack.c.l.b16 %v2207
    %v3626 = vunpack.c.h.b16 %v2207
    %v3627 = vunpack.c.l.b16 %v2208
    %v3628 = vunpack.c.h.b16 %v2208
    %v3629 = vunpack.c.l.b16 %v2209
    %v3630 = vunpack.c.h.b16 %v2209
    %v3631 = vunpack.c.l.b16 %v2210
    %v3632 = vunpack.c.h.b16 %v2210
    %v3633 = vunpack.c.l.b16 %v2211
    %v3634 = vunpack.c.h.b16 %v2211
    %v3635 = vunpack.c.l.b16 %v2212
    %v3636 = vunpack.c.h.b16 %v2212
    %v3637 = vunpack.c.l.b16 %v2213
    %v3638 = vunpack.c.h.b16 %v2213
    %v3639 = vunpack.c.l.b16 %v2214
    %v3640 = vunpack.c.h.b16 %v2214
    %v3641 = vunpack.c.l.b16 %v2215
    %v3642 = vunpack.c.h.b16 %v2215
    %v3643 = vunpack.c.l.b16 %v2216
    %v3644 = vunpack.c.h.b16 %v2216
    %v3645 = vunpack.c.l.b16 %v2217
    %v3646 = vunpack.c.h.b16 %v2217
    %v3647 = vunpack.c.l.b16 %v2218
    %v3648 = vunpack.c.h.b16 %v2218
    %v3649 = vunpack.c.l.b16 %v2219
    %v3650 = vunpack.c.h.b16 %v2219
    %v3651 = vunpack.c.l.b16 %v2220
    %v3652 = vunpack.c.h.b16 %v2220
    %v3653 = vunpack.c.l.b16 %v2221
    %v3654 = vunpack.c.h.b16 %v2221
    %v3655 = vunpack.c.l.b16 %v2222
    %v3656 = vunpack.c.h.b16 %v2222
    %v3657 = vunpack.c.l.b16 %v2223
    %v3658 = vunpack.c.h.b16 %v2223
    %v3659 = vunpack.c.l.b16 %v2224
    %v3660 = vunpack.c.h.b16 %v2224
    %v3661 = vunpack.c.l.b16 %v2225
    %v3662 = vunpack.c.h.b16 %v2225
    %v3663 = vunpack.c.l.b16 %v2226
    %v3664 = vunpack.c.h.b16 %v2226
    %v3665 = vunpack.c.l.b16 %v2227
    %v3666 = vunpack.c.h.b16 %v2227
    %v3667 = vunpack.c.l.b16 %v2228
    %v3668 = vunpack.c.h.b16 %v2228
    %v3669 = vunpack.c.l.b16 %v2229
    %v3670 = vunpack.c.h.b16 %v2229
    %v3671 = vunpack.c.l.b16 %v2230
    %v3672 = vunpack.c.h.b16 %v2230
    %v3673 = vunpack.c.l.b16 %v2231
    %v3674 = vunpack.c.h.b16 %v2231
    %v3675 = vunpack.c.l.b16 %v2232
    %v3676 = vunpack.c.h.b16 %v2232
    %v3677 = vunpack.c.l.b16 %v2233
    %v3678 = vunpack.c.h.b16 %v2233
    %v3679 = vunpack.c.l.b16 %v2234
    %v3680 = vunpack.c.h.b16 %v2234
    %v3681 = vunpack.c.l.b16 %v2235
    %v3682 = vunpack.c.h.b16 %v2235
    %v3683 = vunpack.c.l.b16 %v2236
    %v3684 = vunpack.c.h.b16 %v2236
    %v3685 = vunpack.c.l.b16 %v2237
    %v3686 = vunpack.c.h.b16 %v2237
    %v3687 = vunpack.c.l.b16 %v2238
    %v3688 = vunpack.c.h.b16 %v2238
    %v3689 = vunpack.c.l.b16 %v2239
    %v3690 = vunpack.c.h.b16 %v2239
    %v3691 = vunpack.c.l.b16 %v2240
    %v3692 = vunpack.c.h.b16 %v2240
    %v3693 = vunpack.c.l.b16 %v2241
    %v3694 = vunpack.c.h.b16 %v2241
    %v3695 = vunpack.c.l.b16 %v2242
    %v3696 = vunpack.c.h.b16 %v2242
    %v3697 = vunpack.c.l.b16 %v2243
    %v3698 = vunpack.c.h.b16 %v2243
    %v3699 = vunpack.c.l.b16 %v2244
    %v3700 = vunpack.c.h.b16 %v2244
    %v3701 = vunpack.c.l.b16 %v2245
    %v3702 = vunpack.c.h.b16 %v2245
    %v3703 = vunpack.c.l.b16 %v2246
    %v3704 = vunpack.c.h.b16 %v2246
    %v3705 = vunpack.c.l.b16 %v2247
    %v3706 = vunpack.c.h.b16 %v2247
    %v3707 = vunpack.c.l.b16 %v2248
    %v3708 = vunpack.c.h.b16 %v2248
    %v3709 = vunpack.c.l.b16 %v2249
    %v3710 = vunpack.c.h.b16 %v2249
    %v3711 = vunpack.c.l.b16 %v2250
    %v3712 = vunpack.c.h.b16 %v2250
    %v3713 = vunpack.c.l.b16 %v2251
    %v3714 = vunpack.c.h.b16 %v2251
    %v3715 = vunpack.c.l.b16 %v2252
    %v3716 = vunpack.c.h.b16 %v2252
    %v3717 = vunpack.c.l.b16 %v2253
    %v3718 = vunpack.c.h.b16 %v2253
    %v3719 = vunpack.c.l.b16 %v2254
    %v3720 = vunpack.c.h.b16 %v2254
    %v3721 = vunpack.c.l.b16 %v2255
    %v3722 = vunpack.c.h.b16 %v2255
    %v3723 = vunpack.c.l.b16 %v2256
    %v3724 = vunpack.c.h.b16 %v2256
    %v3725 = vunpack.c.l.b16 %v2257
    %v3726 = vunpack.c.h.b16 %v2257
    %v3727 = vunpack.c.l.b16 %v2258
    %v3728 = vunpack.c.h.b16 %v2258
    %v3729 = vunpack.c.l.b16 %v2259
    %v3730 = vunpack.c.h.b16 %v2259
    %v3731 = vunpack.c.l.b16 %v2260
    %v3732 = vunpack.c.h.b16 %v2260
    %v3733 = vunpack.c.l.b16 %v2261
    %v3734 = vunpack.c.h.b16 %v2261
    %v3735 = vunpack.c.l.b16 %v2262
    %v3736 = vunpack.c.h.b16 %v2262
    %v3737 = vunpack.c.l.b16 %v2263
    %v3738 = vunpack.c.h.b16 %v2263
    %v3739 = vunpack.c.l.b16 %v2264
    %v3740 = vunpack.c.h.b16 %v2264
    %v3741 = vunpack.c.l.b16 %v2265
    %v3742 = vunpack.c.h.b16 %v2265
    %v3743 = vunpack.c.l.b16 %v2266
    %v3744 = vunpack.c.h.b16 %v2266
    %v3745 = vunpack.c.l.b16 %v2267
    %v3746 = vunpack.c.h.b16 %v2267
    %v3747 = vunpack.c.l.b16 %v2268
    %v3748 = vunpack.c.h.b16 %v2268
    %v3749 = vunpack.c.l.b16 %v2269
    %v3750 = vunpack.c.h.b16 %v2269
    %v3751 = vunpack.c.l.b16 %v2270
    %v3752 = vunpack.c.h.b16 %v2270
    %v3753 = vunpack.c.l.b16 %v2271
    %v3754 = vunpack.c.h.b16 %v2271
    %v3755 = vunpack.c.l.b16 %v2272
    %v3756 = vunpack.c.h.b16 %v2272
    %v3757 = vunpack.c.l.b16 %v2273
    %v3758 = vunpack.c.h.b16 %v2273
    %v3759 = vunpack.c.l.b16 %v2274
    %v3760 = vunpack.c.h.b16 %v2274
    %v3761 = vunpack.c.l.b16 %v2275
    %v3762 = vunpack.c.h.b16 %v2275
    %v3763 = vunpack.c.l.b16 %v2276
    %v3764 = vunpack.c.h.b16 %v2276
    %v3765 = vunpack.c.l.b16 %v2277
    %v3766 = vunpack.c.h.b16 %v2277
    %v3767 = vunpack.c.l.b16 %v2278
    %v3768 = vunpack.c.h.b16 %v2278
    %v3769 = vunpack.c.l.b16 %v2279
    %v3770 = vunpack.c.h.b16 %v2279
    %v3771 = vunpack.c.l.b16 %v2280
    %v3772 = vunpack.c.h.b16 %v2280
    %v3773 = vunpack.c.l.b16 %v2281
    %v3774 = vunpack.c.h.b16 %v2281
    %v3775 = vunpack.c.l.b16 %v2282
    %v3776 = vunpack.c.h.b16 %v2282
    %v3777 = vunpack.c.l.b16 %v2283
    %v3778 = vunpack.c.h.b16 %v2283
    %v3779 = vunpack.c.l.b16 %v2284
    %v3780 = vunpack.c.h.b16 %v2284
    %v3781 = vunpack.c.l.b16 %v2285
    %v3782 = vunpack.c.h.b16 %v2285
    %v3783 = vunpack.c.l.b16 %v2286
    %v3784 = vunpack.c.h.b16 %v2286
    %v3785 = vunpack.c.l.b16 %v2287
    %v3786 = vunpack.c.h.b16 %v2287
    %v3787 = vunpack.c.l.b16 %v2288
    %v3788 = vunpack.c.h.b16 %v2288
    %v3789 = vunpack.c.l.b16 %v2289
    %v3790 = vunpack.c.h.b16 %v2289
    %v3791 = vunpack.c.l.b16 %v2290
    %v3792 = vunpack.c.h.b16 %v2290
    %v3793 = vunpack.c.l.b16 %v2291
    %v3794 = vunpack.c.h.b16 %v2291
    %v3795 = vunpack.c.l.b16 %v2292
    %v3796 = vunpack.c.h.b16 %v2292
    %v3797 = vunpack.c.l.b16 %v2293
    %v3798 = vunpack.c.h.b16 %v2293
    %v3799 = vunpack.c.l.b16 %v2294
    %v3800 = vunpack.c.h.b16 %v2294
    %v3801 = vunpack.c.l.b16 %v2295
    %v3802 = vunpack.c.h.b16 %v2295
    %v3803 = vunpack.c.l.b16 %v2296
    %v3804 = vunpack.c.h.b16 %v2296
    %v3805 = vunpack.c.l.b16 %v2297
    %v3806 = vunpack.c.h.b16 %v2297
    %v3807 = vunpack.c.l.b16 %v2298
    %v3808 = vunpack.c.h.b16 %v2298
    %v3809 = vunpack.c.l.b16 %v2299
    %v3810 = vunpack.c.h.b16 %v2299
    %v3811 = vunpack.c.l.b16 %v2300
    %v3812 = vunpack.c.h.b16 %v2300
    %v3813 = vunpack.c.l.b16 %v2301
    %v3814 = vunpack.c.h.b16 %v2301
    %v3815 = vunpack.c.l.b16 %v2302
    %v3816 = vunpack.c.h.b16 %v2302
    %v3817 = vunpack.c.l.b16 %v2303
    %v3818 = vunpack.c.h.b16 %v2303
    %v3819 = vunpack.c.l.b16 %v2304
    %v3820 = vunpack.c.h.b16 %v2304
    %v3821 = vunpack.c.l.b16 %v2305
    %v3822 = vunpack.c.h.b16 %v2305
    %v3823 = vunpack.c.l.b16 %v2306
    %v3824 = vunpack.c.h.b16 %v2306
    %v3825 = vunpack.c.l.b16 %v2307
    %v3826 = vunpack.c.h.b16 %v2307
    %v3827 = vunpack.c.l.b16 %v2308
    %v3828 = vunpack.c.h.b16 %v2308
    %v3829 = vunpack.c.l.b16 %v2309
    %v3830 = vunpack.c.h.b16 %v2309
    %v3831 = vunpack.c.l.b16 %v2310
    %v3832 = vunpack.c.h.b16 %v2310
    %v3833 = vunpack.c.l.b16 %v2311
    %v3834 = vunpack.c.h.b16 %v2311
    %v3835 = vunpack.c.l.b16 %v2312
    %v3836 = vunpack.c.h.b16 %v2312
    %v3837 = vunpack.c.l.b16 %v2313
    %v3838 = vunpack.c.h.b16 %v2313
    %v3839 = vunpack.c.l.b16 %v2314
    %v3840 = vunpack.c.h.b16 %v2314
    %v3841 = vunpack.c.l.b16 %v2315
    %v3842 = vunpack.c.h.b16 %v2315
    %v3843 = vunpack.c.l.b16 %v2316
    %v3844 = vunpack.c.h.b16 %v2316
    %v3845 = vunpack.c.l.b16 %v2317
    %v3846 = vunpack.c.h.b16 %v2317
    %v3847 = vunpack.c.l.b16 %v2318
    %v3848 = vunpack.c.h.b16 %v2318
    %v3849 = vunpack.c.l.b16 %v2319
    %v3850 = vunpack.c.h.b16 %v2319
    %v3851 = vunpack.c.l.b16 %v2320
    %v3852 = vunpack.c.h.b16 %v2320
    %v3853 = vunpack.c.l.b16 %v2321
    %v3854 = vunpack.c.h.b16 %v2321
    %v3855 = vunpack.c.l.b16 %v2322
    %v3856 = vunpack.c.h.b16 %v2322
    %v3857 = vunpack.c.l.b16 %v2323
    %v3858 = vunpack.c.h.b16 %v2323
    %v3859 = vunpack.c.l.b16 %v2324
    %v3860 = vunpack.c.h.b16 %v2324
    %v3861 = vunpack.c.l.b16 %v2325
    %v3862 = vunpack.c.h.b16 %v2325
    %v3863 = vunpack.c.l.b16 %v2326
    %v3864 = vunpack.c.h.b16 %v2326
    %v3865 = vunpack.c.l.b16 %v2327
    %v3866 = vunpack.c.h.b16 %v2327
    %v3867 = vunpack.c.l.b16 %v2328
    %v3868 = vunpack.c.h.b16 %v2328
    %v3869 = vunpack.c.l.b16 %v2329
    %v3870 = vunpack.c.h.b16 %v2329
    %v3871 = vunpack.c.l.b16 %v2330
    %v3872 = vunpack.c.h.b16 %v2330
    %v3873 = vunpack.c.l.b16 %v2331
    %v3874 = vunpack.c.h.b16 %v2331
    %v3875 = vunpack.c.l.b16 %v2332
    %v3876 = vunpack.c.h.b16 %v2332
    %v3877 = vunpack.c.l.b16 %v2333
    %v3878 = vunpack.c.h.b16 %v2333
    %v3879 = vunpack.c.l.b16 %v2334
    %v3880 = vunpack.c.h.b16 %v2334
    %v3881 = vunpack.c.l.b16 %v2335
    %v3882 = vunpack.c.h.b16 %v2335
    %v3883 = vunpack.c.l.b16 %v2336
    %v3884 = vunpack.c.h.b16 %v2336
    %v3885 = vunpack.c.l.b16 %v2337
    %v3886 = vunpack.c.h.b16 %v2337
    %v3887 = vunpack.c.l.b16 %v2338
    %v3888 = vunpack.c.h.b16 %v2338
    %v3889 = vunpack.c.l.b16 %v2339
    %v3890 = vunpack.c.h.b16 %v2339
    %v3891 = vunpack.c.l.b16 %v2340
    %v3892 = vunpack.c.h.b16 %v2340
    %v3893 = vunpack.c.l.b16 %v2341
    %v3894 = vunpack.c.h.b16 %v2341
    %v3895 = vunpack.c.l.b16 %v2342
    %v3896 = vunpack.c.h.b16 %v2342
    %v3897 = vunpack.c.l.b16 %v2343
    %v3898 = vunpack.c.h.b16 %v2343
    %v3899 = vunpack.c.l.b16 %v2344
    %v3900 = vunpack.c.h.b16 %v2344
    %v3901 = vunpack.c.l.b16 %v2345
    %v3902 = vunpack.c.h.b16 %v2345
    %v3903 = vunpack.c.l.b16 %v2346
    %v3904 = vunpack.c.h.b16 %v2346
    %v3905 = vunpack.c.l.b16 %v2347
    %v3906 = vunpack.c.h.b16 %v2347
    %v3907 = vunpack.c.l.b16 %v2348
    %v3908 = vunpack.c.h.b16 %v2348
    %v3909 = vunpack.c.l.b16 %v2349
    %v3910 = vunpack.c.h.b16 %v2349
    %v3911 = vunpack.c.l.b16 %v2350
    %v3912 = vunpack.c.h.b16 %v2350
    %v3913 = vunpack.c.l.b16 %v2351
    %v3914 = vunpack.c.h.b16 %v2351
    %v3915 = vunpack.c.l.b16 %v2352
    %v3916 = vunpack.c.h.b16 %v2352
    %v3917 = vunpack.c.l.b16 %v2353
    %v3918 = vunpack.c.h.b16 %v2353
    %v3919 = vunpack.c.l.b16 %v2354
    %v3920 = vunpack.c.h.b16 %v2354
    %v3921 = vunpack.c.l.b16 %v2355
    %v3922 = vunpack.c.h.b16 %v2355
    %v3923 = vunpack.c.l.b16 %v2356
    %v3924 = vunpack.c.h.b16 %v2356
    %v3925 = vunpack.c.l.b16 %v2357
    %v3926 = vunpack.c.h.b16 %v2357
    %v3927 = vunpack.c.l.b16 %v2358
    %v3928 = vunpack.c.h.b16 %v2358
    %v3929 = vunpack.c.l.b16 %v2359
    %v3930 = vunpack.c.h.b16 %v2359
    %v3931 = vunpack.c.l.b16 %v2360
    %v3932 = vunpack.c.h.b16 %v2360
    %v3933 = vunpack.c.l.b16 %v2361
    %v3934 = vunpack.c.h.b16 %v2361
    %v3935 = vunpack.c.l.b16 %v2362
    %v3936 = vunpack.c.h.b16 %v2362
    %v3937 = vunpack.c.l.b16 %v2363
    %v3938 = vunpack.c.h.b16 %v2363
    %v3939 = vunpack.c.l.b16 %v2364
    %v3940 = vunpack.c.h.b16 %v2364
    %v3941 = vunpack.c.l.b16 %v2365
    %v3942 = vunpack.c.h.b16 %v2365
    %v3943 = vunpack.c.l.b16 %v2366
    %v3944 = vunpack.c.h.b16 %v2366
    %v3945 = vunpack.c.l.b16 %v2367
    %v3946 = vunpack.c.h.b16 %v2367
    %v3947 = vunpack.c.l.b16 %v2368
    %v3948 = vunpack.c.h.b16 %v2368
    %v3949 = vunpack.c.l.b16 %v2369
    %v3950 = vunpack.c.h.b16 %v2369
    %v3951 = vunpack.c.l.b16 %v2370
    %v3952 = vunpack.c.h.b16 %v2370
    %v3953 = vunpack.c.l.b16 %v2371
    %v3954 = vunpack.c.h.b16 %v2371
    %v3955 = vunpack.c.l.b16 %v2372
    %v3956 = vunpack.c.h.b16 %v2372
    %v3957 = vunpack.c.l.b16 %v2373
    %v3958 = vunpack.c.h.b16 %v2373
    %v3959 = vunpack.c.l.b16 %v2374
    %v3960 = vunpack.c.h.b16 %v2374
    %v3961 = vunpack.c.l.b16 %v2375
    %v3962 = vunpack.c.h.b16 %v2375
    %v3963 = vunpack.c.l.b16 %v2376
    %v3964 = vunpack.c.h.b16 %v2376
    %v3965 = vunpack.c.l.b16 %v2377
    %v3966 = vunpack.c.h.b16 %v2377
    %v3967 = vunpack.c.l.b16 %v2378
    %v3968 = vunpack.c.h.b16 %v2378
    %v3969 = vunpack.c.l.b16 %v2379
    %v3970 = vunpack.c.h.b16 %v2379
    %v3971 = vunpack.c.l.b16 %v2380
    %v3972 = vunpack.c.h.b16 %v2380
    %v3973 = vunpack.c.l.b16 %v2381
    %v3974 = vunpack.c.h.b16 %v2381
    %v3975 = vunpack.c.l.b16 %v2382
    %v3976 = vunpack.c.h.b16 %v2382
    %v3977 = vunpack.c.l.b16 %v2383
    %v3978 = vunpack.c.h.b16 %v2383
    %v3979 = vunpack.c.l.b16 %v2384
    %v3980 = vunpack.c.h.b16 %v2384
    %v3981 = vunpack.c.l.b16 %v2385
    %v3982 = vunpack.c.h.b16 %v2385
    %v3983 = vunpack.c.l.b16 %v2386
    %v3984 = vunpack.c.h.b16 %v2386
    %v3985 = vunpack.c.l.b16 %v2387
    %v3986 = vunpack.c.h.b16 %v2387
    %v3987 = vunpack.c.l.b16 %v2388
    %v3988 = vunpack.c.h.b16 %v2388
    %v3989 = vunpack.c.l.b16 %v2389
    %v3990 = vunpack.c.h.b16 %v2389
    %v3991 = vunpack.c.l.b16 %v2390
    %v3992 = vunpack.c.h.b16 %v2390
    %v3993 = vunpack.c.l.b16 %v2391
    %v3994 = vunpack.c.h.b16 %v2391
    %v3995 = vunpack.c.l.b16 %v2392
    %v3996 = vunpack.c.h.b16 %v2392
    %v3997 = vunpack.c.l.b16 %v2393
    %v3998 = vunpack.c.h.b16 %v2393
    %v3999 = vunpack.c.l.b16 %v2394
    %v4000 = vunpack.c.h.b16 %v2394
    %v4001 = vunpack.c.l.b16 %v2395
    %v4002 = vunpack.c.h.b16 %v2395
    %v4003 = vunpack.c.l.b16 %v2396
    %v4004 = vunpack.c.h.b16 %v2396
    %v4005 = vunpack.c.l.b16 %v2397
    %v4006 = vunpack.c.h.b16 %v2397
    %v4007 = vunpack.c.l.b16 %v2398
    %v4008 = vunpack.c.h.b16 %v2398
    %v4009 = vunpack.c.l.b16 %v2399
    %v4010 = vunpack.c.h.b16 %v2399
    %v4011 = vunpack.c.l.b16 %v2400
    %v4012 = vunpack.c.h.b16 %v2400
    %v4013 = vunpack.c.l.b16 %v2401
    %v4014 = vunpack.c.h.b16 %v2401
    %v4015 = vunpack.c.l.b16 %v2402
    %v4016 = vunpack.c.h.b16 %v2402
    %v4017 = vunpack.c.l.b16 %v2403
    %v4018 = vunpack.c.h.b16 %v2403
    %v4019 = vunpack.c.l.b16 %v2404
    %v4020 = vunpack.c.h.b16 %v2404
    %v4021 = vunpack.c.l.b16 %v2405
    %v4022 = vunpack.c.h.b16 %v2405
    %v4023 = vunpack.c.l.b16 %v2406
    %v4024 = vunpack.c.h.b16 %v2406
    %v4025 = vunpack.c.l.b16 %v2407
    %v4026 = vunpack.c.h.b16 %v2407
    %v4027 = vunpack.c.l.b16 %v2408
    %v4028 = vunpack.c.h.b16 %v2408
    %v4029 = vunpack.c.l.b16 %v2409
    %v4030 = vunpack.c.h.b16 %v2409
    %v4031 = vunpack.c.l.b16 %v2410
    %v4032 = vunpack.c.h.b16 %v2410
    %v4033 = vunpack.c.l.b16 %v2411
    %v4034 = vunpack.c.h.b16 %v2411
    %v4035 = vunpack.c.l.b16 %v2412
    %v4036 = vunpack.c.h.b16 %v2412
    %v4037 = vunpack.c.l.b16 %v2413
    %v4038 = vunpack.c.h.b16 %v2413
    %v4039 = vunpack.c.l.b16 %v2414
    %v4040 = vunpack.c.h.b16 %v2414
    %v4041 = vunpack.c.l.b16 %v2415
    %v4042 = vunpack.c.h.b16 %v2415
    %v4043 = vunpack.c.l.b16 %v2416
    %v4044 = vunpack.c.h.b16 %v2416
    %v4045 = vunpack.c.l.b16 %v2417
    %v4046 = vunpack.c.h.b16 %v2417
    %v4047 = vunpack.c.l.b16 %v2418
    %v4048 = vunpack.c.h.b16 %v2418
    %v4049 = vunpack.c.l.b16 %v2419
    %v4050 = vunpack.c.h.b16 %v2419
    %v4051 = vunpack.c.l.b16 %v2420
    %v4052 = vunpack.c.h.b16 %v2420
    %v4053 = vunpack.c.l.b16 %v2421
    %v4054 = vunpack.c.h.b16 %v2421
    %v4055 = vunpack.c.l.b16 %v2422
    %v4056 = vunpack.c.h.b16 %v2422
    %v4057 = vunpack.c.l.b16 %v2423
    %v4058 = vunpack.c.h.b16 %v2423
    %v4059 = vunpack.c.l.b16 %v2424
    %v4060 = vunpack.c.h.b16 %v2424
    %v4061 = vunpack.c.l.b16 %v2425
    %v4062 = vunpack.c.h.b16 %v2425
    %v4063 = vunpack.c.l.b16 %v2426
    %v4064 = vunpack.c.h.b16 %v2426
    %v4065 = vunpack.c.l.b16 %v2427
    %v4066 = vunpack.c.h.b16 %v2427
    %v4067 = vunpack.c.l.b16 %v2428
    %v4068 = vunpack.c.h.b16 %v2428
    %v4069 = vunpack.c.l.b16 %v2429
    %v4070 = vunpack.c.h.b16 %v2429
    %v4071 = vunpack.c.l.b16 %v2430
    %v4072 = vunpack.c.h.b16 %v2430
    %v4073 = vunpack.c.l.b16 %v2431
    %v4074 = vunpack.c.h.b16 %v2431
    %v4075 = vunpack.c.l.b16 %v2432
    %v4076 = vunpack.c.h.b16 %v2432
    %v4077 = vunpack.c.l.b16 %v2433
    %v4078 = vunpack.c.h.b16 %v2433
    %v4079 = vunpack.c.l.b16 %v2434
    %v4080 = vunpack.c.h.b16 %v2434
    %v4081 = vunpack.c.l.b16 %v2435
    %v4082 = vunpack.c.h.b16 %v2435
    %v4083 = vunpack.c.l.b16 %v2436
    %v4084 = vunpack.c.h.b16 %v2436
    %v4085 = vunpack.c.l.b16 %v2437
    %v4086 = vunpack.c.h.b16 %v2437
    %v4087 = vunpack.c.l.b16 %v2438
    %v4088 = vunpack.c.h.b16 %v2438
    %v4089 = vunpack.c.l.b16 %v2439
    %v4090 = vunpack.c.h.b16 %v2439
    %v4091 = vunpack.c.l.b16 %v2440
    %v4092 = vunpack.c.h.b16 %v2440
    %v4093 = vunpack.c.l.b16 %v2441
    %v4094 = vunpack.c.h.b16 %v2441
    %v4095 = vunpack.c.l.b16 %v2442
    %v4096 = vunpack.c.h.b16 %v2442
    %v4097 = vunpack.c.l.b16 %v2443
    %v4098 = vunpack.c.h.b16 %v2443
    %v4099 = vunpack.c.l.b16 %v2444
    %v4100 = vunpack.c.h.b16 %v2444
    %v4101 = vunpack.c.l.b16 %v2445
    %v4102 = vunpack.c.h.b16 %v2445
    %v4103 = vunpack.c.l.b16 %v2446
    %v4104 = vunpack.c.h.b16 %v2446
    %v4105 = vunpack.c.l.b16 %v2447
    %v4106 = vunpack.c.h.b16 %v2447
    %v4107 = vunpack.c.l.b16 %v2448
    %v4108 = vunpack.c.h.b16 %v2448
    %v4109 = vunpack.c.l.b16 %v2449
    %v4110 = vunpack.c.h.b16 %v2449
    %v4111 = vunpack.c.l.b16 %v2450
    %v4112 = vunpack.c.h.b16 %v2450
    %v4113 = vunpack.c.l.b16 %v2451
    %v4114 = vunpack.c.h.b16 %v2451
    %v4115 = vunpack.c.l.b16 %v2452
    %v4116 = vunpack.c.h.b16 %v2452
    %v4117 = vunpack.c.l.b16 %v2453
    %v4118 = vunpack.c.h.b16 %v2453
    %v4119 = vunpack.c.l.b16 %v2454
    %v4120 = vunpack.c.h.b16 %v2454
    %v4121 = vunpack.c.l.b16 %v2455
    %v4122 = vunpack.c.h.b16 %v2455
    %v4123 = vunpack.c.l.b16 %v2456
    %v4124 = vunpack.c.h.b16 %v2456
    %v4125 = vunpack.c.l.b16 %v2457
    %v4126 = vunpack.c.h.b16 %v2457
    %v4127 = vunpack.c.l.b16 %v2458
    %v4128 = vunpack.c.h.b16 %v2458
    %v4129 = vunpack.c.l.b16 %v2459
    %v4130 = vunpack.c.h.b16 %v2459
    %v4131 = vunpack.c.l.b16 %v2460
    %v4132 = vunpack.c.h.b16 %v2460
    %v4133 = vunpack.c.l.b16 %v2461
    %v4134 = vunpack.c.h.b16 %v2461
    %v4135 = vunpack.c.l.b16 %v2462
    %v4136 = vunpack.c.h.b16 %v2462
    %v4137 = vunpack.c.l.b16 %v2463
    %v4138 = vunpack.c.h.b16 %v2463
    %v4139 = vunpack.c.l.b16 %v2464
    %v4140 = vunpack.c.h.b16 %v2464
    %v4141 = vunpack.c.l.b16 %v2465
    %v4142 = vunpack.c.h.b16 %v2465
    %v4143 = vunpack.c.l.b16 %v2466
    %v4144 = vunpack.c.h.b16 %v2466
    %v4145 = vunpack.c.l.b16 %v2467
    %v4146 = vunpack.c.h.b16 %v2467
    %v4147 = vunpack.c.l.b16 %v2468
    %v4148 = vunpack.c.h.b16 %v2468
    %v4149 = vunpack.c.l.b16 %v2469
    %v4150 = vunpack.c.h.b16 %v2469
    %v4151 = vunpack.c.l.b16 %v2470
    %v4152 = vunpack.c.h.b16 %v2470
    %v4153 = vunpack.c.l.b16 %v2471
    %v4154 = vunpack.c.h.b16 %v2471
    %v4155 = vunpack.c.l.b16 %v2472
    %v4156 = vunpack.c.h.b16 %v2472
    %v4157 = vunpack.c.l.b16 %v2473
    %v4158 = vunpack.c.h.b16 %v2473
    %v4159 = vunpack.c.l.b16 %v2474
    %v4160 = vunpack.c.h.b16 %v2474
    %v4161 = vunpack.c.l.b16 %v2475
    %v4162 = vunpack.c.h.b16 %v2475
    %v4163 = vunpack.c.l.b16 %v2476
    %v4164 = vunpack.c.h.b16 %v2476
    %v4165 = vunpack.c.l.b16 %v2477
    %v4166 = vunpack.c.h.b16 %v2477
    %v4167 = vunpack.c.l.b16 %v2478
    %v4168 = vunpack.c.h.b16 %v2478
    %v4169 = vunpack.c.l.b16 %v2479
    %v4170 = vunpack.c.h.b16 %v2479
    %v4171 = vunpack.c.l.b16 %v2480
    %v4172 = vunpack.c.h.b16 %v2480
    %v4173 = vunpack.c.l.b16 %v2481
    %v4174 = vunpack.c.h.b16 %v2481
    %v4175 = vunpack.c.l.b16 %v2482
    %v4176 = vunpack.c.h.b16 %v2482
    %v4177 = vunpack.c.l.b16 %v2483
    %v4178 = vunpack.c.h.b16 %v2483
    %v4179 = vunpack.c.l.b16 %v2484
    %v4180 = vunpack.c.h.b16 %v2484
    %v4181 = vunpack.c.l.b16 %v2485
    %v4182 = vunpack.c.h.b16 %v2485
    %v4183 = vunpack.c.l.b16 %v2486
    %v4184 = vunpack.c.h.b16 %v2486
    %v4185 = vunpack.c.l.b16 %v2487
    %v4186 = vunpack.c.h.b16 %v2487
    %v4187 = vunpack.c.l.b16 %v2488
    %v4188 = vunpack.c.h.b16 %v2488
    %v4189 = vunpack.c.l.b16 %v2489
    %v4190 = vunpack.c.h.b16 %v2489
    %v4191 = vunpack.c.l.b16 %v2490
    %v4192 = vunpack.c.h.b16 %v2490
    %v4193 = vunpack.c.l.b16 %v2491
    %v4194 = vunpack.c.h.b16 %v2491
    %v4195 = vunpack.c.l.b16 %v2492
    %v4196 = vunpack.c.h.b16 %v2492
    %v4197 = vunpack.c.l.b16 %v2493
    %v4198 = vunpack.c.h.b16 %v2493
    %v4199 = vunpack.c.l.b16 %v2494
    %v4200 = vunpack.c.h.b16 %v2494
    %v4201 = vunpack.c.l.b16 %v2495
    %v4202 = vunpack.c.h.b16 %v2495
    %v4203 = vunpack.c.l.b16 %v2496
    %v4204 = vunpack.c.h.b16 %v2496
    %v4205 = vunpack.c.l.b16 %v2497
    %v4206 = vunpack.c.h.b16 %v2497
    %v4207 = vunpack.c.l.b16 %v2498
    %v4208 = vunpack.c.h.b16 %v2498
    %v4209 = vunpack.c.l.b16 %v2499
    %v4210 = vunpack.c.h.b16 %v2499
    %v4211 = vunpack.c.l.b16 %v2500
    %v4212 = vunpack.c.h.b16 %v2500
    %v4213 = vunpack.c.l.b16 %v2501
    %v4214 = vunpack.c.h.b16 %v2501
    %v4215 = vunpack.c.l.b16 %v2502
    %v4216 = vunpack.c.h.b16 %v2502
    %v4217 = vunpack.c.l.b16 %v2503
    %v4218 = vunpack.c.h.b16 %v2503
    %v4219 = vunpack.c.l.b16 %v2504
    %v4220 = vunpack.c.h.b16 %v2504
    %v4221 = vunpack.c.l.b16 %v2505
    %v4222 = vunpack.c.h.b16 %v2505
    %v4223 = vunpack.c.l.b16 %v2506
    %v4224 = vunpack.c.h.b16 %v2506
    %v4225 = vunpack.c.l.b16 %v2507
    %v4226 = vunpack.c.h.b16 %v2507
    %v4227 = vunpack.c.l.b16 %v2508
    %v4228 = vunpack.c.h.b16 %v2508
    %v4229 = vunpack.c.l.b16 %v2509
    %v4230 = vunpack.c.h.b16 %v2509
    %v4231 = vunpack.c.l.b16 %v2510
    %v4232 = vunpack.c.h.b16 %v2510
    %v4233 = vunpack.c.l.b16 %v2511
    %v4234 = vunpack.c.h.b16 %v2511
    %v4235 = vunpack.c.l.b16 %v2512
    %v4236 = vunpack.c.h.b16 %v2512
    %v4237 = vunpack.c.l.b16 %v2513
    %v4238 = vunpack.c.h.b16 %v2513
    %v4239 = vunpack.c.l.b16 %v2514
    %v4240 = vunpack.c.h.b16 %v2514
    %v4241 = vunpack.c.l.b16 %v2515
    %v4242 = vunpack.c.h.b16 %v2515
    %v4243 = vunpack.c.l.b16 %v2516
    %v4244 = vunpack.c.h.b16 %v2516
    %v4245 = vunpack.c.l.b16 %v2517
    %v4246 = vunpack.c.h.b16 %v2517
    %v4247 = vunpack.c.l.b16 %v2518
    %v4248 = vunpack.c.h.b16 %v2518
    %v4249 = vunpack.c.l.b16 %v2519
    %v4250 = vunpack.c.h.b16 %v2519
    %v4251 = vunpack.c.l.b16 %v2520
    %v4252 = vunpack.c.h.b16 %v2520
    %v4253 = vunpack.c.l.b16 %v2521
    %v4254 = vunpack.c.h.b16 %v2521
    %v4255 = vunpack.c.l.b16 %v2522
    %v4256 = vunpack.c.h.b16 %v2522
    %v4257 = vunpack.c.l.b16 %v2523
    %v4258 = vunpack.c.h.b16 %v2523
    %v4259 = vunpack.c.l.b16 %v2524
    %v4260 = vunpack.c.h.b16 %v2524
    %v4261 = vunpack.c.l.b16 %v2525
    %v4262 = vunpack.c.h.b16 %v2525
    %v4263 = vunpack.c.l.b16 %v2526
    %v4264 = vunpack.c.h.b16 %v2526
    %v4265 = vunpack.c.l.b16 %v2527
    %v4266 = vunpack.c.h.b16 %v2527
    %v4267 = vunpack.c.l.b16 %v2528
    %v4268 = vunpack.c.h.b16 %v2528
    %v4269 = vunpack.c.l.b16 %v2529
    %v4270 = vunpack.c.h.b16 %v2529
    %v4271 = vunpack.c.l.b16 %v2530
    %v4272 = vunpack.c.h.b16 %v2530
    %v4273 = vunpack.c.l.b16 %v2531
    %v4274 = vunpack.c.h.b16 %v2531
    %v4275 = vunpack.c.l.b16 %v2532
    %v4276 = vunpack.c.h.b16 %v2532
    %v4277 = vunpack.c.l.b16 %v2533
    %v4278 = vunpack.c.h.b16 %v2533
    %v4279 = vunpack.c.l.b16 %v2534
    %v4280 = vunpack.c.h.b16 %v2534
    %v4281 = vunpack.c.l.b16 %v2535
    %v4282 = vunpack.c.h.b16 %v2535
    %v4283 = vunpack.c.l.b16 %v2536
    %v4284 = vunpack.c.h.b16 %v2536
    %v4285 = vunpack.c.l.b16 %v2537
    %v4286 = vunpack.c.h.b16 %v2537
    %v4287 = vunpack.c.l.b16 %v2538
    %v4288 = vunpack.c.h.b16 %v2538
    %v4289 = vunpack.c.l.b16 %v2539
    %v4290 = vunpack.c.h.b16 %v2539
    %v4291 = vunpack.c.l.b16 %v2540
    %v4292 = vunpack.c.h.b16 %v2540
    %v4293 = vunpack.c.l.b16 %v2541
    %v4294 = vunpack.c.h.b16 %v2541
    %v4295 = vunpack.c.l.b16 %v2542
    %v4296 = vunpack.c.h.b16 %v2542
    %v4297 = vunpack.c.l.b16 %v2543
    %v4298 = vunpack.c.h.b16 %v2543
    %v4299 = vunpack.c.l.b16 %v2544
    %v4300 = vunpack.c.h.b16 %v2544
    %v4301 = vunpack.c.l.b16 %v2545
    %v4302 = vunpack.c.h.b16 %v2545
    %v4303 = vunpack.c.l.b16 %v2546
    %v4304 = vunpack.c.h.b16 %v2546
    %v4305 = vunpack.c.l.b16 %v2547
    %v4306 = vunpack.c.h.b16 %v2547
    %v4307 = vunpack.c.l.b16 %v2548
    %v4308 = vunpack.c.h.b16 %v2548
    %v4309 = vunpack.c.l.b16 %v2549
    %v4310 = vunpack.c.h.b16 %v2549
    %v4311 = vunpack.c.l.b16 %v2550
    %v4312 = vunpack.c.h.b16 %v2550
    %v4313 = vunpack.c.l.b16 %v2551
    %v4314 = vunpack.c.h.b16 %v2551
    %v4315 = vunpack.c.l.b16 %v2552
    %v4316 = vunpack.c.h.b16 %v2552
    %v4317 = vunpack.c.l.b16 %v2553
    %v4318 = vunpack.c.h.b16 %v2553
    %v4319 = vunpack.c.l.b16 %v2554
    %v4320 = vunpack.c.h.b16 %v2554
    %v4321 = vunpack.c.l.b16 %v2555
    %v4322 = vunpack.c.h.b16 %v2555
    %v4323 = vunpack.c.l.b16 %v2556
    %v4324 = vunpack.c.h.b16 %v2556
    %v4325 = vunpack.c.l.b16 %v2557
    %v4326 = vunpack.c.h.b16 %v2557
    %v4327 = vunpack.c.l.b16 %v2558
    %v4328 = vunpack.c.h.b16 %v2558
    %v4329 = vunpack.c.l.b16 %v2559
    %v4330 = vunpack.c.h.b16 %v2559
    %v4331 = vunpack.c.l.b16 %v2560
    %v4332 = vunpack.c.h.b16 %v2560
    %v4333 = vunpack.c.l.b16 %v2561
    %v4334 = vunpack.c.h.b16 %v2561
    %v4335 = vunpack.c.l.b16 %v2562
    %v4336 = vunpack.c.h.b16 %v2562
    %v4337 = vunpack.c.l.b16 %v2563
    %v4338 = vunpack.c.h.b16 %v2563
    %v4339 = vunpack.c.l.b16 %v2564
    %v4340 = vunpack.c.h.b16 %v2564
    %v4341 = vunpack.c.l.b16 %v2565
    %v4342 = vunpack.c.h.b16 %v2565
    %v4343 = vunpack.c.l.b16 %v2566
    %v4344 = vunpack.c.h.b16 %v2566
    %v4345 = vunpack.c.l.b16 %v2567
    %v4346 = vunpack.c.h.b16 %v2567
    %v4347 = vunpack.c.l.b16 %v2568
    %v4348 = vunpack.c.h.b16 %v2568
    %v4349 = vunpack.c.l.b16 %v2569
    %v4350 = vunpack.c.h.b16 %v2569
    %v4351 = vunpack.c.l.b16 %v2570
    %v4352 = vunpack.c.h.b16 %v2570
    %v4353 = vunpack.c.l.b16 %v2571
    %v4354 = vunpack.c.h.b16 %v2571
    %v4355 = vunpack.c.l.b16 %v2572
    %v4356 = vunpack.c.h.b16 %v2572
    %v4357 = vunpack.c.l.b16 %v2573
    %v4358 = vunpack.c.h.b16 %v2573
    %v4359 = vunpack.c.l.b16 %v2574
    %v4360 = vunpack.c.h.b16 %v2574
    %v4361 = vunpack.c.l.b16 %v2575
    %v4362 = vunpack.c.h.b16 %v2575
    %v4363 = vunpack.c.l.b16 %v2576
    %v4364 = vunpack.c.h.b16 %v2576
    %v4365 = vunpack.c.l.b16 %v2577
    %v4366 = vunpack.c.h.b16 %v2577
    %v4367 = vunpack.c.l.b16 %v2578
    %v4368 = vunpack.c.h.b16 %v2578
    %v4369 = vunpack.c.l.b16 %v2579
    %v4370 = vunpack.c.h.b16 %v2579
    %v4371 = vunpack.c.l.b16 %v2580
    %v4372 = vunpack.c.h.b16 %v2580
    %v4373 = vunpack.c.l.b16 %v2581
    %v4374 = vunpack.c.h.b16 %v2581
    %v4375 = vunpack.c.l.b16 %v2582
    %v4376 = vunpack.c.h.b16 %v2582
    %v4377 = vunpack.c.l.b16 %v2583
    %v4378 = vunpack.c.h.b16 %v2583
    %v4379 = vunpack.c.l.b16 %v2584
    %v4380 = vunpack.c.h.b16 %v2584
    %v4381 = vunpack.c.l.b16 %v2585
    %v4382 = vunpack.c.h.b16 %v2585
    %v4383 = vunpack.c.l.b16 %v2586
    %v4384 = vunpack.c.h.b16 %v2586
    %v4385 = vunpack.c.l.b16 %v2587
    %v4386 = vunpack.c.h.b16 %v2587
    %v4387 = vunpack.c.l.b16 %v2588
    %v4388 = vunpack.c.h.b16 %v2588
    %v4389 = vunpack.c.l.b16 %v2589
    %v4390 = vunpack.c.h.b16 %v2589
    %v4391 = vunpack.c.l.b16 %v2590
    %v4392 = vunpack.c.h.b16 %v2590
    %v4393 = vunpack.c.l.b16 %v2591
    %v4394 = vunpack.c.h.b16 %v2591
    %v4395 = vunpack.c.l.b16 %v2592
    %v4396 = vunpack.c.h.b16 %v2592
    %v4397 = vunpack.c.l.b16 %v2593
    %v4398 = vunpack.c.h.b16 %v2593
    %v4399 = vunpack.c.l.b16 %v2594
    %v4400 = vunpack.c.h.b16 %v2594
    %v4401 = vunpack.c.l.b16 %v2595
    %v4402 = vunpack.c.h.b16 %v2595
    %v4403 = vunpack.c.l.b16 %v2596
    %v4404 = vunpack.c.h.b16 %v2596
    %v4405 = vunpack.c.l.b16 %v2597
    %v4406 = vunpack.c.h.b16 %v2597
    %v4407 = vunpack.c.l.b16 %v2598
    %v4408 = vunpack.c.h.b16 %v2598
    %v4409 = vunpack.c.l.b16 %v2599
    %v4410 = vunpack.c.h.b16 %v2599
    %v4411 = vunpack.c.l.b16 %v2600
    %v4412 = vunpack.c.h.b16 %v2600
    %v4413 = vunpack.c.l.b16 %v2601
    %v4414 = vunpack.c.h.b16 %v2601
    %v4415 = vunpack.c.l.b16 %v2602
    %v4416 = vunpack.c.h.b16 %v2602
    %v4417 = vunpack.c.l.b16 %v2603
    %v4418 = vunpack.c.h.b16 %v2603
    %v4419 = vunpack.c.l.b16 %v2604
    %v4420 = vunpack.c.h.b16 %v2604
    %v4421 = vunpack.c.l.b16 %v2605
    %v4422 = vunpack.c.h.b16 %v2605
    %v4423 = vunpack.c.l.b16 %v2606
    %v4424 = vunpack.c.h.b16 %v2606
    %v4425 = vunpack.c.l.b16 %v2607
    %v4426 = vunpack.c.h.b16 %v2607
    %v4427 = vunpack.c.l.b16 %v2608
    %v4428 = vunpack.c.h.b16 %v2608
    %v4429 = vunpack.c.l.b16 %v2609
    %v4430 = vunpack.c.h.b16 %v2609
    %v4431 = vunpack.c.l.b16 %v2610
    %v4432 = vunpack.c.h.b16 %v2610
    %v4433 = vunpack.c.l.b16 %v2611
    %v4434 = vunpack.c.h.b16 %v2611
    %v4435 = vunpack.c.l.b16 %v2612
    %v4436 = vunpack.c.h.b16 %v2612
    %v4437 = vunpack.c.l.b16 %v2613
    %v4438 = vunpack.c.h.b16 %v2613
    %v4439 = vunpack.c.l.b16 %v2614
    %v4440 = vunpack.c.h.b16 %v2614
    %v4441 = vunpack.c.l.b16 %v2615
    %v4442 = vunpack.c.h.b16 %v2615
    %v4443 = vunpack.c.l.b16 %v2616
    %v4444 = vunpack.c.h.b16 %v2616
    %v4445 = vunpack.c.l.b16 %v2617
    %v4446 = vunpack.c.h.b16 %v2617
    %v4447 = vunpack.c.l.b16 %v2618
    %v4448 = vunpack.c.h.b16 %v2618
    %v4449 = vunpack.c.l.b16 %v2619
    %v4450 = vunpack.c.h.b16 %v2619
    %v4451 = vunpack.c.l.b16 %v2620
    %v4452 = vunpack.c.h.b16 %v2620
    %v4453 = vunpack.c.l.b16 %v2621
    %v4454 = vunpack.c.h.b16 %v2621
    %v4455 = vunpack.c.l.b16 %v2622
    %v4456 = vunpack.c.h.b16 %v2622
    %v4457 = vunpack.c.l.b16 %v2623
    %v4458 = vunpack.c.h.b16 %v2623
    %v4459 = vunpack.c.l.b16 %v2624
    %v4460 = vunpack.c.h.b16 %v2624
    %v4461 = vunpack.c.l.b16 %v2625
    %v4462 = vunpack.c.h.b16 %v2625
    %v4463 = vunpack.c.l.b16 %v2626
    %v4464 = vunpack.c.h.b16 %v2626
    %v4465 = vunpack.c.l.b16 %v2627
    %v4466 = vunpack.c.h.b16 %v2627
    %v4467 = vunpack.c.l.b16 %v2628
    %v4468 = vunpack.c.h.b16 %v2628
    %v4469 = vunpack.c.l.b16 %v2629
    %v4470 = vunpack.c.h.b16 %v2629
    %v4471 = vunpack.c.l.b16 %v2630
    %v4472 = vunpack.c.h.b16 %v2630
    %v4473 = vunpack.c.l.b16 %v2631
    %v4474 = vunpack.c.h.b16 %v2631
    %v4475 = vunpack.c.l.b16 %v2632
    %v4476 = vunpack.c.h.b16 %v2632
    %v4477 = vunpack.c.l.b16 %v2633
    %v4478 = vunpack.c.h.b16 %v2633
    %v4479 = vunpack.c.l.b16 %v2634
    %v4480 = vunpack.c.h.b16 %v2634
    %v4481 = vunpack.c.l.b16 %v2635
    %v4482 = vunpack.c.h.b16 %v2635
    %v4483 = vunpack.c.l.b16 %v2636
    %v4484 = vunpack.c.h.b16 %v2636
    %v4485 = vunpack.c.l.b16 %v2637
    %v4486 = vunpack.c.h.b16 %v2637
    %v4487 = vunpack.c.l.b16 %v2638
    %v4488 = vunpack.c.h.b16 %v2638
    %v4489 = vunpack.c.l.b16 %v2639
    %v4490 = vunpack.c.h.b16 %v2639
    %v4491 = vunpack.c.l.b16 %v2640
    %v4492 = vunpack.c.h.b16 %v2640
    %v4493 = vunpack.c.l.b16 %v2641
    %v4494 = vunpack.c.h.b16 %v2641
    %v4495 = vunpack.c.l.b16 %v2642
    %v4496 = vunpack.c.h.b16 %v2642
    %v4497 = vunpack.c.l.b16 %v2643
    %v4498 = vunpack.c.h.b16 %v2643
    %v4499 = vunpack.c.l.b16 %v2644
    %v4500 = vunpack.c.h.b16 %v2644
    %v4501 = vunpack.c.l.b16 %v2645
    %v4502 = vunpack.c.h.b16 %v2645
    %v4503 = vunpack.c.l.b16 %v2646
    %v4504 = vunpack.c.h.b16 %v2646
    %v4505 = vunpack.c.l.b16 %v2647
    %v4506 = vunpack.c.h.b16 %v2647
    %v4507 = vunpack.c.l.b16 %v2648
    %v4508 = vunpack.c.h.b16 %v2648
    %v4509 = vunpack.c.l.b16 %v2649
    %v4510 = vunpack.c.h.b16 %v2649
    %v4511 = vunpack.c.l.b16 %v2650
    %v4512 = vunpack.c.h.b16 %v2650
    %v4513 = vunpack.c.l.b16 %v2651
    %v4514 = vunpack.c.h.b16 %v2651
    %v4515 = vunpack.c.l.b16 %v2652
    %v4516 = vunpack.c.h.b16 %v2652
    %v4517 = vunpack.c.l.b16 %v2653
    %v4518 = vunpack.c.h.b16 %v2653
    %v4519 = vunpack.c.l.b16 %v2654
    %v4520 = vunpack.c.h.b16 %v2654
    %v4521 = vunpack.c.l.b16 %v2655
    %v4522 = vunpack.c.h.b16 %v2655
    %v4523 = vunpack.c.l.b16 %v2656
    %v4524 = vunpack.c.h.b16 %v2656
    %v4525 = vunpack.c.l.b16 %v2657
    %v4526 = vunpack.c.h.b16 %v2657
    %v4527 = vunpack.c.l.b16 %v2658
    %v4528 = vunpack.c.h.b16 %v2658
    %v4529 = vunpack.c.l.b16 %v2659
    %v4530 = vunpack.c.h.b16 %v2659
    %v4531 = vunpack.c.l.b16 %v2660
    %v4532 = vunpack.c.h.b16 %v2660
    %v4533 = vunpack.c.l.b16 %v2661
    %v4534 = vunpack.c.h.b16 %v2661
    %v4535 = vunpack.c.l.b16 %v2662
    %v4536 = vunpack.c.h.b16 %v2662
    %v4537 = vunpack.c.l.b16 %v2663
    %v4538 = vunpack.c.h.b16 %v2663
    %v4539 = vunpack.c.l.b16 %v2664
    %v4540 = vunpack.c.h.b16 %v2664
    %v4541 = vunpack.c.l.b16 %v2665
    %v4542 = vunpack.c.h.b16 %v2665
    %v4543 = vunpack.c.l.b16 %v2666
    %v4544 = vunpack.c.h.b16 %v2666
    %v4545 = vunpack.c.l.b16 %v2667
    %v4546 = vunpack.c.h.b16 %v2667
    %v4547 = vunpack.c.l.b16 %v2668
    %v4548 = vunpack.c.h.b16 %v2668
    %v4549 = vunpack.c.l.b16 %v2669
    %v4550 = vunpack.c.h.b16 %v2669
    %v4551 = vunpack.c.l.b16 %v2670
    %v4552 = vunpack.c.h.b16 %v2670
    %v4553 = vunpack.c.l.b16 %v2671
    %v4554 = vunpack.c.h.b16 %v2671
    %v4555 = vunpack.c.l.b16 %v2672
    %v4556 = vunpack.c.h.b16 %v2672
    %v4557 = vunpack.c.l.b16 %v2673
    %v4558 = vunpack.c.h.b16 %v2673
    %v4559 = vunpack.c.l.b16 %v2674
    %v4560 = vunpack.c.h.b16 %v2674
    %v4561 = vunpack.c.l.b16 %v2675
    %v4562 = vunpack.c.h.b16 %v2675
    %v4563 = vunpack.c.l.b16 %v2676
    %v4564 = vunpack.c.h.b16 %v2676
    %v4565 = vunpack.c.l.b16 %v2677
    %v4566 = vunpack.c.h.b16 %v2677
    %v4567 = vunpack.c.l.b16 %v2678
    %v4568 = vunpack.c.h.b16 %v2678
    %v4569 = vunpack.c.l.b16 %v2679
    %v4570 = vunpack.c.h.b16 %v2679
    %v4571 = vunpack.c.l.b16 %v2680
    %v4572 = vunpack.c.h.b16 %v2680
    %v4573 = vunpack.c.l.b16 %v2681
    %v4574 = vunpack.c.h.b16 %v2681
    %v4575 = vunpack.c.l.b16 %v2682
    %v4576 = vunpack.c.h.b16 %v2682
    %v4577 = vunpack.c.l.b16 %v2683
    %v4578 = vunpack.c.h.b16 %v2683
    %v4579 = vunpack.c.l.b16 %v2684
    %v4580 = vunpack.c.h.b16 %v2684
    %v4581 = vunpack.c.l.b16 %v2685
    %v4582 = vunpack.c.h.b16 %v2685
    %v4583 = vunpack.c.l.b16 %v2686
    %v4584 = vunpack.c.h.b16 %v2686
    %v4585 = vunpack.c.l.b16 %v2687
    %v4586 = vunpack.c.h.b16 %v2687
    %v4587 = vunpack.c.l.b16 %v2688
    %v4588 = vunpack.c.h.b16 %v2688
    %v4589 = vunpack.c.l.b16 %v2689
    %v4590 = vunpack.c.h.b16 %v2689
    %v4591 = vunpack.c.l.b16 %v2690
    %v4592 = vunpack.c.h.b16 %v2690
    %v4593 = vunpack.c.l.b16 %v2691
    %v4594 = vunpack.c.h.b16 %v2691
    %v4595 = vunpack.c.l.b16 %v2692
    %v4596 = vunpack.c.h.b16 %v2692
    %v4597 = vunpack.c.l.b16 %v2693
    %v4598 = vunpack.c.h.b16 %v2693
    %v4599 = vunpack.c.l.b16 %v2694
    %v4600 = vunpack.c.h.b16 %v2694
    %v4601 = vunpack.c.l.b16 %v2695
    %v4602 = vunpack.c.h.b16 %v2695
    %v4603 = vunpack.c.l.b16 %v2696
    %v4604 = vunpack.c.h.b16 %v2696
    %v4605 = vunpack.c.l.b16 %v2697
    %v4606 = vunpack.c.h.b16 %v2697
    %v4607 = vunpack.c.l.b16 %v2698
    %v4608 = vunpack.c.h.b16 %v2698
    %v4609 = vunpack.c.l.b16 %v2699
    %v4610 = vunpack.c.h.b16 %v2699
    %v4611 = vunpack.c.l.b16 %v2700
    %v4612 = vunpack.c.h.b16 %v2700
    %v4613 = vunpack.c.l.b16 %v2701
    %v4614 = vunpack.c.h.b16 %v2701
    %v4615 = vunpack.c.l.b16 %v2702
    %v4616 = vunpack.c.h.b16 %v2702
    %v4617 = vunpack.c.l.b16 %v2703
    %v4618 = vunpack.c.h.b16 %v2703
    %v4619 = vunpack.c.l.b16 %v2704
    %v4620 = vunpack.c.h.b16 %v2704
    %v4621 = vunpack.c.l.b16 %v2705
    %v4622 = vunpack.c.h.b16 %v2705
    %v4623 = vunpack.c.l.b16 %v2706
    %v4624 = vunpack.c.h.b16 %v2706
    %v4625 = vunpack.c.l.b16 %v2707
    %v4626 = vunpack.c.h.b16 %v2707
    %v4627 = vunpack.c.l.b16 %v2708
    %v4628 = vunpack.c.h.b16 %v2708
    %v4629 = vunpack.c.l.b16 %v2709
    %v4630 = vunpack.c.h.b16 %v2709
    %v4631 = vunpack.c.l.b16 %v2710
    %v4632 = vunpack.c.h.b16 %v2710
    %v4633 = vunpack.c.l.b16 %v2711
    %v4634 = vunpack.c.h.b16 %v2711
    %v4635 = vunpack.c.l.b16 %v2712
    %v4636 = vunpack.c.h.b16 %v2712
    %v4637 = vunpack.c.l.b16 %v2713
    %v4638 = vunpack.c.h.b16 %v2713
    %v4639 = vunpack.c.l.b16 %v2714
    %v4640 = vunpack.c.h.b16 %v2714
    %v4641 = vunpack.c.l.b16 %v2715
    %v4642 = vunpack.c.h.b16 %v2715
    %v4643 = vunpack.c.l.b16 %v2716
    %v4644 = vunpack.c.h.b16 %v2716
    %v4645 = vunpack.c.l.b16 %v2717
    %v4646 = vunpack.c.h.b16 %v2717
    %v4647 = vunpack.c.l.b16 %v2718
    %v4648 = vunpack.c.h.b16 %v2718
    %v4649 = vunpack.c.l.b16 %v2719
    %v4650 = vunpack.c.h.b16 %v2719
    %v4651 = vunpack.c.l.b16 %v2720
    %v4652 = vunpack.c.h.b16 %v2720
    %v4653 = vunpack.c.l.b16 %v2721
    %v4654 = vunpack.c.h.b16 %v2721
    %v4655 = vunpack.c.l.b16 %v2722
    %v4656 = vunpack.c.h.b16 %v2722
    %v4657 = vunpack.c.l.b16 %v2723
    %v4658 = vunpack.c.h.b16 %v2723
    %v4659 = vunpack.c.l.b16 %v2724
    %v4660 = vunpack.c.h.b16 %v2724
    %v4661 = vunpack.c.l.b16 %v2725
    %v4662 = vunpack.c.h.b16 %v2725
    %v4663 = vunpack.c.l.b16 %v2726
    %v4664 = vunpack.c.h.b16 %v2726
    %v4665 = vunpack.c.l.b16 %v2727
    %v4666 = vunpack.c.h.b16 %v2727
    %v4667 = vunpack.c.l.b16 %v2728
    %v4668 = vunpack.c.h.b16 %v2728
    %v4669 = vunpack.c.l.b16 %v2729
    %v4670 = vunpack.c.h.b16 %v2729
    %v4671 = vunpack.c.l.b16 %v2730
    %v4672 = vunpack.c.h.b16 %v2730
    %v4673 = vunpack.c.l.b16 %v2731
    %v4674 = vunpack.c.h.b16 %v2731
    %v4675 = vunpack.c.l.b16 %v2732
    %v4676 = vunpack.c.h.b16 %v2732
    %v4677 = vunpack.c.l.b16 %v2733
    %v4678 = vunpack.c.h.b16 %v2733
    %v4679 = vunpack.c.l.b16 %v2734
    %v4680 = vunpack.c.h.b16 %v2734
    %v4681 = vunpack.c.l.b16 %v2735
    %v4682 = vunpack.c.h.b16 %v2735
    %v4683 = vunpack.c.l.b16 %v2736
    %v4684 = vunpack.c.h.b16 %v2736
    %v4685 = vunpack.c.l.b16 %v2737
    %v4686 = vunpack.c.h.b16 %v2737
    %v4687 = vunpack.c.l.b16 %v2738
    %v4688 = vunpack.c.h.b16 %v2738
    %v4689 = vunpack.c.l.b16 %v2739
    %v4690 = vunpack.c.h.b16 %v2739
    %v4691 = vunpack.c.l.b16 %v2740
    %v4692 = vunpack.c.h.b16 %v2740
    %v4693 = vunpack.c.l.b16 %v2741
    %v4694 = vunpack.c.h.b16 %v2741
    %v4695 = vunpack.c.l.b16 %v2742
    %v4696 = vunpack.c.h.b16 %v2742
    %v4697 = vunpack.c.l.b16 %v2743
    %v4698 = vunpack.c.h.b16 %v2743
    %v4699 = vunpack.c.l.b16 %v2744
    %v4700 = vunpack.c.h.b16 %v2744
    %v4701 = vunpack.c.l.b16 %v2745
    %v4702 = vunpack.c.h.b16 %v2745
    %v4703 = vunpack.c.l.b16 %v2746
    %v4704 = vunpack.c.h.b16 %v2746
    %v4705 = vunpack.c.l.b16 %v2747
    %v4706 = vunpack.c.h.b16 %v2747
    %v4707 = vunpack.c.l.b16 %v2748
    %v4708 = vunpack.c.h.b16 %v2748
    %v4709 = vunpack.c.l.b16 %v2749
    %v4710 = vunpack.c.h.b16 %v2749
    %v4711 = vunpack.c.l.b16 %v2750
    %v4712 = vunpack.c.h.b16 %v2750
    %v4713 = vunpack.c.l.b16 %v2751
    %v4714 = vunpack.c.h.b16 %v2751
    %v4715 = vunpack.c.l.b16 %v2752
    %v4716 = vunpack.c.h.b16 %v2752
    %v4717 = vunpack.c.l.b16 %v2753
    %v4718 = vunpack.c.h.b16 %v2753
    %v4719 = vunpack.c.l.b16 %v2754
    %v4720 = vunpack.c.h.b16 %v2754
    %v4721 = vunpack.c.l.b16 %v2755
    %v4722 = vunpack.c.h.b16 %v2755
    %v4723 = vunpack.c.l.b16 %v2756
    %v4724 = vunpack.c.h.b16 %v2756
    %v4725 = vunpack.c.l.b16 %v2757
    %v4726 = vunpack.c.h.b16 %v2757
    %v4727 = vunpack.c.l.b16 %v2758
    %v4728 = vunpack.c.h.b16 %v2758
    %v4729 = vunpack.c.l.b16 %v2759
    %v4730 = vunpack.c.h.b16 %v2759
    %v4731 = vunpack.c.l.b16 %v2760
    %v4732 = vunpack.c.h.b16 %v2760
    %v4733 = vunpack.c.l.b16 %v2761
    %v4734 = vunpack.c.h.b16 %v2761
    %v4735 = vunpack.c.l.b16 %v2762
    %v4736 = vunpack.c.h.b16 %v2762
    %v4737 = vunpack.c.l.b16 %v2763
    %v4738 = vunpack.c.h.b16 %v2763
    %v4739 = vunpack.c.l.b16 %v2764
    %v4740 = vunpack.c.h.b16 %v2764
    %v4741 = vunpack.c.l.b16 %v2765
    %v4742 = vunpack.c.h.b16 %v2765
    %v4743 = vunpack.c.l.b16 %v2766
    %v4744 = vunpack.c.h.b16 %v2766
    %v4745 = vunpack.c.l.b16 %v2767
    %v4746 = vunpack.c.h.b16 %v2767
    %v4747 = vunpack.c.l.b16 %v2768
    %v4748 = vunpack.c.h.b16 %v2768
    %v4749 = vunpack.c.l.b16 %v2769
    %v4750 = vunpack.c.h.b16 %v2769
    %v4751 = vunpack.c.l.b16 %v2770
    %v4752 = vunpack.c.h.b16 %v2770
    %v4753 = vunpack.c.l.b16 %v2771
    %v4754 = vunpack.c.h.b16 %v2771
    %v4755 = vunpack.c.l.b16 %v2772
    %v4756 = vunpack.c.h.b16 %v2772
    %v4757 = vunpack.c.l.b16 %v2773
    %v4758 = vunpack.c.h.b16 %v2773
    %v4759 = vunpack.c.l.b16 %v2774
    %v4760 = vunpack.c.h.b16 %v2774
    %v4761 = vunpack.c.l.b16 %v2775
    %v4762 = vunpack.c.h.b16 %v2775
    %v4763 = vunpack.c.l.b16 %v2776
    %v4764 = vunpack.c.h.b16 %v2776
    %v4765 = vunpack.c.l.b16 %v2777
    %v4766 = vunpack.c.h.b16 %v2777
    %v4767 = vunpack.c.l.b16 %v2778
    %v4768 = vunpack.c.h.b16 %v2778
    %v4769 = vunpack.c.l.b16 %v2779
    %v4770 = vunpack.c.h.b16 %v2779
    %v4771 = vunpack.c.l.b16 %v2780
    %v4772 = vunpack.c.h.b16 %v2780
    %v4773 = vunpack.c.l.b16 %v2781
    %v4774 = vunpack.c.h.b16 %v2781
    %v4775 = vunpack.c.l.b16 %v2782
    %v4776 = vunpack.c.h.b16 %v2782
    %v4777 = vunpack.c.l.b16 %v2783
    %v4778 = vunpack.c.h.b16 %v2783
    %v4779 = vunpack.c.l.b16 %v2784
    %v4780 = vunpack.c.h.b16 %v2784
    %v4781 = vunpack.c.l.b16 %v2785
    %v4782 = vunpack.c.h.b16 %v2785
    %v4783 = vunpack.c.l.b16 %v2786
    %v4784 = vunpack.c.h.b16 %v2786
    %v4785 = vunpack.c.l.b16 %v2787
    %v4786 = vunpack.c.h.b16 %v2787
    %v4787 = vunpack.c.l.b16 %v2788
    %v4788 = vunpack.c.h.b16 %v2788
    %v4789 = vunpack.c.l.b16 %v2789
    %v4790 = vunpack.c.h.b16 %v2789
    %v4791 = vunpack.c.l.b16 %v2790
    %v4792 = vunpack.c.h.b16 %v2790
    %v4793 = vunpack.c.l.b16 %v2791
    %v4794 = vunpack.c.h.b16 %v2791
    %v4795 = vunpack.c.l.b16 %v2792
    %v4796 = vunpack.c.h.b16 %v2792
    %v4797 = vunpack.c.l.b16 %v2793
    %v4798 = vunpack.c.h.b16 %v2793
    %v4799 = vunpack.c.l.b16 %v2794
    %v4800 = vunpack.c.h.b16 %v2794
    %v4801 = vunpack.c.l.b16 %v2795
    %v4802 = vunpack.c.h.b16 %v2795
    %v4803 = vunpack.c.l.b16 %v2796
    %v4804 = vunpack.c.h.b16 %v2796
    %v4805 = vunpack.c.l.b16 %v2797
    %v4806 = vunpack.c.h.b16 %v2797
    %v4807 = vunpack.c.l.b16 %v2798
    %v4808 = vunpack.c.h.b16 %v2798
    %v4809 = vunpack.c.l.b16 %v2799
    %v4810 = vunpack.c.h.b16 %v2799
    %v4811 = vunpack.c.l.b16 %v2800
    %v4812 = vunpack.c.h.b16 %v2800
    %v4813 = vunpack.c.l.b16 %v2801
    %v4814 = vunpack.c.h.b16 %v2801
    %v4815 = vunpack.c.l.b16 %v2802
    %v4816 = vunpack.c.h.b16 %v2802
    %v4817 = vunpack.c.l.b16 %v2803
    %v4818 = vunpack.c.h.b16 %v2803
    %v4819 = vunpack.c.l.b16 %v2804
    %v4820 = vunpack.c.h.b16 %v2804
    %v4821 = vpack.c.b16 %v3489, %v3477
    %v4822 = vpack.c.b16 %v3490, %v3478
    %v4823 = vpack.c.b16 %v3491, %v3479
    %v4824 = vpack.c.b16 %v3492, %v3480
    %v4825 = vpack.c.b16 %v3493, %v3481
    %v4826 = vpack.c.b16 %v3494, %v3482
    %v4827 = vpack.c.b16 %v3495, %v3483
    %v4828 = vpack.c.b16 %v3496, %v3484
    %v4829 = vpack.c.b16 %v3497, %v3485
    %v4830 = vpack.c.b16 %v3498, %v3486
    %v4831 = vpack.c.b16 %v3499, %v3487
    %v4832 = vpack.c.b16 %v3500, %v3488
    %v4833 = vpack.c.b16 %v3513, %v3501
    %v4834 = vpack.c.b16 %v3514, %v3502
    %v4835 = vpack.c.b16 %v3515, %v3503
    %v4836 = vpack.c.b16 %v3516, %v3504
    %v4837 = vpack.c.b16 %v3517, %v3505
    %v4838 = vpack.c.b16 %v3518, %v3506
    %v4839 = vpack.c.b16 %v3519, %v3507
    %v4840 = vpack.c.b16 %v3520, %v3508
    %v4841 = vpack.c.b16 %v3521, %v3509
    %v4842 = vpack.c.b16 %v3522, %v3510
    %v4843 = vpack.c.b16 %v3523, %v3511
    %v4844 = vpack.c.b16 %v3524, %v3512
    %v4845 = vpack.c.b16 %v3537, %v3525
    %v4846 = vpack.c.b16 %v3538, %v3526
    %v4847 = vpack.c.b16 %v3539, %v3527
    %v4848 = vpack.c.b16 %v3540, %v3528
    %v4849 = vpack.c.b16 %v3541, %v3529
    %v4850 = vpack.c.b16 %v3542, %v3530
    %v4851 = vpack.c.b16 %v3543, %v3531
    %v4852 = vpack.c.b16 %v3544, %v3532
    %v4853 = vpack.c.b16 %v3545, %v3533
    %v4854 = vpack.c.b16 %v3546, %v3534
    %v4855 = vpack.c.b16 %v3547, %v3535
    %v4856 = vpack.c.b16 %v3548, %v3536
    %v4857 = vpack.c.b16 %v3561, %v3549
    %v4858 = vpack.c.b16 %v3562, %v3550
    %v4859 = vpack.c.b16 %v3563, %v3551
    %v4860 = vpack.c.b16 %v3564, %v3552
    %v4861 = vpack.c.b16 %v3565, %v3553
    %v4862 = vpack.c.b16 %v3566, %v3554
    %v4863 = vpack.c.b16 %v3567, %v3555
    %v4864 = vpack.c.b16 %v3568, %v3556
    %v4865 = vpack.c.b16 %v3569, %v3557
    %v4866 = vpack.c.b16 %v3570, %v3558
    %v4867 = vpack.c.b16 %v3571, %v3559
    %v4868 = vpack.c.b16 %v3572, %v3560
    %v4869 = vpack.c.b16 %v3585, %v3573
    %v4870 = vpack.c.b16 %v3586, %v3574
    %v4871 = vpack.c.b16 %v3587, %v3575
    %v4872 = vpack.c.b16 %v3588, %v3576
    %v4873 = vpack.c.b16 %v3589, %v3577
    %v4874 = vpack.c.b16 %v3590, %v3578
    %v4875 = vpack.c.b16 %v3591, %v3579
    %v4876 = vpack.c.b16 %v3592, %v3580
    %v4877 = vpack.c.b16 %v3593, %v3581
    %v4878 = vpack.c.b16 %v3594, %v3582
    %v4879 = vpack.c.b16 %v3595, %v3583
    %v4880 = vpack.c.b16 %v3596, %v3584
    %v4881 = vpack.c.b16 %v3609, %v3597
    %v4882 = vpack.c.b16 %v3610, %v3598
    %v4883 = vpack.c.b16 %v3611, %v3599
    %v4884 = vpack.c.b16 %v3612, %v3600
    %v4885 = vpack.c.b16 %v3613, %v3601
    %v4886 = vpack.c.b16 %v3614, %v3602
    %v4887 = vpack.c.b16 %v3615, %v3603
    %v4888 = vpack.c.b16 %v3616, %v3604
    %v4889 = vpack.c.b16 %v3617, %v3605
    %v4890 = vpack.c.b16 %v3618, %v3606
    %v4891 = vpack.c.b16 %v3619, %v3607
    %v4892 = vpack.c.b16 %v3620, %v3608
    %v4893 = vpack.c.b16 %v3633, %v3621
    %v4894 = vpack.c.b16 %v3634, %v3622
    %v4895 = vpack.c.b16 %v3635, %v3623
    %v4896 = vpack.c.b16 %v3636, %v3624
    %v4897 = vpack.c.b16 %v3637, %v3625
    %v4898 = vpack.c.b16 %v3638, %v3626
    %v4899 = vpack.c.b16 %v3639, %v3627
    %v4900 = vpack.c.b16 %v3640, %v3628
    %v4901 = vpack.c.b16 %v3641, %v3629
    %v4902 = vpack.c.b16 %v3642, %v3630
    %v4903 = vpack.c.b16 %v3643, %v3631
    %v4904 = vpack.c.b16 %v3644, %v3632
    %v4905 = vpack.c.b16 %v3657, %v3645
    %v4906 = vpack.c.b16 %v3658, %v3646
    %v4907 = vpack.c.b16 %v3659, %v3647
    %v4908 = vpack.c.b16 %v3660, %v3648
    %v4909 = vpack.c.b16 %v3661, %v3649
    %v4910 = vpack.c.b16 %v3662, %v3650
    %v4911 = vpack.c.b16 %v3663, %v3651
    %v4912 = vpack.c.b16 %v3664, %v3652
    %v4913 = vpack.c.b16 %v3665, %v3653
    %v4914 = vpack.c.b16 %v3666, %v3654
    %v4915 = vpack.c.b16 %v3667, %v3655
    %v4916 = vpack.c.b16 %v3668, %v3656
    %v4917 = vpack.c.b16 %v3681, %v3669
    %v4918 = vpack.c.b16 %v3682, %v3670
    %v4919 = vpack.c.b16 %v3683, %v3671
    %v4920 = vpack.c.b16 %v3684, %v3672
    %v4921 = vpack.c.b16 %v3685, %v3673
    %v4922 = vpack.c.b16 %v3686, %v3674
    %v4923 = vpack.c.b16 %v3687, %v3675
    %v4924 = vpack.c.b16 %v3688, %v3676
    %v4925 = vpack.c.b16 %v3689, %v3677
    %v4926 = vpack.c.b16 %v3690, %v3678
    %v4927 = vpack.c.b16 %v3691, %v3679
    %v4928 = vpack.c.b16 %v3692, %v3680
    %v4929 = vpack.c.b16 %v3705, %v3693
    %v4930 = vpack.c.b16 %v3706, %v3694
    %v4931 = vpack.c.b16 %v3707, %v3695
    %v4932 = vpack.c.b16 %v3708, %v3696
    %v4933 = vpack.c.b16 %v3709, %v3697
    %v4934 = vpack.c.b16 %v3710, %v3698
    %v4935 = vpack.c.b16 %v3711, %v3699
    %v4936 = vpack.c.b16 %v3712, %v3700
    %v4937 = vpack.c.b16 %v3713, %v3701
    %v4938 = vpack.c.b16 %v3714, %v3702
    %v4939 = vpack.c.b16 %v3715, %v3703
    %v4940 = vpack.c.b16 %v3716, %v3704
    %v4941 = vpack.c.b16 %v3729, %v3717
    %v4942 = vpack.c.b16 %v3730, %v3718
    %v4943 = vpack.c.b16 %v3731, %v3719
    %v4944 = vpack.c.b16 %v3732, %v3720
    %v4945 = vpack.c.b16 %v3733, %v3721
    %v4946 = vpack.c.b16 %v3734, %v3722
    %v4947 = vpack.c.b16 %v3735, %v3723
    %v4948 = vpack.c.b16 %v3736, %v3724
    %v4949 = vpack.c.b16 %v3737, %v3725
    %v4950 = vpack.c.b16 %v3738, %v3726
    %v4951 = vpack.c.b16 %v3739, %v3727
    %v4952 = vpack.c.b16 %v3740, %v3728
    %v4953 = vpack.c.b16 %v3753, %v3741
    %v4954 = vpack.c.b16 %v3754, %v3742
    %v4955 = vpack.c.b16 %v3755, %v3743
    %v4956 = vpack.c.b16 %v3756, %v3744
    %v4957 = vpack.c.b16 %v3757, %v3745
    %v4958 = vpack.c.b16 %v3758, %v3746
    %v4959 = vpack.c.b16 %v3759, %v3747
    %v4960 = vpack.c.b16 %v3760, %v3748
    %v4961 = vpack.c.b16 %v3761, %v3749
    %v4962 = vpack.c.b16 %v3762, %v3750
    %v4963 = vpack.c.b16 %v3763, %v3751
    %v4964 = vpack.c.b16 %v3764, %v3752
    %v4965 = vpack.c.b16 %v3777, %v3765
    %v4966 = vpack.c.b16 %v3778, %v3766
    %v4967 = vpack.c.b16 %v3779, %v3767
    %v4968 = vpack.c.b16 %v3780, %v3768
    %v4969 = vpack.c.b16 %v3781, %v3769
    %v4970 = vpack.c.b16 %v3782, %v3770
    %v4971 = vpack.c.b16 %v3783, %v3771
    %v4972 = vpack.c.b16 %v3784, %v3772
    %v4973 = vpack.c.b16 %v3785, %v3773
    %v4974 = vpack.c.b16 %v3786, %v3774
    %v4975 = vpack.c.b16 %v3787, %v3775
    %v4976 = vpack.c.b16 %v3788, %v3776
    %v4977 = vpack.c.b16 %v3801, %v3789
    %v4978 = vpack.c.b16 %v3802, %v3790
    %v4979 = vpack.c.b16 %v3803, %v3791
    %v4980 = vpack.c.b16 %v3804, %v3792
    %v4981 = vpack.c.b16 %v3805, %v3793
    %v4982 = vpack.c.b16 %v3806, %v3794
    %v4983 = vpack.c.b16 %v3807, %v3795
    %v4984 = vpack.c.b16 %v3808, %v3796
    %v4985 = vpack.c.b16 %v3809, %v3797
    %v4986 = vpack.c.b16 %v3810, %v3798
    %v4987 = vpack.c.b16 %v3811, %v3799
    %v4988 = vpack.c.b16 %v3812, %v3800
    %v4989 = vpack.c.b16 %v3825, %v3813
    %v4990 = vpack.c.b16 %v3826, %v3814
    %v4991 = vpack.c.b16 %v3827, %v3815
    %v4992 = vpack.c.b16 %v3828, %v3816
    %v4993 = vpack.c.b16 %v3829, %v3817
    %v4994 = vpack.c.b16 %v3830, %v3818
    %v4995 = vpack.c.b16 %v3831, %v3819
    %v4996 = vpack.c.b16 %v3832, %v3820
    %v4997 = vpack.c.b16 %v3833, %v3821
    %v4998 = vpack.c.b16 %v3834, %v3822
    %v4999 = vpack.c.b16 %v3835, %v3823
    %v5000 = vpack.c.b16 %v3836, %v3824
    %v5001 = vpack.c.b16 %v3849, %v3837
    %v5002 = vpack.c.b16 %v3850, %v3838
    %v5003 = vpack.c.b16 %v3851, %v3839
    %v5004 = vpack.c.b16 %v3852, %v3840
    %v5005 = vpack.c.b16 %v3853, %v3841
    %v5006 = vpack.c.b16 %v3854, %v3842
    %v5007 = vpack.c.b16 %v3855, %v3843
    %v5008 = vpack.c.b16 %v3856, %v3844
    %v5009 = vpack.c.b16 %v3857, %v3845
    %v5010 = vpack.c.b16 %v3858, %v3846
    %v5011 = vpack.c.b16 %v3859, %v3847
    %v5012 = vpack.c.b16 %v3860, %v3848
    %v5013 = vpack.c.b16 %v3873, %v3861
    %v5014 = vpack.c.b16 %v3874, %v3862
    %v5015 = vpack.c.b16 %v3875, %v3863
    %v5016 = vpack.c.b16 %v3876, %v3864
    %v5017 = vpack.c.b16 %v3877, %v3865
    %v5018 = vpack.c.b16 %v3878, %v3866
    %v5019 = vpack.c.b16 %v3879, %v3867
    %v5020 = vpack.c.b16 %v3880, %v3868
    %v5021 = vpack.c.b16 %v3881, %v3869
    %v5022 = vpack.c.b16 %v3882, %v3870
    %v5023 = vpack.c.b16 %v3883, %v3871
    %v5024 = vpack.c.b16 %v3884, %v3872
    %v5025 = vpack.c.b16 %v3897, %v3885
    %v5026 = vpack.c.b16 %v3898, %v3886
    %v5027 = vpack.c.b16 %v3899, %v3887
    %v5028 = vpack.c.b16 %v3900, %v3888
    %v5029 = vpack.c.b16 %v3901, %v3889
    %v5030 = vpack.c.b16 %v3902, %v3890
    %v5031 = vpack.c.b16 %v3903, %v3891
    %v5032 = vpack.c.b16 %v3904, %v3892
    %v5033 = vpack.c.b16 %v3905, %v3893
    %v5034 = vpack.c.b16 %v3906, %v3894
    %v5035 = vpack.c.b16 %v3907, %v3895
    %v5036 = vpack.c.b16 %v3908, %v3896
    %v5037 = vpack.c.b16 %v3921, %v3909
    %v5038 = vpack.c.b16 %v3922, %v3910
    %v5039 = vpack.c.b16 %v3923, %v3911
    %v5040 = vpack.c.b16 %v3924, %v3912
    %v5041 = vpack.c.b16 %v3925, %v3913
    %v5042 = vpack.c.b16 %v3926, %v3914
    %v5043 = vpack.c.b16 %v3927, %v3915
    %v5044 = vpack.c.b16 %v3928, %v3916
    %v5045 = vpack.c.b16 %v3929, %v3917
    %v5046 = vpack.c.b16 %v3930, %v3918
    %v5047 = vpack.c.b16 %v3931, %v3919
    %v5048 = vpack.c.b16 %v3932, %v3920
    %v5049 = vpack.c.b16 %v3945, %v3933
    %v5050 = vpack.c.b16 %v3946, %v3934
    %v5051 = vpack.c.b16 %v3947, %v3935
    %v5052 = vpack.c.b16 %v3948, %v3936
    %v5053 = vpack.c.b16 %v3949, %v3937
    %v5054 = vpack.c.b16 %v3950, %v3938
    %v5055 = vpack.c.b16 %v3951, %v3939
    %v5056 = vpack.c.b16 %v3952, %v3940
    %v5057 = vpack.c.b16 %v3953, %v3941
    %v5058 = vpack.c.b16 %v3954, %v3942
    %v5059 = vpack.c.b16 %v3955, %v3943
    %v5060 = vpack.c.b16 %v3956, %v3944
    %v5061 = vpack.c.b16 %v3969, %v3957
    %v5062 = vpack.c.b16 %v3970, %v3958
    %v5063 = vpack.c.b16 %v3971, %v3959
    %v5064 = vpack.c.b16 %v3972, %v3960
    %v5065 = vpack.c.b16 %v3973, %v3961
    %v5066 = vpack.c.b16 %v3974, %v3962
    %v5067 = vpack.c.b16 %v3975, %v3963
    %v5068 = vpack.c.b16 %v3976, %v3964
    %v5069 = vpack.c.b16 %v3977, %v3965
    %v5070 = vpack.c.b16 %v3978, %v3966
    %v5071 = vpack.c.b16 %v3979, %v3967
    %v5072 = vpack.c.b16 %v3980, %v3968
    %v5073 = vpack.c.b16 %v3993, %v3981
    %v5074 = vpack.c.b16 %v3994, %v3982
    %v5075 = vpack.c.b16 %v3995, %v3983
    %v5076 = vpack.c.b16 %v3996, %v3984
    %v5077 = vpack.c.b16 %v3997, %v3985
    %v5078 = vpack.c.b16 %v3998, %v3986
    %v5079 = vpack.c.b16 %v3999, %v3987
    %v5080 = vpack.c.b16 %v4000, %v3988
    %v5081 = vpack.c.b16 %v4001, %v3989
    %v5082 = vpack.c.b16 %v4002, %v3990
    %v5083 = vpack.c.b16 %v4003, %v3991
    %v5084 = vpack.c.b16 %v4004, %v3992
    %v5085 = vpack.c.b16 %v4017, %v4005
    %v5086 = vpack.c.b16 %v4018, %v4006
    %v5087 = vpack.c.b16 %v4019, %v4007
    %v5088 = vpack.c.b16 %v4020, %v4008
    %v5089 = vpack.c.b16 %v4021, %v4009
    %v5090 = vpack.c.b16 %v4022, %v4010
    %v5091 = vpack.c.b16 %v4023, %v4011
    %v5092 = vpack.c.b16 %v4024, %v4012
    %v5093 = vpack.c.b16 %v4025, %v4013
    %v5094 = vpack.c.b16 %v4026, %v4014
    %v5095 = vpack.c.b16 %v4027, %v4015
    %v5096 = vpack.c.b16 %v4028, %v4016
    %v5097 = vpack.c.b16 %v4041, %v4029
    %v5098 = vpack.c.b16 %v4042, %v4030
    %v5099 = vpack.c.b16 %v4043, %v4031
    %v5100 = vpack.c.b16 %v4044, %v4032
    %v5101 = vpack.c.b16 %v4045, %v4033
    %v5102 = vpack.c.b16 %v4046, %v4034
    %v5103 = vpack.c.b16 %v4047, %v4035
    %v5104 = vpack.c.b16 %v4048, %v4036
    %v5105 = vpack.c.b16 %v4049, %v4037
    %v5106 = vpack.c.b16 %v4050, %v4038
    %v5107 = vpack.c.b16 %v4051, %v4039
    %v5108 = vpack.c.b16 %v4052, %v4040
    %v5109 = vpack.c.b16 %v4065, %v4053
    %v5110 = vpack.c.b16 %v4066, %v4054
    %v5111 = vpack.c.b16 %v4067, %v4055
    %v5112 = vpack.c.b16 %v4068, %v4056
    %v5113 = vpack.c.b16 %v4069, %v4057
    %v5114 = vpack.c.b16 %v4070, %v4058
    %v5115 = vpack.c.b16 %v4071, %v4059
    %v5116 = vpack.c.b16 %v4072, %v4060
    %v5117 = vpack.c.b16 %v4073, %v4061
    %v5118 = vpack.c.b16 %v4074, %v4062
    %v5119 = vpack.c.b16 %v4075, %v4063
    %v5120 = vpack.c.b16 %v4076, %v4064
    %v5121 = vpack.c.b16 %v4089, %v4077
    %v5122 = vpack.c.b16 %v4090, %v4078
    %v5123 = vpack.c.b16 %v4091, %v4079
    %v5124 = vpack.c.b16 %v4092, %v4080
    %v5125 = vpack.c.b16 %v4093, %v4081
    %v5126 = vpack.c.b16 %v4094, %v4082
    %v5127 = vpack.c.b16 %v4095, %v4083
    %v5128 = vpack.c.b16 %v4096, %v4084
    %v5129 = vpack.c.b16 %v4097, %v4085
    %v5130 = vpack.c.b16 %v4098, %v4086
    %v5131 = vpack.c.b16 %v4099, %v4087
    %v5132 = vpack.c.b16 %v4100, %v4088
    %v5133 = vpack.c.b16 %v4113, %v4101
    %v5134 = vpack.c.b16 %v4114, %v4102
    %v5135 = vpack.c.b16 %v4115, %v4103
    %v5136 = vpack.c.b16 %v4116, %v4104
    %v5137 = vpack.c.b16 %v4117, %v4105
    %v5138 = vpack.c.b16 %v4118, %v4106
    %v5139 = vpack.c.b16 %v4119, %v4107
    %v5140 = vpack.c.b16 %v4120, %v4108
    %v5141 = vpack.c.b16 %v4121, %v4109
    %v5142 = vpack.c.b16 %v4122, %v4110
    %v5143 = vpack.c.b16 %v4123, %v4111
    %v5144 = vpack.c.b16 %v4124, %v4112
    %v5145 = vpack.c.b16 %v4137, %v4125
    %v5146 = vpack.c.b16 %v4138, %v4126
    %v5147 = vpack.c.b16 %v4139, %v4127
    %v5148 = vpack.c.b16 %v4140, %v4128
    %v5149 = vpack.c.b16 %v4141, %v4129
    %v5150 = vpack.c.b16 %v4142, %v4130
    %v5151 = vpack.c.b16 %v4143, %v4131
    %v5152 = vpack.c.b16 %v4144, %v4132
    %v5153 = vpack.c.b16 %v4145, %v4133
    %v5154 = vpack.c.b16 %v4146, %v4134
    %v5155 = vpack.c.b16 %v4147, %v4135
    %v5156 = vpack.c.b16 %v4148, %v4136
    %v5157 = vpack.c.b16 %v4161, %v4149
    %v5158 = vpack.c.b16 %v4162, %v4150
    %v5159 = vpack.c.b16 %v4163, %v4151
    %v5160 = vpack.c.b16 %v4164, %v4152
    %v5161 = vpack.c.b16 %v4165, %v4153
    %v5162 = vpack.c.b16 %v4166, %v4154
    %v5163 = vpack.c.b16 %v4167, %v4155
    %v5164 = vpack.c.b16 %v4168, %v4156
    %v5165 = vpack.c.b16 %v4169, %v4157
    %v5166 = vpack.c.b16 %v4170, %v4158
    %v5167 = vpack.c.b16 %v4171, %v4159
    %v5168 = vpack.c.b16 %v4172, %v4160
    %v5169 = vpack.c.b16 %v4185, %v4173
    %v5170 = vpack.c.b16 %v4186, %v4174
    %v5171 = vpack.c.b16 %v4187, %v4175
    %v5172 = vpack.c.b16 %v4188, %v4176
    %v5173 = vpack.c.b16 %v4189, %v4177
    %v5174 = vpack.c.b16 %v4190, %v4178
    %v5175 = vpack.c.b16 %v4191, %v4179
    %v5176 = vpack.c.b16 %v4192, %v4180
    %v5177 = vpack.c.b16 %v4193, %v4181
    %v5178 = vpack.c.b16 %v4194, %v4182
    %v5179 = vpack.c.b16 %v4195, %v4183
    %v5180 = vpack.c.b16 %v4196, %v4184
    %v5181 = vpack.c.b16 %v4209, %v4197
    %v5182 = vpack.c.b16 %v4210, %v4198
    %v5183 = vpack.c.b16 %v4211, %v4199
    %v5184 = vpack.c.b16 %v4212, %v4200
    %v5185 = vpack.c.b16 %v4213, %v4201
    %v5186 = vpack.c.b16 %v4214, %v4202
    %v5187 = vpack.c.b16 %v4215, %v4203
    %v5188 = vpack.c.b16 %v4216, %v4204
    %v5189 = vpack.c.b16 %v4217, %v4205
    %v5190 = vpack.c.b16 %v4218, %v4206
    %v5191 = vpack.c.b16 %v4219, %v4207
    %v5192 = vpack.c.b16 %v4220, %v4208
    %v5193 = vpack.c.b16 %v4233, %v4221
    %v5194 = vpack.c.b16 %v4234, %v4222
    %v5195 = vpack.c.b16 %v4235, %v4223
    %v5196 = vpack.c.b16 %v4236, %v4224
    %v5197 = vpack.c.b16 %v4237, %v4225
    %v5198 = vpack.c.b16 %v4238, %v4226
    %v5199 = vpack.c.b16 %v4239, %v4227
    %v5200 = vpack.c.b16 %v4240, %v4228
    %v5201 = vpack.c.b16 %v4241, %v4229
    %v5202 = vpack.c.b16 %v4242, %v4230
    %v5203 = vpack.c.b16 %v4243, %v4231
    %v5204 = vpack.c.b16 %v4244, %v4232
    %v5205 = vpack.c.b16 %v4257, %v4245
    %v5206 = vpack.c.b16 %v4258, %v4246
    %v5207 = vpack.c.b16 %v4259, %v4247
    %v5208 = vpack.c.b16 %v4260, %v4248
    %v5209 = vpack.c.b16 %v4261, %v4249
    %v5210 = vpack.c.b16 %v4262, %v4250
    %v5211 = vpack.c.b16 %v4263, %v4251
    %v5212 = vpack.c.b16 %v4264, %v4252
    %v5213 = vpack.c.b16 %v4265, %v4253
    %v5214 = vpack.c.b16 %v4266, %v4254
    %v5215 = vpack.c.b16 %v4267, %v4255
    %v5216 = vpack.c.b16 %v4268, %v4256
    %v5217 = vpack.c.b16 %v4281, %v4269
    %v5218 = vpack.c.b16 %v4282, %v4270
    %v5219 = vpack.c.b16 %v4283, %v4271
    %v5220 = vpack.c.b16 %v4284, %v4272
    %v5221 = vpack.c.b16 %v4285, %v4273
    %v5222 = vpack.c.b16 %v4286, %v4274
    %v5223 = vpack.c.b16 %v4287, %v4275
    %v5224 = vpack.c.b16 %v4288, %v4276
    %v5225 = vpack.c.b16 %v4289, %v4277
    %v5226 = vpack.c.b16 %v4290, %v4278
    %v5227 = vpack.c.b16 %v4291, %v4279
    %v5228 = vpack.c.b16 %v4292, %v4280
    %v5229 = vpack.c.b16 %v4305, %v4293
    %v5230 = vpack.c.b16 %v4306, %v4294
    %v5231 = vpack.c.b16 %v4307, %v4295
    %v5232 = vpack.c.b16 %v4308, %v4296
    %v5233 = vpack.c.b16 %v4309, %v4297
    %v5234 = vpack.c.b16 %v4310, %v4298
    %v5235 = vpack.c.b16 %v4311, %v4299
    %v5236 = vpack.c.b16 %v4312, %v4300
    %v5237 = vpack.c.b16 %v4313, %v4301
    %v5238 = vpack.c.b16 %v4314, %v4302
    %v5239 = vpack.c.b16 %v4315, %v4303
    %v5240 = vpack.c.b16 %v4316, %v4304
    %v5241 = vpack.c.b16 %v4329, %v4317
    %v5242 = vpack.c.b16 %v4330, %v4318
    %v5243 = vpack.c.b16 %v4331, %v4319
    %v5244 = vpack.c.b16 %v4332, %v4320
    %v5245 = vpack.c.b16 %v4333, %v4321
    %v5246 = vpack.c.b16 %v4334, %v4322
    %v5247 = vpack.c.b16 %v4335, %v4323
    %v5248 = vpack.c.b16 %v4336, %v4324
    %v5249 = vpack.c.b16 %v4337, %v4325
    %v5250 = vpack.c.b16 %v4338, %v4326
    %v5251 = vpack.c.b16 %v4339, %v4327
    %v5252 = vpack.c.b16 %v4340, %v4328
    %v5253 = vpack.c.b16 %v4353, %v4341
    %v5254 = vpack.c.b16 %v4354, %v4342
    %v5255 = vpack.c.b16 %v4355, %v4343
    %v5256 = vpack.c.b16 %v4356, %v4344
    %v5257 = vpack.c.b16 %v4357, %v4345
    %v5258 = vpack.c.b16 %v4358, %v4346
    %v5259 = vpack.c.b16 %v4359, %v4347
    %v5260 = vpack.c.b16 %v4360, %v4348
    %v5261 = vpack.c.b16 %v4361, %v4349
    %v5262 = vpack.c.b16 %v4362, %v4350
    %v5263 = vpack.c.b16 %v4363, %v4351
    %v5264 = vpack.c.b16 %v4364, %v4352
    %v5265 = vpack.c.b16 %v4377, %v4365
    %v5266 = vpack.c.b16 %v4378, %v4366
    %v5267 = vpack.c.b16 %v4379, %v4367
    %v5268 = vpack.c.b16 %v4380, %v4368
    %v5269 = vpack.c.b16 %v4381, %v4369
    %v5270 = vpack.c.b16 %v4382, %v4370
    %v5271 = vpack.c.b16 %v4383, %v4371
    %v5272 = vpack.c.b16 %v4384, %v4372
    %v5273 = vpack.c.b16 %v4385, %v4373
    %v5274 = vpack.c.b16 %v4386, %v4374
    %v5275 = vpack.c.b16 %v4387, %v4375
    %v5276 = vpack.c.b16 %v4388, %v4376
    %v5277 = vpack.c.b16 %v4401, %v4389
    %v5278 = vpack.c.b16 %v4402, %v4390
    %v5279 = vpack.c.b16 %v4403, %v4391
    %v5280 = vpack.c.b16 %v4404, %v4392
    %v5281 = vpack.c.b16 %v4405, %v4393
    %v5282 = vpack.c.b16 %v4406, %v4394
    %v5283 = vpack.c.b16 %v4407, %v4395
    %v5284 = vpack.c.b16 %v4408, %v4396
    %v5285 = vpack.c.b16 %v4409, %v4397
    %v5286 = vpack.c.b16 %v4410, %v4398
    %v5287 = vpack.c.b16 %v4411, %v4399
    %v5288 = vpack.c.b16 %v4412, %v4400
    %v5289 = vpack.c.b16 %v4425, %v4413
    %v5290 = vpack.c.b16 %v4426, %v4414
    %v5291 = vpack.c.b16 %v4427, %v4415
    %v5292 = vpack.c.b16 %v4428, %v4416
    %v5293 = vpack.c.b16 %v4429, %v4417
    %v5294 = vpack.c.b16 %v4430, %v4418
    %v5295 = vpack.c.b16 %v4431, %v4419
    %v5296 = vpack.c.b16 %v4432, %v4420
    %v5297 = vpack.c.b16 %v4433, %v4421
    %v5298 = vpack.c.b16 %v4434, %v4422
    %v5299 = vpack.c.b16 %v4435, %v4423
    %v5300 = vpack.c.b16 %v4436, %v4424
    %v5301 = vpack.c.b16 %v4449, %v4437
    %v5302 = vpack.c.b16 %v4450, %v4438
    %v5303 = vpack.c.b16 %v4451, %v4439
    %v5304 = vpack.c.b16 %v4452, %v4440
    %v5305 = vpack.c.b16 %v4453, %v4441
    %v5306 = vpack.c.b16 %v4454, %v4442
    %v5307 = vpack.c.b16 %v4455, %v4443
    %v5308 = vpack.c.b16 %v4456, %v4444
    %v5309 = vpack.c.b16 %v4457, %v4445
    %v5310 = vpack.c.b16 %v4458, %v4446
    %v5311 = vpack.c.b16 %v4459, %v4447
    %v5312 = vpack.c.b16 %v4460, %v4448
    %v5313 = vpack.c.b16 %v4473, %v4461
    %v5314 = vpack.c.b16 %v4474, %v4462
    %v5315 = vpack.c.b16 %v4475, %v4463
    %v5316 = vpack.c.b16 %v4476, %v4464
    %v5317 = vpack.c.b16 %v4477, %v4465
    %v5318 = vpack.c.b16 %v4478, %v4466
    %v5319 = vpack.c.b16 %v4479, %v4467
    %v5320 = vpack.c.b16 %v4480, %v4468
    %v5321 = vpack.c.b16 %v4481, %v4469
    %v5322 = vpack.c.b16 %v4482, %v4470
    %v5323 = vpack.c.b16 %v4483, %v4471
    %v5324 = vpack.c.b16 %v4484, %v4472
    %v5325 = vpack.c.b16 %v4497, %v4485
    %v5326 = vpack.c.b16 %v4498, %v4486
    %v5327 = vpack.c.b16 %v4499, %v4487
    %v5328 = vpack.c.b16 %v4500, %v4488
    %v5329 = vpack.c.b16 %v4501, %v4489
    %v5330 = vpack.c.b16 %v4502, %v4490
    %v5331 = vpack.c.b16 %v4503, %v4491
    %v5332 = vpack.c.b16 %v4504, %v4492
    %v5333 = vpack.c.b16 %v4505, %v4493
    %v5334 = vpack.c.b16 %v4506, %v4494
    %v5335 = vpack.c.b16 %v4507, %v4495
    %v5336 = vpack.c.b16 %v4508, %v4496
    %v5337 = vpack.c.b16 %v4521, %v4509
    %v5338 = vpack.c.b16 %v4522, %v4510
    %v5339 = vpack.c.b16 %v4523, %v4511
    %v5340 = vpack.c.b16 %v4524, %v4512
    %v5341 = vpack.c.b16 %v4525, %v4513
    %v5342 = vpack.c.b16 %v4526, %v4514
    %v5343 = vpack.c.b16 %v4527, %v4515
    %v5344 = vpack.c.b16 %v4528, %v4516
    %v5345 = vpack.c.b16 %v4529, %v4517
    %v5346 = vpack.c.b16 %v4530, %v4518
    %v5347 = vpack.c.b16 %v4531, %v4519
    %v5348 = vpack.c.b16 %v4532, %v4520
    %v5349 = vpack.c.b16 %v4545, %v4533
    %v5350 = vpack.c.b16 %v4546, %v4534
    %v5351 = vpack.c.b16 %v4547, %v4535
    %v5352 = vpack.c.b16 %v4548, %v4536
    %v5353 = vpack.c.b16 %v4549, %v4537
    %v5354 = vpack.c.b16 %v4550, %v4538
    %v5355 = vpack.c.b16 %v4551, %v4539
    %v5356 = vpack.c.b16 %v4552, %v4540
    %v5357 = vpack.c.b16 %v4553, %v4541
    %v5358 = vpack.c.b16 %v4554, %v4542
    %v5359 = vpack.c.b16 %v4555, %v4543
    %v5360 = vpack.c.b16 %v4556, %v4544
    %v5361 = vpack.c.b16 %v4569, %v4557
    %v5362 = vpack.c.b16 %v4570, %v4558
    %v5363 = vpack.c.b16 %v4571, %v4559
    %v5364 = vpack.c.b16 %v4572, %v4560
    %v5365 = vpack.c.b16 %v4573, %v4561
    %v5366 = vpack.c.b16 %v4574, %v4562
    %v5367 = vpack.c.b16 %v4575, %v4563
    %v5368 = vpack.c.b16 %v4576, %v4564
    %v5369 = vpack.c.b16 %v4577, %v4565
    %v5370 = vpack.c.b16 %v4578, %v4566
    %v5371 = vpack.c.b16 %v4579, %v4567
    %v5372 = vpack.c.b16 %v4580, %v4568
    %v5373 = vpack.c.b16 %v4593, %v4581
    %v5374 = vpack.c.b16 %v4594, %v4582
    %v5375 = vpack.c.b16 %v4595, %v4583
    %v5376 = vpack.c.b16 %v4596, %v4584
    %v5377 = vpack.c.b16 %v4597, %v4585
    %v5378 = vpack.c.b16 %v4598, %v4586
    %v5379 = vpack.c.b16 %v4599, %v4587
    %v5380 = vpack.c.b16 %v4600, %v4588
    %v5381 = vpack.c.b16 %v4601, %v4589
    %v5382 = vpack.c.b16 %v4602, %v4590
    %v5383 = vpack.c.b16 %v4603, %v4591
    %v5384 = vpack.c.b16 %v4604, %v4592
    %v5385 = vpack.c.b16 %v4617, %v4605
    %v5386 = vpack.c.b16 %v4618, %v4606
    %v5387 = vpack.c.b16 %v4619, %v4607
    %v5388 = vpack.c.b16 %v4620, %v4608
    %v5389 = vpack.c.b16 %v4621, %v4609
    %v5390 = vpack.c.b16 %v4622, %v4610
    %v5391 = vpack.c.b16 %v4623, %v4611
    %v5392 = vpack.c.b16 %v4624, %v4612
    %v5393 = vpack.c.b16 %v4625, %v4613
    %v5394 = vpack.c.b16 %v4626, %v4614
    %v5395 = vpack.c.b16 %v4627, %v4615
    %v5396 = vpack.c.b16 %v4628, %v4616
    %v5397 = vpack.c.b16 %v4641, %v4629
    %v5398 = vpack.c.b16 %v4642, %v4630
    %v5399 = vpack.c.b16 %v4643, %v4631
    %v5400 = vpack.c.b16 %v4644, %v4632
    %v5401 = vpack.c.b16 %v4645, %v4633
    %v5402 = vpack.c.b16 %v4646, %v4634
    %v5403 = vpack.c.b16 %v4647, %v4635
    %v5404 = vpack.c.b16 %v4648, %v4636
    %v5405 = vpack.c.b16 %v4649, %v4637
    %v5406 = vpack.c.b16 %v4650, %v4638
    %v5407 = vpack.c.b16 %v4651, %v4639
    %v5408 = vpack.c.b16 %v4652, %v4640
    %v5409 = vpack.c.b16 %v4665, %v4653
    %v5410 = vpack.c.b16 %v4666, %v4654
    %v5411 = vpack.c.b16 %v4667, %v4655
    %v5412 = vpack.c.b16 %v4668, %v4656
    %v5413 = vpack.c.b16 %v4669, %v4657
    %v5414 = vpack.c.b16 %v4670, %v4658
    %v5415 = vpack.c.b16 %v4671, %v4659
    %v5416 = vpack.c.b16 %v4672, %v4660
    %v5417 = vpack.c.b16 %v4673, %v4661
    %v5418 = vpack.c.b16 %v4674, %v4662
    %v5419 = vpack.c.b16 %v4675, %v4663
    %v5420 = vpack.c.b16 %v4676, %v4664
    %v5421 = vpack.c.b16 %v4689, %v4677
    %v5422 = vpack.c.b16 %v4690, %v4678
    %v5423 = vpack.c.b16 %v4691, %v4679
    %v5424 = vpack.c.b16 %v4692, %v4680
    %v5425 = vpack.c.b16 %v4693, %v4681
    %v5426 = vpack.c.b16 %v4694, %v4682
    %v5427 = vpack.c.b16 %v4695, %v4683
    %v5428 = vpack.c.b16 %v4696, %v4684
    %v5429 = vpack.c.b16 %v4697, %v4685
    %v5430 = vpack.c.b16 %v4698, %v4686
    %v5431 = vpack.c.b16 %v4699, %v4687
    %v5432 = vpack.c.b16 %v4700, %v4688
    %v5433 = vpack.c.b16 %v4713, %v4701
    %v5434 = vpack.c.b16 %v4714, %v4702
    %v5435 = vpack.c.b16 %v4715, %v4703
    %v5436 = vpack.c.b16 %v4716, %v4704
    %v5437 = vpack.c.b16 %v4717, %v4705
    %v5438 = vpack.c.b16 %v4718, %v4706
    %v5439 = vpack.c.b16 %v4719, %v4707
    %v5440 = vpack.c.b16 %v4720, %v4708
    %v5441 = vpack.c.b16 %v4721, %v4709
    %v5442 = vpack.c.b16 %v4722, %v4710
    %v5443 = vpack.c.b16 %v4723, %v4711
    %v5444 = vpack.c.b16 %v4724, %v4712
    %v5445 = vpack.c.b16 %v4737, %v4725
    %v5446 = vpack.c.b16 %v4738, %v4726
    %v5447 = vpack.c.b16 %v4739, %v4727
    %v5448 = vpack.c.b16 %v4740, %v4728
    %v5449 = vpack.c.b16 %v4741, %v4729
    %v5450 = vpack.c.b16 %v4742, %v4730
    %v5451 = vpack.c.b16 %v4743, %v4731
    %v5452 = vpack.c.b16 %v4744, %v4732
    %v5453 = vpack.c.b16 %v4745, %v4733
    %v5454 = vpack.c.b16 %v4746, %v4734
    %v5455 = vpack.c.b16 %v4747, %v4735
    %v5456 = vpack.c.b16 %v4748, %v4736
    %v5457 = vpack.c.b16 %v4761, %v4749
    %v5458 = vpack.c.b16 %v4762, %v4750
    %v5459 = vpack.c.b16 %v4763, %v4751
    %v5460 = vpack.c.b16 %v4764, %v4752
    %v5461 = vpack.c.b16 %v4765, %v4753
    %v5462 = vpack.c.b16 %v4766, %v4754
    %v5463 = vpack.c.b16 %v4767, %v4755
    %v5464 = vpack.c.b16 %v4768, %v4756
    %v5465 = vpack.c.b16 %v4769, %v4757
    %v5466 = vpack.c.b16 %v4770, %v4758
    %v5467 = vpack.c.b16 %v4771, %v4759
    %v5468 = vpack.c.b16 %v4772, %v4760
    %v5469 = vpack.c.b16 %v4785, %v4773
    %v5470 = vpack.c.b16 %v4786, %v4774
    %v5471 = vpack.c.b16 %v4787, %v4775
    %v5472 = vpack.c.b16 %v4788, %v4776
    %v5473 = vpack.c.b16 %v4789, %v4777
    %v5474 = vpack.c.b16 %v4790, %v4778
    %v5475 = vpack.c.b16 %v4791, %v4779
    %v5476 = vpack.c.b16 %v4792, %v4780
    %v5477 = vpack.c.b16 %v4793, %v4781
    %v5478 = vpack.c.b16 %v4794, %v4782
    %v5479 = vpack.c.b16 %v4795, %v4783
    %v5480 = vpack.c.b16 %v4796, %v4784
    %v5481 = vpack.c.b16 %v4809, %v4797
    %v5482 = vpack.c.b16 %v4810, %v4798
    %v5483 = vpack.c.b16 %v4811, %v4799
    %v5484 = vpack.c.b16 %v4812, %v4800
    %v5485 = vpack.c.b16 %v4813, %v4801
    %v5486 = vpack.c.b16 %v4814, %v4802
    %v5487 = vpack.c.b16 %v4815, %v4803
    %v5488 = vpack.c.b16 %v4816, %v4804
    %v5489 = vpack.c.b16 %v4817, %v4805
    %v5490 = vpack.c.b16 %v4818, %v4806
    %v5491 = vpack.c.b16 %v4819, %v4807
    %v5492 = vpack.c.b16 %v4820, %v4808
    %6165 = vmatprep.subr.bf16.mxu0 %v4906
    %6166 = vmatpush1.bf16.msra.mxu0 %v4905
    %6167 = vmatprep.subr.bf16.mxu0 %v4894
    %6168 = vmatpush1.bf16.msra.mxu0 %v4893
    %6169 = vmatprep.subr.bf16.mxu0 %v4882
    %6170 = vmatpush1.bf16.msra.mxu0 %v4881
    %6171 = vmatprep.subr.bf16.mxu0 %v4870
    %6172 = vmatpush1.bf16.msra.mxu0 %v4869
    %6173 = vmatprep.subr.bf16.mxu0 %v4858
    %6174 = vmatpush1.bf16.msra.mxu0 %v4857
    %6175 = vmatprep.subr.bf16.mxu0 %v4846
    %6176 = vmatpush1.bf16.msra.mxu0 %v4845
    %6177 = vmatprep.subr.bf16.mxu0 %v4834
    %6178 = vmatpush1.bf16.msra.mxu0 %v4833
    %6179 = vmatprep.subr.bf16.mxu0 %v4822
    %6180 = vmatpush1.bf16.msra.mxu0 %v4821
    %6181 = vmatprep.subr.bf16.mxu0 %v5002
    %6182 = vmatpush2.bf16.msra.mxu0 %v5001
    %6183 = vmatprep.subr.bf16.mxu0 %v4990
    %6184 = vmatpush2.bf16.msra.mxu0 %v4989
    %6185 = vmatprep.subr.bf16.mxu0 %v4978
    %6186 = vmatpush2.bf16.msra.mxu0 %v4977
    %6187 = vmatprep.subr.bf16.mxu0 %v4966
    %6188 = vmatpush2.bf16.msra.mxu0 %v4965
    %6189 = vmatprep.subr.bf16.mxu0 %v4954
    %6190 = vmatpush2.bf16.msra.mxu0 %v4953
    %6191 = vmatprep.subr.bf16.mxu0 %v4942
    %6192 = vmatpush2.bf16.msra.mxu0 %v4941
    %6193 = vmatprep.subr.bf16.mxu0 %v4930
    %6194 = vmatpush2.bf16.msra.mxu0 %v4929
    %6195 = vmatprep.subr.bf16.mxu0 %v4918
    %6196 = vmatpush2.bf16.msra.mxu0 %v4917
    %6197 = vmatprep.mubr.bf16.mxu0 %v2127
    %6198 = vmatmul.mubr.bf16.gmra.mxu0 %v2126
    %v6199 = vpop.f32.mrf.mxu0
    %v6200 = vadd.f32 0.0, %v6199
    %v6201 = vpop.f32.mrf.mxu0
    %v6202 = vadd.f32 0.0, %v6201
    %v6203 = vpop.f32.mrf.mxu0
    %v6204 = vpop.f32.mrf.mxu0
    %6205 = vdwg.mxu0
    %6206 = vmatprep.subr.bf16.mxu0 %v5098
    %6207 = vmatpush1.bf16.msra.mxu0 %v5097
    %6208 = vmatprep.subr.bf16.mxu0 %v5086
    %6209 = vmatpush1.bf16.msra.mxu0 %v5085
    %6210 = vmatprep.subr.bf16.mxu0 %v5074
    %6211 = vmatpush1.bf16.msra.mxu0 %v5073
    %6212 = vmatprep.subr.bf16.mxu0 %v5062
    %6213 = vmatpush1.bf16.msra.mxu0 %v5061
    %6214 = vmatprep.subr.bf16.mxu0 %v5050
    %6215 = vmatpush1.bf16.msra.mxu0 %v5049
    %6216 = vmatprep.subr.bf16.mxu0 %v5038
    %6217 = vmatpush1.bf16.msra.mxu0 %v5037
    %6218 = vmatprep.subr.bf16.mxu0 %v5026
    %6219 = vmatpush1.bf16.msra.mxu0 %v5025
    %6220 = vmatprep.subr.bf16.mxu0 %v5014
    %6221 = vmatpush1.bf16.msra.mxu0 %v5013
    %6222 = vmatprep.subr.bf16.mxu0 %v5194
    %6223 = vmatpush2.bf16.msra.mxu0 %v5193
    %6224 = vmatprep.subr.bf16.mxu0 %v5182
    %6225 = vmatpush2.bf16.msra.mxu0 %v5181
    %6226 = vmatprep.subr.bf16.mxu0 %v5170
    %6227 = vmatpush2.bf16.msra.mxu0 %v5169
    %6228 = vmatprep.subr.bf16.mxu0 %v5158
    %6229 = vmatpush2.bf16.msra.mxu0 %v5157
    %6230 = vmatprep.subr.bf16.mxu0 %v5146
    %6231 = vmatpush2.bf16.msra.mxu0 %v5145
    %6232 = vmatprep.subr.bf16.mxu0 %v5134
    %6233 = vmatpush2.bf16.msra.mxu0 %v5133
    %6234 = vmatprep.subr.bf16.mxu0 %v5122
    %6235 = vmatpush2.bf16.msra.mxu0 %v5121
    %6236 = vmatprep.subr.bf16.mxu0 %v5110
    %6237 = vmatpush2.bf16.msra.mxu0 %v5109
    %6238 = vmatprep.mubr.bf16.mxu0 %v2129
    %6239 = vmatmul.mubr.bf16.gmra.mxu0 %v2128
    %v6240 = vpop.f32.mrf.mxu0
    %v6241 = vadd.f32 %v6200, %v6240
    %v6242 = vpop.f32.mrf.mxu0
    %v6243 = vadd.f32 %v6202, %v6242
    %v6244 = vpop.f32.mrf.mxu0
    %v6245 = vpop.f32.mrf.mxu0
    %6246 = vdwg.mxu0
    %6247 = vmatprep.subr.bf16.mxu0 %v5290
    %6248 = vmatpush1.bf16.msra.mxu0 %v5289
    %6249 = vmatprep.subr.bf16.mxu0 %v5278
    %6250 = vmatpush1.bf16.msra.mxu0 %v5277
    %6251 = vmatprep.subr.bf16.mxu0 %v5266
    %6252 = vmatpush1.bf16.msra.mxu0 %v5265
    %6253 = vmatprep.subr.bf16.mxu0 %v5254
    %6254 = vmatpush1.bf16.msra.mxu0 %v5253
    %6255 = vmatprep.subr.bf16.mxu0 %v5242
    %6256 = vmatpush1.bf16.msra.mxu0 %v5241
    %6257 = vmatprep.subr.bf16.mxu0 %v5230
    %6258 = vmatpush1.bf16.msra.mxu0 %v5229
    %6259 = vmatprep.subr.bf16.mxu0 %v5218
    %6260 = vmatpush1.bf16.msra.mxu0 %v5217
    %6261 = vmatprep.subr.bf16.mxu0 %v5206
    %6262 = vmatpush1.bf16.msra.mxu0 %v5205
    %6263 = vmatprep.subr.bf16.mxu0 %v5386
    %6264 = vmatpush2.bf16.msra.mxu0 %v5385
    %6265 = vmatprep.subr.bf16.mxu0 %v5374
    %6266 = vmatpush2.bf16.msra.mxu0 %v5373
    %6267 = vmatprep.subr.bf16.mxu0 %v5362
    %6268 = vmatpush2.bf16.msra.mxu0 %v5361
    %6269 = vmatprep.subr.bf16.mxu0 %v5350
    %6270 = vmatpush2.bf16.msra.mxu0 %v5349
    %6271 = vmatprep.subr.bf16.mxu0 %v5338
    %6272 = vmatpush2.bf16.msra.mxu0 %v5337
    %6273 = vmatprep.subr.bf16.mxu0 %v5326
    %6274 = vmatpush2.bf16.msra.mxu0 %v5325
    %6275 = vmatprep.subr.bf16.mxu0 %v5314
    %6276 = vmatpush2.bf16.msra.mxu0 %v5313
    %6277 = vmatprep.subr.bf16.mxu0 %v5302
    %6278 = vmatpush2.bf16.msra.mxu0 %v5301
    %6279 = vmatprep.mubr.bf16.mxu0 %v2131
    %6280 = vmatmul.mubr.bf16.gmra.mxu0 %v2130
    %v6281 = vpop.f32.mrf.mxu0
    %v6282 = vadd.f32 %v6241, %v6281
    %v6283 = vpop.f32.mrf.mxu0
    %v6284 = vadd.f32 %v6243, %v6283
    %v6285 = vpop.f32.mrf.mxu0
    %v6286 = vpop.f32.mrf.mxu0
    %6287 = vdwg.mxu0
    %6288 = vmatprep.subr.bf16.mxu0 %v5482
    %6289 = vmatpush1.bf16.msra.mxu0 %v5481
    %6290 = vmatprep.subr.bf16.mxu0 %v5470
    %6291 = vmatpush1.bf16.msra.mxu0 %v5469
    %6292 = vmatprep.subr.bf16.mxu0 %v5458
    %6293 = vmatpush1.bf16.msra.mxu0 %v5457
    %6294 = vmatprep.subr.bf16.mxu0 %v5446
    %6295 = vmatpush1.bf16.msra.mxu0 %v5445
    %6296 = vmatprep.subr.bf16.mxu0 %v5434
    %6297 = vmatpush1.bf16.msra.mxu0 %v5433
    %6298 = vmatprep.subr.bf16.mxu0 %v5422
    %6299 = vmatpush1.bf16.msra.mxu0 %v5421
    %6300 = vmatprep.subr.bf16.mxu0 %v5410
    %6301 = vmatpush1.bf16.msra.mxu0 %v5409
    %6302 = vmatprep.subr.bf16.mxu0 %v5398
    %6303 = vmatpush1.bf16.msra.mxu0 %v5397
    %6304 = vmatprep.subr.bf16.mxu0 0
    %6305 = vmatpush2.bf16.msra.mxu0 0
    %6306 = vmatprep.subr.bf16.mxu0 0
    %6307 = vmatpush2.bf16.msra.mxu0 0
    %6308 = vmatprep.subr.bf16.mxu0 0
    %6309 = vmatpush2.bf16.msra.mxu0 0
    %6310 = vmatprep.subr.bf16.mxu0 0
    %6311 = vmatpush2.bf16.msra.mxu0 0
    %6312 = vmatprep.subr.bf16.mxu0 0
    %6313 = vmatpush2.bf16.msra.mxu0 0
    %6314 = vmatprep.subr.bf16.mxu0 0
    %6315 = vmatpush2.bf16.msra.mxu0 0
    %6316 = vmatprep.subr.bf16.mxu0 0
    %6317 = vmatpush2.bf16.msra.mxu0 0
    %6318 = vmatprep.subr.bf16.mxu0 0
    %6319 = vmatpush2.bf16.msra.mxu0 0
    %6320 = vmatprep.mubr.bf16.mxu0 0
    %6321 = vmatmul.mubr.bf16.gmra.mxu0 %v2132
    %v6322 = vpop.f32.mrf.mxu0
    %v6323 = vadd.f32 %v6282, %v6322
    %v6324 = vpop.f32.mrf.mxu0
    %v6325 = vadd.f32 %v6284, %v6324
    %v6326 = vpop.f32.mrf.mxu0
    %v6327 = vpop.f32.mrf.mxu0
    %6328 = vdwg.mxu0
    %6329 = vmatprep.subr.bf16.mxu0 %v4908
    %6330 = vmatpush1.bf16.msra.mxu0 %v4907
    %6331 = vmatprep.subr.bf16.mxu0 %v4896
    %6332 = vmatpush1.bf16.msra.mxu0 %v4895
    %6333 = vmatprep.subr.bf16.mxu0 %v4884
    %6334 = vmatpush1.bf16.msra.mxu0 %v4883
    %6335 = vmatprep.subr.bf16.mxu0 %v4872
    %6336 = vmatpush1.bf16.msra.mxu0 %v4871
    %6337 = vmatprep.subr.bf16.mxu0 %v4860
    %6338 = vmatpush1.bf16.msra.mxu0 %v4859
    %6339 = vmatprep.subr.bf16.mxu0 %v4848
    %6340 = vmatpush1.bf16.msra.mxu0 %v4847
    %6341 = vmatprep.subr.bf16.mxu0 %v4836
    %6342 = vmatpush1.bf16.msra.mxu0 %v4835
    %6343 = vmatprep.subr.bf16.mxu0 %v4824
    %6344 = vmatpush1.bf16.msra.mxu0 %v4823
    %6345 = vmatprep.subr.bf16.mxu0 %v5004
    %6346 = vmatpush2.bf16.msra.mxu0 %v5003
    %6347 = vmatprep.subr.bf16.mxu0 %v4992
    %6348 = vmatpush2.bf16.msra.mxu0 %v4991
    %6349 = vmatprep.subr.bf16.mxu0 %v4980
    %6350 = vmatpush2.bf16.msra.mxu0 %v4979
    %6351 = vmatprep.subr.bf16.mxu0 %v4968
    %6352 = vmatpush2.bf16.msra.mxu0 %v4967
    %6353 = vmatprep.subr.bf16.mxu0 %v4956
    %6354 = vmatpush2.bf16.msra.mxu0 %v4955
    %6355 = vmatprep.subr.bf16.mxu0 %v4944
    %6356 = vmatpush2.bf16.msra.mxu0 %v4943
    %6357 = vmatprep.subr.bf16.mxu0 %v4932
    %6358 = vmatpush2.bf16.msra.mxu0 %v4931
    %6359 = vmatprep.subr.bf16.mxu0 %v4920
    %6360 = vmatpush2.bf16.msra.mxu0 %v4919
    %6361 = vmatprep.mubr.bf16.mxu0 %v2127
    %6362 = vmatmul.mubr.bf16.gmra.mxu0 %v2126
    %v6363 = vpop.f32.mrf.mxu0
    %v6364 = vadd.f32 0.0, %v6363
    %v6365 = vpop.f32.mrf.mxu0
    %v6366 = vadd.f32 0.0, %v6365
    %v6367 = vpop.f32.mrf.mxu0
    %v6368 = vpop.f32.mrf.mxu0
    %6369 = vdwg.mxu0
    %6370 = vmatprep.subr.bf16.mxu0 %v5100
    %6371 = vmatpush1.bf16.msra.mxu0 %v5099
    %6372 = vmatprep.subr.bf16.mxu0 %v5088
    %6373 = vmatpush1.bf16.msra.mxu0 %v5087
    %6374 = vmatprep.subr.bf16.mxu0 %v5076
    %6375 = vmatpush1.bf16.msra.mxu0 %v5075
    %6376 = vmatprep.subr.bf16.mxu0 %v5064
    %6377 = vmatpush1.bf16.msra.mxu0 %v5063
    %6378 = vmatprep.subr.bf16.mxu0 %v5052
    %6379 = vmatpush1.bf16.msra.mxu0 %v5051
    %6380 = vmatprep.subr.bf16.mxu0 %v5040
    %6381 = vmatpush1.bf16.msra.mxu0 %v5039
    %6382 = vmatprep.subr.bf16.mxu0 %v5028
    %6383 = vmatpush1.bf16.msra.mxu0 %v5027
    %6384 = vmatprep.subr.bf16.mxu0 %v5016
    %6385 = vmatpush1.bf16.msra.mxu0 %v5015
    %6386 = vmatprep.subr.bf16.mxu0 %v5196
    %6387 = vmatpush2.bf16.msra.mxu0 %v5195
    %6388 = vmatprep.subr.bf16.mxu0 %v5184
    %6389 = vmatpush2.bf16.msra.mxu0 %v5183
    %6390 = vmatprep.subr.bf16.mxu0 %v5172
    %6391 = vmatpush2.bf16.msra.mxu0 %v5171
    %6392 = vmatprep.subr.bf16.mxu0 %v5160
    %6393 = vmatpush2.bf16.msra.mxu0 %v5159
    %6394 = vmatprep.subr.bf16.mxu0 %v5148
    %6395 = vmatpush2.bf16.msra.mxu0 %v5147
    %6396 = vmatprep.subr.bf16.mxu0 %v5136
    %6397 = vmatpush2.bf16.msra.mxu0 %v5135
    %6398 = vmatprep.subr.bf16.mxu0 %v5124
    %6399 = vmatpush2.bf16.msra.mxu0 %v5123
    %6400 = vmatprep.subr.bf16.mxu0 %v5112
    %6401 = vmatpush2.bf16.msra.mxu0 %v5111
    %6402 = vmatprep.mubr.bf16.mxu0 %v2129
    %6403 = vmatmul.mubr.bf16.gmra.mxu0 %v2128
    %v6404 = vpop.f32.mrf.mxu0
    %v6405 = vadd.f32 %v6364, %v6404
    %v6406 = vpop.f32.mrf.mxu0
    %v6407 = vadd.f32 %v6366, %v6406
    %v6408 = vpop.f32.mrf.mxu0
    %v6409 = vpop.f32.mrf.mxu0
    %6410 = vdwg.mxu0
    %6411 = vmatprep.subr.bf16.mxu0 %v5292
    %6412 = vmatpush1.bf16.msra.mxu0 %v5291
    %6413 = vmatprep.subr.bf16.mxu0 %v5280
    %6414 = vmatpush1.bf16.msra.mxu0 %v5279
    %6415 = vmatprep.subr.bf16.mxu0 %v5268
    %6416 = vmatpush1.bf16.msra.mxu0 %v5267
    %6417 = vmatprep.subr.bf16.mxu0 %v5256
    %6418 = vmatpush1.bf16.msra.mxu0 %v5255
    %6419 = vmatprep.subr.bf16.mxu0 %v5244
    %6420 = vmatpush1.bf16.msra.mxu0 %v5243
    %6421 = vmatprep.subr.bf16.mxu0 %v5232
    %6422 = vmatpush1.bf16.msra.mxu0 %v5231
    %6423 = vmatprep.subr.bf16.mxu0 %v5220
    %6424 = vmatpush1.bf16.msra.mxu0 %v5219
    %6425 = vmatprep.subr.bf16.mxu0 %v5208
    %6426 = vmatpush1.bf16.msra.mxu0 %v5207
    %6427 = vmatprep.subr.bf16.mxu0 %v5388
    %6428 = vmatpush2.bf16.msra.mxu0 %v5387
    %6429 = vmatprep.subr.bf16.mxu0 %v5376
    %6430 = vmatpush2.bf16.msra.mxu0 %v5375
    %6431 = vmatprep.subr.bf16.mxu0 %v5364
    %6432 = vmatpush2.bf16.msra.mxu0 %v5363
    %6433 = vmatprep.subr.bf16.mxu0 %v5352
    %6434 = vmatpush2.bf16.msra.mxu0 %v5351
    %6435 = vmatprep.subr.bf16.mxu0 %v5340
    %6436 = vmatpush2.bf16.msra.mxu0 %v5339
    %6437 = vmatprep.subr.bf16.mxu0 %v5328
    %6438 = vmatpush2.bf16.msra.mxu0 %v5327
    %6439 = vmatprep.subr.bf16.mxu0 %v5316
    %6440 = vmatpush2.bf16.msra.mxu0 %v5315
    %6441 = vmatprep.subr.bf16.mxu0 %v5304
    %6442 = vmatpush2.bf16.msra.mxu0 %v5303
    %6443 = vmatprep.mubr.bf16.mxu0 %v2131
    %6444 = vmatmul.mubr.bf16.gmra.mxu0 %v2130
    %v6445 = vpop.f32.mrf.mxu0
    %v6446 = vadd.f32 %v6405, %v6445
    %v6447 = vpop.f32.mrf.mxu0
    %v6448 = vadd.f32 %v6407, %v6447
    %v6449 = vpop.f32.mrf.mxu0
    %v6450 = vpop.f32.mrf.mxu0
    %6451 = vdwg.mxu0
    %6452 = vmatprep.subr.bf16.mxu0 %v5484
    %6453 = vmatpush1.bf16.msra.mxu0 %v5483
    %6454 = vmatprep.subr.bf16.mxu0 %v5472
    %6455 = vmatpush1.bf16.msra.mxu0 %v5471
    %6456 = vmatprep.subr.bf16.mxu0 %v5460
    %6457 = vmatpush1.bf16.msra.mxu0 %v5459
    %6458 = vmatprep.subr.bf16.mxu0 %v5448
    %6459 = vmatpush1.bf16.msra.mxu0 %v5447
    %6460 = vmatprep.subr.bf16.mxu0 %v5436
    %6461 = vmatpush1.bf16.msra.mxu0 %v5435
    %6462 = vmatprep.subr.bf16.mxu0 %v5424
    %6463 = vmatpush1.bf16.msra.mxu0 %v5423
    %6464 = vmatprep.subr.bf16.mxu0 %v5412
    %6465 = vmatpush1.bf16.msra.mxu0 %v5411
    %6466 = vmatprep.subr.bf16.mxu0 %v5400
    %6467 = vmatpush1.bf16.msra.mxu0 %v5399
    %6468 = vmatprep.subr.bf16.mxu0 0
    %6469 = vmatpush2.bf16.msra.mxu0 0
    %6470 = vmatprep.subr.bf16.mxu0 0
    %6471 = vmatpush2.bf16.msra.mxu0 0
    %6472 = vmatprep.subr.bf16.mxu0 0
    %6473 = vmatpush2.bf16.msra.mxu0 0
    %6474 = vmatprep.subr.bf16.mxu0 0
    %6475 = vmatpush2.bf16.msra.mxu0 0
    %6476 = vmatprep.subr.bf16.mxu0 0
    %6477 = vmatpush2.bf16.msra.mxu0 0
    %6478 = vmatprep.subr.bf16.mxu0 0
    %6479 = vmatpush2.bf16.msra.mxu0 0
    %6480 = vmatprep.subr.bf16.mxu0 0
    %6481 = vmatpush2.bf16.msra.mxu0 0
    %6482 = vmatprep.subr.bf16.mxu0 0
    %6483 = vmatpush2.bf16.msra.mxu0 0
    %6484 = vmatprep.mubr.bf16.mxu0 0
    %6485 = vmatmul.mubr.bf16.gmra.mxu0 %v2132
    %v6486 = vpop.f32.mrf.mxu0
    %v6487 = vadd.f32 %v6446, %v6486
    %v6488 = vpop.f32.mrf.mxu0
    %v6489 = vadd.f32 %v6448, %v6488
    %v6490 = vpop.f32.mrf.mxu0
    %v6491 = vpop.f32.mrf.mxu0
    %6492 = vdwg.mxu0
    %6493 = vmatprep.subr.bf16.mxu0 %v4910
    %6494 = vmatpush1.bf16.msra.mxu0 %v4909
    %6495 = vmatprep.subr.bf16.mxu0 %v4898
    %6496 = vmatpush1.bf16.msra.mxu0 %v4897
    %6497 = vmatprep.subr.bf16.mxu0 %v4886
    %6498 = vmatpush1.bf16.msra.mxu0 %v4885
    %6499 = vmatprep.subr.bf16.mxu0 %v4874
    %6500 = vmatpush1.bf16.msra.mxu0 %v4873
    %6501 = vmatprep.subr.bf16.mxu0 %v4862
    %6502 = vmatpush1.bf16.msra.mxu0 %v4861
    %6503 = vmatprep.subr.bf16.mxu0 %v4850
    %6504 = vmatpush1.bf16.msra.mxu0 %v4849
    %6505 = vmatprep.subr.bf16.mxu0 %v4838
    %6506 = vmatpush1.bf16.msra.mxu0 %v4837
    %6507 = vmatprep.subr.bf16.mxu0 %v4826
    %6508 = vmatpush1.bf16.msra.mxu0 %v4825
    %6509 = vmatprep.subr.bf16.mxu0 %v5006
    %6510 = vmatpush2.bf16.msra.mxu0 %v5005
    %6511 = vmatprep.subr.bf16.mxu0 %v4994
    %6512 = vmatpush2.bf16.msra.mxu0 %v4993
    %6513 = vmatprep.subr.bf16.mxu0 %v4982
    %6514 = vmatpush2.bf16.msra.mxu0 %v4981
    %6515 = vmatprep.subr.bf16.mxu0 %v4970
    %6516 = vmatpush2.bf16.msra.mxu0 %v4969
    %6517 = vmatprep.subr.bf16.mxu0 %v4958
    %6518 = vmatpush2.bf16.msra.mxu0 %v4957
    %6519 = vmatprep.subr.bf16.mxu0 %v4946
    %6520 = vmatpush2.bf16.msra.mxu0 %v4945
    %6521 = vmatprep.subr.bf16.mxu0 %v4934
    %6522 = vmatpush2.bf16.msra.mxu0 %v4933
    %6523 = vmatprep.subr.bf16.mxu0 %v4922
    %6524 = vmatpush2.bf16.msra.mxu0 %v4921
    %6525 = vmatprep.mubr.bf16.mxu0 %v2127
    %6526 = vmatmul.mubr.bf16.gmra.mxu0 %v2126
    %v6527 = vpop.f32.mrf.mxu0
    %v6528 = vadd.f32 0.0, %v6527
    %v6529 = vpop.f32.mrf.mxu0
    %v6530 = vadd.f32 0.0, %v6529
    %v6531 = vpop.f32.mrf.mxu0
    %v6532 = vpop.f32.mrf.mxu0
    %6533 = vdwg.mxu0
    %6534 = vmatprep.subr.bf16.mxu0 %v5102
    %6535 = vmatpush1.bf16.msra.mxu0 %v5101
    %6536 = vmatprep.subr.bf16.mxu0 %v5090
    %6537 = vmatpush1.bf16.msra.mxu0 %v5089
    %6538 = vmatprep.subr.bf16.mxu0 %v5078
    %6539 = vmatpush1.bf16.msra.mxu0 %v5077
    %6540 = vmatprep.subr.bf16.mxu0 %v5066
    %6541 = vmatpush1.bf16.msra.mxu0 %v5065
    %6542 = vmatprep.subr.bf16.mxu0 %v5054
    %6543 = vmatpush1.bf16.msra.mxu0 %v5053
    %6544 = vmatprep.subr.bf16.mxu0 %v5042
    %6545 = vmatpush1.bf16.msra.mxu0 %v5041
    %6546 = vmatprep.subr.bf16.mxu0 %v5030
    %6547 = vmatpush1.bf16.msra.mxu0 %v5029
    %6548 = vmatprep.subr.bf16.mxu0 %v5018
    %6549 = vmatpush1.bf16.msra.mxu0 %v5017
    %6550 = vmatprep.subr.bf16.mxu0 %v5198
    %6551 = vmatpush2.bf16.msra.mxu0 %v5197
    %6552 = vmatprep.subr.bf16.mxu0 %v5186
    %6553 = vmatpush2.bf16.msra.mxu0 %v5185
    %6554 = vmatprep.subr.bf16.mxu0 %v5174
    %6555 = vmatpush2.bf16.msra.mxu0 %v5173
    %6556 = vmatprep.subr.bf16.mxu0 %v5162
    %6557 = vmatpush2.bf16.msra.mxu0 %v5161
    %6558 = vmatprep.subr.bf16.mxu0 %v5150
    %6559 = vmatpush2.bf16.msra.mxu0 %v5149
    %6560 = vmatprep.subr.bf16.mxu0 %v5138
    %6561 = vmatpush2.bf16.msra.mxu0 %v5137
    %6562 = vmatprep.subr.bf16.mxu0 %v5126
    %6563 = vmatpush2.bf16.msra.mxu0 %v5125
    %6564 = vmatprep.subr.bf16.mxu0 %v5114
    %6565 = vmatpush2.bf16.msra.mxu0 %v5113
    %6566 = vmatprep.mubr.bf16.mxu0 %v2129
    %6567 = vmatmul.mubr.bf16.gmra.mxu0 %v2128
    %v6568 = vpop.f32.mrf.mxu0
    %v6569 = vadd.f32 %v6528, %v6568
    %v6570 = vpop.f32.mrf.mxu0
    %v6571 = vadd.f32 %v6530, %v6570
    %v6572 = vpop.f32.mrf.mxu0
    %v6573 = vpop.f32.mrf.mxu0
    %6574 = vdwg.mxu0
    %6575 = vmatprep.subr.bf16.mxu0 %v5294
    %6576 = vmatpush1.bf16.msra.mxu0 %v5293
    %6577 = vmatprep.subr.bf16.mxu0 %v5282
    %6578 = vmatpush1.bf16.msra.mxu0 %v5281
    %6579 = vmatprep.subr.bf16.mxu0 %v5270
    %6580 = vmatpush1.bf16.msra.mxu0 %v5269
    %6581 = vmatprep.subr.bf16.mxu0 %v5258
    %6582 = vmatpush1.bf16.msra.mxu0 %v5257
    %6583 = vmatprep.subr.bf16.mxu0 %v5246
    %6584 = vmatpush1.bf16.msra.mxu0 %v5245
    %6585 = vmatprep.subr.bf16.mxu0 %v5234
    %6586 = vmatpush1.bf16.msra.mxu0 %v5233
    %6587 = vmatprep.subr.bf16.mxu0 %v5222
    %6588 = vmatpush1.bf16.msra.mxu0 %v5221
    %6589 = vmatprep.subr.bf16.mxu0 %v5210
    %6590 = vmatpush1.bf16.msra.mxu0 %v5209
    %6591 = vmatprep.subr.bf16.mxu0 %v5390
    %6592 = vmatpush2.bf16.msra.mxu0 %v5389
    %6593 = vmatprep.subr.bf16.mxu0 %v5378
    %6594 = vmatpush2.bf16.msra.mxu0 %v5377
    %6595 = vmatprep.subr.bf16.mxu0 %v5366
    %6596 = vmatpush2.bf16.msra.mxu0 %v5365
    %6597 = vmatprep.subr.bf16.mxu0 %v5354
    %6598 = vmatpush2.bf16.msra.mxu0 %v5353
    %6599 = vmatprep.subr.bf16.mxu0 %v5342
    %6600 = vmatpush2.bf16.msra.mxu0 %v5341
    %6601 = vmatprep.subr.bf16.mxu0 %v5330
    %6602 = vmatpush2.bf16.msra.mxu0 %v5329
    %6603 = vmatprep.subr.bf16.mxu0 %v5318
    %6604 = vmatpush2.bf16.msra.mxu0 %v5317
    %6605 = vmatprep.subr.bf16.mxu0 %v5306
    %6606 = vmatpush2.bf16.msra.mxu0 %v5305
    %6607 = vmatprep.mubr.bf16.mxu0 %v2131
    %6608 = vmatmul.mubr.bf16.gmra.mxu0 %v2130
    %v6609 = vpop.f32.mrf.mxu0
    %v6610 = vadd.f32 %v6569, %v6609
    %v6611 = vpop.f32.mrf.mxu0
    %v6612 = vadd.f32 %v6571, %v6611
    %v6613 = vpop.f32.mrf.mxu0
    %v6614 = vpop.f32.mrf.mxu0
    %6615 = vdwg.mxu0
    %6616 = vmatprep.subr.bf16.mxu0 %v5486
    %6617 = vmatpush1.bf16.msra.mxu0 %v5485
    %6618 = vmatprep.subr.bf16.mxu0 %v5474
    %6619 = vmatpush1.bf16.msra.mxu0 %v5473
    %6620 = vmatprep.subr.bf16.mxu0 %v5462
    %6621 = vmatpush1.bf16.msra.mxu0 %v5461
    %6622 = vmatprep.subr.bf16.mxu0 %v5450
    %6623 = vmatpush1.bf16.msra.mxu0 %v5449
    %6624 = vmatprep.subr.bf16.mxu0 %v5438
    %6625 = vmatpush1.bf16.msra.mxu0 %v5437
    %6626 = vmatprep.subr.bf16.mxu0 %v5426
    %6627 = vmatpush1.bf16.msra.mxu0 %v5425
    %6628 = vmatprep.subr.bf16.mxu0 %v5414
    %6629 = vmatpush1.bf16.msra.mxu0 %v5413
    %6630 = vmatprep.subr.bf16.mxu0 %v5402
    %6631 = vmatpush1.bf16.msra.mxu0 %v5401
    %6632 = vmatprep.subr.bf16.mxu0 0
    %6633 = vmatpush2.bf16.msra.mxu0 0
    %6634 = vmatprep.subr.bf16.mxu0 0
    %6635 = vmatpush2.bf16.msra.mxu0 0
    %6636 = vmatprep.subr.bf16.mxu0 0
    %6637 = vmatpush2.bf16.msra.mxu0 0
    %6638 = vmatprep.subr.bf16.mxu0 0
    %6639 = vmatpush2.bf16.msra.mxu0 0
    %6640 = vmatprep.subr.bf16.mxu0 0
    %6641 = vmatpush2.bf16.msra.mxu0 0
    %6642 = vmatprep.subr.bf16.mxu0 0
    %6643 = vmatpush2.bf16.msra.mxu0 0
    %6644 = vmatprep.subr.bf16.mxu0 0
    %6645 = vmatpush2.bf16.msra.mxu0 0
    %6646 = vmatprep.subr.bf16.mxu0 0
    %6647 = vmatpush2.bf16.msra.mxu0 0
    %6648 = vmatprep.mubr.bf16.mxu0 0
    %6649 = vmatmul.mubr.bf16.gmra.mxu0 %v2132
    %v6650 = vpop.f32.mrf.mxu0
    %v6651 = vadd.f32 %v6610, %v6650
    %v6652 = vpop.f32.mrf.mxu0
    %v6653 = vadd.f32 %v6612, %v6652
    %v6654 = vpop.f32.mrf.mxu0
    %v6655 = vpop.f32.mrf.mxu0
    %6656 = vdwg.mxu0
    %6657 = vmatprep.subr.bf16.mxu0 %v4912
    %6658 = vmatpush1.bf16.msra.mxu0 %v4911
    %6659 = vmatprep.subr.bf16.mxu0 %v4900
    %6660 = vmatpush1.bf16.msra.mxu0 %v4899
    %6661 = vmatprep.subr.bf16.mxu0 %v4888
    %6662 = vmatpush1.bf16.msra.mxu0 %v4887
    %6663 = vmatprep.subr.bf16.mxu0 %v4876
    %6664 = vmatpush1.bf16.msra.mxu0 %v4875
    %6665 = vmatprep.subr.bf16.mxu0 %v4864
    %6666 = vmatpush1.bf16.msra.mxu0 %v4863
    %6667 = vmatprep.subr.bf16.mxu0 %v4852
    %6668 = vmatpush1.bf16.msra.mxu0 %v4851
    %6669 = vmatprep.subr.bf16.mxu0 %v4840
    %6670 = vmatpush1.bf16.msra.mxu0 %v4839
    %6671 = vmatprep.subr.bf16.mxu0 %v4828
    %6672 = vmatpush1.bf16.msra.mxu0 %v4827
    %6673 = vmatprep.subr.bf16.mxu0 %v5008
    %6674 = vmatpush2.bf16.msra.mxu0 %v5007
    %6675 = vmatprep.subr.bf16.mxu0 %v4996
    %6676 = vmatpush2.bf16.msra.mxu0 %v4995
    %6677 = vmatprep.subr.bf16.mxu0 %v4984
    %6678 = vmatpush2.bf16.msra.mxu0 %v4983
    %6679 = vmatprep.subr.bf16.mxu0 %v4972
    %6680 = vmatpush2.bf16.msra.mxu0 %v4971
    %6681 = vmatprep.subr.bf16.mxu0 %v4960
    %6682 = vmatpush2.bf16.msra.mxu0 %v4959
    %6683 = vmatprep.subr.bf16.mxu0 %v4948
    %6684 = vmatpush2.bf16.msra.mxu0 %v4947
    %6685 = vmatprep.subr.bf16.mxu0 %v4936
    %6686 = vmatpush2.bf16.msra.mxu0 %v4935
    %6687 = vmatprep.subr.bf16.mxu0 %v4924
    %6688 = vmatpush2.bf16.msra.mxu0 %v4923
    %6689 = vmatprep.mubr.bf16.mxu0 %v2127
    %6690 = vmatmul.mubr.bf16.gmra.mxu0 %v2126
    %v6691 = vpop.f32.mrf.mxu0
    %v6692 = vadd.f32 0.0, %v6691
    %v6693 = vpop.f32.mrf.mxu0
    %v6694 = vadd.f32 0.0, %v6693
    %v6695 = vpop.f32.mrf.mxu0
    %v6696 = vpop.f32.mrf.mxu0
    %6697 = vdwg.mxu0
    %6698 = vmatprep.subr.bf16.mxu0 %v5104
    %6699 = vmatpush1.bf16.msra.mxu0 %v5103
    %6700 = vmatprep.subr.bf16.mxu0 %v5092
    %6701 = vmatpush1.bf16.msra.mxu0 %v5091
    %6702 = vmatprep.subr.bf16.mxu0 %v5080
    %6703 = vmatpush1.bf16.msra.mxu0 %v5079
    %6704 = vmatprep.subr.bf16.mxu0 %v5068
    %6705 = vmatpush1.bf16.msra.mxu0 %v5067
    %6706 = vmatprep.subr.bf16.mxu0 %v5056
    %6707 = vmatpush1.bf16.msra.mxu0 %v5055
    %6708 = vmatprep.subr.bf16.mxu0 %v5044
    %6709 = vmatpush1.bf16.msra.mxu0 %v5043
    %6710 = vmatprep.subr.bf16.mxu0 %v5032
    %6711 = vmatpush1.bf16.msra.mxu0 %v5031
    %6712 = vmatprep.subr.bf16.mxu0 %v5020
    %6713 = vmatpush1.bf16.msra.mxu0 %v5019
    %6714 = vmatprep.subr.bf16.mxu0 %v5200
    %6715 = vmatpush2.bf16.msra.mxu0 %v5199
    %6716 = vmatprep.subr.bf16.mxu0 %v5188
    %6717 = vmatpush2.bf16.msra.mxu0 %v5187
    %6718 = vmatprep.subr.bf16.mxu0 %v5176
    %6719 = vmatpush2.bf16.msra.mxu0 %v5175
    %6720 = vmatprep.subr.bf16.mxu0 %v5164
    %6721 = vmatpush2.bf16.msra.mxu0 %v5163
    %6722 = vmatprep.subr.bf16.mxu0 %v5152
    %6723 = vmatpush2.bf16.msra.mxu0 %v5151
    %6724 = vmatprep.subr.bf16.mxu0 %v5140
    %6725 = vmatpush2.bf16.msra.mxu0 %v5139
    %6726 = vmatprep.subr.bf16.mxu0 %v5128
    %6727 = vmatpush2.bf16.msra.mxu0 %v5127
    %6728 = vmatprep.subr.bf16.mxu0 %v5116
    %6729 = vmatpush2.bf16.msra.mxu0 %v5115
    %6730 = vmatprep.mubr.bf16.mxu0 %v2129
    %6731 = vmatmul.mubr.bf16.gmra.mxu0 %v2128
    %v6732 = vpop.f32.mrf.mxu0
    %v6733 = vadd.f32 %v6692, %v6732
    %v6734 = vpop.f32.mrf.mxu0
    %v6735 = vadd.f32 %v6694, %v6734
    %v6736 = vpop.f32.mrf.mxu0
    %v6737 = vpop.f32.mrf.mxu0
    %6738 = vdwg.mxu0
    %6739 = vmatprep.subr.bf16.mxu0 %v5296
    %6740 = vmatpush1.bf16.msra.mxu0 %v5295
    %6741 = vmatprep.subr.bf16.mxu0 %v5284
    %6742 = vmatpush1.bf16.msra.mxu0 %v5283
    %6743 = vmatprep.subr.bf16.mxu0 %v5272
    %6744 = vmatpush1.bf16.msra.mxu0 %v5271
    %6745 = vmatprep.subr.bf16.mxu0 %v5260
    %6746 = vmatpush1.bf16.msra.mxu0 %v5259
    %6747 = vmatprep.subr.bf16.mxu0 %v5248
    %6748 = vmatpush1.bf16.msra.mxu0 %v5247
    %6749 = vmatprep.subr.bf16.mxu0 %v5236
    %6750 = vmatpush1.bf16.msra.mxu0 %v5235
    %6751 = vmatprep.subr.bf16.mxu0 %v5224
    %6752 = vmatpush1.bf16.msra.mxu0 %v5223
    %6753 = vmatprep.subr.bf16.mxu0 %v5212
    %6754 = vmatpush1.bf16.msra.mxu0 %v5211
    %6755 = vmatprep.subr.bf16.mxu0 %v5392
    %6756 = vmatpush2.bf16.msra.mxu0 %v5391
    %6757 = vmatprep.subr.bf16.mxu0 %v5380
    %6758 = vmatpush2.bf16.msra.mxu0 %v5379
    %6759 = vmatprep.subr.bf16.mxu0 %v5368
    %6760 = vmatpush2.bf16.msra.mxu0 %v5367
    %6761 = vmatprep.subr.bf16.mxu0 %v5356
    %6762 = vmatpush2.bf16.msra.mxu0 %v5355
    %6763 = vmatprep.subr.bf16.mxu0 %v5344
    %6764 = vmatpush2.bf16.msra.mxu0 %v5343
    %6765 = vmatprep.subr.bf16.mxu0 %v5332
    %6766 = vmatpush2.bf16.msra.mxu0 %v5331
    %6767 = vmatprep.subr.bf16.mxu0 %v5320
    %6768 = vmatpush2.bf16.msra.mxu0 %v5319
    %6769 = vmatprep.subr.bf16.mxu0 %v5308
    %6770 = vmatpush2.bf16.msra.mxu0 %v5307
    %6771 = vmatprep.mubr.bf16.mxu0 %v2131
    %6772 = vmatmul.mubr.bf16.gmra.mxu0 %v2130
    %v6773 = vpop.f32.mrf.mxu0
    %v6774 = vadd.f32 %v6733, %v6773
    %v6775 = vpop.f32.mrf.mxu0
    %v6776 = vadd.f32 %v6735, %v6775
    %v6777 = vpop.f32.mrf.mxu0
    %v6778 = vpop.f32.mrf.mxu0
    %6779 = vdwg.mxu0
    %6780 = vmatprep.subr.bf16.mxu0 %v5488
    %6781 = vmatpush1.bf16.msra.mxu0 %v5487
    %6782 = vmatprep.subr.bf16.mxu0 %v5476
    %6783 = vmatpush1.bf16.msra.mxu0 %v5475
    %6784 = vmatprep.subr.bf16.mxu0 %v5464
    %6785 = vmatpush1.bf16.msra.mxu0 %v5463
    %6786 = vmatprep.subr.bf16.mxu0 %v5452
    %6787 = vmatpush1.bf16.msra.mxu0 %v5451
    %6788 = vmatprep.subr.bf16.mxu0 %v5440
    %6789 = vmatpush1.bf16.msra.mxu0 %v5439
    %6790 = vmatprep.subr.bf16.mxu0 %v5428
    %6791 = vmatpush1.bf16.msra.mxu0 %v5427
    %6792 = vmatprep.subr.bf16.mxu0 %v5416
    %6793 = vmatpush1.bf16.msra.mxu0 %v5415
    %6794 = vmatprep.subr.bf16.mxu0 %v5404
    %6795 = vmatpush1.bf16.msra.mxu0 %v5403
    %6796 = vmatprep.subr.bf16.mxu0 0
    %6797 = vmatpush2.bf16.msra.mxu0 0
    %6798 = vmatprep.subr.bf16.mxu0 0
    %6799 = vmatpush2.bf16.msra.mxu0 0
    %6800 = vmatprep.subr.bf16.mxu0 0
    %6801 = vmatpush2.bf16.msra.mxu0 0
    %6802 = vmatprep.subr.bf16.mxu0 0
    %6803 = vmatpush2.bf16.msra.mxu0 0
    %6804 = vmatprep.subr.bf16.mxu0 0
    %6805 = vmatpush2.bf16.msra.mxu0 0
    %6806 = vmatprep.subr.bf16.mxu0 0
    %6807 = vmatpush2.bf16.msra.mxu0 0
    %6808 = vmatprep.subr.bf16.mxu0 0
    %6809 = vmatpush2.bf16.msra.mxu0 0
    %6810 = vmatprep.subr.bf16.mxu0 0
    %6811 = vmatpush2.bf16.msra.mxu0 0
    %6812 = vmatprep.mubr.bf16.mxu0 0
    %6813 = vmatmul.mubr.bf16.gmra.mxu0 %v2132
    %v6814 = vpop.f32.mrf.mxu0
    %v6815 = vadd.f32 %v6774, %v6814
    %v6816 = vpop.f32.mrf.mxu0
    %v6817 = vadd.f32 %v6776, %v6816
    %v6818 = vpop.f32.mrf.mxu0
    %v6819 = vpop.f32.mrf.mxu0
    %6820 = vdwg.mxu0
    %6821 = vmatprep.subr.bf16.mxu0 %v4914
    %6822 = vmatpush1.bf16.msra.mxu0 %v4913
    %6823 = vmatprep.subr.bf16.mxu0 %v4902
    %6824 = vmatpush1.bf16.msra.mxu0 %v4901
    %6825 = vmatprep.subr.bf16.mxu0 %v4890
    %6826 = vmatpush1.bf16.msra.mxu0 %v4889
    %6827 = vmatprep.subr.bf16.mxu0 %v4878
    %6828 = vmatpush1.bf16.msra.mxu0 %v4877
    %6829 = vmatprep.subr.bf16.mxu0 %v4866
    %6830 = vmatpush1.bf16.msra.mxu0 %v4865
    %6831 = vmatprep.subr.bf16.mxu0 %v4854
    %6832 = vmatpush1.bf16.msra.mxu0 %v4853
    %6833 = vmatprep.subr.bf16.mxu0 %v4842
    %6834 = vmatpush1.bf16.msra.mxu0 %v4841
    %6835 = vmatprep.subr.bf16.mxu0 %v4830
    %6836 = vmatpush1.bf16.msra.mxu0 %v4829
    %6837 = vmatprep.subr.bf16.mxu0 %v5010
    %6838 = vmatpush2.bf16.msra.mxu0 %v5009
    %6839 = vmatprep.subr.bf16.mxu0 %v4998
    %6840 = vmatpush2.bf16.msra.mxu0 %v4997
    %6841 = vmatprep.subr.bf16.mxu0 %v4986
    %6842 = vmatpush2.bf16.msra.mxu0 %v4985
    %6843 = vmatprep.subr.bf16.mxu0 %v4974
    %6844 = vmatpush2.bf16.msra.mxu0 %v4973
    %6845 = vmatprep.subr.bf16.mxu0 %v4962
    %6846 = vmatpush2.bf16.msra.mxu0 %v4961
    %6847 = vmatprep.subr.bf16.mxu0 %v4950
    %6848 = vmatpush2.bf16.msra.mxu0 %v4949
    %6849 = vmatprep.subr.bf16.mxu0 %v4938
    %6850 = vmatpush2.bf16.msra.mxu0 %v4937
    %6851 = vmatprep.subr.bf16.mxu0 %v4926
    %6852 = vmatpush2.bf16.msra.mxu0 %v4925
    %6853 = vmatprep.mubr.bf16.mxu0 %v2127
    %6854 = vmatmul.mubr.bf16.gmra.mxu0 %v2126
    %v6855 = vpop.f32.mrf.mxu0
    %v6856 = vadd.f32 0.0, %v6855
    %v6857 = vpop.f32.mrf.mxu0
    %v6858 = vadd.f32 0.0, %v6857
    %v6859 = vpop.f32.mrf.mxu0
    %v6860 = vpop.f32.mrf.mxu0
    %6861 = vdwg.mxu0
    %6862 = vmatprep.subr.bf16.mxu0 %v5106
    %6863 = vmatpush1.bf16.msra.mxu0 %v5105
    %6864 = vmatprep.subr.bf16.mxu0 %v5094
    %6865 = vmatpush1.bf16.msra.mxu0 %v5093
    %6866 = vmatprep.subr.bf16.mxu0 %v5082
    %6867 = vmatpush1.bf16.msra.mxu0 %v5081
    %6868 = vmatprep.subr.bf16.mxu0 %v5070
    %6869 = vmatpush1.bf16.msra.mxu0 %v5069
    %6870 = vmatprep.subr.bf16.mxu0 %v5058
    %6871 = vmatpush1.bf16.msra.mxu0 %v5057
    %6872 = vmatprep.subr.bf16.mxu0 %v5046
    %6873 = vmatpush1.bf16.msra.mxu0 %v5045
    %6874 = vmatprep.subr.bf16.mxu0 %v5034
    %6875 = vmatpush1.bf16.msra.mxu0 %v5033
    %6876 = vmatprep.subr.bf16.mxu0 %v5022
    %6877 = vmatpush1.bf16.msra.mxu0 %v5021
    %6878 = vmatprep.subr.bf16.mxu0 %v5202
    %6879 = vmatpush2.bf16.msra.mxu0 %v5201
    %6880 = vmatprep.subr.bf16.mxu0 %v5190
    %6881 = vmatpush2.bf16.msra.mxu0 %v5189
    %6882 = vmatprep.subr.bf16.mxu0 %v5178
    %6883 = vmatpush2.bf16.msra.mxu0 %v5177
    %6884 = vmatprep.subr.bf16.mxu0 %v5166
    %6885 = vmatpush2.bf16.msra.mxu0 %v5165
    %6886 = vmatprep.subr.bf16.mxu0 %v5154
    %6887 = vmatpush2.bf16.msra.mxu0 %v5153
    %6888 = vmatprep.subr.bf16.mxu0 %v5142
    %6889 = vmatpush2.bf16.msra.mxu0 %v5141
    %6890 = vmatprep.subr.bf16.mxu0 %v5130
    %6891 = vmatpush2.bf16.msra.mxu0 %v5129
    %6892 = vmatprep.subr.bf16.mxu0 %v5118
    %6893 = vmatpush2.bf16.msra.mxu0 %v5117
    %6894 = vmatprep.mubr.bf16.mxu0 %v2129
    %6895 = vmatmul.mubr.bf16.gmra.mxu0 %v2128
    %v6896 = vpop.f32.mrf.mxu0
    %v6897 = vadd.f32 %v6856, %v6896
    %v6898 = vpop.f32.mrf.mxu0
    %v6899 = vadd.f32 %v6858, %v6898
    %v6900 = vpop.f32.mrf.mxu0
    %v6901 = vpop.f32.mrf.mxu0
    %6902 = vdwg.mxu0
    %6903 = vmatprep.subr.bf16.mxu0 %v5298
    %6904 = vmatpush1.bf16.msra.mxu0 %v5297
    %6905 = vmatprep.subr.bf16.mxu0 %v5286
    %6906 = vmatpush1.bf16.msra.mxu0 %v5285
    %6907 = vmatprep.subr.bf16.mxu0 %v5274
    %6908 = vmatpush1.bf16.msra.mxu0 %v5273
    %6909 = vmatprep.subr.bf16.mxu0 %v5262
    %6910 = vmatpush1.bf16.msra.mxu0 %v5261
    %6911 = vmatprep.subr.bf16.mxu0 %v5250
    %6912 = vmatpush1.bf16.msra.mxu0 %v5249
    %6913 = vmatprep.subr.bf16.mxu0 %v5238
    %6914 = vmatpush1.bf16.msra.mxu0 %v5237
    %6915 = vmatprep.subr.bf16.mxu0 %v5226
    %6916 = vmatpush1.bf16.msra.mxu0 %v5225
    %6917 = vmatprep.subr.bf16.mxu0 %v5214
    %6918 = vmatpush1.bf16.msra.mxu0 %v5213
    %6919 = vmatprep.subr.bf16.mxu0 %v5394
    %6920 = vmatpush2.bf16.msra.mxu0 %v5393
    %6921 = vmatprep.subr.bf16.mxu0 %v5382
    %6922 = vmatpush2.bf16.msra.mxu0 %v5381
    %6923 = vmatprep.subr.bf16.mxu0 %v5370
    %6924 = vmatpush2.bf16.msra.mxu0 %v5369
    %6925 = vmatprep.subr.bf16.mxu0 %v5358
    %6926 = vmatpush2.bf16.msra.mxu0 %v5357
    %6927 = vmatprep.subr.bf16.mxu0 %v5346
    %6928 = vmatpush2.bf16.msra.mxu0 %v5345
    %6929 = vmatprep.subr.bf16.mxu0 %v5334
    %6930 = vmatpush2.bf16.msra.mxu0 %v5333
    %6931 = vmatprep.subr.bf16.mxu0 %v5322
    %6932 = vmatpush2.bf16.msra.mxu0 %v5321
    %6933 = vmatprep.subr.bf16.mxu0 %v5310
    %6934 = vmatpush2.bf16.msra.mxu0 %v5309
    %6935 = vmatprep.mubr.bf16.mxu0 %v2131
    %6936 = vmatmul.mubr.bf16.gmra.mxu0 %v2130
    %v6937 = vpop.f32.mrf.mxu0
    %v6938 = vadd.f32 %v6897, %v6937
    %v6939 = vpop.f32.mrf.mxu0
    %v6940 = vadd.f32 %v6899, %v6939
    %v6941 = vpop.f32.mrf.mxu0
    %v6942 = vpop.f32.mrf.mxu0
    %6943 = vdwg.mxu0
    %6944 = vmatprep.subr.bf16.mxu0 %v5490
    %6945 = vmatpush1.bf16.msra.mxu0 %v5489
    %6946 = vmatprep.subr.bf16.mxu0 %v5478
    %6947 = vmatpush1.bf16.msra.mxu0 %v5477
    %6948 = vmatprep.subr.bf16.mxu0 %v5466
    %6949 = vmatpush1.bf16.msra.mxu0 %v5465
    %6950 = vmatprep.subr.bf16.mxu0 %v5454
    %6951 = vmatpush1.bf16.msra.mxu0 %v5453
    %6952 = vmatprep.subr.bf16.mxu0 %v5442
    %6953 = vmatpush1.bf16.msra.mxu0 %v5441
    %6954 = vmatprep.subr.bf16.mxu0 %v5430
    %6955 = vmatpush1.bf16.msra.mxu0 %v5429
    %6956 = vmatprep.subr.bf16.mxu0 %v5418
    %6957 = vmatpush1.bf16.msra.mxu0 %v5417
    %6958 = vmatprep.subr.bf16.mxu0 %v5406
    %6959 = vmatpush1.bf16.msra.mxu0 %v5405
    %6960 = vmatprep.subr.bf16.mxu0 0
    %6961 = vmatpush2.bf16.msra.mxu0 0
    %6962 = vmatprep.subr.bf16.mxu0 0
    %6963 = vmatpush2.bf16.msra.mxu0 0
    %6964 = vmatprep.subr.bf16.mxu0 0
    %6965 = vmatpush2.bf16.msra.mxu0 0
    %6966 = vmatprep.subr.bf16.mxu0 0
    %6967 = vmatpush2.bf16.msra.mxu0 0
    %6968 = vmatprep.subr.bf16.mxu0 0
    %6969 = vmatpush2.bf16.msra.mxu0 0
    %6970 = vmatprep.subr.bf16.mxu0 0
    %6971 = vmatpush2.bf16.msra.mxu0 0
    %6972 = vmatprep.subr.bf16.mxu0 0
    %6973 = vmatpush2.bf16.msra.mxu0 0
    %6974 = vmatprep.subr.bf16.mxu0 0
    %6975 = vmatpush2.bf16.msra.mxu0 0
    %6976 = vmatprep.mubr.bf16.mxu0 0
    %6977 = vmatmul.mubr.bf16.gmra.mxu0 %v2132
    %v6978 = vpop.f32.mrf.mxu0
    %v6979 = vadd.f32 %v6938, %v6978
    %v6980 = vpop.f32.mrf.mxu0
    %v6981 = vadd.f32 %v6940, %v6980
    %v6982 = vpop.f32.mrf.mxu0
    %v6983 = vpop.f32.mrf.mxu0
    %6984 = vdwg.mxu0
    %6985 = vmatprep.subr.bf16.mxu0 %v4916
    %6986 = vmatpush1.bf16.msra.mxu0 %v4915
    %6987 = vmatprep.subr.bf16.mxu0 %v4904
    %6988 = vmatpush1.bf16.msra.mxu0 %v4903
    %6989 = vmatprep.subr.bf16.mxu0 %v4892
    %6990 = vmatpush1.bf16.msra.mxu0 %v4891
    %6991 = vmatprep.subr.bf16.mxu0 %v4880
    %6992 = vmatpush1.bf16.msra.mxu0 %v4879
    %6993 = vmatprep.subr.bf16.mxu0 %v4868
    %6994 = vmatpush1.bf16.msra.mxu0 %v4867
    %6995 = vmatprep.subr.bf16.mxu0 %v4856
    %6996 = vmatpush1.bf16.msra.mxu0 %v4855
    %6997 = vmatprep.subr.bf16.mxu0 %v4844
    %6998 = vmatpush1.bf16.msra.mxu0 %v4843
    %6999 = vmatprep.subr.bf16.mxu0 %v4832
    %7000 = vmatpush1.bf16.msra.mxu0 %v4831
    %7001 = vmatprep.subr.bf16.mxu0 %v5012
    %7002 = vmatpush2.bf16.msra.mxu0 %v5011
    %7003 = vmatprep.subr.bf16.mxu0 %v5000
    %7004 = vmatpush2.bf16.msra.mxu0 %v4999
    %7005 = vmatprep.subr.bf16.mxu0 %v4988
    %7006 = vmatpush2.bf16.msra.mxu0 %v4987
    %7007 = vmatprep.subr.bf16.mxu0 %v4976
    %7008 = vmatpush2.bf16.msra.mxu0 %v4975
    %7009 = vmatprep.subr.bf16.mxu0 %v4964
    %7010 = vmatpush2.bf16.msra.mxu0 %v4963
    %7011 = vmatprep.subr.bf16.mxu0 %v4952
    %7012 = vmatpush2.bf16.msra.mxu0 %v4951
    %7013 = vmatprep.subr.bf16.mxu0 %v4940
    %7014 = vmatpush2.bf16.msra.mxu0 %v4939
    %7015 = vmatprep.subr.bf16.mxu0 %v4928
    %7016 = vmatpush2.bf16.msra.mxu0 %v4927
    %7017 = vmatprep.mubr.bf16.mxu0 %v2127
    %7018 = vmatmul.mubr.bf16.gmra.mxu0 %v2126
    %v7019 = vpop.f32.mrf.mxu0
    %v7020 = vadd.f32 0.0, %v7019
    %v7021 = vpop.f32.mrf.mxu0
    %v7022 = vadd.f32 0.0, %v7021
    %v7023 = vpop.f32.mrf.mxu0
    %v7024 = vpop.f32.mrf.mxu0
    %7025 = vdwg.mxu0
    %7026 = vmatprep.subr.bf16.mxu0 %v5108
    %7027 = vmatpush1.bf16.msra.mxu0 %v5107
    %7028 = vmatprep.subr.bf16.mxu0 %v5096
    %7029 = vmatpush1.bf16.msra.mxu0 %v5095
    %7030 = vmatprep.subr.bf16.mxu0 %v5084
    %7031 = vmatpush1.bf16.msra.mxu0 %v5083
    %7032 = vmatprep.subr.bf16.mxu0 %v5072
    %7033 = vmatpush1.bf16.msra.mxu0 %v5071
    %7034 = vmatprep.subr.bf16.mxu0 %v5060
    %7035 = vmatpush1.bf16.msra.mxu0 %v5059
    %7036 = vmatprep.subr.bf16.mxu0 %v5048
    %7037 = vmatpush1.bf16.msra.mxu0 %v5047
    %7038 = vmatprep.subr.bf16.mxu0 %v5036
    %7039 = vmatpush1.bf16.msra.mxu0 %v5035
    %7040 = vmatprep.subr.bf16.mxu0 %v5024
    %7041 = vmatpush1.bf16.msra.mxu0 %v5023
    %7042 = vmatprep.subr.bf16.mxu0 %v5204
    %7043 = vmatpush2.bf16.msra.mxu0 %v5203
    %7044 = vmatprep.subr.bf16.mxu0 %v5192
    %7045 = vmatpush2.bf16.msra.mxu0 %v5191
    %7046 = vmatprep.subr.bf16.mxu0 %v5180
    %7047 = vmatpush2.bf16.msra.mxu0 %v5179
    %7048 = vmatprep.subr.bf16.mxu0 %v5168
    %7049 = vmatpush2.bf16.msra.mxu0 %v5167
    %7050 = vmatprep.subr.bf16.mxu0 %v5156
    %7051 = vmatpush2.bf16.msra.mxu0 %v5155
    %7052 = vmatprep.subr.bf16.mxu0 %v5144
    %7053 = vmatpush2.bf16.msra.mxu0 %v5143
    %7054 = vmatprep.subr.bf16.mxu0 %v5132
    %7055 = vmatpush2.bf16.msra.mxu0 %v5131
    %7056 = vmatprep.subr.bf16.mxu0 %v5120
    %7057 = vmatpush2.bf16.msra.mxu0 %v5119
    %7058 = vmatprep.mubr.bf16.mxu0 %v2129
    %7059 = vmatmul.mubr.bf16.gmra.mxu0 %v2128
    %v7060 = vpop.f32.mrf.mxu0
    %v7061 = vadd.f32 %v7020, %v7060
    %v7062 = vpop.f32.mrf.mxu0
    %v7063 = vadd.f32 %v7022, %v7062
    %v7064 = vpop.f32.mrf.mxu0
    %v7065 = vpop.f32.mrf.mxu0
    %7066 = vdwg.mxu0
    %7067 = vmatprep.subr.bf16.mxu0 %v5300
    %7068 = vmatpush1.bf16.msra.mxu0 %v5299
    %7069 = vmatprep.subr.bf16.mxu0 %v5288
    %7070 = vmatpush1.bf16.msra.mxu0 %v5287
    %7071 = vmatprep.subr.bf16.mxu0 %v5276
    %7072 = vmatpush1.bf16.msra.mxu0 %v5275
    %7073 = vmatprep.subr.bf16.mxu0 %v5264
    %7074 = vmatpush1.bf16.msra.mxu0 %v5263
    %7075 = vmatprep.subr.bf16.mxu0 %v5252
    %7076 = vmatpush1.bf16.msra.mxu0 %v5251
    %7077 = vmatprep.subr.bf16.mxu0 %v5240
    %7078 = vmatpush1.bf16.msra.mxu0 %v5239
    %7079 = vmatprep.subr.bf16.mxu0 %v5228
    %7080 = vmatpush1.bf16.msra.mxu0 %v5227
    %7081 = vmatprep.subr.bf16.mxu0 %v5216
    %7082 = vmatpush1.bf16.msra.mxu0 %v5215
    %7083 = vmatprep.subr.bf16.mxu0 %v5396
    %7084 = vmatpush2.bf16.msra.mxu0 %v5395
    %7085 = vmatprep.subr.bf16.mxu0 %v5384
    %7086 = vmatpush2.bf16.msra.mxu0 %v5383
    %7087 = vmatprep.subr.bf16.mxu0 %v5372
    %7088 = vmatpush2.bf16.msra.mxu0 %v5371
    %7089 = vmatprep.subr.bf16.mxu0 %v5360
    %7090 = vmatpush2.bf16.msra.mxu0 %v5359
    %7091 = vmatprep.subr.bf16.mxu0 %v5348
    %7092 = vmatpush2.bf16.msra.mxu0 %v5347
    %7093 = vmatprep.subr.bf16.mxu0 %v5336
    %7094 = vmatpush2.bf16.msra.mxu0 %v5335
    %7095 = vmatprep.subr.bf16.mxu0 %v5324
    %7096 = vmatpush2.bf16.msra.mxu0 %v5323
    %7097 = vmatprep.subr.bf16.mxu0 %v5312
    %7098 = vmatpush2.bf16.msra.mxu0 %v5311
    %7099 = vmatprep.mubr.bf16.mxu0 %v2131
    %7100 = vmatmul.mubr.bf16.gmra.mxu0 %v2130
    %v7101 = vpop.f32.mrf.mxu0
    %v7102 = vadd.f32 %v7061, %v7101
    %v7103 = vpop.f32.mrf.mxu0
    %v7104 = vadd.f32 %v7063, %v7103
    %v7105 = vpop.f32.mrf.mxu0
    %v7106 = vpop.f32.mrf.mxu0
    %7107 = vdwg.mxu0
    %7108 = vmatprep.subr.bf16.mxu0 %v5492
    %7109 = vmatpush1.bf16.msra.mxu0 %v5491
    %7110 = vmatprep.subr.bf16.mxu0 %v5480
    %7111 = vmatpush1.bf16.msra.mxu0 %v5479
    %7112 = vmatprep.subr.bf16.mxu0 %v5468
    %7113 = vmatpush1.bf16.msra.mxu0 %v5467
    %7114 = vmatprep.subr.bf16.mxu0 %v5456
    %7115 = vmatpush1.bf16.msra.mxu0 %v5455
    %7116 = vmatprep.subr.bf16.mxu0 %v5444
    %7117 = vmatpush1.bf16.msra.mxu0 %v5443
    %7118 = vmatprep.subr.bf16.mxu0 %v5432
    %7119 = vmatpush1.bf16.msra.mxu0 %v5431
    %7120 = vmatprep.subr.bf16.mxu0 %v5420
    %7121 = vmatpush1.bf16.msra.mxu0 %v5419
    %7122 = vmatprep.subr.bf16.mxu0 %v5408
    %7123 = vmatpush1.bf16.msra.mxu0 %v5407
    %7124 = vmatprep.subr.bf16.mxu0 0
    %7125 = vmatpush2.bf16.msra.mxu0 0
    %7126 = vmatprep.subr.bf16.mxu0 0
    %7127 = vmatpush2.bf16.msra.mxu0 0
    %7128 = vmatprep.subr.bf16.mxu0 0
    %7129 = vmatpush2.bf16.msra.mxu0 0
    %7130 = vmatprep.subr.bf16.mxu0 0
    %7131 = vmatpush2.bf16.msra.mxu0 0
    %7132 = vmatprep.subr.bf16.mxu0 0
    %7133 = vmatpush2.bf16.msra.mxu0 0
    %7134 = vmatprep.subr.bf16.mxu0 0
    %7135 = vmatpush2.bf16.msra.mxu0 0
    %7136 = vmatprep.subr.bf16.mxu0 0
    %7137 = vmatpush2.bf16.msra.mxu0 0
    %7138 = vmatprep.subr.bf16.mxu0 0
    %7139 = vmatpush2.bf16.msra.mxu0 0
    %7140 = vmatprep.mubr.bf16.mxu0 0
    %7141 = vmatmul.mubr.bf16.gmra.mxu0 %v2132
    %v7142 = vpop.f32.mrf.mxu0
    %v7143 = vadd.f32 %v7102, %v7142
    %v7144 = vpop.f32.mrf.mxu0
    %v7145 = vadd.f32 %v7104, %v7144
    %v7146 = vpop.f32.mrf.mxu0
    %v7147 = vpop.f32.mrf.mxu0
    %7148 = vdwg.mxu0
    %v7149 = vmax.f32 %v6323, %v6489
    %v7150 = vmax.f32 %v6325, %v6651
    %v7151 = vmax.f32 %v6487, %v6653
    %v7152 = vmax.f32 %v6815, %v6981
    %v7153 = vmax.f32 %v6817, %v7143
    %v7154 = vmax.f32 %v6979, %v7145
    %v7155 = vmax.f32 %v7149, %v7152
    %v7156 = vmax.f32 %v7150, %v7153
    %v7157 = vmax.f32 %v7151, %v7154
    %v7158 = vld [vmem:[#allocation7] sm:$0x7]
    %v7160 = vlaneseq
    %v7161 = vshrl.u32 %v7160, 7
    %v7162 = vsub.s32 0, %v7161
    %v7163 = vrot.slane %v7158, %v7162
    %v7164 = vlaneseq
    %v7165 = vshrl.u32 %v7164, 7
    %v7166 = vsub.s32 1, %v7165
    %v7167 = vrot.slane %v7158, %v7166
    %v7168 = vlaneseq
    %v7169 = vshrl.u32 %v7168, 7
    %v7170 = vsub.s32 2, %v7169
    %v7171 = vrot.slane %v7158, %v7170
    %v7175 = vadd.f32 %v7155, %v7163
    %v7176 = vadd.f32 %v7156, %v7167
    %v7177 = vadd.f32 %v7157, %v7171
    %v7178 = vmax.f32 %v7175, 0.0
    %v7179 = vmax.f32 %v7176, 0.0
    %v7180 = vmax.f32 %v7177, 0.0
    %v7181 = vpack.c.bf16 %v7178, %v7178
    %v7182 = vpack.c.bf16 %v7179, %v7179
    %v7183 = vpack.c.bf16 %v7180, %v7180
    %v7184 = vld [vmem:[#allocation9] sm:$0xf]
    %v7185 = vld [vmem:[#allocation9 + $0x4] sm:$0xf]
    %v7186 = vld [vmem:[#allocation9 + $0x8] sm:$0xf]
    %v7187 = vld [vmem:[#allocation9 + $0xc] sm:$0xf]
    %v7188 = vld [vmem:[#allocation9 + $0x10] sm:$0xf]
    %v7189 = vld [vmem:[#allocation9 + $0x14] sm:$0xf]
    %v7190 = vld [vmem:[#allocation9 + $0x18] sm:$0xf]
    %v7191 = vld [vmem:[#allocation9 + $0x1c] sm:$0xf]
    %v7192 = vld [vmem:[#allocation9 + $0x20] sm:$0xf]
    %v7193 = vld [vmem:[#allocation9 + $0x24] sm:$0xf]
    %v7194 = vld [vmem:[#allocation9 + $0x28] sm:$0xf]
    %v7195 = vld [vmem:[#allocation9 + $0x2c] sm:$0xf]
    %v7196 = vld [vmem:[#allocation9 + $0x30] sm:$0xf]
    %v7197 = vld [vmem:[#allocation9 + $0x34] sm:$0xf]
    %v7198 = vld [vmem:[#allocation9 + $0x38] sm:$0xf]
    %v7199 = vld [vmem:[#allocation9 + $0x3c] sm:$0xf]
    %v7200 = vld [vmem:[#allocation9 + $0x40] sm:$0xf]
    %v7201 = vld [vmem:[#allocation9 + $0x44] sm:$0xf]
    %v7202 = vld [vmem:[#allocation9 + $0x48] sm:$0xf]
    %v7203 = vld [vmem:[#allocation9 + $0x4c] sm:$0xf]
    %v7204 = vld [vmem:[#allocation9 + $0x50] sm:$0xf]
    %v7205 = vld [vmem:[#allocation9 + $0x54] sm:$0xf]
    %v7206 = vld [vmem:[#allocation9 + $0x58] sm:$0xf]
    %v7207 = vld [vmem:[#allocation9 + $0x5c] sm:$0xf]
    %v7208 = vld [vmem:[#allocation9 + $0x60] sm:$0xf]
    %v7209 = vld [vmem:[#allocation9 + $0x64] sm:$0xf]
    %v7210 = vld [vmem:[#allocation9 + $0x68] sm:$0xf]
    %v7211 = vld [vmem:[#allocation9 + $0x6c] sm:$0xf]
    %v7212 = vld [vmem:[#allocation9 + $0x70] sm:$0xf]
    %v7213 = vld [vmem:[#allocation9 + $0x74] sm:$0xf]
    %v7214 = vld [vmem:[#allocation9 + $0x78] sm:$0xf]
    %v7215 = vld [vmem:[#allocation9 + $0x7c] sm:$0xf]
    %v7216 = vld [vmem:[#allocation9 + $0x80] sm:$0xf]
    %v7217 = vld [vmem:[#allocation9 + $0x84] sm:$0xf]
    %v7218 = vld [vmem:[#allocation9 + $0x88] sm:$0xf]
    %v7219 = vld [vmem:[#allocation9 + $0x8c] sm:$0xf]
    %v7220 = vld [vmem:[#allocation9 + $0x90] sm:$0xf]
    %v7221 = vld [vmem:[#allocation9 + $0x94] sm:$0xf]
    %v7222 = vld [vmem:[#allocation9 + $0x98] sm:$0xf]
    %v7223 = vld [vmem:[#allocation9 + $0x9c] sm:$0xf]
    %v7224 = vld [vmem:[#allocation9 + $0xa0] sm:$0xf]
    %v7225 = vld [vmem:[#allocation9 + $0xa4] sm:$0xf]
    %v7226 = vld [vmem:[#allocation9 + $0xa8] sm:$0xf]
    %v7227 = vld [vmem:[#allocation9 + $0xac] sm:$0xf]
    %v7228 = vld [vmem:[#allocation9 + $0xb0] sm:$0xf]
    %v7229 = vld [vmem:[#allocation9 + $0xb4] sm:$0xf]
    %v7230 = vld [vmem:[#allocation9 + $0xb8] sm:$0xf]
    %v7231 = vld [vmem:[#allocation9 + $0xbc] sm:$0xf]
    %v7232 = vld [vmem:[#allocation10] sm:$0x1]
    %v7234 = vlaneseq
    %v7235 = vshrl.u32 %v7234, 7
    %v7236 = vsub.s32 0, %v7235
    %v7237 = vrot.slane %v7232, %v7236
    %v7287 = vunpack.c.l.b16 %v7184
    %v7288 = vunpack.c.l.b16 %v7185
    %v7289 = vunpack.c.l.b16 %v7186
    %v7290 = vunpack.c.l.b16 %v7187
    %v7291 = vunpack.c.l.b16 %v7188
    %v7292 = vunpack.c.l.b16 %v7189
    %v7293 = vunpack.c.l.b16 %v7190
    %v7294 = vunpack.c.l.b16 %v7191
    %v7295 = vunpack.c.l.b16 %v7192
    %v7296 = vunpack.c.l.b16 %v7193
    %v7297 = vunpack.c.l.b16 %v7194
    %v7298 = vunpack.c.l.b16 %v7195
    %v7299 = vunpack.c.l.b16 %v7196
    %v7300 = vunpack.c.l.b16 %v7197
    %v7301 = vunpack.c.l.b16 %v7198
    %v7302 = vunpack.c.l.b16 %v7199
    %v7303 = vunpack.c.l.b16 %v7200
    %v7304 = vunpack.c.l.b16 %v7201
    %v7305 = vunpack.c.l.b16 %v7202
    %v7306 = vunpack.c.l.b16 %v7203
    %v7307 = vunpack.c.l.b16 %v7204
    %v7308 = vunpack.c.l.b16 %v7205
    %v7309 = vunpack.c.l.b16 %v7206
    %v7310 = vunpack.c.l.b16 %v7207
    %v7311 = vunpack.c.l.b16 %v7208
    %v7312 = vunpack.c.l.b16 %v7209
    %v7313 = vunpack.c.l.b16 %v7210
    %v7314 = vunpack.c.l.b16 %v7211
    %v7315 = vunpack.c.l.b16 %v7212
    %v7316 = vunpack.c.l.b16 %v7213
    %v7317 = vunpack.c.l.b16 %v7214
    %v7318 = vunpack.c.l.b16 %v7215
    %v7319 = vunpack.c.l.b16 %v7216
    %v7320 = vunpack.c.l.b16 %v7217
    %v7321 = vunpack.c.l.b16 %v7218
    %v7322 = vunpack.c.l.b16 %v7219
    %v7323 = vunpack.c.l.b16 %v7220
    %v7324 = vunpack.c.l.b16 %v7221
    %v7325 = vunpack.c.l.b16 %v7222
    %v7326 = vunpack.c.l.b16 %v7223
    %v7327 = vunpack.c.l.b16 %v7224
    %v7328 = vunpack.c.l.b16 %v7225
    %v7329 = vunpack.c.l.b16 %v7226
    %v7330 = vunpack.c.l.b16 %v7227
    %v7331 = vunpack.c.l.b16 %v7228
    %v7332 = vunpack.c.l.b16 %v7229
    %v7333 = vunpack.c.l.b16 %v7230
    %v7334 = vunpack.c.l.b16 %v7231
    %v7335 = vpack.c.b16 %v7288, %v7287
    %v7336 = vpack.c.b16 %v7290, %v7289
    %v7337 = vpack.c.b16 %v7292, %v7291
    %v7338 = vpack.c.b16 %v7294, %v7293
    %v7339 = vpack.c.b16 %v7296, %v7295
    %v7340 = vpack.c.b16 %v7298, %v7297
    %v7341 = vpack.c.b16 %v7300, %v7299
    %v7342 = vpack.c.b16 %v7302, %v7301
    %v7343 = vpack.c.b16 %v7304, %v7303
    %v7344 = vpack.c.b16 %v7306, %v7305
    %v7345 = vpack.c.b16 %v7308, %v7307
    %v7346 = vpack.c.b16 %v7310, %v7309
    %v7347 = vpack.c.b16 %v7312, %v7311
    %v7348 = vpack.c.b16 %v7314, %v7313
    %v7349 = vpack.c.b16 %v7316, %v7315
    %v7350 = vpack.c.b16 %v7318, %v7317
    %v7351 = vpack.c.b16 %v7320, %v7319
    %v7352 = vpack.c.b16 %v7322, %v7321
    %v7353 = vpack.c.b16 %v7324, %v7323
    %v7354 = vpack.c.b16 %v7326, %v7325
    %v7355 = vpack.c.b16 %v7328, %v7327
    %v7356 = vpack.c.b16 %v7330, %v7329
    %v7357 = vpack.c.b16 %v7332, %v7331
    %v7358 = vpack.c.b16 %v7334, %v7333
    %7383 = vmatprep.subr.bf16.mxu0 0
    %7384 = vmatpush1.bf16.msra.mxu0 %v7342
    %7385 = vmatprep.subr.bf16.mxu0 0
    %7386 = vmatpush1.bf16.msra.mxu0 %v7341
    %7387 = vmatprep.subr.bf16.mxu0 0
    %7388 = vmatpush1.bf16.msra.mxu0 %v7340
    %7389 = vmatprep.subr.bf16.mxu0 0
    %7390 = vmatpush1.bf16.msra.mxu0 %v7339
    %7391 = vmatprep.subr.bf16.mxu0 0
    %7392 = vmatpush1.bf16.msra.mxu0 %v7338
    %7393 = vmatprep.subr.bf16.mxu0 0
    %7394 = vmatpush1.bf16.msra.mxu0 %v7337
    %7395 = vmatprep.subr.bf16.mxu0 0
    %7396 = vmatpush1.bf16.msra.mxu0 %v7336
    %7397 = vmatprep.subr.bf16.mxu0 0
    %7398 = vmatpush1.bf16.msra.mxu0 %v7335
    %7399 = vmatprep.subr.bf16.mxu0 0
    %7400 = vmatpush2.bf16.msra.mxu0 %v7350
    %7401 = vmatprep.subr.bf16.mxu0 0
    %7402 = vmatpush2.bf16.msra.mxu0 %v7349
    %7403 = vmatprep.subr.bf16.mxu0 0
    %7404 = vmatpush2.bf16.msra.mxu0 %v7348
    %7405 = vmatprep.subr.bf16.mxu0 0
    %7406 = vmatpush2.bf16.msra.mxu0 %v7347
    %7407 = vmatprep.subr.bf16.mxu0 0
    %7408 = vmatpush2.bf16.msra.mxu0 %v7346
    %7409 = vmatprep.subr.bf16.mxu0 0
    %7410 = vmatpush2.bf16.msra.mxu0 %v7345
    %7411 = vmatprep.subr.bf16.mxu0 0
    %7412 = vmatpush2.bf16.msra.mxu0 %v7344
    %7413 = vmatprep.subr.bf16.mxu0 0
    %7414 = vmatpush2.bf16.msra.mxu0 %v7343
    %7415 = vmatprep.mubr.bf16.mxu0 %v7182
    %7416 = vmatmul.mubr.bf16.gmra.mxu0 %v7181
    %v7417 = vpop.f32.mrf.mxu0
    %v7418 = vadd.f32 %v7237, %v7417
    %v7419 = vpop.f32.mrf.mxu0
    %v7420 = vpop.f32.mrf.mxu0
    %v7421 = vpop.f32.mrf.mxu0
    %7422 = vdwg.mxu0
    %7423 = vmatprep.subr.bf16.mxu0 0
    %7424 = vmatpush1.bf16.msra.mxu0 %v7358
    %7425 = vmatprep.subr.bf16.mxu0 0
    %7426 = vmatpush1.bf16.msra.mxu0 %v7357
    %7427 = vmatprep.subr.bf16.mxu0 0
    %7428 = vmatpush1.bf16.msra.mxu0 %v7356
    %7429 = vmatprep.subr.bf16.mxu0 0
    %7430 = vmatpush1.bf16.msra.mxu0 %v7355
    %7431 = vmatprep.subr.bf16.mxu0 0
    %7432 = vmatpush1.bf16.msra.mxu0 %v7354
    %7433 = vmatprep.subr.bf16.mxu0 0
    %7434 = vmatpush1.bf16.msra.mxu0 %v7353
    %7435 = vmatprep.subr.bf16.mxu0 0
    %7436 = vmatpush1.bf16.msra.mxu0 %v7352
    %7437 = vmatprep.subr.bf16.mxu0 0
    %7438 = vmatpush1.bf16.msra.mxu0 %v7351
    %7439 = vmatprep.subr.bf16.mxu0 0
    %7440 = vmatpush2.bf16.msra.mxu0 0
    %7441 = vmatprep.subr.bf16.mxu0 0
    %7442 = vmatpush2.bf16.msra.mxu0 0
    %7443 = vmatprep.subr.bf16.mxu0 0
    %7444 = vmatpush2.bf16.msra.mxu0 0
    %7445 = vmatprep.subr.bf16.mxu0 0
    %7446 = vmatpush2.bf16.msra.mxu0 0
    %7447 = vmatprep.subr.bf16.mxu0 0
    %7448 = vmatpush2.bf16.msra.mxu0 0
    %7449 = vmatprep.subr.bf16.mxu0 0
    %7450 = vmatpush2.bf16.msra.mxu0 0
    %7451 = vmatprep.subr.bf16.mxu0 0
    %7452 = vmatpush2.bf16.msra.mxu0 0
    %7453 = vmatprep.subr.bf16.mxu0 0
    %7454 = vmatpush2.bf16.msra.mxu0 0
    %7455 = vmatprep.mubr.bf16.mxu0 0
    %7456 = vmatmul.mubr.bf16.gmra.mxu0 %v7183
    %v7457 = vpop.f32.mrf.mxu0
    %v7458 = vadd.f32 %v7418, %v7457
    %v7459 = vpop.f32.mrf.mxu0
    %v7460 = vpop.f32.mrf.mxu0
    %v7461 = vpop.f32.mrf.mxu0
    %7462 = vdwg.mxu0
    %v7463 = vmax.f32 %v7458, 0.0
    %v7464 = vpack.c.bf16 %v7463, %v7463
    %v7465 = vld [vmem:[#allocation12] sm:$0xf]
    %v7466 = vld [vmem:[#allocation12 + $0x4] sm:$0xf]
    %v7467 = vld [vmem:[#allocation12 + $0x8] sm:$0xf]
    %v7468 = vld [vmem:[#allocation12 + $0xc] sm:$0xf]
    %v7469 = vld [vmem:[#allocation12 + $0x10] sm:$0xf]
    %v7470 = vld [vmem:[#allocation12 + $0x14] sm:$0xf]
    %v7471 = vld [vmem:[#allocation12 + $0x18] sm:$0xf]
    %v7472 = vld [vmem:[#allocation12 + $0x1c] sm:$0xf]
    %v7473 = vld [vmem:[#allocation12 + $0x20] sm:$0xf]
    %v7474 = vld [vmem:[#allocation12 + $0x24] sm:$0xf]
    %v7475 = vld [vmem:[#allocation12 + $0x28] sm:$0xf]
    %v7476 = vld [vmem:[#allocation12 + $0x2c] sm:$0xf]
    %v7477 = vld [vmem:[#allocation12 + $0x30] sm:$0xf]
    %v7478 = vld [vmem:[#allocation12 + $0x34] sm:$0xf]
    %v7479 = vld [vmem:[#allocation12 + $0x38] sm:$0xf]
    %v7480 = vld [vmem:[#allocation12 + $0x3c] sm:$0xf]
    %v7481 = vld [vmem:[#allocation13] sm:$0x1]
    %v7483 = vlaneseq
    %v7484 = vshrl.u32 %v7483, 7
    %v7485 = vsub.s32 0, %v7484
    %v7486 = vrot.slane %v7481, %v7485
    %v7504 = vunpack.c.l.b16 %v7465
    %v7505 = vunpack.c.l.b16 %v7466
    %v7506 = vunpack.c.l.b16 %v7467
    %v7507 = vunpack.c.l.b16 %v7468
    %v7508 = vunpack.c.l.b16 %v7469
    %v7509 = vunpack.c.l.b16 %v7470
    %v7510 = vunpack.c.l.b16 %v7471
    %v7511 = vunpack.c.l.b16 %v7472
    %v7512 = vunpack.c.l.b16 %v7473
    %v7513 = vunpack.c.l.b16 %v7474
    %v7514 = vunpack.c.l.b16 %v7475
    %v7515 = vunpack.c.l.b16 %v7476
    %v7516 = vunpack.c.l.b16 %v7477
    %v7517 = vunpack.c.l.b16 %v7478
    %v7518 = vunpack.c.l.b16 %v7479
    %v7519 = vunpack.c.l.b16 %v7480
    %v7520 = vpack.c.b16 %v7505, %v7504
    %v7521 = vpack.c.b16 %v7507, %v7506
    %v7522 = vpack.c.b16 %v7509, %v7508
    %v7523 = vpack.c.b16 %v7511, %v7510
    %v7524 = vpack.c.b16 %v7513, %v7512
    %v7525 = vpack.c.b16 %v7515, %v7514
    %v7526 = vpack.c.b16 %v7517, %v7516
    %v7527 = vpack.c.b16 %v7519, %v7518
    %7536 = vmatprep.subr.bf16.mxu0 0
    %7537 = vmatpush1.bf16.msra.mxu0 %v7527
    %7538 = vmatprep.subr.bf16.mxu0 0
    %7539 = vmatpush1.bf16.msra.mxu0 %v7526
    %7540 = vmatprep.subr.bf16.mxu0 0
    %7541 = vmatpush1.bf16.msra.mxu0 %v7525
    %7542 = vmatprep.subr.bf16.mxu0 0
    %7543 = vmatpush1.bf16.msra.mxu0 %v7524
    %7544 = vmatprep.subr.bf16.mxu0 0
    %7545 = vmatpush1.bf16.msra.mxu0 %v7523
    %7546 = vmatprep.subr.bf16.mxu0 0
    %7547 = vmatpush1.bf16.msra.mxu0 %v7522
    %7548 = vmatprep.subr.bf16.mxu0 0
    %7549 = vmatpush1.bf16.msra.mxu0 %v7521
    %7550 = vmatprep.subr.bf16.mxu0 0
    %7551 = vmatpush1.bf16.msra.mxu0 %v7520
    %7552 = vmatprep.subr.bf16.mxu0 0
    %7553 = vmatpush2.bf16.msra.mxu0 0
    %7554 = vmatprep.subr.bf16.mxu0 0
    %7555 = vmatpush2.bf16.msra.mxu0 0
    %7556 = vmatprep.subr.bf16.mxu0 0
    %7557 = vmatpush2.bf16.msra.mxu0 0
    %7558 = vmatprep.subr.bf16.mxu0 0
    %7559 = vmatpush2.bf16.msra.mxu0 0
    %7560 = vmatprep.subr.bf16.mxu0 0
    %7561 = vmatpush2.bf16.msra.mxu0 0
    %7562 = vmatprep.subr.bf16.mxu0 0
    %7563 = vmatpush2.bf16.msra.mxu0 0
    %7564 = vmatprep.subr.bf16.mxu0 0
    %7565 = vmatpush2.bf16.msra.mxu0 0
    %7566 = vmatprep.subr.bf16.mxu0 0
    %7567 = vmatpush2.bf16.msra.mxu0 0
    %7568 = vmatprep.mubr.bf16.mxu0 0
    %7569 = vmatmul.mubr.bf16.gmra.mxu0 %v7464
    %v7570 = vpop.f32.mrf.mxu0
    %v7571 = vadd.f32 %v7486, %v7570
    %v7572 = vpop.f32.mrf.mxu0
    %v7573 = vpop.f32.mrf.mxu0
    %v7574 = vpop.f32.mrf.mxu0
    %7575 = vdwg.mxu0
    %7576 = vmax.xlane.f32.xlu0 %v7571
    %v7577 = vpop.xlane.xlu0 %7576
    %v7578 = vsub.f32 %v7571, %v7577
    %v7579 = vmul.f32 %v7578, 1.442695
    %v7580 = vpow.pop %v7579
    %7581 = vadd.xlane.f32.xlu0 %v7580
    %v7582 = vpop.xlane.xlu0 %7581
    %v7583 = vlog2.pop %v7582
    %v7584 = vmul.f32 %v7583, 0.6931472
    %v7585 = vsub.f32 %v7578, %v7584
    %7586 = vst [vmem:[%s9] sm:$0xff] %v7585
    // Predicated region
    $region70: #{net_forward.1} parent=1 // pred_check
      _
    $region71: #{net_forward.1} parent=1 // pred_check_branch
      %7588 = sbr.rel (0) target = $region73
    $region72: #{net_forward.1} parent=1 // pred_region
      _
    $region73: #{net_forward.1} parent=1 // pred_fallthru
      _
    // Predicated region
    $region74: #{net_forward.1} parent=1 // pred_check
      _
    $region75: #{net_forward.1} parent=1 // pred_check_branch
      %7590 = sbr.rel (0) target = $region77
    $region76: #{net_forward.1} parent=1 // pred_region
      _
    $region77: #{net_forward.1} parent=1 // pred_fallthru
      _
    %7591 = vsyncpa [#allocation3], 1
    %7592 = vsyncpa [#allocation5], 1
    %7593 = vsyncpa [#allocation8], 1
    %7594 = vsyncpa [#allocation11], 1
    %7595 = vsyncpa [#allocation14], 1

</llo_original>
